<compile_context>
chip_gen: v6e
topology: v6e:2x2x1
jax: 0.10.0
libtpu: 0.0.40
codegen_flags: <defaults>
</compile_context>

<pallas_src>
import functools

import numpy as np
import jax
import jax.numpy as jnp
from jax import lax
from jax.experimental import pallas as pl
from jax.experimental.pallas import tpu as pltpu


def _round_up(x, m):
    return (x + m - 1) // m * m


# Tap index k in {0,1,2} of a stride-2 / pad-1 / 3x3 conv -> (input phase, delta):
#   input coord = 2*out + k - 1 = 2*(out + delta) + phase
_TAP_PHASE = ((1, -1), (0, 0), (1, 0))


# ----------------------------------------------------------------------------
# Wrapper-side conv1 im2col, rows pre-ordered in the phase-decomposed padded
# layout consumed by the kernel:
#   row = ((ph*2 + pw)*64 + (a+1)*8 + (b+1))*N + n
# holds the 3x3 input patch feeding conv1 output (h1, w1) = (2a+ph, 2b+pw).
# Rows with a+1 == 0 or b+1 == 0 are conv2's zero padding (the kernel also
# force-masks them to exactly 0 after bias+ReLU).
# TODO(synk): fold this im2col + phase reorder into the kernel (DMA the raw x
# and gather via a 16-phase input layout) to drop the last small wrapper
# fusion and the patches HBM round-trip.
# ----------------------------------------------------------------------------
def _conv1_patches_phase_layout(x):
    N = x.shape[0]
    xp = jnp.pad(x[:, 0], ((0, 0), (1, 1), (1, 1)))             # (N, 30, 30)
    taps = [xp[:, i:i + 28:2, j:j + 28:2]                        # (N, 14, 14)
            for i in range(3) for j in range(3)]
    p = jnp.stack(taps, axis=-1)                                 # (N, 14, 14, 9)
    p = p.reshape(N, 7, 2, 7, 2, 9)                              # h1=2a+ph, w1=2b+pw
    p = p.transpose(2, 4, 1, 3, 0, 5)                            # (ph, pw, a, b, N, 9)
    p = jnp.pad(p, ((0, 0), (0, 0), (1, 0), (1, 0), (0, 0), (0, 0)))
    return p.reshape(4 * 64 * N, 9)                              # (256N, 9)


def _phase_pad_mask(N):
    """(256N, 1) f32 mask: 0 on phase-padding rows (a+1==0 or b+1==0), else 1."""
    idx = np.arange(4 * 64 * N)
    slot = (idx % (64 * N)) // N                                 # (a+1)*8 + (b+1)
    valid = (slot // 8 != 0) & (slot % 8 != 0)
    return jnp.asarray(valid.astype(np.float32)[:, None])


# ----------------------------------------------------------------------------
# Fused kernel: conv1 + ReLU + conv2 + ReLU + conv3, intermediates in VMEM.
# ----------------------------------------------------------------------------
def _encoder_kernel(p1_ref, mask_ref, w1_ref, b1_ref, w2_ref, b2_ref,
                    w3_ref, b3_ref, o_ref, act1_ref, *, n_batch, m1_buf):
    n = n_batch
    m1 = 4 * 64 * n      # conv1 rows in the phase-padded layout
    m2 = 56 * n          # conv2 rows: m = (ho*8 + wo)*n + sample; wo==7 is junk

    # ---- conv1: one (256N,9)@(9,16) matmul + bias + ReLU.  Phase-padding rows
    #      are forced to exactly 0, so conv2's zero padding is exact (the old
    #      "relu(b1) garbage in pad rows" fragility is gone).
    a1 = jnp.dot(p1_ref[...], w1_ref[...], preferred_element_type=jnp.float32)
    a1 = jnp.maximum(a1 + b1_ref[...], 0.0) * mask_ref[...]
    act1_ref[pl.ds(0, m1), :] = a1
    # Zero the small tail so tap slices that overrun into it (only for junk
    # wo==7 output rows) never read uninitialized VMEM.
    act1_ref[pl.ds(m1, m1_buf - m1), :] = jnp.zeros(
        (m1_buf - m1, a1.shape[1]), jnp.float32)

    # ---- conv2: each of the 9 taps is ONE contiguous act1 slice followed by a
    #      small (56N,16)@(16,32) weight matmul; bias is the accumulator init.
    acc2 = jnp.broadcast_to(b2_ref[...], (m2, b2_ref.shape[1]))
    for i in range(3):
        ph, da = _TAP_PHASE[i]
        for j in range(3):
            pw, db = _TAP_PHASE[j]
            start = ((ph * 2 + pw) * 64 + (da + 1) * 8 + (db + 1)) * n
            g = act1_ref[pl.ds(start, m2), :]                    # (56N, 16)
            acc2 = acc2 + jnp.dot(g, w2_ref[i * 3 + j],
                                  preferred_element_type=jnp.float32)
    act2 = jnp.maximum(acc2, 0.0)                                # (56N, 32)

    # ---- conv3 (7x7 kernel == full spatial map): accumulated sum of 49 tiny
    #      (N,32)@(32,64) matmuls over contiguous act2 slices.  Junk wo==7 rows
    #      are never read here: (kh*8 + kw) with kw <= 6 is never 7 (mod 8).
    acc3 = jnp.broadcast_to(b3_ref[...], (n, b3_ref.shape[1]))
    for kh in range(7):
        for kw in range(7):
            r0 = (kh * 8 + kw) * n
            acc3 = acc3 + jnp.dot(act2[r0:r0 + n, :], w3_ref[kh * 7 + kw],
                                  preferred_element_type=jnp.float32)

    np_rows = o_ref.shape[0]
    if np_rows > n:
        acc3 = jnp.concatenate(
            [acc3, jnp.zeros((np_rows - n, acc3.shape[1]), jnp.float32)], axis=0)
    o_ref[...] = acc3


def encoder_forward(x, params):
    """PyTorch-semantics Encoder forward.  x: (N, 1, 28, 28) -> (N, 64, 1, 1)."""
    (w1, b1), (w2, b2), (w3, b3) = params
    N, Cin, H, W = x.shape
    C1, _, k1, _ = w1.shape            # (16, 1, 3, 3)
    C2, _, k2, _ = w2.shape            # (32, 16, 3, 3)
    C3, C3in, k3, _ = w3.shape         # (64, 32, 7, 7)
    assert Cin == 1 and k1 == 3 and k2 == 3 and k3 == 7
    # The in-kernel layout constants (8x8 phase grids, 56-row conv2 blocks)
    # assume the module's native geometry: 28x28 -> 14 -> 7 -> 1.
    assert H == 28 and W == 28, "Encoder geometry must be 28x28 -> 14 -> 7 -> 1"

    patches = _conv1_patches_phase_layout(x)                    # (256N, 9)
    mask = _phase_pad_mask(N)                                    # (256N, 1)

    # Weight/bias layouts consumed by the kernel (from PyTorch OIHW layouts).
    w1r = w1.reshape(C1, k1 * k1).T                              # (9, 16)
    w2r = jnp.transpose(w2, (2, 3, 1, 0)).reshape(k2 * k2, C1, C2)    # (9, 16, 32)
    w3r = jnp.transpose(w3, (2, 3, 1, 0)).reshape(k3 * k3, C3in, C3)  # (49, 32, 64)
    b1r, b2r, b3r = b1.reshape(1, -1), b2.reshape(1, -1), b3.reshape(1, -1)

    m1_buf = _round_up((4 * 64 + 1) * N, 8)   # +N rows: largest tap-slice overrun
    NP = _round_up(N, 8)

    kern = functools.partial(_encoder_kernel, n_batch=N, m1_buf=m1_buf)
    out = pl.pallas_call(
        kern,
        out_shape=jax.ShapeDtypeStruct((NP, C3), jnp.float32),
        in_specs=[pl.BlockSpec(memory_space=pltpu.VMEM)] * 8,
        out_specs=pl.BlockSpec(memory_space=pltpu.VMEM),
        scratch_shapes=[
            pltpu.VMEM((m1_buf, C1), jnp.float32),   # conv1 activation (phase layout)
        ],
        # TODO(synk): for large batch, add a batch-parallel leading grid axis
        # (dimension_semantics=("parallel",)) so v7x's two TensorCores split
        # the work; VMEM use here scales only linearly with N.
    )(patches, mask, w1r, b1r, w2r, b2r, w3r, b3r)

    return out[:N].reshape(N, C3, 1, 1)


# ----------------------------------------------------------------------------
# Deterministic param init matching the PyTorch layer shapes.
# ----------------------------------------------------------------------------
def init_params(key):
    shapes = [
        ((16, 1, 3, 3), (16,)),
        ((32, 16, 3, 3), (32,)),
        ((64, 32, 7, 7), (64,)),
    ]
    params = []
    for wshape, bshape in shapes:
        key, kw, kb = jax.random.split(key, 3)
        fan_in = wshape[1] * wshape[2] * wshape[3]
        bound = 1.0 / float(np.sqrt(fan_in))
        w = jax.random.uniform(kw, wshape, jnp.float32, -bound, bound)
        b = jax.random.uniform(kb, bshape, jnp.float32, -bound, bound)
        params.append((w, b))
    return params


# ----------------------------------------------------------------------------
# Pure-JAX reference (for correctness check only).
# ----------------------------------------------------------------------------
def _ref_conv(x, w, b, stride, pad):
    y = lax.conv_general_dilated(
        x, w, window_strides=(stride, stride),
        padding=((pad, pad), (pad, pad)),
        dimension_numbers=("NCHW", "OIHW", "NCHW"),
    )
    return y + b.reshape(1, -1, 1, 1)


def _ref_forward(x, params):
    (w1, b1), (w2, b2), (w3, b3) = params
    x = jax.nn.relu(_ref_conv(x, w1, b1, 2, 1))
    x = jax.nn.relu(_ref_conv(x, w2, b2, 2, 1))
    return _ref_conv(x, w3, b3, 1, 0)


if __name__ == "__main__":
    key = jax.random.PRNGKey(0)
    key, kx = jax.random.split(key)
    # Input consistent with the module's architecture (28x28 -> 14 -> 7 -> 1).
    x = jax.random.normal(kx, (2, 1, 28, 28), dtype=jnp.float32)
    params = init_params(key)

    fwd = jax.jit(encoder_forward)
    out = jax.block_until_ready(fwd(x, params))
    assert out.shape == (2, 64, 1, 1), out.shape

    ref = jax.block_until_ready(_ref_forward(x, params))
    assert jnp.allclose(out, ref, atol=1e-3, rtol=1e-3), (
        float(jnp.max(jnp.abs(out - ref)))
    )

    print("KERNEL_OK")
</pallas_src>

<mosaic_0001>
module attributes {stable_mosaic.version = 11 : i64} {
  func.func @_encoder_kernel(%arg0: memref<512x9xf32, #tpu.memory_space<vmem>>, %arg1: memref<512x1xf32, #tpu.memory_space<vmem>>, %arg2: memref<9x16xf32, #tpu.memory_space<vmem>>, %arg3: memref<1x16xf32, #tpu.memory_space<vmem>>, %arg4: memref<9x16x32xf32, #tpu.memory_space<vmem>>, %arg5: memref<1x32xf32, #tpu.memory_space<vmem>>, %arg6: memref<49x32x64xf32, #tpu.memory_space<vmem>>, %arg7: memref<1x64xf32, #tpu.memory_space<vmem>>, %arg8: memref<8x64xf32, #tpu.memory_space<vmem>>, %arg9: memref<520x16xf32, #tpu.memory_space<vmem>>) attributes {dimension_semantics = [], scalar_prefetch = 0 : i64, scratch_operands = 1 : i64, tpu.core_type = #tpu.core_type<tc>} {
    %c0 = arith.constant 0 : index
    %c0_0 = arith.constant 0 : index
    %0 = vector.load %arg0[%c0, %c0_0] : memref<512x9xf32, #tpu.memory_space<vmem>>, vector<512x9xf32>
    %c0_1 = arith.constant 0 : index
    %c0_2 = arith.constant 0 : index
    %1 = vector.load %arg2[%c0_1, %c0_2] : memref<9x16xf32, #tpu.memory_space<vmem>>, vector<9x16xf32>
    %cst = arith.constant dense<0.000000e+00> : vector<512x16xf32>
    %2 = tpu.matmul %0, %1, %cst {dimension_numbers = #tpu.dot_dimension_numbers<[1], [0], [0], [1], [0, 0, 1, 1], [], []>} : vector<512x9xf32>, vector<9x16xf32>, vector<512x16xf32> -> vector<512x16xf32>
    %c0_3 = arith.constant 0 : index
    %c0_4 = arith.constant 0 : index
    %3 = vector.load %arg3[%c0_3, %c0_4] : memref<1x16xf32, #tpu.memory_space<vmem>>, vector<1x16xf32>
    %4 = vector.broadcast %3 : vector<1x16xf32> to vector<512x16xf32>
    %5 = arith.addf %2, %4 : vector<512x16xf32>
    %cst_5 = arith.constant 0.000000e+00 : f32
    %6 = vector.broadcast %cst_5 : f32 to vector<512x16xf32>
    %7 = arith.maximumf %5, %6 : vector<512x16xf32>
    %c0_6 = arith.constant 0 : index
    %c0_7 = arith.constant 0 : index
    %8 = vector.load %arg1[%c0_6, %c0_7] : memref<512x1xf32, #tpu.memory_space<vmem>>, vector<512x1xf32>
    %9 = vector.broadcast %8 : vector<512x1xf32> to vector<512x16xf32>
    %10 = arith.mulf %7, %9 : vector<512x16xf32>
    %c0_8 = arith.constant 0 : index
    %c0_9 = arith.constant 0 : index
    %11 = vector.load %arg9[%c0_8, %c0_9] : memref<520x16xf32, #tpu.memory_space<vmem>>, vector<512x16xf32>
    tpu.vector_store %arg9[%c0_8, %c0_9], %10 {strides = array<i32>} : memref<520x16xf32, #tpu.memory_space<vmem>>, vector<512x16xf32>,
    %cst_10 = arith.constant 0.000000e+00 : f32
    %12 = vector.broadcast %cst_10 : f32 to vector<8x16xf32>
    %c512 = arith.constant 512 : index
    %c0_11 = arith.constant 0 : index
    %13 = vector.load %arg9[%c512, %c0_11] : memref<520x16xf32, #tpu.memory_space<vmem>>, vector<8x16xf32>
    tpu.vector_store %arg9[%c512, %c0_11], %12 {strides = array<i32>} : memref<520x16xf32, #tpu.memory_space<vmem>>, vector<8x16xf32>,
    %c0_12 = arith.constant 0 : index
    %c0_13 = arith.constant 0 : index
    %14 = vector.load %arg5[%c0_12, %c0_13] : memref<1x32xf32, #tpu.memory_space<vmem>>, vector<1x32xf32>
    %15 = vector.shape_cast %14 : vector<1x32xf32> to vector<1x32xf32>
    %16 = vector.broadcast %15 : vector<1x32xf32> to vector<112x32xf32>
    %c384 = arith.constant 384 : index
    %c0_14 = arith.constant 0 : index
    %17 = vector.load %arg9[%c384, %c0_14] : memref<520x16xf32, #tpu.memory_space<vmem>>, vector<112x16xf32>
    %c0_15 = arith.constant 0 : index
    %c0_16 = arith.constant 0 : index
    %c0_17 = arith.constant 0 : index
    %18 = vector.load %arg4[%c0_15, %c0_16, %c0_17] : memref<9x16x32xf32, #tpu.memory_space<vmem>>, vector<1x16x32xf32>
    %19 = vector.shape_cast %18 : vector<1x16x32xf32> to vector<16x32xf32>
    %cst_18 = arith.constant dense<0.000000e+00> : vector<112x32xf32>
    %20 = tpu.matmul %17, %19, %cst_18 {dimension_numbers = #tpu.dot_dimension_numbers<[1], [0], [0], [1], [0, 0, 1, 1], [], []>} : vector<112x16xf32>, vector<16x32xf32>, vector<112x32xf32> -> vector<112x32xf32>
    %21 = arith.addf %16, %20 : vector<112x32xf32>
    %c258 = arith.constant 258 : index
    %c0_19 = arith.constant 0 : index
    %22 = vector.load %arg9[%c258, %c0_19] : memref<520x16xf32, #tpu.memory_space<vmem>>, vector<112x16xf32>
    %c1 = arith.constant 1 : index
    %c0_20 = arith.constant 0 : index
    %c0_21 = arith.constant 0 : index
    %23 = vector.load %arg4[%c1, %c0_20, %c0_21] : memref<9x16x32xf32, #tpu.memory_space<vmem>>, vector<1x16x32xf32>
    %24 = vector.shape_cast %23 : vector<1x16x32xf32> to vector<16x32xf32>
    %cst_22 = arith.constant dense<0.000000e+00> : vector<112x32xf32>
    %25 = tpu.matmul %22, %24, %cst_22 {dimension_numbers = #tpu.dot_dimension_numbers<[1], [0], [0], [1], [0, 0, 1, 1], [], []>} : vector<112x16xf32>, vector<16x32xf32>, vector<112x32xf32> -> vector<112x32xf32>
    %26 = arith.addf %21, %25 : vector<112x32xf32>
    %c386 = arith.constant 386 : index
    %c0_23 = arith.constant 0 : index
    %27 = vector.load %arg9[%c386, %c0_23] : memref<520x16xf32, #tpu.memory_space<vmem>>, vector<112x16xf32>
    %c2 = arith.constant 2 : index
    %c0_24 = arith.constant 0 : index
    %c0_25 = arith.constant 0 : index
    %28 = vector.load %arg4[%c2, %c0_24, %c0_25] : memref<9x16x32xf32, #tpu.memory_space<vmem>>, vector<1x16x32xf32>
    %29 = vector.shape_cast %28 : vector<1x16x32xf32> to vector<16x32xf32>
    %cst_26 = arith.constant dense<0.000000e+00> : vector<112x32xf32>
    %30 = tpu.matmul %27, %29, %cst_26 {dimension_numbers = #tpu.dot_dimension_numbers<[1], [0], [0], [1], [0, 0, 1, 1], [], []>} : vector<112x16xf32>, vector<16x32xf32>, vector<112x32xf32> -> vector<112x32xf32>
    %31 = arith.addf %26, %30 : vector<112x32xf32>
    %c144 = arith.constant 144 : index
    %c0_27 = arith.constant 0 : index
    %32 = vector.load %arg9[%c144, %c0_27] : memref<520x16xf32, #tpu.memory_space<vmem>>, vector<112x16xf32>
    %c3 = arith.constant 3 : index
    %c0_28 = arith.constant 0 : index
    %c0_29 = arith.constant 0 : index
    %33 = vector.load %arg4[%c3, %c0_28, %c0_29] : memref<9x16x32xf32, #tpu.memory_space<vmem>>, vector<1x16x32xf32>
    %34 = vector.shape_cast %33 : vector<1x16x32xf32> to vector<16x32xf32>
    %cst_30 = arith.constant dense<0.000000e+00> : vector<112x32xf32>
    %35 = tpu.matmul %32, %34, %cst_30 {dimension_numbers = #tpu.dot_dimension_numbers<[1], [0], [0], [1], [0, 0, 1, 1], [], []>} : vector<112x16xf32>, vector<16x32xf32>, vector<112x32xf32> -> vector<112x32xf32>
    %36 = arith.addf %31, %35 : vector<112x32xf32>
    %c18 = arith.constant 18 : index
    %c0_31 = arith.constant 0 : index
    %37 = vector.load %arg9[%c18, %c0_31] : memref<520x16xf32, #tpu.memory_space<vmem>>, vector<112x16xf32>
    %c4 = arith.constant 4 : index
    %c0_32 = arith.constant 0 : index
    %c0_33 = arith.constant 0 : index
    %38 = vector.load %arg4[%c4, %c0_32, %c0_33] : memref<9x16x32xf32, #tpu.memory_space<vmem>>, vector<1x16x32xf32>
    %39 = vector.shape_cast %38 : vector<1x16x32xf32> to vector<16x32xf32>
    %cst_34 = arith.constant dense<0.000000e+00> : vector<112x32xf32>
    %40 = tpu.matmul %37, %39, %cst_34 {dimension_numbers = #tpu.dot_dimension_numbers<[1], [0], [0], [1], [0, 0, 1, 1], [], []>} : vector<112x16xf32>, vector<16x32xf32>, vector<112x32xf32> -> vector<112x32xf32>
    %41 = arith.addf %36, %40 : vector<112x32xf32>
    %c146 = arith.constant 146 : index
    %c0_35 = arith.constant 0 : index
    %42 = vector.load %arg9[%c146, %c0_35] : memref<520x16xf32, #tpu.memory_space<vmem>>, vector<112x16xf32>
    %c5 = arith.constant 5 : index
    %c0_36 = arith.constant 0 : index
    %c0_37 = arith.constant 0 : index
    %43 = vector.load %arg4[%c5, %c0_36, %c0_37] : memref<9x16x32xf32, #tpu.memory_space<vmem>>, vector<1x16x32xf32>
    %44 = vector.shape_cast %43 : vector<1x16x32xf32> to vector<16x32xf32>
    %cst_38 = arith.constant dense<0.000000e+00> : vector<112x32xf32>
    %45 = tpu.matmul %42, %44, %cst_38 {dimension_numbers = #tpu.dot_dimension_numbers<[1], [0], [0], [1], [0, 0, 1, 1], [], []>} : vector<112x16xf32>, vector<16x32xf32>, vector<112x32xf32> -> vector<112x32xf32>
    %46 = arith.addf %41, %45 : vector<112x32xf32>
    %c400 = arith.constant 400 : index
    %c0_39 = arith.constant 0 : index
    %47 = vector.load %arg9[%c400, %c0_39] : memref<520x16xf32, #tpu.memory_space<vmem>>, vector<112x16xf32>
    %c6 = arith.constant 6 : index
    %c0_40 = arith.constant 0 : index
    %c0_41 = arith.constant 0 : index
    %48 = vector.load %arg4[%c6, %c0_40, %c0_41] : memref<9x16x32xf32, #tpu.memory_space<vmem>>, vector<1x16x32xf32>
    %49 = vector.shape_cast %48 : vector<1x16x32xf32> to vector<16x32xf32>
    %cst_42 = arith.constant dense<0.000000e+00> : vector<112x32xf32>
    %50 = tpu.matmul %47, %49, %cst_42 {dimension_numbers = #tpu.dot_dimension_numbers<[1], [0], [0], [1], [0, 0, 1, 1], [], []>} : vector<112x16xf32>, vector<16x32xf32>, vector<112x32xf32> -> vector<112x32xf32>
    %51 = arith.addf %46, %50 : vector<112x32xf32>
    %c274 = arith.constant 274 : index
    %c0_43 = arith.constant 0 : index
    %52 = vector.load %arg9[%c274, %c0_43] : memref<520x16xf32, #tpu.memory_space<vmem>>, vector<112x16xf32>
    %c7 = arith.constant 7 : index
    %c0_44 = arith.constant 0 : index
    %c0_45 = arith.constant 0 : index
    %53 = vector.load %arg4[%c7, %c0_44, %c0_45] : memref<9x16x32xf32, #tpu.memory_space<vmem>>, vector<1x16x32xf32>
    %54 = vector.shape_cast %53 : vector<1x16x32xf32> to vector<16x32xf32>
    %cst_46 = arith.constant dense<0.000000e+00> : vector<112x32xf32>
    %55 = tpu.matmul %52, %54, %cst_46 {dimension_numbers = #tpu.dot_dimension_numbers<[1], [0], [0], [1], [0, 0, 1, 1], [], []>} : vector<112x16xf32>, vector<16x32xf32>, vector<112x32xf32> -> vector<112x32xf32>
    %56 = arith.addf %51, %55 : vector<112x32xf32>
    %c402 = arith.constant 402 : index
    %c0_47 = arith.constant 0 : index
    %57 = vector.load %arg9[%c402, %c0_47] : memref<520x16xf32, #tpu.memory_space<vmem>>, vector<112x16xf32>
    %c8 = arith.constant 8 : index
    %c0_48 = arith.constant 0 : index
    %c0_49 = arith.constant 0 : index
    %58 = vector.load %arg4[%c8, %c0_48, %c0_49] : memref<9x16x32xf32, #tpu.memory_space<vmem>>, vector<1x16x32xf32>
    %59 = vector.shape_cast %58 : vector<1x16x32xf32> to vector<16x32xf32>
    %cst_50 = arith.constant dense<0.000000e+00> : vector<112x32xf32>
    %60 = tpu.matmul %57, %59, %cst_50 {dimension_numbers = #tpu.dot_dimension_numbers<[1], [0], [0], [1], [0, 0, 1, 1], [], []>} : vector<112x16xf32>, vector<16x32xf32>, vector<112x32xf32> -> vector<112x32xf32>
    %61 = arith.addf %56, %60 : vector<112x32xf32>
    %cst_51 = arith.constant 0.000000e+00 : f32
    %62 = vector.broadcast %cst_51 : f32 to vector<112x32xf32>
    %63 = arith.maximumf %61, %62 : vector<112x32xf32>
    %c0_52 = arith.constant 0 : index
    %c0_53 = arith.constant 0 : index
    %64 = vector.load %arg7[%c0_52, %c0_53] : memref<1x64xf32, #tpu.memory_space<vmem>>, vector<1x64xf32>
    %65 = vector.shape_cast %64 : vector<1x64xf32> to vector<1x64xf32>
    %66 = vector.broadcast %65 : vector<1x64xf32> to vector<2x64xf32>
    %67 = vector.extract_strided_slice %63 {offsets = [0, 0], sizes = [2, 32], strides = [1, 1]} : vector<112x32xf32> to vector<2x32xf32>
    %c0_54 = arith.constant 0 : index
    %c0_55 = arith.constant 0 : index
    %c0_56 = arith.constant 0 : index
    %68 = vector.load %arg6[%c0_54, %c0_55, %c0_56] : memref<49x32x64xf32, #tpu.memory_space<vmem>>, vector<1x32x64xf32>
    %69 = vector.shape_cast %68 : vector<1x32x64xf32> to vector<32x64xf32>
    %cst_57 = arith.constant dense<0.000000e+00> : vector<2x64xf32>
    %70 = tpu.matmul %67, %69, %cst_57 {dimension_numbers = #tpu.dot_dimension_numbers<[1], [0], [0], [1], [0, 0, 1, 1], [], []>} : vector<2x32xf32>, vector<32x64xf32>, vector<2x64xf32> -> vector<2x64xf32>
    %71 = arith.addf %66, %70 : vector<2x64xf32>
    %72 = vector.extract_strided_slice %63 {offsets = [2, 0], sizes = [2, 32], strides = [1, 1]} : vector<112x32xf32> to vector<2x32xf32>
    %c1_58 = arith.constant 1 : index
    %c0_59 = arith.constant 0 : index
    %c0_60 = arith.constant 0 : index
    %73 = vector.load %arg6[%c1_58, %c0_59, %c0_60] : memref<49x32x64xf32, #tpu.memory_space<vmem>>, vector<1x32x64xf32>
    %74 = vector.shape_cast %73 : vector<1x32x64xf32> to vector<32x64xf32>
    %cst_61 = arith.constant dense<0.000000e+00> : vector<2x64xf32>
    %75 = tpu.matmul %72, %74, %cst_61 {dimension_numbers = #tpu.dot_dimension_numbers<[1], [0], [0], [1], [0, 0, 1, 1], [], []>} : vector<2x32xf32>, vector<32x64xf32>, vector<2x64xf32> -> vector<2x64xf32>
    %76 = arith.addf %71, %75 : vector<2x64xf32>
    %77 = vector.extract_strided_slice %63 {offsets = [4, 0], sizes = [2, 32], strides = [1, 1]} : vector<112x32xf32> to vector<2x32xf32>
    %c2_62 = arith.constant 2 : index
    %c0_63 = arith.constant 0 : index
    %c0_64 = arith.constant 0 : index
    %78 = vector.load %arg6[%c2_62, %c0_63, %c0_64] : memref<49x32x64xf32, #tpu.memory_space<vmem>>, vector<1x32x64xf32>
    %79 = vector.shape_cast %78 : vector<1x32x64xf32> to vector<32x64xf32>
    %cst_65 = arith.constant dense<0.000000e+00> : vector<2x64xf32>
    %80 = tpu.matmul %77, %79, %cst_65 {dimension_numbers = #tpu.dot_dimension_numbers<[1], [0], [0], [1], [0, 0, 1, 1], [], []>} : vector<2x32xf32>, vector<32x64xf32>, vector<2x64xf32> -> vector<2x64xf32>
    %81 = arith.addf %76, %80 : vector<2x64xf32>
    %82 = vector.extract_strided_slice %63 {offsets = [6, 0], sizes = [2, 32], strides = [1, 1]} : vector<112x32xf32> to vector<2x32xf32>
    %c3_66 = arith.constant 3 : index
    %c0_67 = arith.constant 0 : index
    %c0_68 = arith.constant 0 : index
    %83 = vector.load %arg6[%c3_66, %c0_67, %c0_68] : memref<49x32x64xf32, #tpu.memory_space<vmem>>, vector<1x32x64xf32>
    %84 = vector.shape_cast %83 : vector<1x32x64xf32> to vector<32x64xf32>
    %cst_69 = arith.constant dense<0.000000e+00> : vector<2x64xf32>
    %85 = tpu.matmul %82, %84, %cst_69 {dimension_numbers = #tpu.dot_dimension_numbers<[1], [0], [0], [1], [0, 0, 1, 1], [], []>} : vector<2x32xf32>, vector<32x64xf32>, vector<2x64xf32> -> vector<2x64xf32>
    %86 = arith.addf %81, %85 : vector<2x64xf32>
    %87 = vector.extract_strided_slice %63 {offsets = [8, 0], sizes = [2, 32], strides = [1, 1]} : vector<112x32xf32> to vector<2x32xf32>
    %c4_70 = arith.constant 4 : index
    %c0_71 = arith.constant 0 : index
    %c0_72 = arith.constant 0 : index
    %88 = vector.load %arg6[%c4_70, %c0_71, %c0_72] : memref<49x32x64xf32, #tpu.memory_space<vmem>>, vector<1x32x64xf32>
    %89 = vector.shape_cast %88 : vector<1x32x64xf32> to vector<32x64xf32>
    %cst_73 = arith.constant dense<0.000000e+00> : vector<2x64xf32>
    %90 = tpu.matmul %87, %89, %cst_73 {dimension_numbers = #tpu.dot_dimension_numbers<[1], [0], [0], [1], [0, 0, 1, 1], [], []>} : vector<2x32xf32>, vector<32x64xf32>, vector<2x64xf32> -> vector<2x64xf32>
    %91 = arith.addf %86, %90 : vector<2x64xf32>
    %92 = vector.extract_strided_slice %63 {offsets = [10, 0], sizes = [2, 32], strides = [1, 1]} : vector<112x32xf32> to vector<2x32xf32>
    %c5_74 = arith.constant 5 : index
    %c0_75 = arith.constant 0 : index
    %c0_76 = arith.constant 0 : index
    %93 = vector.load %arg6[%c5_74, %c0_75, %c0_76] : memref<49x32x64xf32, #tpu.memory_space<vmem>>, vector<1x32x64xf32>
    %94 = vector.shape_cast %93 : vector<1x32x64xf32> to vector<32x64xf32>
    %cst_77 = arith.constant dense<0.000000e+00> : vector<2x64xf32>
    %95 = tpu.matmul %92, %94, %cst_77 {dimension_numbers = #tpu.dot_dimension_numbers<[1], [0], [0], [1], [0, 0, 1, 1], [], []>} : vector<2x32xf32>, vector<32x64xf32>, vector<2x64xf32> -> vector<2x64xf32>
    %96 = arith.addf %91, %95 : vector<2x64xf32>
    %97 = vector.extract_strided_slice %63 {offsets = [12, 0], sizes = [2, 32], strides = [1, 1]} : vector<112x32xf32> to vector<2x32xf32>
    %c6_78 = arith.constant 6 : index
    %c0_79 = arith.constant 0 : index
    %c0_80 = arith.constant 0 : index
    %98 = vector.load %arg6[%c6_78, %c0_79, %c0_80] : memref<49x32x64xf32, #tpu.memory_space<vmem>>, vector<1x32x64xf32>
    %99 = vector.shape_cast %98 : vector<1x32x64xf32> to vector<32x64xf32>
    %cst_81 = arith.constant dense<0.000000e+00> : vector<2x64xf32>
    %100 = tpu.matmul %97, %99, %cst_81 {dimension_numbers = #tpu.dot_dimension_numbers<[1], [0], [0], [1], [0, 0, 1, 1], [], []>} : vector<2x32xf32>, vector<32x64xf32>, vector<2x64xf32> -> vector<2x64xf32>
    %101 = arith.addf %96, %100 : vector<2x64xf32>
    %102 = vector.extract_strided_slice %63 {offsets = [16, 0], sizes = [2, 32], strides = [1, 1]} : vector<112x32xf32> to vector<2x32xf32>
    %c7_82 = arith.constant 7 : index
    %c0_83 = arith.constant 0 : index
    %c0_84 = arith.constant 0 : index
    %103 = vector.load %arg6[%c7_82, %c0_83, %c0_84] : memref<49x32x64xf32, #tpu.memory_space<vmem>>, vector<1x32x64xf32>
    %104 = vector.shape_cast %103 : vector<1x32x64xf32> to vector<32x64xf32>
    %cst_85 = arith.constant dense<0.000000e+00> : vector<2x64xf32>
    %105 = tpu.matmul %102, %104, %cst_85 {dimension_numbers = #tpu.dot_dimension_numbers<[1], [0], [0], [1], [0, 0, 1, 1], [], []>} : vector<2x32xf32>, vector<32x64xf32>, vector<2x64xf32> -> vector<2x64xf32>
    %106 = arith.addf %101, %105 : vector<2x64xf32>
    %107 = vector.extract_strided_slice %63 {offsets = [18, 0], sizes = [2, 32], strides = [1, 1]} : vector<112x32xf32> to vector<2x32xf32>
    %c8_86 = arith.constant 8 : index
    %c0_87 = arith.constant 0 : index
    %c0_88 = arith.constant 0 : index
    %108 = vector.load %arg6[%c8_86, %c0_87, %c0_88] : memref<49x32x64xf32, #tpu.memory_space<vmem>>, vector<1x32x64xf32>
    %109 = vector.shape_cast %108 : vector<1x32x64xf32> to vector<32x64xf32>
    %cst_89 = arith.constant dense<0.000000e+00> : vector<2x64xf32>
    %110 = tpu.matmul %107, %109, %cst_89 {dimension_numbers = #tpu.dot_dimension_numbers<[1], [0], [0], [1], [0, 0, 1, 1], [], []>} : vector<2x32xf32>, vector<32x64xf32>, vector<2x64xf32> -> vector<2x64xf32>
    %111 = arith.addf %106, %110 : vector<2x64xf32>
    %112 = vector.extract_strided_slice %63 {offsets = [20, 0], sizes = [2, 32], strides = [1, 1]} : vector<112x32xf32> to vector<2x32xf32>
    %c9 = arith.constant 9 : index
    %c0_90 = arith.constant 0 : index
    %c0_91 = arith.constant 0 : index
    %113 = vector.load %arg6[%c9, %c0_90, %c0_91] : memref<49x32x64xf32, #tpu.memory_space<vmem>>, vector<1x32x64xf32>
    %114 = vector.shape_cast %113 : vector<1x32x64xf32> to vector<32x64xf32>
    %cst_92 = arith.constant dense<0.000000e+00> : vector<2x64xf32>
    %115 = tpu.matmul %112, %114, %cst_92 {dimension_numbers = #tpu.dot_dimension_numbers<[1], [0], [0], [1], [0, 0, 1, 1], [], []>} : vector<2x32xf32>, vector<32x64xf32>, vector<2x64xf32> -> vector<2x64xf32>
    %116 = arith.addf %111, %115 : vector<2x64xf32>
    %117 = vector.extract_strided_slice %63 {offsets = [22, 0], sizes = [2, 32], strides = [1, 1]} : vector<112x32xf32> to vector<2x32xf32>
    %c10 = arith.constant 10 : index
    %c0_93 = arith.constant 0 : index
    %c0_94 = arith.constant 0 : index
    %118 = vector.load %arg6[%c10, %c0_93, %c0_94] : memref<49x32x64xf32, #tpu.memory_space<vmem>>, vector<1x32x64xf32>
    %119 = vector.shape_cast %118 : vector<1x32x64xf32> to vector<32x64xf32>
    %cst_95 = arith.constant dense<0.000000e+00> : vector<2x64xf32>
    %120 = tpu.matmul %117, %119, %cst_95 {dimension_numbers = #tpu.dot_dimension_numbers<[1], [0], [0], [1], [0, 0, 1, 1], [], []>} : vector<2x32xf32>, vector<32x64xf32>, vector<2x64xf32> -> vector<2x64xf32>
    %121 = arith.addf %116, %120 : vector<2x64xf32>
    %122 = vector.extract_strided_slice %63 {offsets = [24, 0], sizes = [2, 32], strides = [1, 1]} : vector<112x32xf32> to vector<2x32xf32>
    %c11 = arith.constant 11 : index
    %c0_96 = arith.constant 0 : index
    %c0_97 = arith.constant 0 : index
    %123 = vector.load %arg6[%c11, %c0_96, %c0_97] : memref<49x32x64xf32, #tpu.memory_space<vmem>>, vector<1x32x64xf32>
    %124 = vector.shape_cast %123 : vector<1x32x64xf32> to vector<32x64xf32>
    %cst_98 = arith.constant dense<0.000000e+00> : vector<2x64xf32>
    %125 = tpu.matmul %122, %124, %cst_98 {dimension_numbers = #tpu.dot_dimension_numbers<[1], [0], [0], [1], [0, 0, 1, 1], [], []>} : vector<2x32xf32>, vector<32x64xf32>, vector<2x64xf32> -> vector<2x64xf32>
    %126 = arith.addf %121, %125 : vector<2x64xf32>
    %127 = vector.extract_strided_slice %63 {offsets = [26, 0], sizes = [2, 32], strides = [1, 1]} : vector<112x32xf32> to vector<2x32xf32>
    %c12 = arith.constant 12 : index
    %c0_99 = arith.constant 0 : index
    %c0_100 = arith.constant 0 : index
    %128 = vector.load %arg6[%c12, %c0_99, %c0_100] : memref<49x32x64xf32, #tpu.memory_space<vmem>>, vector<1x32x64xf32>
    %129 = vector.shape_cast %128 : vector<1x32x64xf32> to vector<32x64xf32>
    %cst_101 = arith.constant dense<0.000000e+00> : vector<2x64xf32>
    %130 = tpu.matmul %127, %129, %cst_101 {dimension_numbers = #tpu.dot_dimension_numbers<[1], [0], [0], [1], [0, 0, 1, 1], [], []>} : vector<2x32xf32>, vector<32x64xf32>, vector<2x64xf32> -> vector<2x64xf32>
    %131 = arith.addf %126, %130 : vector<2x64xf32>
    %132 = vector.extract_strided_slice %63 {offsets = [28, 0], sizes = [2, 32], strides = [1, 1]} : vector<112x32xf32> to vector<2x32xf32>
    %c13 = arith.constant 13 : index
    %c0_102 = arith.constant 0 : index
    %c0_103 = arith.constant 0 : index
    %133 = vector.load %arg6[%c13, %c0_102, %c0_103] : memref<49x32x64xf32, #tpu.memory_space<vmem>>, vector<1x32x64xf32>
    %134 = vector.shape_cast %133 : vector<1x32x64xf32> to vector<32x64xf32>
    %cst_104 = arith.constant dense<0.000000e+00> : vector<2x64xf32>
    %135 = tpu.matmul %132, %134, %cst_104 {dimension_numbers = #tpu.dot_dimension_numbers<[1], [0], [0], [1], [0, 0, 1, 1], [], []>} : vector<2x32xf32>, vector<32x64xf32>, vector<2x64xf32> -> vector<2x64xf32>
    %136 = arith.addf %131, %135 : vector<2x64xf32>
    %137 = vector.extract_strided_slice %63 {offsets = [32, 0], sizes = [2, 32], strides = [1, 1]} : vector<112x32xf32> to vector<2x32xf32>
    %c14 = arith.constant 14 : index
    %c0_105 = arith.constant 0 : index
    %c0_106 = arith.constant 0 : index
    %138 = vector.load %arg6[%c14, %c0_105, %c0_106] : memref<49x32x64xf32, #tpu.memory_space<vmem>>, vector<1x32x64xf32>
    %139 = vector.shape_cast %138 : vector<1x32x64xf32> to vector<32x64xf32>
    %cst_107 = arith.constant dense<0.000000e+00> : vector<2x64xf32>
    %140 = tpu.matmul %137, %139, %cst_107 {dimension_numbers = #tpu.dot_dimension_numbers<[1], [0], [0], [1], [0, 0, 1, 1], [], []>} : vector<2x32xf32>, vector<32x64xf32>, vector<2x64xf32> -> vector<2x64xf32>
    %141 = arith.addf %136, %140 : vector<2x64xf32>
    %142 = vector.extract_strided_slice %63 {offsets = [34, 0], sizes = [2, 32], strides = [1, 1]} : vector<112x32xf32> to vector<2x32xf32>
    %c15 = arith.constant 15 : index
    %c0_108 = arith.constant 0 : index
    %c0_109 = arith.constant 0 : index
    %143 = vector.load %arg6[%c15, %c0_108, %c0_109] : memref<49x32x64xf32, #tpu.memory_space<vmem>>, vector<1x32x64xf32>
    %144 = vector.shape_cast %143 : vector<1x32x64xf32> to vector<32x64xf32>
    %cst_110 = arith.constant dense<0.000000e+00> : vector<2x64xf32>
    %145 = tpu.matmul %142, %144, %cst_110 {dimension_numbers = #tpu.dot_dimension_numbers<[1], [0], [0], [1], [0, 0, 1, 1], [], []>} : vector<2x32xf32>, vector<32x64xf32>, vector<2x64xf32> -> vector<2x64xf32>
    %146 = arith.addf %141, %145 : vector<2x64xf32>
    %147 = vector.extract_strided_slice %63 {offsets = [36, 0], sizes = [2, 32], strides = [1, 1]} : vector<112x32xf32> to vector<2x32xf32>
    %c16 = arith.constant 16 : index
    %c0_111 = arith.constant 0 : index
    %c0_112 = arith.constant 0 : index
    %148 = vector.load %arg6[%c16, %c0_111, %c0_112] : memref<49x32x64xf32, #tpu.memory_space<vmem>>, vector<1x32x64xf32>
    %149 = vector.shape_cast %148 : vector<1x32x64xf32> to vector<32x64xf32>
    %cst_113 = arith.constant dense<0.000000e+00> : vector<2x64xf32>
    %150 = tpu.matmul %147, %149, %cst_113 {dimension_numbers = #tpu.dot_dimension_numbers<[1], [0], [0], [1], [0, 0, 1, 1], [], []>} : vector<2x32xf32>, vector<32x64xf32>, vector<2x64xf32> -> vector<2x64xf32>
    %151 = arith.addf %146, %150 : vector<2x64xf32>
    %152 = vector.extract_strided_slice %63 {offsets = [38, 0], sizes = [2, 32], strides = [1, 1]} : vector<112x32xf32> to vector<2x32xf32>
    %c17 = arith.constant 17 : index
    %c0_114 = arith.constant 0 : index
    %c0_115 = arith.constant 0 : index
    %153 = vector.load %arg6[%c17, %c0_114, %c0_115] : memref<49x32x64xf32, #tpu.memory_space<vmem>>, vector<1x32x64xf32>
    %154 = vector.shape_cast %153 : vector<1x32x64xf32> to vector<32x64xf32>
    %cst_116 = arith.constant dense<0.000000e+00> : vector<2x64xf32>
    %155 = tpu.matmul %152, %154, %cst_116 {dimension_numbers = #tpu.dot_dimension_numbers<[1], [0], [0], [1], [0, 0, 1, 1], [], []>} : vector<2x32xf32>, vector<32x64xf32>, vector<2x64xf32> -> vector<2x64xf32>
    %156 = arith.addf %151, %155 : vector<2x64xf32>
    %157 = vector.extract_strided_slice %63 {offsets = [40, 0], sizes = [2, 32], strides = [1, 1]} : vector<112x32xf32> to vector<2x32xf32>
    %c18_117 = arith.constant 18 : index
    %c0_118 = arith.constant 0 : index
    %c0_119 = arith.constant 0 : index
    %158 = vector.load %arg6[%c18_117, %c0_118, %c0_119] : memref<49x32x64xf32, #tpu.memory_space<vmem>>, vector<1x32x64xf32>
    %159 = vector.shape_cast %158 : vector<1x32x64xf32> to vector<32x64xf32>
    %cst_120 = arith.constant dense<0.000000e+00> : vector<2x64xf32>
    %160 = tpu.matmul %157, %159, %cst_120 {dimension_numbers = #tpu.dot_dimension_numbers<[1], [0], [0], [1], [0, 0, 1, 1], [], []>} : vector<2x32xf32>, vector<32x64xf32>, vector<2x64xf32> -> vector<2x64xf32>
    %161 = arith.addf %156, %160 : vector<2x64xf32>
    %162 = vector.extract_strided_slice %63 {offsets = [42, 0], sizes = [2, 32], strides = [1, 1]} : vector<112x32xf32> to vector<2x32xf32>
    %c19 = arith.constant 19 : index
    %c0_121 = arith.constant 0 : index
    %c0_122 = arith.constant 0 : index
    %163 = vector.load %arg6[%c19, %c0_121, %c0_122] : memref<49x32x64xf32, #tpu.memory_space<vmem>>, vector<1x32x64xf32>
    %164 = vector.shape_cast %163 : vector<1x32x64xf32> to vector<32x64xf32>
    %cst_123 = arith.constant dense<0.000000e+00> : vector<2x64xf32>
    %165 = tpu.matmul %162, %164, %cst_123 {dimension_numbers = #tpu.dot_dimension_numbers<[1], [0], [0], [1], [0, 0, 1, 1], [], []>} : vector<2x32xf32>, vector<32x64xf32>, vector<2x64xf32> -> vector<2x64xf32>
    %166 = arith.addf %161, %165 : vector<2x64xf32>
    %167 = vector.extract_strided_slice %63 {offsets = [44, 0], sizes = [2, 32], strides = [1, 1]} : vector<112x32xf32> to vector<2x32xf32>
    %c20 = arith.constant 20 : index
    %c0_124 = arith.constant 0 : index
    %c0_125 = arith.constant 0 : index
    %168 = vector.load %arg6[%c20, %c0_124, %c0_125] : memref<49x32x64xf32, #tpu.memory_space<vmem>>, vector<1x32x64xf32>
    %169 = vector.shape_cast %168 : vector<1x32x64xf32> to vector<32x64xf32>
    %cst_126 = arith.constant dense<0.000000e+00> : vector<2x64xf32>
    %170 = tpu.matmul %167, %169, %cst_126 {dimension_numbers = #tpu.dot_dimension_numbers<[1], [0], [0], [1], [0, 0, 1, 1], [], []>} : vector<2x32xf32>, vector<32x64xf32>, vector<2x64xf32> -> vector<2x64xf32>
    %171 = arith.addf %166, %170 : vector<2x64xf32>
    %172 = vector.extract_strided_slice %63 {offsets = [48, 0], sizes = [2, 32], strides = [1, 1]} : vector<112x32xf32> to vector<2x32xf32>
    %c21 = arith.constant 21 : index
    %c0_127 = arith.constant 0 : index
    %c0_128 = arith.constant 0 : index
    %173 = vector.load %arg6[%c21, %c0_127, %c0_128] : memref<49x32x64xf32, #tpu.memory_space<vmem>>, vector<1x32x64xf32>
    %174 = vector.shape_cast %173 : vector<1x32x64xf32> to vector<32x64xf32>
    %cst_129 = arith.constant dense<0.000000e+00> : vector<2x64xf32>
    %175 = tpu.matmul %172, %174, %cst_129 {dimension_numbers = #tpu.dot_dimension_numbers<[1], [0], [0], [1], [0, 0, 1, 1], [], []>} : vector<2x32xf32>, vector<32x64xf32>, vector<2x64xf32> -> vector<2x64xf32>
    %176 = arith.addf %171, %175 : vector<2x64xf32>
    %177 = vector.extract_strided_slice %63 {offsets = [50, 0], sizes = [2, 32], strides = [1, 1]} : vector<112x32xf32> to vector<2x32xf32>
    %c22 = arith.constant 22 : index
    %c0_130 = arith.constant 0 : index
    %c0_131 = arith.constant 0 : index
    %178 = vector.load %arg6[%c22, %c0_130, %c0_131] : memref<49x32x64xf32, #tpu.memory_space<vmem>>, vector<1x32x64xf32>
    %179 = vector.shape_cast %178 : vector<1x32x64xf32> to vector<32x64xf32>
    %cst_132 = arith.constant dense<0.000000e+00> : vector<2x64xf32>
    %180 = tpu.matmul %177, %179, %cst_132 {dimension_numbers = #tpu.dot_dimension_numbers<[1], [0], [0], [1], [0, 0, 1, 1], [], []>} : vector<2x32xf32>, vector<32x64xf32>, vector<2x64xf32> -> vector<2x64xf32>
    %181 = arith.addf %176, %180 : vector<2x64xf32>
    %182 = vector.extract_strided_slice %63 {offsets = [52, 0], sizes = [2, 32], strides = [1, 1]} : vector<112x32xf32> to vector<2x32xf32>
    %c23 = arith.constant 23 : index
    %c0_133 = arith.constant 0 : index
    %c0_134 = arith.constant 0 : index
    %183 = vector.load %arg6[%c23, %c0_133, %c0_134] : memref<49x32x64xf32, #tpu.memory_space<vmem>>, vector<1x32x64xf32>
    %184 = vector.shape_cast %183 : vector<1x32x64xf32> to vector<32x64xf32>
    %cst_135 = arith.constant dense<0.000000e+00> : vector<2x64xf32>
    %185 = tpu.matmul %182, %184, %cst_135 {dimension_numbers = #tpu.dot_dimension_numbers<[1], [0], [0], [1], [0, 0, 1, 1], [], []>} : vector<2x32xf32>, vector<32x64xf32>, vector<2x64xf32> -> vector<2x64xf32>
    %186 = arith.addf %181, %185 : vector<2x64xf32>
    %187 = vector.extract_strided_slice %63 {offsets = [54, 0], sizes = [2, 32], strides = [1, 1]} : vector<112x32xf32> to vector<2x32xf32>
    %c24 = arith.constant 24 : index
    %c0_136 = arith.constant 0 : index
    %c0_137 = arith.constant 0 : index
    %188 = vector.load %arg6[%c24, %c0_136, %c0_137] : memref<49x32x64xf32, #tpu.memory_space<vmem>>, vector<1x32x64xf32>
    %189 = vector.shape_cast %188 : vector<1x32x64xf32> to vector<32x64xf32>
    %cst_138 = arith.constant dense<0.000000e+00> : vector<2x64xf32>
    %190 = tpu.matmul %187, %189, %cst_138 {dimension_numbers = #tpu.dot_dimension_numbers<[1], [0], [0], [1], [0, 0, 1, 1], [], []>} : vector<2x32xf32>, vector<32x64xf32>, vector<2x64xf32> -> vector<2x64xf32>
    %191 = arith.addf %186, %190 : vector<2x64xf32>
    %192 = vector.extract_strided_slice %63 {offsets = [56, 0], sizes = [2, 32], strides = [1, 1]} : vector<112x32xf32> to vector<2x32xf32>
    %c25 = arith.constant 25 : index
    %c0_139 = arith.constant 0 : index
    %c0_140 = arith.constant 0 : index
    %193 = vector.load %arg6[%c25, %c0_139, %c0_140] : memref<49x32x64xf32, #tpu.memory_space<vmem>>, vector<1x32x64xf32>
    %194 = vector.shape_cast %193 : vector<1x32x64xf32> to vector<32x64xf32>
    %cst_141 = arith.constant dense<0.000000e+00> : vector<2x64xf32>
    %195 = tpu.matmul %192, %194, %cst_141 {dimension_numbers = #tpu.dot_dimension_numbers<[1], [0], [0], [1], [0, 0, 1, 1], [], []>} : vector<2x32xf32>, vector<32x64xf32>, vector<2x64xf32> -> vector<2x64xf32>
    %196 = arith.addf %191, %195 : vector<2x64xf32>
    %197 = vector.extract_strided_slice %63 {offsets = [58, 0], sizes = [2, 32], strides = [1, 1]} : vector<112x32xf32> to vector<2x32xf32>
    %c26 = arith.constant 26 : index
    %c0_142 = arith.constant 0 : index
    %c0_143 = arith.constant 0 : index
    %198 = vector.load %arg6[%c26, %c0_142, %c0_143] : memref<49x32x64xf32, #tpu.memory_space<vmem>>, vector<1x32x64xf32>
    %199 = vector.shape_cast %198 : vector<1x32x64xf32> to vector<32x64xf32>
    %cst_144 = arith.constant dense<0.000000e+00> : vector<2x64xf32>
    %200 = tpu.matmul %197, %199, %cst_144 {dimension_numbers = #tpu.dot_dimension_numbers<[1], [0], [0], [1], [0, 0, 1, 1], [], []>} : vector<2x32xf32>, vector<32x64xf32>, vector<2x64xf32> -> vector<2x64xf32>
    %201 = arith.addf %196, %200 : vector<2x64xf32>
    %202 = vector.extract_strided_slice %63 {offsets = [60, 0], sizes = [2, 32], strides = [1, 1]} : vector<112x32xf32> to vector<2x32xf32>
    %c27 = arith.constant 27 : index
    %c0_145 = arith.constant 0 : index
    %c0_146 = arith.constant 0 : index
    %203 = vector.load %arg6[%c27, %c0_145, %c0_146] : memref<49x32x64xf32, #tpu.memory_space<vmem>>, vector<1x32x64xf32>
    %204 = vector.shape_cast %203 : vector<1x32x64xf32> to vector<32x64xf32>
    %cst_147 = arith.constant dense<0.000000e+00> : vector<2x64xf32>
    %205 = tpu.matmul %202, %204, %cst_147 {dimension_numbers = #tpu.dot_dimension_numbers<[1], [0], [0], [1], [0, 0, 1, 1], [], []>} : vector<2x32xf32>, vector<32x64xf32>, vector<2x64xf32> -> vector<2x64xf32>
    %206 = arith.addf %201, %205 : vector<2x64xf32>
    %207 = vector.extract_strided_slice %63 {offsets = [64, 0], sizes = [2, 32], strides = [1, 1]} : vector<112x32xf32> to vector<2x32xf32>
    %c28 = arith.constant 28 : index
    %c0_148 = arith.constant 0 : index
    %c0_149 = arith.constant 0 : index
    %208 = vector.load %arg6[%c28, %c0_148, %c0_149] : memref<49x32x64xf32, #tpu.memory_space<vmem>>, vector<1x32x64xf32>
    %209 = vector.shape_cast %208 : vector<1x32x64xf32> to vector<32x64xf32>
    %cst_150 = arith.constant dense<0.000000e+00> : vector<2x64xf32>
    %210 = tpu.matmul %207, %209, %cst_150 {dimension_numbers = #tpu.dot_dimension_numbers<[1], [0], [0], [1], [0, 0, 1, 1], [], []>} : vector<2x32xf32>, vector<32x64xf32>, vector<2x64xf32> -> vector<2x64xf32>
    %211 = arith.addf %206, %210 : vector<2x64xf32>
    %212 = vector.extract_strided_slice %63 {offsets = [66, 0], sizes = [2, 32], strides = [1, 1]} : vector<112x32xf32> to vector<2x32xf32>
    %c29 = arith.constant 29 : index
    %c0_151 = arith.constant 0 : index
    %c0_152 = arith.constant 0 : index
    %213 = vector.load %arg6[%c29, %c0_151, %c0_152] : memref<49x32x64xf32, #tpu.memory_space<vmem>>, vector<1x32x64xf32>
    %214 = vector.shape_cast %213 : vector<1x32x64xf32> to vector<32x64xf32>
    %cst_153 = arith.constant dense<0.000000e+00> : vector<2x64xf32>
    %215 = tpu.matmul %212, %214, %cst_153 {dimension_numbers = #tpu.dot_dimension_numbers<[1], [0], [0], [1], [0, 0, 1, 1], [], []>} : vector<2x32xf32>, vector<32x64xf32>, vector<2x64xf32> -> vector<2x64xf32>
    %216 = arith.addf %211, %215 : vector<2x64xf32>
    %217 = vector.extract_strided_slice %63 {offsets = [68, 0], sizes = [2, 32], strides = [1, 1]} : vector<112x32xf32> to vector<2x32xf32>
    %c30 = arith.constant 30 : index
    %c0_154 = arith.constant 0 : index
    %c0_155 = arith.constant 0 : index
    %218 = vector.load %arg6[%c30, %c0_154, %c0_155] : memref<49x32x64xf32, #tpu.memory_space<vmem>>, vector<1x32x64xf32>
    %219 = vector.shape_cast %218 : vector<1x32x64xf32> to vector<32x64xf32>
    %cst_156 = arith.constant dense<0.000000e+00> : vector<2x64xf32>
    %220 = tpu.matmul %217, %219, %cst_156 {dimension_numbers = #tpu.dot_dimension_numbers<[1], [0], [0], [1], [0, 0, 1, 1], [], []>} : vector<2x32xf32>, vector<32x64xf32>, vector<2x64xf32> -> vector<2x64xf32>
    %221 = arith.addf %216, %220 : vector<2x64xf32>
    %222 = vector.extract_strided_slice %63 {offsets = [70, 0], sizes = [2, 32], strides = [1, 1]} : vector<112x32xf32> to vector<2x32xf32>
    %c31 = arith.constant 31 : index
    %c0_157 = arith.constant 0 : index
    %c0_158 = arith.constant 0 : index
    %223 = vector.load %arg6[%c31, %c0_157, %c0_158] : memref<49x32x64xf32, #tpu.memory_space<vmem>>, vector<1x32x64xf32>
    %224 = vector.shape_cast %223 : vector<1x32x64xf32> to vector<32x64xf32>
    %cst_159 = arith.constant dense<0.000000e+00> : vector<2x64xf32>
    %225 = tpu.matmul %222, %224, %cst_159 {dimension_numbers = #tpu.dot_dimension_numbers<[1], [0], [0], [1], [0, 0, 1, 1], [], []>} : vector<2x32xf32>, vector<32x64xf32>, vector<2x64xf32> -> vector<2x64xf32>
    %226 = arith.addf %221, %225 : vector<2x64xf32>
    %227 = vector.extract_strided_slice %63 {offsets = [72, 0], sizes = [2, 32], strides = [1, 1]} : vector<112x32xf32> to vector<2x32xf32>
    %c32 = arith.constant 32 : index
    %c0_160 = arith.constant 0 : index
    %c0_161 = arith.constant 0 : index
    %228 = vector.load %arg6[%c32, %c0_160, %c0_161] : memref<49x32x64xf32, #tpu.memory_space<vmem>>, vector<1x32x64xf32>
    %229 = vector.shape_cast %228 : vector<1x32x64xf32> to vector<32x64xf32>
    %cst_162 = arith.constant dense<0.000000e+00> : vector<2x64xf32>
    %230 = tpu.matmul %227, %229, %cst_162 {dimension_numbers = #tpu.dot_dimension_numbers<[1], [0], [0], [1], [0, 0, 1, 1], [], []>} : vector<2x32xf32>, vector<32x64xf32>, vector<2x64xf32> -> vector<2x64xf32>
    %231 = arith.addf %226, %230 : vector<2x64xf32>
    %232 = vector.extract_strided_slice %63 {offsets = [74, 0], sizes = [2, 32], strides = [1, 1]} : vector<112x32xf32> to vector<2x32xf32>
    %c33 = arith.constant 33 : index
    %c0_163 = arith.constant 0 : index
    %c0_164 = arith.constant 0 : index
    %233 = vector.load %arg6[%c33, %c0_163, %c0_164] : memref<49x32x64xf32, #tpu.memory_space<vmem>>, vector<1x32x64xf32>
    %234 = vector.shape_cast %233 : vector<1x32x64xf32> to vector<32x64xf32>
    %cst_165 = arith.constant dense<0.000000e+00> : vector<2x64xf32>
    %235 = tpu.matmul %232, %234, %cst_165 {dimension_numbers = #tpu.dot_dimension_numbers<[1], [0], [0], [1], [0, 0, 1, 1], [], []>} : vector<2x32xf32>, vector<32x64xf32>, vector<2x64xf32> -> vector<2x64xf32>
    %236 = arith.addf %231, %235 : vector<2x64xf32>
    %237 = vector.extract_strided_slice %63 {offsets = [76, 0], sizes = [2, 32], strides = [1, 1]} : vector<112x32xf32> to vector<2x32xf32>
    %c34 = arith.constant 34 : index
    %c0_166 = arith.constant 0 : index
    %c0_167 = arith.constant 0 : index
    %238 = vector.load %arg6[%c34, %c0_166, %c0_167] : memref<49x32x64xf32, #tpu.memory_space<vmem>>, vector<1x32x64xf32>
    %239 = vector.shape_cast %238 : vector<1x32x64xf32> to vector<32x64xf32>
    %cst_168 = arith.constant dense<0.000000e+00> : vector<2x64xf32>
    %240 = tpu.matmul %237, %239, %cst_168 {dimension_numbers = #tpu.dot_dimension_numbers<[1], [0], [0], [1], [0, 0, 1, 1], [], []>} : vector<2x32xf32>, vector<32x64xf32>, vector<2x64xf32> -> vector<2x64xf32>
    %241 = arith.addf %236, %240 : vector<2x64xf32>
    %242 = vector.extract_strided_slice %63 {offsets = [80, 0], sizes = [2, 32], strides = [1, 1]} : vector<112x32xf32> to vector<2x32xf32>
    %c35 = arith.constant 35 : index
    %c0_169 = arith.constant 0 : index
    %c0_170 = arith.constant 0 : index
    %243 = vector.load %arg6[%c35, %c0_169, %c0_170] : memref<49x32x64xf32, #tpu.memory_space<vmem>>, vector<1x32x64xf32>
    %244 = vector.shape_cast %243 : vector<1x32x64xf32> to vector<32x64xf32>
    %cst_171 = arith.constant dense<0.000000e+00> : vector<2x64xf32>
    %245 = tpu.matmul %242, %244, %cst_171 {dimension_numbers = #tpu.dot_dimension_numbers<[1], [0], [0], [1], [0, 0, 1, 1], [], []>} : vector<2x32xf32>, vector<32x64xf32>, vector<2x64xf32> -> vector<2x64xf32>
    %246 = arith.addf %241, %245 : vector<2x64xf32>
    %247 = vector.extract_strided_slice %63 {offsets = [82, 0], sizes = [2, 32], strides = [1, 1]} : vector<112x32xf32> to vector<2x32xf32>
    %c36 = arith.constant 36 : index
    %c0_172 = arith.constant 0 : index
    %c0_173 = arith.constant 0 : index
    %248 = vector.load %arg6[%c36, %c0_172, %c0_173] : memref<49x32x64xf32, #tpu.memory_space<vmem>>, vector<1x32x64xf32>
    %249 = vector.shape_cast %248 : vector<1x32x64xf32> to vector<32x64xf32>
    %cst_174 = arith.constant dense<0.000000e+00> : vector<2x64xf32>
    %250 = tpu.matmul %247, %249, %cst_174 {dimension_numbers = #tpu.dot_dimension_numbers<[1], [0], [0], [1], [0, 0, 1, 1], [], []>} : vector<2x32xf32>, vector<32x64xf32>, vector<2x64xf32> -> vector<2x64xf32>
    %251 = arith.addf %246, %250 : vector<2x64xf32>
    %252 = vector.extract_strided_slice %63 {offsets = [84, 0], sizes = [2, 32], strides = [1, 1]} : vector<112x32xf32> to vector<2x32xf32>
    %c37 = arith.constant 37 : index
    %c0_175 = arith.constant 0 : index
    %c0_176 = arith.constant 0 : index
    %253 = vector.load %arg6[%c37, %c0_175, %c0_176] : memref<49x32x64xf32, #tpu.memory_space<vmem>>, vector<1x32x64xf32>
    %254 = vector.shape_cast %253 : vector<1x32x64xf32> to vector<32x64xf32>
    %cst_177 = arith.constant dense<0.000000e+00> : vector<2x64xf32>
    %255 = tpu.matmul %252, %254, %cst_177 {dimension_numbers = #tpu.dot_dimension_numbers<[1], [0], [0], [1], [0, 0, 1, 1], [], []>} : vector<2x32xf32>, vector<32x64xf32>, vector<2x64xf32> -> vector<2x64xf32>
    %256 = arith.addf %251, %255 : vector<2x64xf32>
    %257 = vector.extract_strided_slice %63 {offsets = [86, 0], sizes = [2, 32], strides = [1, 1]} : vector<112x32xf32> to vector<2x32xf32>
    %c38 = arith.constant 38 : index
    %c0_178 = arith.constant 0 : index
    %c0_179 = arith.constant 0 : index
    %258 = vector.load %arg6[%c38, %c0_178, %c0_179] : memref<49x32x64xf32, #tpu.memory_space<vmem>>, vector<1x32x64xf32>
    %259 = vector.shape_cast %258 : vector<1x32x64xf32> to vector<32x64xf32>
    %cst_180 = arith.constant dense<0.000000e+00> : vector<2x64xf32>
    %260 = tpu.matmul %257, %259, %cst_180 {dimension_numbers = #tpu.dot_dimension_numbers<[1], [0], [0], [1], [0, 0, 1, 1], [], []>} : vector<2x32xf32>, vector<32x64xf32>, vector<2x64xf32> -> vector<2x64xf32>
    %261 = arith.addf %256, %260 : vector<2x64xf32>
    %262 = vector.extract_strided_slice %63 {offsets = [88, 0], sizes = [2, 32], strides = [1, 1]} : vector<112x32xf32> to vector<2x32xf32>
    %c39 = arith.constant 39 : index
    %c0_181 = arith.constant 0 : index
    %c0_182 = arith.constant 0 : index
    %263 = vector.load %arg6[%c39, %c0_181, %c0_182] : memref<49x32x64xf32, #tpu.memory_space<vmem>>, vector<1x32x64xf32>
    %264 = vector.shape_cast %263 : vector<1x32x64xf32> to vector<32x64xf32>
    %cst_183 = arith.constant dense<0.000000e+00> : vector<2x64xf32>
    %265 = tpu.matmul %262, %264, %cst_183 {dimension_numbers = #tpu.dot_dimension_numbers<[1], [0], [0], [1], [0, 0, 1, 1], [], []>} : vector<2x32xf32>, vector<32x64xf32>, vector<2x64xf32> -> vector<2x64xf32>
    %266 = arith.addf %261, %265 : vector<2x64xf32>
    %267 = vector.extract_strided_slice %63 {offsets = [90, 0], sizes = [2, 32], strides = [1, 1]} : vector<112x32xf32> to vector<2x32xf32>
    %c40 = arith.constant 40 : index
    %c0_184 = arith.constant 0 : index
    %c0_185 = arith.constant 0 : index
    %268 = vector.load %arg6[%c40, %c0_184, %c0_185] : memref<49x32x64xf32, #tpu.memory_space<vmem>>, vector<1x32x64xf32>
    %269 = vector.shape_cast %268 : vector<1x32x64xf32> to vector<32x64xf32>
    %cst_186 = arith.constant dense<0.000000e+00> : vector<2x64xf32>
    %270 = tpu.matmul %267, %269, %cst_186 {dimension_numbers = #tpu.dot_dimension_numbers<[1], [0], [0], [1], [0, 0, 1, 1], [], []>} : vector<2x32xf32>, vector<32x64xf32>, vector<2x64xf32> -> vector<2x64xf32>
    %271 = arith.addf %266, %270 : vector<2x64xf32>
    %272 = vector.extract_strided_slice %63 {offsets = [92, 0], sizes = [2, 32], strides = [1, 1]} : vector<112x32xf32> to vector<2x32xf32>
    %c41 = arith.constant 41 : index
    %c0_187 = arith.constant 0 : index
    %c0_188 = arith.constant 0 : index
    %273 = vector.load %arg6[%c41, %c0_187, %c0_188] : memref<49x32x64xf32, #tpu.memory_space<vmem>>, vector<1x32x64xf32>
    %274 = vector.shape_cast %273 : vector<1x32x64xf32> to vector<32x64xf32>
    %cst_189 = arith.constant dense<0.000000e+00> : vector<2x64xf32>
    %275 = tpu.matmul %272, %274, %cst_189 {dimension_numbers = #tpu.dot_dimension_numbers<[1], [0], [0], [1], [0, 0, 1, 1], [], []>} : vector<2x32xf32>, vector<32x64xf32>, vector<2x64xf32> -> vector<2x64xf32>
    %276 = arith.addf %271, %275 : vector<2x64xf32>
    %277 = vector.extract_strided_slice %63 {offsets = [96, 0], sizes = [2, 32], strides = [1, 1]} : vector<112x32xf32> to vector<2x32xf32>
    %c42 = arith.constant 42 : index
    %c0_190 = arith.constant 0 : index
    %c0_191 = arith.constant 0 : index
    %278 = vector.load %arg6[%c42, %c0_190, %c0_191] : memref<49x32x64xf32, #tpu.memory_space<vmem>>, vector<1x32x64xf32>
    %279 = vector.shape_cast %278 : vector<1x32x64xf32> to vector<32x64xf32>
    %cst_192 = arith.constant dense<0.000000e+00> : vector<2x64xf32>
    %280 = tpu.matmul %277, %279, %cst_192 {dimension_numbers = #tpu.dot_dimension_numbers<[1], [0], [0], [1], [0, 0, 1, 1], [], []>} : vector<2x32xf32>, vector<32x64xf32>, vector<2x64xf32> -> vector<2x64xf32>
    %281 = arith.addf %276, %280 : vector<2x64xf32>
    %282 = vector.extract_strided_slice %63 {offsets = [98, 0], sizes = [2, 32], strides = [1, 1]} : vector<112x32xf32> to vector<2x32xf32>
    %c43 = arith.constant 43 : index
    %c0_193 = arith.constant 0 : index
    %c0_194 = arith.constant 0 : index
    %283 = vector.load %arg6[%c43, %c0_193, %c0_194] : memref<49x32x64xf32, #tpu.memory_space<vmem>>, vector<1x32x64xf32>
    %284 = vector.shape_cast %283 : vector<1x32x64xf32> to vector<32x64xf32>
    %cst_195 = arith.constant dense<0.000000e+00> : vector<2x64xf32>
    %285 = tpu.matmul %282, %284, %cst_195 {dimension_numbers = #tpu.dot_dimension_numbers<[1], [0], [0], [1], [0, 0, 1, 1], [], []>} : vector<2x32xf32>, vector<32x64xf32>, vector<2x64xf32> -> vector<2x64xf32>
    %286 = arith.addf %281, %285 : vector<2x64xf32>
    %287 = vector.extract_strided_slice %63 {offsets = [100, 0], sizes = [2, 32], strides = [1, 1]} : vector<112x32xf32> to vector<2x32xf32>
    %c44 = arith.constant 44 : index
    %c0_196 = arith.constant 0 : index
    %c0_197 = arith.constant 0 : index
    %288 = vector.load %arg6[%c44, %c0_196, %c0_197] : memref<49x32x64xf32, #tpu.memory_space<vmem>>, vector<1x32x64xf32>
    %289 = vector.shape_cast %288 : vector<1x32x64xf32> to vector<32x64xf32>
    %cst_198 = arith.constant dense<0.000000e+00> : vector<2x64xf32>
    %290 = tpu.matmul %287, %289, %cst_198 {dimension_numbers = #tpu.dot_dimension_numbers<[1], [0], [0], [1], [0, 0, 1, 1], [], []>} : vector<2x32xf32>, vector<32x64xf32>, vector<2x64xf32> -> vector<2x64xf32>
    %291 = arith.addf %286, %290 : vector<2x64xf32>
    %292 = vector.extract_strided_slice %63 {offsets = [102, 0], sizes = [2, 32], strides = [1, 1]} : vector<112x32xf32> to vector<2x32xf32>
    %c45 = arith.constant 45 : index
    %c0_199 = arith.constant 0 : index
    %c0_200 = arith.constant 0 : index
    %293 = vector.load %arg6[%c45, %c0_199, %c0_200] : memref<49x32x64xf32, #tpu.memory_space<vmem>>, vector<1x32x64xf32>
    %294 = vector.shape_cast %293 : vector<1x32x64xf32> to vector<32x64xf32>
    %cst_201 = arith.constant dense<0.000000e+00> : vector<2x64xf32>
    %295 = tpu.matmul %292, %294, %cst_201 {dimension_numbers = #tpu.dot_dimension_numbers<[1], [0], [0], [1], [0, 0, 1, 1], [], []>} : vector<2x32xf32>, vector<32x64xf32>, vector<2x64xf32> -> vector<2x64xf32>
    %296 = arith.addf %291, %295 : vector<2x64xf32>
    %297 = vector.extract_strided_slice %63 {offsets = [104, 0], sizes = [2, 32], strides = [1, 1]} : vector<112x32xf32> to vector<2x32xf32>
    %c46 = arith.constant 46 : index
    %c0_202 = arith.constant 0 : index
    %c0_203 = arith.constant 0 : index
    %298 = vector.load %arg6[%c46, %c0_202, %c0_203] : memref<49x32x64xf32, #tpu.memory_space<vmem>>, vector<1x32x64xf32>
    %299 = vector.shape_cast %298 : vector<1x32x64xf32> to vector<32x64xf32>
    %cst_204 = arith.constant dense<0.000000e+00> : vector<2x64xf32>
    %300 = tpu.matmul %297, %299, %cst_204 {dimension_numbers = #tpu.dot_dimension_numbers<[1], [0], [0], [1], [0, 0, 1, 1], [], []>} : vector<2x32xf32>, vector<32x64xf32>, vector<2x64xf32> -> vector<2x64xf32>
    %301 = arith.addf %296, %300 : vector<2x64xf32>
    %302 = vector.extract_strided_slice %63 {offsets = [106, 0], sizes = [2, 32], strides = [1, 1]} : vector<112x32xf32> to vector<2x32xf32>
    %c47 = arith.constant 47 : index
    %c0_205 = arith.constant 0 : index
    %c0_206 = arith.constant 0 : index
    %303 = vector.load %arg6[%c47, %c0_205, %c0_206] : memref<49x32x64xf32, #tpu.memory_space<vmem>>, vector<1x32x64xf32>
    %304 = vector.shape_cast %303 : vector<1x32x64xf32> to vector<32x64xf32>
    %cst_207 = arith.constant dense<0.000000e+00> : vector<2x64xf32>
    %305 = tpu.matmul %302, %304, %cst_207 {dimension_numbers = #tpu.dot_dimension_numbers<[1], [0], [0], [1], [0, 0, 1, 1], [], []>} : vector<2x32xf32>, vector<32x64xf32>, vector<2x64xf32> -> vector<2x64xf32>
    %306 = arith.addf %301, %305 : vector<2x64xf32>
    %307 = vector.extract_strided_slice %63 {offsets = [108, 0], sizes = [2, 32], strides = [1, 1]} : vector<112x32xf32> to vector<2x32xf32>
    %c48 = arith.constant 48 : index
    %c0_208 = arith.constant 0 : index
    %c0_209 = arith.constant 0 : index
    %308 = vector.load %arg6[%c48, %c0_208, %c0_209] : memref<49x32x64xf32, #tpu.memory_space<vmem>>, vector<1x32x64xf32>
    %309 = vector.shape_cast %308 : vector<1x32x64xf32> to vector<32x64xf32>
    %cst_210 = arith.constant dense<0.000000e+00> : vector<2x64xf32>
    %310 = tpu.matmul %307, %309, %cst_210 {dimension_numbers = #tpu.dot_dimension_numbers<[1], [0], [0], [1], [0, 0, 1, 1], [], []>} : vector<2x32xf32>, vector<32x64xf32>, vector<2x64xf32> -> vector<2x64xf32>
    %311 = arith.addf %306, %310 : vector<2x64xf32>
    %cst_211 = arith.constant 0.000000e+00 : f32
    %312 = vector.broadcast %cst_211 : f32 to vector<6x64xf32>
    %313 = tpu.concatenate %311, %312 in 0 : vector<2x64xf32>, vector<6x64xf32> -> vector<8x64xf32>
    %c0_212 = arith.constant 0 : index
    %c0_213 = arith.constant 0 : index
    %314 = vector.load %arg8[%c0_212, %c0_213] : memref<8x64xf32, #tpu.memory_space<vmem>>, vector<8x64xf32>
    tpu.vector_store %arg8[%c0_212, %c0_213], %313 {strides = array<i32>} : memref<8x64xf32, #tpu.memory_space<vmem>>, vector<8x64xf32>,
    return
  }
}

</mosaic_0001>

<llo_original>
// kernel: encoder_forward.1
$region0: #{encoder_forward.1}
  #allocation0 [shape = 'u32[]', space=smem, size = 0x4, offset = 0x4, fixed_abs, tag = 'smem constant byte address 0x4 - core index']
  #allocation1 [shape = 'u32[144,128]{1,0:T(1,128)}', space=vmem, size = 0x12000, scoped, tag = 'internal scratch']
  #allocation2 [shape = 'f32[520,16]{1,0:T(8,128)}', space=vmem, size = 0x41000, scoped, tag = 'scratch operand']
  %s0 = inlined_call_operand.vmem [shape: f32[512,9], index: 0, kind: input, shape index: {}]
  %s1 = inlined_call_operand.vmem [shape: f32[512,1], index: 1, kind: input, shape index: {}]
  %s2 = inlined_call_operand.vmem [shape: f32[9,16], index: 2, kind: input, shape index: {}]
  %s3 = inlined_call_operand.vmem [shape: f32[1,16], index: 3, kind: input, shape index: {}]
  %s4 = inlined_call_operand.vmem [shape: f32[9,16,32], index: 4, kind: input, shape index: {}]
  %s5 = inlined_call_operand.vmem [shape: f32[1,32], index: 5, kind: input, shape index: {}]
  %s6 = inlined_call_operand.vmem [shape: f32[49,32,64], index: 6, kind: input, shape index: {}]
  %s7 = inlined_call_operand.vmem [shape: f32[1,64], index: 7, kind: input, shape index: {}]
  %s8 = inlined_call_operand.vmem [shape: f32[8,64], index: 8, kind: output, shape index: {}]
  %s9 = sld [smem:[#allocation0]]
  $region42: #{encoder_forward.1} parent=0
    _
  %s11 = ssub.s32 1, %s9
  %s12 = scalar_select 0, %s11, %s9
  // Predicated region
  $region2: #{encoder_forward.1} parent=0 // pred_check
    _
  $region3: #{encoder_forward.1} parent=0 // pred_check_branch
    %14 = sbr.rel (0) target = $region5
  $region4: #{encoder_forward.1} parent=0 // pred_region
    _
  $region5: #{encoder_forward.1} parent=0 // pred_fallthru
    _
  // Predicated region
  $region6: #{encoder_forward.1} parent=0 // pred_check
    _
  $region7: #{encoder_forward.1} parent=0 // pred_check_branch
    %16 = sbr.rel (0) target = $region9
  $region8: #{encoder_forward.1} parent=0 // pred_region
    _
  $region9: #{encoder_forward.1} parent=0 // pred_fallthru
    _
  // Predicated region
  $region10: #{encoder_forward.1} parent=0 // pred_check
    _
  $region11: #{encoder_forward.1} parent=0 // pred_check_branch
    %18 = sbr.rel (0) target = $region13
  $region12: #{encoder_forward.1} parent=0 // pred_region
    _
  $region13: #{encoder_forward.1} parent=0 // pred_fallthru
    _
  // Predicated region
  $region14: #{encoder_forward.1} parent=0 // pred_check
    _
  $region15: #{encoder_forward.1} parent=0 // pred_check_branch
    %20 = sbr.rel (0) target = $region17
  $region16: #{encoder_forward.1} parent=0 // pred_region
    _
  $region17: #{encoder_forward.1} parent=0 // pred_fallthru
    _
  // Predicated region
  $region18: #{encoder_forward.1} parent=0 // pred_check
    _
  $region19: #{encoder_forward.1} parent=0 // pred_check_branch
    %22 = sbr.rel (0) target = $region21
  $region20: #{encoder_forward.1} parent=0 // pred_region
    _
  $region21: #{encoder_forward.1} parent=0 // pred_fallthru
    _
  // Predicated region
  $region22: #{encoder_forward.1} parent=0 // pred_check
    _
  $region23: #{encoder_forward.1} parent=0 // pred_check_branch
    %24 = sbr.rel (0) target = $region25
  $region24: #{encoder_forward.1} parent=0 // pred_region
    _
  $region25: #{encoder_forward.1} parent=0 // pred_fallthru
    _
  // Predicated region
  $region26: #{encoder_forward.1} parent=0 // pred_check
    _
  $region27: #{encoder_forward.1} parent=0 // pred_check_branch
    %26 = sbr.rel (0) target = $region29
  $region28: #{encoder_forward.1} parent=0 // pred_region
    _
  $region29: #{encoder_forward.1} parent=0 // pred_fallthru
    _
  // Predicated region
  $region30: #{encoder_forward.1} parent=0 // pred_check
    _
  $region31: #{encoder_forward.1} parent=0 // pred_check_branch
    %28 = sbr.rel (0) target = $region33
  $region32: #{encoder_forward.1} parent=0 // pred_region
    _
  $region33: #{encoder_forward.1} parent=0 // pred_fallthru
    _
  %v29 = vld [vmem:[%s0] sm:$0xff]
  %v30 = vld [vmem:[%s0 + $0x8] sm:$0xff]
  %v31 = vld [vmem:[%s0 + $0x10] sm:$0xff]
  %v32 = vld [vmem:[%s0 + $0x18] sm:$0xff]
  %v33 = vld [vmem:[%s0 + $0x20] sm:$0xff]
  %v34 = vld [vmem:[%s0 + $0x28] sm:$0xff]
  %v35 = vld [vmem:[%s0 + $0x30] sm:$0xff]
  %v36 = vld [vmem:[%s0 + $0x38] sm:$0xff]
  %v37 = vld [vmem:[%s0 + $0x40] sm:$0xff]
  %v38 = vld [vmem:[%s0 + $0x48] sm:$0xff]
  %v39 = vld [vmem:[%s0 + $0x50] sm:$0xff]
  %v40 = vld [vmem:[%s0 + $0x58] sm:$0xff]
  %v41 = vld [vmem:[%s0 + $0x60] sm:$0xff]
  %v42 = vld [vmem:[%s0 + $0x68] sm:$0xff]
  %v43 = vld [vmem:[%s0 + $0x70] sm:$0xff]
  %v44 = vld [vmem:[%s0 + $0x78] sm:$0xff]
  %v45 = vld [vmem:[%s0 + $0x80] sm:$0xff]
  %v46 = vld [vmem:[%s0 + $0x88] sm:$0xff]
  %v47 = vld [vmem:[%s0 + $0x90] sm:$0xff]
  %v48 = vld [vmem:[%s0 + $0x98] sm:$0xff]
  %v49 = vld [vmem:[%s0 + $0xa0] sm:$0xff]
  %v50 = vld [vmem:[%s0 + $0xa8] sm:$0xff]
  %v51 = vld [vmem:[%s0 + $0xb0] sm:$0xff]
  %v52 = vld [vmem:[%s0 + $0xb8] sm:$0xff]
  %v53 = vld [vmem:[%s0 + $0xc0] sm:$0xff]
  %v54 = vld [vmem:[%s0 + $0xc8] sm:$0xff]
  %v55 = vld [vmem:[%s0 + $0xd0] sm:$0xff]
  %v56 = vld [vmem:[%s0 + $0xd8] sm:$0xff]
  %v57 = vld [vmem:[%s0 + $0xe0] sm:$0xff]
  %v58 = vld [vmem:[%s0 + $0xe8] sm:$0xff]
  %v59 = vld [vmem:[%s0 + $0xf0] sm:$0xff]
  %v60 = vld [vmem:[%s0 + $0xf8] sm:$0xff]
  %v61 = vld [vmem:[%s0 + $0x100] sm:$0xff]
  %v62 = vld [vmem:[%s0 + $0x108] sm:$0xff]
  %v63 = vld [vmem:[%s0 + $0x110] sm:$0xff]
  %v64 = vld [vmem:[%s0 + $0x118] sm:$0xff]
  %v65 = vld [vmem:[%s0 + $0x120] sm:$0xff]
  %v66 = vld [vmem:[%s0 + $0x128] sm:$0xff]
  %v67 = vld [vmem:[%s0 + $0x130] sm:$0xff]
  %v68 = vld [vmem:[%s0 + $0x138] sm:$0xff]
  %v69 = vld [vmem:[%s0 + $0x140] sm:$0xff]
  %v70 = vld [vmem:[%s0 + $0x148] sm:$0xff]
  %v71 = vld [vmem:[%s0 + $0x150] sm:$0xff]
  %v72 = vld [vmem:[%s0 + $0x158] sm:$0xff]
  %v73 = vld [vmem:[%s0 + $0x160] sm:$0xff]
  %v74 = vld [vmem:[%s0 + $0x168] sm:$0xff]
  %v75 = vld [vmem:[%s0 + $0x170] sm:$0xff]
  %v76 = vld [vmem:[%s0 + $0x178] sm:$0xff]
  %v77 = vld [vmem:[%s0 + $0x180] sm:$0xff]
  %v78 = vld [vmem:[%s0 + $0x188] sm:$0xff]
  %v79 = vld [vmem:[%s0 + $0x190] sm:$0xff]
  %v80 = vld [vmem:[%s0 + $0x198] sm:$0xff]
  %v81 = vld [vmem:[%s0 + $0x1a0] sm:$0xff]
  %v82 = vld [vmem:[%s0 + $0x1a8] sm:$0xff]
  %v83 = vld [vmem:[%s0 + $0x1b0] sm:$0xff]
  %v84 = vld [vmem:[%s0 + $0x1b8] sm:$0xff]
  %v85 = vld [vmem:[%s0 + $0x1c0] sm:$0xff]
  %v86 = vld [vmem:[%s0 + $0x1c8] sm:$0xff]
  %v87 = vld [vmem:[%s0 + $0x1d0] sm:$0xff]
  %v88 = vld [vmem:[%s0 + $0x1d8] sm:$0xff]
  %v89 = vld [vmem:[%s0 + $0x1e0] sm:$0xff]
  %v90 = vld [vmem:[%s0 + $0x1e8] sm:$0xff]
  %v91 = vld [vmem:[%s0 + $0x1f0] sm:$0xff]
  %v92 = vld [vmem:[%s0 + $0x1f8] sm:$0xff]
  %v93 = vld [vmem:[%s2] sm:$0xff]
  %v94 = vld [vmem:[%s2 + $0x8] sm:$0x1]
  %v95 = vld [vmem:[%s3] sm:$0x1]
  %v97 = vlaneseq
  %v98 = vshrl.u32 %v97, 7
  %v99 = vsub.s32 0, %v98
  %v100 = vrot.slane %v95, %v99
  %vm102 = vcmask 72704
  %v104 = vsel %vm102, %v29, 0
  %v107 = vsel %vm102, %v30, 0
  %v110 = vsel %vm102, %v31, 0
  %v113 = vsel %vm102, %v32, 0
  %v116 = vsel %vm102, %v33, 0
  %v119 = vsel %vm102, %v34, 0
  %v122 = vsel %vm102, %v35, 0
  %v125 = vsel %vm102, %v36, 0
  %v128 = vsel %vm102, %v37, 0
  %v131 = vsel %vm102, %v38, 0
  %v134 = vsel %vm102, %v39, 0
  %v137 = vsel %vm102, %v40, 0
  %v140 = vsel %vm102, %v41, 0
  %v143 = vsel %vm102, %v42, 0
  %v146 = vsel %vm102, %v43, 0
  %v149 = vsel %vm102, %v44, 0
  %v152 = vsel %vm102, %v45, 0
  %v155 = vsel %vm102, %v46, 0
  %v158 = vsel %vm102, %v47, 0
  %v161 = vsel %vm102, %v48, 0
  %v164 = vsel %vm102, %v49, 0
  %v167 = vsel %vm102, %v50, 0
  %v170 = vsel %vm102, %v51, 0
  %v173 = vsel %vm102, %v52, 0
  %v176 = vsel %vm102, %v53, 0
  %v179 = vsel %vm102, %v54, 0
  %v182 = vsel %vm102, %v55, 0
  %v185 = vsel %vm102, %v56, 0
  %v188 = vsel %vm102, %v57, 0
  %v191 = vsel %vm102, %v58, 0
  %v194 = vsel %vm102, %v59, 0
  %v197 = vsel %vm102, %v60, 0
  %v200 = vsel %vm102, %v61, 0
  %v203 = vsel %vm102, %v62, 0
  %v206 = vsel %vm102, %v63, 0
  %v209 = vsel %vm102, %v64, 0
  %v212 = vsel %vm102, %v65, 0
  %v215 = vsel %vm102, %v66, 0
  %v218 = vsel %vm102, %v67, 0
  %v221 = vsel %vm102, %v68, 0
  %v224 = vsel %vm102, %v69, 0
  %v227 = vsel %vm102, %v70, 0
  %v230 = vsel %vm102, %v71, 0
  %v233 = vsel %vm102, %v72, 0
  %v236 = vsel %vm102, %v73, 0
  %v239 = vsel %vm102, %v74, 0
  %v242 = vsel %vm102, %v75, 0
  %v245 = vsel %vm102, %v76, 0
  %v248 = vsel %vm102, %v77, 0
  %v251 = vsel %vm102, %v78, 0
  %v254 = vsel %vm102, %v79, 0
  %v257 = vsel %vm102, %v80, 0
  %v260 = vsel %vm102, %v81, 0
  %v263 = vsel %vm102, %v82, 0
  %v266 = vsel %vm102, %v83, 0
  %v269 = vsel %vm102, %v84, 0
  %v272 = vsel %vm102, %v85, 0
  %v275 = vsel %vm102, %v86, 0
  %v278 = vsel %vm102, %v87, 0
  %v281 = vsel %vm102, %v88, 0
  %v284 = vsel %vm102, %v89, 0
  %v287 = vsel %vm102, %v90, 0
  %v290 = vsel %vm102, %v91, 0
  %v293 = vsel %vm102, %v92, 0
  %vm295 = vcmask 1040384
  %v297 = vsel %vm295, %v94, 0
  %299 = vmatprep.subr.mxu0 0.0
  %300 = vmatpush1.msra.mxu0 0.0
  %301 = vmatprep.subr.mxu0 0.0
  %302 = vmatpush1.msra.mxu0 0.0
  %303 = vmatprep.subr.mxu0 0.0
  %304 = vmatpush1.msra.mxu0 0.0
  %305 = vmatprep.subr.mxu0 0.0
  %306 = vmatpush1.msra.mxu0 0.0
  %307 = vmatprep.subr.mxu0 0.0
  %308 = vmatpush1.msra.mxu0 0.0
  %309 = vmatprep.subr.mxu0 0.0
  %310 = vmatpush1.msra.mxu0 0.0
  %311 = vmatprep.subr.mxu0 0.0
  %312 = vmatpush1.msra.mxu0 0.0
  %313 = vmatprep.subr.mxu0 0.0
  %314 = vmatpush1.msra.mxu0 0.0
  %315 = vmatprep.subr.mxu0 0.0
  %316 = vmatpush1.msra.mxu0 0.0
  %317 = vmatprep.subr.mxu0 0.0
  %318 = vmatpush1.msra.mxu0 0.0
  %319 = vmatprep.subr.mxu0 0.0
  %320 = vmatpush1.msra.mxu0 0.0
  %321 = vmatprep.subr.mxu0 0.0
  %322 = vmatpush1.msra.mxu0 0.0
  %323 = vmatprep.subr.mxu0 0.0
  %324 = vmatpush1.msra.mxu0 0.0
  %325 = vmatprep.subr.mxu0 0.0
  %326 = vmatpush1.msra.mxu0 0.0
  %327 = vmatprep.subr.mxu0 0.0
  %328 = vmatpush1.msra.mxu0 %v297
  %329 = vmatprep.subr.mxu0 0.0
  %330 = vmatpush1.msra.mxu0 %v93
  %331 = vmatprep.subr.mxu0 0.0
  %332 = vmatpush2.msra.mxu0 0.0
  %333 = vmatprep.subr.mxu0 0.0
  %334 = vmatpush2.msra.mxu0 0.0
  %335 = vmatprep.subr.mxu0 0.0
  %336 = vmatpush2.msra.mxu0 0.0
  %337 = vmatprep.subr.mxu0 0.0
  %338 = vmatpush2.msra.mxu0 0.0
  %339 = vmatprep.subr.mxu0 0.0
  %340 = vmatpush2.msra.mxu0 0.0
  %341 = vmatprep.subr.mxu0 0.0
  %342 = vmatpush2.msra.mxu0 0.0
  %343 = vmatprep.subr.mxu0 0.0
  %344 = vmatpush2.msra.mxu0 0.0
  %345 = vmatprep.subr.mxu0 0.0
  %346 = vmatpush2.msra.mxu0 0.0
  %347 = vmatprep.subr.mxu0 0.0
  %348 = vmatpush2.msra.mxu0 0.0
  %349 = vmatprep.subr.mxu0 0.0
  %350 = vmatpush2.msra.mxu0 0.0
  %351 = vmatprep.subr.mxu0 0.0
  %352 = vmatpush2.msra.mxu0 0.0
  %353 = vmatprep.subr.mxu0 0.0
  %354 = vmatpush2.msra.mxu0 0.0
  %355 = vmatprep.subr.mxu0 0.0
  %356 = vmatpush2.msra.mxu0 0.0
  %357 = vmatprep.subr.mxu0 0.0
  %358 = vmatpush2.msra.mxu0 0.0
  %359 = vmatprep.subr.mxu0 0.0
  %360 = vmatpush2.msra.mxu0 0.0
  %361 = vmatprep.subr.mxu0 0.0
  %362 = vmatpush2.msra.mxu0 0.0
  %363 = vmatprep.mubr.f32.mxu0 0.0
  %364 = vmatmul.mubr.f32.gmra.mxu0 %v104
  %v365 = vpop.f32.mrf.mxu0
  %v366 = vadd.f32 %v100, %v365
  %v367 = vpop.f32.mrf.mxu0
  %368 = vmatprep.mubr.f32.mxu0 0.0
  %369 = vmatmul.mubr.f32.gmra.mxu0 %v107
  %v370 = vpop.f32.mrf.mxu0
  %v371 = vadd.f32 %v100, %v370
  %v372 = vpop.f32.mrf.mxu0
  %373 = vmatprep.mubr.f32.mxu0 0.0
  %374 = vmatmul.mubr.f32.gmra.mxu0 %v110
  %v375 = vpop.f32.mrf.mxu0
  %v376 = vadd.f32 %v100, %v375
  %v377 = vpop.f32.mrf.mxu0
  %378 = vmatprep.mubr.f32.mxu0 0.0
  %379 = vmatmul.mubr.f32.gmra.mxu0 %v113
  %v380 = vpop.f32.mrf.mxu0
  %v381 = vadd.f32 %v100, %v380
  %v382 = vpop.f32.mrf.mxu0
  %383 = vmatprep.mubr.f32.mxu0 0.0
  %384 = vmatmul.mubr.f32.gmra.mxu0 %v116
  %v385 = vpop.f32.mrf.mxu0
  %v386 = vadd.f32 %v100, %v385
  %v387 = vpop.f32.mrf.mxu0
  %388 = vmatprep.mubr.f32.mxu0 0.0
  %389 = vmatmul.mubr.f32.gmra.mxu0 %v119
  %v390 = vpop.f32.mrf.mxu0
  %v391 = vadd.f32 %v100, %v390
  %v392 = vpop.f32.mrf.mxu0
  %393 = vmatprep.mubr.f32.mxu0 0.0
  %394 = vmatmul.mubr.f32.gmra.mxu0 %v122
  %v395 = vpop.f32.mrf.mxu0
  %v396 = vadd.f32 %v100, %v395
  %v397 = vpop.f32.mrf.mxu0
  %398 = vmatprep.mubr.f32.mxu0 0.0
  %399 = vmatmul.mubr.f32.gmra.mxu0 %v125
  %v400 = vpop.f32.mrf.mxu0
  %v401 = vadd.f32 %v100, %v400
  %v402 = vpop.f32.mrf.mxu0
  %403 = vmatprep.mubr.f32.mxu0 0.0
  %404 = vmatmul.mubr.f32.gmra.mxu0 %v128
  %v405 = vpop.f32.mrf.mxu0
  %v406 = vadd.f32 %v100, %v405
  %v407 = vpop.f32.mrf.mxu0
  %408 = vmatprep.mubr.f32.mxu0 0.0
  %409 = vmatmul.mubr.f32.gmra.mxu0 %v131
  %v410 = vpop.f32.mrf.mxu0
  %v411 = vadd.f32 %v100, %v410
  %v412 = vpop.f32.mrf.mxu0
  %413 = vmatprep.mubr.f32.mxu0 0.0
  %414 = vmatmul.mubr.f32.gmra.mxu0 %v134
  %v415 = vpop.f32.mrf.mxu0
  %v416 = vadd.f32 %v100, %v415
  %v417 = vpop.f32.mrf.mxu0
  %418 = vmatprep.mubr.f32.mxu0 0.0
  %419 = vmatmul.mubr.f32.gmra.mxu0 %v137
  %v420 = vpop.f32.mrf.mxu0
  %v421 = vadd.f32 %v100, %v420
  %v422 = vpop.f32.mrf.mxu0
  %423 = vmatprep.mubr.f32.mxu0 0.0
  %424 = vmatmul.mubr.f32.gmra.mxu0 %v140
  %v425 = vpop.f32.mrf.mxu0
  %v426 = vadd.f32 %v100, %v425
  %v427 = vpop.f32.mrf.mxu0
  %428 = vmatprep.mubr.f32.mxu0 0.0
  %429 = vmatmul.mubr.f32.gmra.mxu0 %v143
  %v430 = vpop.f32.mrf.mxu0
  %v431 = vadd.f32 %v100, %v430
  %v432 = vpop.f32.mrf.mxu0
  %433 = vmatprep.mubr.f32.mxu0 0.0
  %434 = vmatmul.mubr.f32.gmra.mxu0 %v146
  %v435 = vpop.f32.mrf.mxu0
  %v436 = vadd.f32 %v100, %v435
  %v437 = vpop.f32.mrf.mxu0
  %438 = vmatprep.mubr.f32.mxu0 0.0
  %439 = vmatmul.mubr.f32.gmra.mxu0 %v149
  %v440 = vpop.f32.mrf.mxu0
  %v441 = vadd.f32 %v100, %v440
  %v442 = vpop.f32.mrf.mxu0
  %443 = vmatprep.mubr.f32.mxu0 0.0
  %444 = vmatmul.mubr.f32.gmra.mxu0 %v152
  %v445 = vpop.f32.mrf.mxu0
  %v446 = vadd.f32 %v100, %v445
  %v447 = vpop.f32.mrf.mxu0
  %448 = vmatprep.mubr.f32.mxu0 0.0
  %449 = vmatmul.mubr.f32.gmra.mxu0 %v155
  %v450 = vpop.f32.mrf.mxu0
  %v451 = vadd.f32 %v100, %v450
  %v452 = vpop.f32.mrf.mxu0
  %453 = vmatprep.mubr.f32.mxu0 0.0
  %454 = vmatmul.mubr.f32.gmra.mxu0 %v158
  %v455 = vpop.f32.mrf.mxu0
  %v456 = vadd.f32 %v100, %v455
  %v457 = vpop.f32.mrf.mxu0
  %458 = vmatprep.mubr.f32.mxu0 0.0
  %459 = vmatmul.mubr.f32.gmra.mxu0 %v161
  %v460 = vpop.f32.mrf.mxu0
  %v461 = vadd.f32 %v100, %v460
  %v462 = vpop.f32.mrf.mxu0
  %463 = vmatprep.mubr.f32.mxu0 0.0
  %464 = vmatmul.mubr.f32.gmra.mxu0 %v164
  %v465 = vpop.f32.mrf.mxu0
  %v466 = vadd.f32 %v100, %v465
  %v467 = vpop.f32.mrf.mxu0
  %468 = vmatprep.mubr.f32.mxu0 0.0
  %469 = vmatmul.mubr.f32.gmra.mxu0 %v167
  %v470 = vpop.f32.mrf.mxu0
  %v471 = vadd.f32 %v100, %v470
  %v472 = vpop.f32.mrf.mxu0
  %473 = vmatprep.mubr.f32.mxu0 0.0
  %474 = vmatmul.mubr.f32.gmra.mxu0 %v170
  %v475 = vpop.f32.mrf.mxu0
  %v476 = vadd.f32 %v100, %v475
  %v477 = vpop.f32.mrf.mxu0
  %478 = vmatprep.mubr.f32.mxu0 0.0
  %479 = vmatmul.mubr.f32.gmra.mxu0 %v173
  %v480 = vpop.f32.mrf.mxu0
  %v481 = vadd.f32 %v100, %v480
  %v482 = vpop.f32.mrf.mxu0
  %483 = vmatprep.mubr.f32.mxu0 0.0
  %484 = vmatmul.mubr.f32.gmra.mxu0 %v176
  %v485 = vpop.f32.mrf.mxu0
  %v486 = vadd.f32 %v100, %v485
  %v487 = vpop.f32.mrf.mxu0
  %488 = vmatprep.mubr.f32.mxu0 0.0
  %489 = vmatmul.mubr.f32.gmra.mxu0 %v179
  %v490 = vpop.f32.mrf.mxu0
  %v491 = vadd.f32 %v100, %v490
  %v492 = vpop.f32.mrf.mxu0
  %493 = vmatprep.mubr.f32.mxu0 0.0
  %494 = vmatmul.mubr.f32.gmra.mxu0 %v182
  %v495 = vpop.f32.mrf.mxu0
  %v496 = vadd.f32 %v100, %v495
  %v497 = vpop.f32.mrf.mxu0
  %498 = vmatprep.mubr.f32.mxu0 0.0
  %499 = vmatmul.mubr.f32.gmra.mxu0 %v185
  %v500 = vpop.f32.mrf.mxu0
  %v501 = vadd.f32 %v100, %v500
  %v502 = vpop.f32.mrf.mxu0
  %503 = vmatprep.mubr.f32.mxu0 0.0
  %504 = vmatmul.mubr.f32.gmra.mxu0 %v188
  %v505 = vpop.f32.mrf.mxu0
  %v506 = vadd.f32 %v100, %v505
  %v507 = vpop.f32.mrf.mxu0
  %508 = vmatprep.mubr.f32.mxu0 0.0
  %509 = vmatmul.mubr.f32.gmra.mxu0 %v191
  %v510 = vpop.f32.mrf.mxu0
  %v511 = vadd.f32 %v100, %v510
  %v512 = vpop.f32.mrf.mxu0
  %513 = vmatprep.mubr.f32.mxu0 0.0
  %514 = vmatmul.mubr.f32.gmra.mxu0 %v194
  %v515 = vpop.f32.mrf.mxu0
  %v516 = vadd.f32 %v100, %v515
  %v517 = vpop.f32.mrf.mxu0
  %518 = vmatprep.mubr.f32.mxu0 0.0
  %519 = vmatmul.mubr.f32.gmra.mxu0 %v197
  %v520 = vpop.f32.mrf.mxu0
  %v521 = vadd.f32 %v100, %v520
  %v522 = vpop.f32.mrf.mxu0
  %523 = vmatprep.mubr.f32.mxu0 0.0
  %524 = vmatmul.mubr.f32.gmra.mxu0 %v200
  %v525 = vpop.f32.mrf.mxu0
  %v526 = vadd.f32 %v100, %v525
  %v527 = vpop.f32.mrf.mxu0
  %528 = vmatprep.mubr.f32.mxu0 0.0
  %529 = vmatmul.mubr.f32.gmra.mxu0 %v203
  %v530 = vpop.f32.mrf.mxu0
  %v531 = vadd.f32 %v100, %v530
  %v532 = vpop.f32.mrf.mxu0
  %533 = vmatprep.mubr.f32.mxu0 0.0
  %534 = vmatmul.mubr.f32.gmra.mxu0 %v206
  %v535 = vpop.f32.mrf.mxu0
  %v536 = vadd.f32 %v100, %v535
  %v537 = vpop.f32.mrf.mxu0
  %538 = vmatprep.mubr.f32.mxu0 0.0
  %539 = vmatmul.mubr.f32.gmra.mxu0 %v209
  %v540 = vpop.f32.mrf.mxu0
  %v541 = vadd.f32 %v100, %v540
  %v542 = vpop.f32.mrf.mxu0
  %543 = vmatprep.mubr.f32.mxu0 0.0
  %544 = vmatmul.mubr.f32.gmra.mxu0 %v212
  %v545 = vpop.f32.mrf.mxu0
  %v546 = vadd.f32 %v100, %v545
  %v547 = vpop.f32.mrf.mxu0
  %548 = vmatprep.mubr.f32.mxu0 0.0
  %549 = vmatmul.mubr.f32.gmra.mxu0 %v215
  %v550 = vpop.f32.mrf.mxu0
  %v551 = vadd.f32 %v100, %v550
  %v552 = vpop.f32.mrf.mxu0
  %553 = vmatprep.mubr.f32.mxu0 0.0
  %554 = vmatmul.mubr.f32.gmra.mxu0 %v218
  %v555 = vpop.f32.mrf.mxu0
  %v556 = vadd.f32 %v100, %v555
  %v557 = vpop.f32.mrf.mxu0
  %558 = vmatprep.mubr.f32.mxu0 0.0
  %559 = vmatmul.mubr.f32.gmra.mxu0 %v221
  %v560 = vpop.f32.mrf.mxu0
  %v561 = vadd.f32 %v100, %v560
  %v562 = vpop.f32.mrf.mxu0
  %563 = vmatprep.mubr.f32.mxu0 0.0
  %564 = vmatmul.mubr.f32.gmra.mxu0 %v224
  %v565 = vpop.f32.mrf.mxu0
  %v566 = vadd.f32 %v100, %v565
  %v567 = vpop.f32.mrf.mxu0
  %568 = vmatprep.mubr.f32.mxu0 0.0
  %569 = vmatmul.mubr.f32.gmra.mxu0 %v227
  %v570 = vpop.f32.mrf.mxu0
  %v571 = vadd.f32 %v100, %v570
  %v572 = vpop.f32.mrf.mxu0
  %573 = vmatprep.mubr.f32.mxu0 0.0
  %574 = vmatmul.mubr.f32.gmra.mxu0 %v230
  %v575 = vpop.f32.mrf.mxu0
  %v576 = vadd.f32 %v100, %v575
  %v577 = vpop.f32.mrf.mxu0
  %578 = vmatprep.mubr.f32.mxu0 0.0
  %579 = vmatmul.mubr.f32.gmra.mxu0 %v233
  %v580 = vpop.f32.mrf.mxu0
  %v581 = vadd.f32 %v100, %v580
  %v582 = vpop.f32.mrf.mxu0
  %583 = vmatprep.mubr.f32.mxu0 0.0
  %584 = vmatmul.mubr.f32.gmra.mxu0 %v236
  %v585 = vpop.f32.mrf.mxu0
  %v586 = vadd.f32 %v100, %v585
  %v587 = vpop.f32.mrf.mxu0
  %588 = vmatprep.mubr.f32.mxu0 0.0
  %589 = vmatmul.mubr.f32.gmra.mxu0 %v239
  %v590 = vpop.f32.mrf.mxu0
  %v591 = vadd.f32 %v100, %v590
  %v592 = vpop.f32.mrf.mxu0
  %593 = vmatprep.mubr.f32.mxu0 0.0
  %594 = vmatmul.mubr.f32.gmra.mxu0 %v242
  %v595 = vpop.f32.mrf.mxu0
  %v596 = vadd.f32 %v100, %v595
  %v597 = vpop.f32.mrf.mxu0
  %598 = vmatprep.mubr.f32.mxu0 0.0
  %599 = vmatmul.mubr.f32.gmra.mxu0 %v245
  %v600 = vpop.f32.mrf.mxu0
  %v601 = vadd.f32 %v100, %v600
  %v602 = vpop.f32.mrf.mxu0
  %603 = vmatprep.mubr.f32.mxu0 0.0
  %604 = vmatmul.mubr.f32.gmra.mxu0 %v248
  %v605 = vpop.f32.mrf.mxu0
  %v606 = vadd.f32 %v100, %v605
  %v607 = vpop.f32.mrf.mxu0
  %608 = vmatprep.mubr.f32.mxu0 0.0
  %609 = vmatmul.mubr.f32.gmra.mxu0 %v251
  %v610 = vpop.f32.mrf.mxu0
  %v611 = vadd.f32 %v100, %v610
  %v612 = vpop.f32.mrf.mxu0
  %613 = vmatprep.mubr.f32.mxu0 0.0
  %614 = vmatmul.mubr.f32.gmra.mxu0 %v254
  %v615 = vpop.f32.mrf.mxu0
  %v616 = vadd.f32 %v100, %v615
  %v617 = vpop.f32.mrf.mxu0
  %618 = vmatprep.mubr.f32.mxu0 0.0
  %619 = vmatmul.mubr.f32.gmra.mxu0 %v257
  %v620 = vpop.f32.mrf.mxu0
  %v621 = vadd.f32 %v100, %v620
  %v622 = vpop.f32.mrf.mxu0
  %623 = vmatprep.mubr.f32.mxu0 0.0
  %624 = vmatmul.mubr.f32.gmra.mxu0 %v260
  %v625 = vpop.f32.mrf.mxu0
  %v626 = vadd.f32 %v100, %v625
  %v627 = vpop.f32.mrf.mxu0
  %628 = vmatprep.mubr.f32.mxu0 0.0
  %629 = vmatmul.mubr.f32.gmra.mxu0 %v263
  %v630 = vpop.f32.mrf.mxu0
  %v631 = vadd.f32 %v100, %v630
  %v632 = vpop.f32.mrf.mxu0
  %633 = vmatprep.mubr.f32.mxu0 0.0
  %634 = vmatmul.mubr.f32.gmra.mxu0 %v266
  %v635 = vpop.f32.mrf.mxu0
  %v636 = vadd.f32 %v100, %v635
  %v637 = vpop.f32.mrf.mxu0
  %638 = vmatprep.mubr.f32.mxu0 0.0
  %639 = vmatmul.mubr.f32.gmra.mxu0 %v269
  %v640 = vpop.f32.mrf.mxu0
  %v641 = vadd.f32 %v100, %v640
  %v642 = vpop.f32.mrf.mxu0
  %643 = vmatprep.mubr.f32.mxu0 0.0
  %644 = vmatmul.mubr.f32.gmra.mxu0 %v272
  %v645 = vpop.f32.mrf.mxu0
  %v646 = vadd.f32 %v100, %v645
  %v647 = vpop.f32.mrf.mxu0
  %648 = vmatprep.mubr.f32.mxu0 0.0
  %649 = vmatmul.mubr.f32.gmra.mxu0 %v275
  %v650 = vpop.f32.mrf.mxu0
  %v651 = vadd.f32 %v100, %v650
  %v652 = vpop.f32.mrf.mxu0
  %653 = vmatprep.mubr.f32.mxu0 0.0
  %654 = vmatmul.mubr.f32.gmra.mxu0 %v278
  %v655 = vpop.f32.mrf.mxu0
  %v656 = vadd.f32 %v100, %v655
  %v657 = vpop.f32.mrf.mxu0
  %658 = vmatprep.mubr.f32.mxu0 0.0
  %659 = vmatmul.mubr.f32.gmra.mxu0 %v281
  %v660 = vpop.f32.mrf.mxu0
  %v661 = vadd.f32 %v100, %v660
  %v662 = vpop.f32.mrf.mxu0
  %663 = vmatprep.mubr.f32.mxu0 0.0
  %664 = vmatmul.mubr.f32.gmra.mxu0 %v284
  %v665 = vpop.f32.mrf.mxu0
  %v666 = vadd.f32 %v100, %v665
  %v667 = vpop.f32.mrf.mxu0
  %668 = vmatprep.mubr.f32.mxu0 0.0
  %669 = vmatmul.mubr.f32.gmra.mxu0 %v287
  %v670 = vpop.f32.mrf.mxu0
  %v671 = vadd.f32 %v100, %v670
  %v672 = vpop.f32.mrf.mxu0
  %673 = vmatprep.mubr.f32.mxu0 0.0
  %674 = vmatmul.mubr.f32.gmra.mxu0 %v290
  %v675 = vpop.f32.mrf.mxu0
  %v676 = vadd.f32 %v100, %v675
  %v677 = vpop.f32.mrf.mxu0
  %678 = vmatprep.mubr.f32.mxu0 0.0
  %679 = vmatmul.mubr.f32.gmra.mxu0 %v293
  %v680 = vpop.f32.mrf.mxu0
  %v681 = vadd.f32 %v100, %v680
  %v682 = vpop.f32.mrf.mxu0
  %683 = vdwg.mxu0
  %v684 = vmax.f32 %v366, 0.0
  %v685 = vmax.f32 %v371, 0.0
  %v686 = vmax.f32 %v376, 0.0
  %v687 = vmax.f32 %v381, 0.0
  %v688 = vmax.f32 %v386, 0.0
  %v689 = vmax.f32 %v391, 0.0
  %v690 = vmax.f32 %v396, 0.0
  %v691 = vmax.f32 %v401, 0.0
  %v692 = vmax.f32 %v406, 0.0
  %v693 = vmax.f32 %v411, 0.0
  %v694 = vmax.f32 %v416, 0.0
  %v695 = vmax.f32 %v421, 0.0
  %v696 = vmax.f32 %v426, 0.0
  %v697 = vmax.f32 %v431, 0.0
  %v698 = vmax.f32 %v436, 0.0
  %v699 = vmax.f32 %v441, 0.0
  %v700 = vmax.f32 %v446, 0.0
  %v701 = vmax.f32 %v451, 0.0
  %v702 = vmax.f32 %v456, 0.0
  %v703 = vmax.f32 %v461, 0.0
  %v704 = vmax.f32 %v466, 0.0
  %v705 = vmax.f32 %v471, 0.0
  %v706 = vmax.f32 %v476, 0.0
  %v707 = vmax.f32 %v481, 0.0
  %v708 = vmax.f32 %v486, 0.0
  %v709 = vmax.f32 %v491, 0.0
  %v710 = vmax.f32 %v496, 0.0
  %v711 = vmax.f32 %v501, 0.0
  %v712 = vmax.f32 %v506, 0.0
  %v713 = vmax.f32 %v511, 0.0
  %v714 = vmax.f32 %v516, 0.0
  %v715 = vmax.f32 %v521, 0.0
  %v716 = vmax.f32 %v526, 0.0
  %v717 = vmax.f32 %v531, 0.0
  %v718 = vmax.f32 %v536, 0.0
  %v719 = vmax.f32 %v541, 0.0
  %v720 = vmax.f32 %v546, 0.0
  %v721 = vmax.f32 %v551, 0.0
  %v722 = vmax.f32 %v556, 0.0
  %v723 = vmax.f32 %v561, 0.0
  %v724 = vmax.f32 %v566, 0.0
  %v725 = vmax.f32 %v571, 0.0
  %v726 = vmax.f32 %v576, 0.0
  %v727 = vmax.f32 %v581, 0.0
  %v728 = vmax.f32 %v586, 0.0
  %v729 = vmax.f32 %v591, 0.0
  %v730 = vmax.f32 %v596, 0.0
  %v731 = vmax.f32 %v601, 0.0
  %v732 = vmax.f32 %v606, 0.0
  %v733 = vmax.f32 %v611, 0.0
  %v734 = vmax.f32 %v616, 0.0
  %v735 = vmax.f32 %v621, 0.0
  %v736 = vmax.f32 %v626, 0.0
  %v737 = vmax.f32 %v631, 0.0
  %v738 = vmax.f32 %v636, 0.0
  %v739 = vmax.f32 %v641, 0.0
  %v740 = vmax.f32 %v646, 0.0
  %v741 = vmax.f32 %v651, 0.0
  %v742 = vmax.f32 %v656, 0.0
  %v743 = vmax.f32 %v661, 0.0
  %v744 = vmax.f32 %v666, 0.0
  %v745 = vmax.f32 %v671, 0.0
  %v746 = vmax.f32 %v676, 0.0
  %v747 = vmax.f32 %v681, 0.0
  %v748 = vld [vmem:[%s1] sm:$0xff]
  %v749 = vld [vmem:[%s1 + $0x8] sm:$0xff]
  %v750 = vld [vmem:[%s1 + $0x10] sm:$0xff]
  %v751 = vld [vmem:[%s1 + $0x18] sm:$0xff]
  %v752 = vld [vmem:[%s1 + $0x20] sm:$0xff]
  %v753 = vld [vmem:[%s1 + $0x28] sm:$0xff]
  %v754 = vld [vmem:[%s1 + $0x30] sm:$0xff]
  %v755 = vld [vmem:[%s1 + $0x38] sm:$0xff]
  %v756 = vld [vmem:[%s1 + $0x40] sm:$0xff]
  %v757 = vld [vmem:[%s1 + $0x48] sm:$0xff]
  %v758 = vld [vmem:[%s1 + $0x50] sm:$0xff]
  %v759 = vld [vmem:[%s1 + $0x58] sm:$0xff]
  %v760 = vld [vmem:[%s1 + $0x60] sm:$0xff]
  %v761 = vld [vmem:[%s1 + $0x68] sm:$0xff]
  %v762 = vld [vmem:[%s1 + $0x70] sm:$0xff]
  %v763 = vld [vmem:[%s1 + $0x78] sm:$0xff]
  %v764 = vld [vmem:[%s1 + $0x80] sm:$0xff]
  %v765 = vld [vmem:[%s1 + $0x88] sm:$0xff]
  %v766 = vld [vmem:[%s1 + $0x90] sm:$0xff]
  %v767 = vld [vmem:[%s1 + $0x98] sm:$0xff]
  %v768 = vld [vmem:[%s1 + $0xa0] sm:$0xff]
  %v769 = vld [vmem:[%s1 + $0xa8] sm:$0xff]
  %v770 = vld [vmem:[%s1 + $0xb0] sm:$0xff]
  %v771 = vld [vmem:[%s1 + $0xb8] sm:$0xff]
  %v772 = vld [vmem:[%s1 + $0xc0] sm:$0xff]
  %v773 = vld [vmem:[%s1 + $0xc8] sm:$0xff]
  %v774 = vld [vmem:[%s1 + $0xd0] sm:$0xff]
  %v775 = vld [vmem:[%s1 + $0xd8] sm:$0xff]
  %v776 = vld [vmem:[%s1 + $0xe0] sm:$0xff]
  %v777 = vld [vmem:[%s1 + $0xe8] sm:$0xff]
  %v778 = vld [vmem:[%s1 + $0xf0] sm:$0xff]
  %v779 = vld [vmem:[%s1 + $0xf8] sm:$0xff]
  %v780 = vld [vmem:[%s1 + $0x100] sm:$0xff]
  %v781 = vld [vmem:[%s1 + $0x108] sm:$0xff]
  %v782 = vld [vmem:[%s1 + $0x110] sm:$0xff]
  %v783 = vld [vmem:[%s1 + $0x118] sm:$0xff]
  %v784 = vld [vmem:[%s1 + $0x120] sm:$0xff]
  %v785 = vld [vmem:[%s1 + $0x128] sm:$0xff]
  %v786 = vld [vmem:[%s1 + $0x130] sm:$0xff]
  %v787 = vld [vmem:[%s1 + $0x138] sm:$0xff]
  %v788 = vld [vmem:[%s1 + $0x140] sm:$0xff]
  %v789 = vld [vmem:[%s1 + $0x148] sm:$0xff]
  %v790 = vld [vmem:[%s1 + $0x150] sm:$0xff]
  %v791 = vld [vmem:[%s1 + $0x158] sm:$0xff]
  %v792 = vld [vmem:[%s1 + $0x160] sm:$0xff]
  %v793 = vld [vmem:[%s1 + $0x168] sm:$0xff]
  %v794 = vld [vmem:[%s1 + $0x170] sm:$0xff]
  %v795 = vld [vmem:[%s1 + $0x178] sm:$0xff]
  %v796 = vld [vmem:[%s1 + $0x180] sm:$0xff]
  %v797 = vld [vmem:[%s1 + $0x188] sm:$0xff]
  %v798 = vld [vmem:[%s1 + $0x190] sm:$0xff]
  %v799 = vld [vmem:[%s1 + $0x198] sm:$0xff]
  %v800 = vld [vmem:[%s1 + $0x1a0] sm:$0xff]
  %v801 = vld [vmem:[%s1 + $0x1a8] sm:$0xff]
  %v802 = vld [vmem:[%s1 + $0x1b0] sm:$0xff]
  %v803 = vld [vmem:[%s1 + $0x1b8] sm:$0xff]
  %v804 = vld [vmem:[%s1 + $0x1c0] sm:$0xff]
  %v805 = vld [vmem:[%s1 + $0x1c8] sm:$0xff]
  %v806 = vld [vmem:[%s1 + $0x1d0] sm:$0xff]
  %v807 = vld [vmem:[%s1 + $0x1d8] sm:$0xff]
  %v808 = vld [vmem:[%s1 + $0x1e0] sm:$0xff]
  %v809 = vld [vmem:[%s1 + $0x1e8] sm:$0xff]
  %v810 = vld [vmem:[%s1 + $0x1f0] sm:$0xff]
  %v811 = vld [vmem:[%s1 + $0x1f8] sm:$0xff]
  %813 = vset.pattern.permute.xlu0 0
  %814 = vperm.xlu0 %813, %v748
  %v815 = vpop.permute.xlu0 %814
  %818 = vset.pattern.permute.xlu0 0
  %819 = vperm.xlu0 %818, %v749
  %v820 = vpop.permute.xlu0 %819
  %823 = vset.pattern.permute.xlu0 0
  %824 = vperm.xlu0 %823, %v750
  %v825 = vpop.permute.xlu0 %824
  %828 = vset.pattern.permute.xlu0 0
  %829 = vperm.xlu0 %828, %v751
  %v830 = vpop.permute.xlu0 %829
  %833 = vset.pattern.permute.xlu0 0
  %834 = vperm.xlu0 %833, %v752
  %v835 = vpop.permute.xlu0 %834
  %838 = vset.pattern.permute.xlu0 0
  %839 = vperm.xlu0 %838, %v753
  %v840 = vpop.permute.xlu0 %839
  %843 = vset.pattern.permute.xlu0 0
  %844 = vperm.xlu0 %843, %v754
  %v845 = vpop.permute.xlu0 %844
  %848 = vset.pattern.permute.xlu0 0
  %849 = vperm.xlu0 %848, %v755
  %v850 = vpop.permute.xlu0 %849
  %853 = vset.pattern.permute.xlu0 0
  %854 = vperm.xlu0 %853, %v756
  %v855 = vpop.permute.xlu0 %854
  %858 = vset.pattern.permute.xlu0 0
  %859 = vperm.xlu0 %858, %v757
  %v860 = vpop.permute.xlu0 %859
  %863 = vset.pattern.permute.xlu0 0
  %864 = vperm.xlu0 %863, %v758
  %v865 = vpop.permute.xlu0 %864
  %868 = vset.pattern.permute.xlu0 0
  %869 = vperm.xlu0 %868, %v759
  %v870 = vpop.permute.xlu0 %869
  %873 = vset.pattern.permute.xlu0 0
  %874 = vperm.xlu0 %873, %v760
  %v875 = vpop.permute.xlu0 %874
  %878 = vset.pattern.permute.xlu0 0
  %879 = vperm.xlu0 %878, %v761
  %v880 = vpop.permute.xlu0 %879
  %883 = vset.pattern.permute.xlu0 0
  %884 = vperm.xlu0 %883, %v762
  %v885 = vpop.permute.xlu0 %884
  %888 = vset.pattern.permute.xlu0 0
  %889 = vperm.xlu0 %888, %v763
  %v890 = vpop.permute.xlu0 %889
  %893 = vset.pattern.permute.xlu0 0
  %894 = vperm.xlu0 %893, %v764
  %v895 = vpop.permute.xlu0 %894
  %898 = vset.pattern.permute.xlu0 0
  %899 = vperm.xlu0 %898, %v765
  %v900 = vpop.permute.xlu0 %899
  %903 = vset.pattern.permute.xlu0 0
  %904 = vperm.xlu0 %903, %v766
  %v905 = vpop.permute.xlu0 %904
  %908 = vset.pattern.permute.xlu0 0
  %909 = vperm.xlu0 %908, %v767
  %v910 = vpop.permute.xlu0 %909
  %913 = vset.pattern.permute.xlu0 0
  %914 = vperm.xlu0 %913, %v768
  %v915 = vpop.permute.xlu0 %914
  %918 = vset.pattern.permute.xlu0 0
  %919 = vperm.xlu0 %918, %v769
  %v920 = vpop.permute.xlu0 %919
  %923 = vset.pattern.permute.xlu0 0
  %924 = vperm.xlu0 %923, %v770
  %v925 = vpop.permute.xlu0 %924
  %928 = vset.pattern.permute.xlu0 0
  %929 = vperm.xlu0 %928, %v771
  %v930 = vpop.permute.xlu0 %929
  %933 = vset.pattern.permute.xlu0 0
  %934 = vperm.xlu0 %933, %v772
  %v935 = vpop.permute.xlu0 %934
  %938 = vset.pattern.permute.xlu0 0
  %939 = vperm.xlu0 %938, %v773
  %v940 = vpop.permute.xlu0 %939
  %943 = vset.pattern.permute.xlu0 0
  %944 = vperm.xlu0 %943, %v774
  %v945 = vpop.permute.xlu0 %944
  %948 = vset.pattern.permute.xlu0 0
  %949 = vperm.xlu0 %948, %v775
  %v950 = vpop.permute.xlu0 %949
  %953 = vset.pattern.permute.xlu0 0
  %954 = vperm.xlu0 %953, %v776
  %v955 = vpop.permute.xlu0 %954
  %958 = vset.pattern.permute.xlu0 0
  %959 = vperm.xlu0 %958, %v777
  %v960 = vpop.permute.xlu0 %959
  %963 = vset.pattern.permute.xlu0 0
  %964 = vperm.xlu0 %963, %v778
  %v965 = vpop.permute.xlu0 %964
  %968 = vset.pattern.permute.xlu0 0
  %969 = vperm.xlu0 %968, %v779
  %v970 = vpop.permute.xlu0 %969
  %973 = vset.pattern.permute.xlu0 0
  %974 = vperm.xlu0 %973, %v780
  %v975 = vpop.permute.xlu0 %974
  %978 = vset.pattern.permute.xlu0 0
  %979 = vperm.xlu0 %978, %v781
  %v980 = vpop.permute.xlu0 %979
  %983 = vset.pattern.permute.xlu0 0
  %984 = vperm.xlu0 %983, %v782
  %v985 = vpop.permute.xlu0 %984
  %988 = vset.pattern.permute.xlu0 0
  %989 = vperm.xlu0 %988, %v783
  %v990 = vpop.permute.xlu0 %989
  %993 = vset.pattern.permute.xlu0 0
  %994 = vperm.xlu0 %993, %v784
  %v995 = vpop.permute.xlu0 %994
  %998 = vset.pattern.permute.xlu0 0
  %999 = vperm.xlu0 %998, %v785
  %v1000 = vpop.permute.xlu0 %999
  %1003 = vset.pattern.permute.xlu0 0
  %1004 = vperm.xlu0 %1003, %v786
  %v1005 = vpop.permute.xlu0 %1004
  %1008 = vset.pattern.permute.xlu0 0
  %1009 = vperm.xlu0 %1008, %v787
  %v1010 = vpop.permute.xlu0 %1009
  %1013 = vset.pattern.permute.xlu0 0
  %1014 = vperm.xlu0 %1013, %v788
  %v1015 = vpop.permute.xlu0 %1014
  %1018 = vset.pattern.permute.xlu0 0
  %1019 = vperm.xlu0 %1018, %v789
  %v1020 = vpop.permute.xlu0 %1019
  %1023 = vset.pattern.permute.xlu0 0
  %1024 = vperm.xlu0 %1023, %v790
  %v1025 = vpop.permute.xlu0 %1024
  %1028 = vset.pattern.permute.xlu0 0
  %1029 = vperm.xlu0 %1028, %v791
  %v1030 = vpop.permute.xlu0 %1029
  %1033 = vset.pattern.permute.xlu0 0
  %1034 = vperm.xlu0 %1033, %v792
  %v1035 = vpop.permute.xlu0 %1034
  %1038 = vset.pattern.permute.xlu0 0
  %1039 = vperm.xlu0 %1038, %v793
  %v1040 = vpop.permute.xlu0 %1039
  %1043 = vset.pattern.permute.xlu0 0
  %1044 = vperm.xlu0 %1043, %v794
  %v1045 = vpop.permute.xlu0 %1044
  %1048 = vset.pattern.permute.xlu0 0
  %1049 = vperm.xlu0 %1048, %v795
  %v1050 = vpop.permute.xlu0 %1049
  %1053 = vset.pattern.permute.xlu0 0
  %1054 = vperm.xlu0 %1053, %v796
  %v1055 = vpop.permute.xlu0 %1054
  %1058 = vset.pattern.permute.xlu0 0
  %1059 = vperm.xlu0 %1058, %v797
  %v1060 = vpop.permute.xlu0 %1059
  %1063 = vset.pattern.permute.xlu0 0
  %1064 = vperm.xlu0 %1063, %v798
  %v1065 = vpop.permute.xlu0 %1064
  %1068 = vset.pattern.permute.xlu0 0
  %1069 = vperm.xlu0 %1068, %v799
  %v1070 = vpop.permute.xlu0 %1069
  %1073 = vset.pattern.permute.xlu0 0
  %1074 = vperm.xlu0 %1073, %v800
  %v1075 = vpop.permute.xlu0 %1074
  %1078 = vset.pattern.permute.xlu0 0
  %1079 = vperm.xlu0 %1078, %v801
  %v1080 = vpop.permute.xlu0 %1079
  %1083 = vset.pattern.permute.xlu0 0
  %1084 = vperm.xlu0 %1083, %v802
  %v1085 = vpop.permute.xlu0 %1084
  %1088 = vset.pattern.permute.xlu0 0
  %1089 = vperm.xlu0 %1088, %v803
  %v1090 = vpop.permute.xlu0 %1089
  %1093 = vset.pattern.permute.xlu0 0
  %1094 = vperm.xlu0 %1093, %v804
  %v1095 = vpop.permute.xlu0 %1094
  %1098 = vset.pattern.permute.xlu0 0
  %1099 = vperm.xlu0 %1098, %v805
  %v1100 = vpop.permute.xlu0 %1099
  %1103 = vset.pattern.permute.xlu0 0
  %1104 = vperm.xlu0 %1103, %v806
  %v1105 = vpop.permute.xlu0 %1104
  %1108 = vset.pattern.permute.xlu0 0
  %1109 = vperm.xlu0 %1108, %v807
  %v1110 = vpop.permute.xlu0 %1109
  %1113 = vset.pattern.permute.xlu0 0
  %1114 = vperm.xlu0 %1113, %v808
  %v1115 = vpop.permute.xlu0 %1114
  %1118 = vset.pattern.permute.xlu0 0
  %1119 = vperm.xlu0 %1118, %v809
  %v1120 = vpop.permute.xlu0 %1119
  %1123 = vset.pattern.permute.xlu0 0
  %1124 = vperm.xlu0 %1123, %v810
  %v1125 = vpop.permute.xlu0 %1124
  %1128 = vset.pattern.permute.xlu0 0
  %1129 = vperm.xlu0 %1128, %v811
  %v1130 = vpop.permute.xlu0 %1129
  %v1132 = vmul.f32 %v684, %v815
  %v1133 = vmul.f32 %v685, %v820
  %v1134 = vmul.f32 %v686, %v825
  %v1135 = vmul.f32 %v687, %v830
  %v1136 = vmul.f32 %v688, %v835
  %v1137 = vmul.f32 %v689, %v840
  %v1138 = vmul.f32 %v690, %v845
  %v1139 = vmul.f32 %v691, %v850
  %v1140 = vmul.f32 %v692, %v855
  %v1141 = vmul.f32 %v693, %v860
  %v1142 = vmul.f32 %v694, %v865
  %v1143 = vmul.f32 %v695, %v870
  %v1144 = vmul.f32 %v696, %v875
  %v1145 = vmul.f32 %v697, %v880
  %v1146 = vmul.f32 %v698, %v885
  %v1147 = vmul.f32 %v699, %v890
  %v1148 = vmul.f32 %v700, %v895
  %v1149 = vmul.f32 %v701, %v900
  %v1150 = vmul.f32 %v702, %v905
  %v1151 = vmul.f32 %v703, %v910
  %v1152 = vmul.f32 %v704, %v915
  %v1153 = vmul.f32 %v705, %v920
  %v1154 = vmul.f32 %v706, %v925
  %v1155 = vmul.f32 %v707, %v930
  %v1156 = vmul.f32 %v708, %v935
  %v1157 = vmul.f32 %v709, %v940
  %v1158 = vmul.f32 %v710, %v945
  %v1159 = vmul.f32 %v711, %v950
  %v1160 = vmul.f32 %v712, %v955
  %v1161 = vmul.f32 %v713, %v960
  %v1162 = vmul.f32 %v714, %v965
  %v1163 = vmul.f32 %v715, %v970
  %v1164 = vmul.f32 %v716, %v975
  %v1165 = vmul.f32 %v717, %v980
  %v1166 = vmul.f32 %v718, %v985
  %v1167 = vmul.f32 %v719, %v990
  %v1168 = vmul.f32 %v720, %v995
  %v1169 = vmul.f32 %v721, %v1000
  %v1170 = vmul.f32 %v722, %v1005
  %v1171 = vmul.f32 %v723, %v1010
  %v1172 = vmul.f32 %v724, %v1015
  %v1173 = vmul.f32 %v725, %v1020
  %v1174 = vmul.f32 %v726, %v1025
  %v1175 = vmul.f32 %v727, %v1030
  %v1176 = vmul.f32 %v728, %v1035
  %v1177 = vmul.f32 %v729, %v1040
  %v1178 = vmul.f32 %v730, %v1045
  %v1179 = vmul.f32 %v731, %v1050
  %v1180 = vmul.f32 %v732, %v1055
  %v1181 = vmul.f32 %v733, %v1060
  %v1182 = vmul.f32 %v734, %v1065
  %v1183 = vmul.f32 %v735, %v1070
  %v1184 = vmul.f32 %v736, %v1075
  %v1185 = vmul.f32 %v737, %v1080
  %v1186 = vmul.f32 %v738, %v1085
  %v1187 = vmul.f32 %v739, %v1090
  %v1188 = vmul.f32 %v740, %v1095
  %v1189 = vmul.f32 %v741, %v1100
  %v1190 = vmul.f32 %v742, %v1105
  %v1191 = vmul.f32 %v743, %v1110
  %v1192 = vmul.f32 %v744, %v1115
  %v1193 = vmul.f32 %v745, %v1120
  %v1194 = vmul.f32 %v746, %v1125
  %v1195 = vmul.f32 %v747, %v1130
  %vm1196 = vcmask 130048
  %1197 = vst.msk [vmem:[#allocation2] sm:$0xff] %vm1196, %v1132
  %1198 = vst.msk [vmem:[#allocation2 + $0x8] sm:$0xff] %vm1196, %v1133
  %1199 = vst.msk [vmem:[#allocation2 + $0x10] sm:$0xff] %vm1196, %v1134
  %1200 = vst.msk [vmem:[#allocation2 + $0x18] sm:$0xff] %vm1196, %v1135
  %1201 = vst.msk [vmem:[#allocation2 + $0x20] sm:$0xff] %vm1196, %v1136
  %1202 = vst.msk [vmem:[#allocation2 + $0x28] sm:$0xff] %vm1196, %v1137
  %1203 = vst.msk [vmem:[#allocation2 + $0x30] sm:$0xff] %vm1196, %v1138
  %1204 = vst.msk [vmem:[#allocation2 + $0x38] sm:$0xff] %vm1196, %v1139
  %1205 = vst.msk [vmem:[#allocation2 + $0x40] sm:$0xff] %vm1196, %v1140
  %1206 = vst.msk [vmem:[#allocation2 + $0x48] sm:$0xff] %vm1196, %v1141
  %1207 = vst.msk [vmem:[#allocation2 + $0x50] sm:$0xff] %vm1196, %v1142
  %1208 = vst.msk [vmem:[#allocation2 + $0x58] sm:$0xff] %vm1196, %v1143
  %1209 = vst.msk [vmem:[#allocation2 + $0x60] sm:$0xff] %vm1196, %v1144
  %1210 = vst.msk [vmem:[#allocation2 + $0x68] sm:$0xff] %vm1196, %v1145
  %1211 = vst.msk [vmem:[#allocation2 + $0x70] sm:$0xff] %vm1196, %v1146
  %1212 = vst.msk [vmem:[#allocation2 + $0x78] sm:$0xff] %vm1196, %v1147
  %1213 = vst.msk [vmem:[#allocation2 + $0x80] sm:$0xff] %vm1196, %v1148
  %1214 = vst.msk [vmem:[#allocation2 + $0x88] sm:$0xff] %vm1196, %v1149
  %1215 = vst.msk [vmem:[#allocation2 + $0x90] sm:$0xff] %vm1196, %v1150
  %1216 = vst.msk [vmem:[#allocation2 + $0x98] sm:$0xff] %vm1196, %v1151
  %1217 = vst.msk [vmem:[#allocation2 + $0xa0] sm:$0xff] %vm1196, %v1152
  %1218 = vst.msk [vmem:[#allocation2 + $0xa8] sm:$0xff] %vm1196, %v1153
  %1219 = vst.msk [vmem:[#allocation2 + $0xb0] sm:$0xff] %vm1196, %v1154
  %1220 = vst.msk [vmem:[#allocation2 + $0xb8] sm:$0xff] %vm1196, %v1155
  %1221 = vst.msk [vmem:[#allocation2 + $0xc0] sm:$0xff] %vm1196, %v1156
  %1222 = vst.msk [vmem:[#allocation2 + $0xc8] sm:$0xff] %vm1196, %v1157
  %1223 = vst.msk [vmem:[#allocation2 + $0xd0] sm:$0xff] %vm1196, %v1158
  %1224 = vst.msk [vmem:[#allocation2 + $0xd8] sm:$0xff] %vm1196, %v1159
  %1225 = vst.msk [vmem:[#allocation2 + $0xe0] sm:$0xff] %vm1196, %v1160
  %1226 = vst.msk [vmem:[#allocation2 + $0xe8] sm:$0xff] %vm1196, %v1161
  %1227 = vst.msk [vmem:[#allocation2 + $0xf0] sm:$0xff] %vm1196, %v1162
  %1228 = vst.msk [vmem:[#allocation2 + $0xf8] sm:$0xff] %vm1196, %v1163
  %1229 = vst.msk [vmem:[#allocation2 + $0x100] sm:$0xff] %vm1196, %v1164
  %1230 = vst.msk [vmem:[#allocation2 + $0x108] sm:$0xff] %vm1196, %v1165
  %1231 = vst.msk [vmem:[#allocation2 + $0x110] sm:$0xff] %vm1196, %v1166
  %1232 = vst.msk [vmem:[#allocation2 + $0x118] sm:$0xff] %vm1196, %v1167
  %1233 = vst.msk [vmem:[#allocation2 + $0x120] sm:$0xff] %vm1196, %v1168
  %1234 = vst.msk [vmem:[#allocation2 + $0x128] sm:$0xff] %vm1196, %v1169
  %1235 = vst.msk [vmem:[#allocation2 + $0x130] sm:$0xff] %vm1196, %v1170
  %1236 = vst.msk [vmem:[#allocation2 + $0x138] sm:$0xff] %vm1196, %v1171
  %1237 = vst.msk [vmem:[#allocation2 + $0x140] sm:$0xff] %vm1196, %v1172
  %1238 = vst.msk [vmem:[#allocation2 + $0x148] sm:$0xff] %vm1196, %v1173
  %1239 = vst.msk [vmem:[#allocation2 + $0x150] sm:$0xff] %vm1196, %v1174
  %1240 = vst.msk [vmem:[#allocation2 + $0x158] sm:$0xff] %vm1196, %v1175
  %1241 = vst.msk [vmem:[#allocation2 + $0x160] sm:$0xff] %vm1196, %v1176
  %1242 = vst.msk [vmem:[#allocation2 + $0x168] sm:$0xff] %vm1196, %v1177
  %1243 = vst.msk [vmem:[#allocation2 + $0x170] sm:$0xff] %vm1196, %v1178
  %1244 = vst.msk [vmem:[#allocation2 + $0x178] sm:$0xff] %vm1196, %v1179
  %1245 = vst.msk [vmem:[#allocation2 + $0x180] sm:$0xff] %vm1196, %v1180
  %1246 = vst.msk [vmem:[#allocation2 + $0x188] sm:$0xff] %vm1196, %v1181
  %1247 = vst.msk [vmem:[#allocation2 + $0x190] sm:$0xff] %vm1196, %v1182
  %1248 = vst.msk [vmem:[#allocation2 + $0x198] sm:$0xff] %vm1196, %v1183
  %1249 = vst.msk [vmem:[#allocation2 + $0x1a0] sm:$0xff] %vm1196, %v1184
  %1250 = vst.msk [vmem:[#allocation2 + $0x1a8] sm:$0xff] %vm1196, %v1185
  %1251 = vst.msk [vmem:[#allocation2 + $0x1b0] sm:$0xff] %vm1196, %v1186
  %1252 = vst.msk [vmem:[#allocation2 + $0x1b8] sm:$0xff] %vm1196, %v1187
  %1253 = vst.msk [vmem:[#allocation2 + $0x1c0] sm:$0xff] %vm1196, %v1188
  %1254 = vst.msk [vmem:[#allocation2 + $0x1c8] sm:$0xff] %vm1196, %v1189
  %1255 = vst.msk [vmem:[#allocation2 + $0x1d0] sm:$0xff] %vm1196, %v1190
  %1256 = vst.msk [vmem:[#allocation2 + $0x1d8] sm:$0xff] %vm1196, %v1191
  %1257 = vst.msk [vmem:[#allocation2 + $0x1e0] sm:$0xff] %vm1196, %v1192
  %1258 = vst.msk [vmem:[#allocation2 + $0x1e8] sm:$0xff] %vm1196, %v1193
  %1259 = vst.msk [vmem:[#allocation2 + $0x1f0] sm:$0xff] %vm1196, %v1194
  %1260 = vst.msk [vmem:[#allocation2 + $0x1f8] sm:$0xff] %vm1196, %v1195
  %1261 = vst.msk [vmem:[#allocation2 + $0x200] sm:$0xff] %vm1196, 0.0
  %v1262 = vld [vmem:[%s5] sm:$0x1]
  %v1264 = vlaneseq
  %v1265 = vshrl.u32 %v1264, 7
  %v1266 = vsub.s32 0, %v1265
  %v1267 = vrot.slane %v1262, %v1266
  %v1269 = vld [vmem:[#allocation2 + $0x180] sm:$0xff]
  %v1270 = vld [vmem:[#allocation2 + $0x188] sm:$0xff]
  %v1271 = vld [vmem:[#allocation2 + $0x190] sm:$0xff]
  %v1272 = vld [vmem:[#allocation2 + $0x198] sm:$0xff]
  %v1273 = vld [vmem:[#allocation2 + $0x1a0] sm:$0xff]
  %v1274 = vld [vmem:[#allocation2 + $0x1a8] sm:$0xff]
  %v1275 = vld [vmem:[#allocation2 + $0x1b0] sm:$0xff]
  %v1276 = vld [vmem:[#allocation2 + $0x1b8] sm:$0xff]
  %v1277 = vld [vmem:[#allocation2 + $0x1c0] sm:$0xff]
  %v1278 = vld [vmem:[#allocation2 + $0x1c8] sm:$0xff]
  %v1279 = vld [vmem:[#allocation2 + $0x1d0] sm:$0xff]
  %v1280 = vld [vmem:[#allocation2 + $0x1d8] sm:$0xff]
  %v1281 = vld [vmem:[#allocation2 + $0x1e0] sm:$0xff]
  %v1282 = vld [vmem:[#allocation2 + $0x1e8] sm:$0xff]
  %v1283 = vld [vmem:[%s4] sm:$0xff]
  %v1284 = vld [vmem:[%s4 + $0x8] sm:$0xff]
  %v1286 = vsel %vm1196, %v1269, 0
  %v1289 = vsel %vm1196, %v1270, 0
  %v1292 = vsel %vm1196, %v1271, 0
  %v1295 = vsel %vm1196, %v1272, 0
  %v1298 = vsel %vm1196, %v1273, 0
  %v1301 = vsel %vm1196, %v1274, 0
  %v1304 = vsel %vm1196, %v1275, 0
  %v1307 = vsel %vm1196, %v1276, 0
  %v1310 = vsel %vm1196, %v1277, 0
  %v1313 = vsel %vm1196, %v1278, 0
  %v1316 = vsel %vm1196, %v1279, 0
  %v1319 = vsel %vm1196, %v1280, 0
  %v1322 = vsel %vm1196, %v1281, 0
  %v1325 = vsel %vm1196, %v1282, 0
  %1327 = vmatprep.subr.mxu0 0.0
  %1328 = vmatpush1.msra.mxu0 0.0
  %1329 = vmatprep.subr.mxu0 0.0
  %1330 = vmatpush1.msra.mxu0 0.0
  %1331 = vmatprep.subr.mxu0 0.0
  %1332 = vmatpush1.msra.mxu0 0.0
  %1333 = vmatprep.subr.mxu0 0.0
  %1334 = vmatpush1.msra.mxu0 0.0
  %1335 = vmatprep.subr.mxu0 0.0
  %1336 = vmatpush1.msra.mxu0 0.0
  %1337 = vmatprep.subr.mxu0 0.0
  %1338 = vmatpush1.msra.mxu0 0.0
  %1339 = vmatprep.subr.mxu0 0.0
  %1340 = vmatpush1.msra.mxu0 0.0
  %1341 = vmatprep.subr.mxu0 0.0
  %1342 = vmatpush1.msra.mxu0 0.0
  %1343 = vmatprep.subr.mxu0 0.0
  %1344 = vmatpush1.msra.mxu0 0.0
  %1345 = vmatprep.subr.mxu0 0.0
  %1346 = vmatpush1.msra.mxu0 0.0
  %1347 = vmatprep.subr.mxu0 0.0
  %1348 = vmatpush1.msra.mxu0 0.0
  %1349 = vmatprep.subr.mxu0 0.0
  %1350 = vmatpush1.msra.mxu0 0.0
  %1351 = vmatprep.subr.mxu0 0.0
  %1352 = vmatpush1.msra.mxu0 0.0
  %1353 = vmatprep.subr.mxu0 0.0
  %1354 = vmatpush1.msra.mxu0 0.0
  %1355 = vmatprep.subr.mxu0 0.0
  %1356 = vmatpush1.msra.mxu0 %v1284
  %1357 = vmatprep.subr.mxu0 0.0
  %1358 = vmatpush1.msra.mxu0 %v1283
  %1359 = vmatprep.subr.mxu0 0.0
  %1360 = vmatpush2.msra.mxu0 0.0
  %1361 = vmatprep.subr.mxu0 0.0
  %1362 = vmatpush2.msra.mxu0 0.0
  %1363 = vmatprep.subr.mxu0 0.0
  %1364 = vmatpush2.msra.mxu0 0.0
  %1365 = vmatprep.subr.mxu0 0.0
  %1366 = vmatpush2.msra.mxu0 0.0
  %1367 = vmatprep.subr.mxu0 0.0
  %1368 = vmatpush2.msra.mxu0 0.0
  %1369 = vmatprep.subr.mxu0 0.0
  %1370 = vmatpush2.msra.mxu0 0.0
  %1371 = vmatprep.subr.mxu0 0.0
  %1372 = vmatpush2.msra.mxu0 0.0
  %1373 = vmatprep.subr.mxu0 0.0
  %1374 = vmatpush2.msra.mxu0 0.0
  %1375 = vmatprep.subr.mxu0 0.0
  %1376 = vmatpush2.msra.mxu0 0.0
  %1377 = vmatprep.subr.mxu0 0.0
  %1378 = vmatpush2.msra.mxu0 0.0
  %1379 = vmatprep.subr.mxu0 0.0
  %1380 = vmatpush2.msra.mxu0 0.0
  %1381 = vmatprep.subr.mxu0 0.0
  %1382 = vmatpush2.msra.mxu0 0.0
  %1383 = vmatprep.subr.mxu0 0.0
  %1384 = vmatpush2.msra.mxu0 0.0
  %1385 = vmatprep.subr.mxu0 0.0
  %1386 = vmatpush2.msra.mxu0 0.0
  %1387 = vmatprep.subr.mxu0 0.0
  %1388 = vmatpush2.msra.mxu0 0.0
  %1389 = vmatprep.subr.mxu0 0.0
  %1390 = vmatpush2.msra.mxu0 0.0
  %1391 = vmatprep.mubr.f32.mxu0 0.0
  %1392 = vmatmul.mubr.f32.gmra.mxu0 %v1286
  %v1393 = vpop.f32.mrf.mxu0
  %v1394 = vadd.f32 0.0, %v1393
  %v1395 = vpop.f32.mrf.mxu0
  %1396 = vmatprep.mubr.f32.mxu0 0.0
  %1397 = vmatmul.mubr.f32.gmra.mxu0 %v1289
  %v1398 = vpop.f32.mrf.mxu0
  %v1399 = vadd.f32 0.0, %v1398
  %v1400 = vpop.f32.mrf.mxu0
  %1401 = vmatprep.mubr.f32.mxu0 0.0
  %1402 = vmatmul.mubr.f32.gmra.mxu0 %v1292
  %v1403 = vpop.f32.mrf.mxu0
  %v1404 = vadd.f32 0.0, %v1403
  %v1405 = vpop.f32.mrf.mxu0
  %1406 = vmatprep.mubr.f32.mxu0 0.0
  %1407 = vmatmul.mubr.f32.gmra.mxu0 %v1295
  %v1408 = vpop.f32.mrf.mxu0
  %v1409 = vadd.f32 0.0, %v1408
  %v1410 = vpop.f32.mrf.mxu0
  %1411 = vmatprep.mubr.f32.mxu0 0.0
  %1412 = vmatmul.mubr.f32.gmra.mxu0 %v1298
  %v1413 = vpop.f32.mrf.mxu0
  %v1414 = vadd.f32 0.0, %v1413
  %v1415 = vpop.f32.mrf.mxu0
  %1416 = vmatprep.mubr.f32.mxu0 0.0
  %1417 = vmatmul.mubr.f32.gmra.mxu0 %v1301
  %v1418 = vpop.f32.mrf.mxu0
  %v1419 = vadd.f32 0.0, %v1418
  %v1420 = vpop.f32.mrf.mxu0
  %1421 = vmatprep.mubr.f32.mxu0 0.0
  %1422 = vmatmul.mubr.f32.gmra.mxu0 %v1304
  %v1423 = vpop.f32.mrf.mxu0
  %v1424 = vadd.f32 0.0, %v1423
  %v1425 = vpop.f32.mrf.mxu0
  %1426 = vmatprep.mubr.f32.mxu0 0.0
  %1427 = vmatmul.mubr.f32.gmra.mxu0 %v1307
  %v1428 = vpop.f32.mrf.mxu0
  %v1429 = vadd.f32 0.0, %v1428
  %v1430 = vpop.f32.mrf.mxu0
  %1431 = vmatprep.mubr.f32.mxu0 0.0
  %1432 = vmatmul.mubr.f32.gmra.mxu0 %v1310
  %v1433 = vpop.f32.mrf.mxu0
  %v1434 = vadd.f32 0.0, %v1433
  %v1435 = vpop.f32.mrf.mxu0
  %1436 = vmatprep.mubr.f32.mxu0 0.0
  %1437 = vmatmul.mubr.f32.gmra.mxu0 %v1313
  %v1438 = vpop.f32.mrf.mxu0
  %v1439 = vadd.f32 0.0, %v1438
  %v1440 = vpop.f32.mrf.mxu0
  %1441 = vmatprep.mubr.f32.mxu0 0.0
  %1442 = vmatmul.mubr.f32.gmra.mxu0 %v1316
  %v1443 = vpop.f32.mrf.mxu0
  %v1444 = vadd.f32 0.0, %v1443
  %v1445 = vpop.f32.mrf.mxu0
  %1446 = vmatprep.mubr.f32.mxu0 0.0
  %1447 = vmatmul.mubr.f32.gmra.mxu0 %v1319
  %v1448 = vpop.f32.mrf.mxu0
  %v1449 = vadd.f32 0.0, %v1448
  %v1450 = vpop.f32.mrf.mxu0
  %1451 = vmatprep.mubr.f32.mxu0 0.0
  %1452 = vmatmul.mubr.f32.gmra.mxu0 %v1322
  %v1453 = vpop.f32.mrf.mxu0
  %v1454 = vadd.f32 0.0, %v1453
  %v1455 = vpop.f32.mrf.mxu0
  %1456 = vmatprep.mubr.f32.mxu0 0.0
  %1457 = vmatmul.mubr.f32.gmra.mxu0 %v1325
  %v1458 = vpop.f32.mrf.mxu0
  %v1459 = vadd.f32 0.0, %v1458
  %v1460 = vpop.f32.mrf.mxu0
  %1461 = vdwg.mxu0
  %v1462 = vadd.f32 %v1267, %v1394
  %v1463 = vadd.f32 %v1267, %v1399
  %v1464 = vadd.f32 %v1267, %v1404
  %v1465 = vadd.f32 %v1267, %v1409
  %v1466 = vadd.f32 %v1267, %v1414
  %v1467 = vadd.f32 %v1267, %v1419
  %v1468 = vadd.f32 %v1267, %v1424
  %v1469 = vadd.f32 %v1267, %v1429
  %v1470 = vadd.f32 %v1267, %v1434
  %v1471 = vadd.f32 %v1267, %v1439
  %v1472 = vadd.f32 %v1267, %v1444
  %v1473 = vadd.f32 %v1267, %v1449
  %v1474 = vadd.f32 %v1267, %v1454
  %v1475 = vadd.f32 %v1267, %v1459
  %v1476 = vld [vmem:[#allocation2 + $0x102] sm:$0xff]
  %v1477 = vld [vmem:[#allocation2 + $0x10a] sm:$0xff]
  %v1478 = vld [vmem:[#allocation2 + $0x112] sm:$0xff]
  %v1479 = vld [vmem:[#allocation2 + $0x11a] sm:$0xff]
  %v1480 = vld [vmem:[#allocation2 + $0x122] sm:$0xff]
  %v1481 = vld [vmem:[#allocation2 + $0x12a] sm:$0xff]
  %v1482 = vld [vmem:[#allocation2 + $0x132] sm:$0xff]
  %v1483 = vld [vmem:[#allocation2 + $0x13a] sm:$0xff]
  %v1484 = vld [vmem:[#allocation2 + $0x142] sm:$0xff]
  %v1485 = vld [vmem:[#allocation2 + $0x14a] sm:$0xff]
  %v1486 = vld [vmem:[#allocation2 + $0x152] sm:$0xff]
  %v1487 = vld [vmem:[#allocation2 + $0x15a] sm:$0xff]
  %v1488 = vld [vmem:[#allocation2 + $0x162] sm:$0xff]
  %v1489 = vld [vmem:[#allocation2 + $0x16a] sm:$0xff]
  %s1490 = scalar_lea.vmem %s4, 16
  %v1491 = vld [vmem:[%s1490] sm:$0xff]
  %v1492 = vld [vmem:[%s1490 + $0x8] sm:$0xff]
  %v1494 = vsel %vm1196, %v1476, 0
  %v1497 = vsel %vm1196, %v1477, 0
  %v1500 = vsel %vm1196, %v1478, 0
  %v1503 = vsel %vm1196, %v1479, 0
  %v1506 = vsel %vm1196, %v1480, 0
  %v1509 = vsel %vm1196, %v1481, 0
  %v1512 = vsel %vm1196, %v1482, 0
  %v1515 = vsel %vm1196, %v1483, 0
  %v1518 = vsel %vm1196, %v1484, 0
  %v1521 = vsel %vm1196, %v1485, 0
  %v1524 = vsel %vm1196, %v1486, 0
  %v1527 = vsel %vm1196, %v1487, 0
  %v1530 = vsel %vm1196, %v1488, 0
  %v1533 = vsel %vm1196, %v1489, 0
  %1535 = vmatprep.subr.mxu0 0.0
  %1536 = vmatpush1.msra.mxu0 0.0
  %1537 = vmatprep.subr.mxu0 0.0
  %1538 = vmatpush1.msra.mxu0 0.0
  %1539 = vmatprep.subr.mxu0 0.0
  %1540 = vmatpush1.msra.mxu0 0.0
  %1541 = vmatprep.subr.mxu0 0.0
  %1542 = vmatpush1.msra.mxu0 0.0
  %1543 = vmatprep.subr.mxu0 0.0
  %1544 = vmatpush1.msra.mxu0 0.0
  %1545 = vmatprep.subr.mxu0 0.0
  %1546 = vmatpush1.msra.mxu0 0.0
  %1547 = vmatprep.subr.mxu0 0.0
  %1548 = vmatpush1.msra.mxu0 0.0
  %1549 = vmatprep.subr.mxu0 0.0
  %1550 = vmatpush1.msra.mxu0 0.0
  %1551 = vmatprep.subr.mxu0 0.0
  %1552 = vmatpush1.msra.mxu0 0.0
  %1553 = vmatprep.subr.mxu0 0.0
  %1554 = vmatpush1.msra.mxu0 0.0
  %1555 = vmatprep.subr.mxu0 0.0
  %1556 = vmatpush1.msra.mxu0 0.0
  %1557 = vmatprep.subr.mxu0 0.0
  %1558 = vmatpush1.msra.mxu0 0.0
  %1559 = vmatprep.subr.mxu0 0.0
  %1560 = vmatpush1.msra.mxu0 0.0
  %1561 = vmatprep.subr.mxu0 0.0
  %1562 = vmatpush1.msra.mxu0 0.0
  %1563 = vmatprep.subr.mxu0 0.0
  %1564 = vmatpush1.msra.mxu0 %v1492
  %1565 = vmatprep.subr.mxu0 0.0
  %1566 = vmatpush1.msra.mxu0 %v1491
  %1567 = vmatprep.subr.mxu0 0.0
  %1568 = vmatpush2.msra.mxu0 0.0
  %1569 = vmatprep.subr.mxu0 0.0
  %1570 = vmatpush2.msra.mxu0 0.0
  %1571 = vmatprep.subr.mxu0 0.0
  %1572 = vmatpush2.msra.mxu0 0.0
  %1573 = vmatprep.subr.mxu0 0.0
  %1574 = vmatpush2.msra.mxu0 0.0
  %1575 = vmatprep.subr.mxu0 0.0
  %1576 = vmatpush2.msra.mxu0 0.0
  %1577 = vmatprep.subr.mxu0 0.0
  %1578 = vmatpush2.msra.mxu0 0.0
  %1579 = vmatprep.subr.mxu0 0.0
  %1580 = vmatpush2.msra.mxu0 0.0
  %1581 = vmatprep.subr.mxu0 0.0
  %1582 = vmatpush2.msra.mxu0 0.0
  %1583 = vmatprep.subr.mxu0 0.0
  %1584 = vmatpush2.msra.mxu0 0.0
  %1585 = vmatprep.subr.mxu0 0.0
  %1586 = vmatpush2.msra.mxu0 0.0
  %1587 = vmatprep.subr.mxu0 0.0
  %1588 = vmatpush2.msra.mxu0 0.0
  %1589 = vmatprep.subr.mxu0 0.0
  %1590 = vmatpush2.msra.mxu0 0.0
  %1591 = vmatprep.subr.mxu0 0.0
  %1592 = vmatpush2.msra.mxu0 0.0
  %1593 = vmatprep.subr.mxu0 0.0
  %1594 = vmatpush2.msra.mxu0 0.0
  %1595 = vmatprep.subr.mxu0 0.0
  %1596 = vmatpush2.msra.mxu0 0.0
  %1597 = vmatprep.subr.mxu0 0.0
  %1598 = vmatpush2.msra.mxu0 0.0
  %1599 = vmatprep.mubr.f32.mxu0 0.0
  %1600 = vmatmul.mubr.f32.gmra.mxu0 %v1494
  %v1601 = vpop.f32.mrf.mxu0
  %v1602 = vadd.f32 0.0, %v1601
  %v1603 = vpop.f32.mrf.mxu0
  %1604 = vmatprep.mubr.f32.mxu0 0.0
  %1605 = vmatmul.mubr.f32.gmra.mxu0 %v1497
  %v1606 = vpop.f32.mrf.mxu0
  %v1607 = vadd.f32 0.0, %v1606
  %v1608 = vpop.f32.mrf.mxu0
  %1609 = vmatprep.mubr.f32.mxu0 0.0
  %1610 = vmatmul.mubr.f32.gmra.mxu0 %v1500
  %v1611 = vpop.f32.mrf.mxu0
  %v1612 = vadd.f32 0.0, %v1611
  %v1613 = vpop.f32.mrf.mxu0
  %1614 = vmatprep.mubr.f32.mxu0 0.0
  %1615 = vmatmul.mubr.f32.gmra.mxu0 %v1503
  %v1616 = vpop.f32.mrf.mxu0
  %v1617 = vadd.f32 0.0, %v1616
  %v1618 = vpop.f32.mrf.mxu0
  %1619 = vmatprep.mubr.f32.mxu0 0.0
  %1620 = vmatmul.mubr.f32.gmra.mxu0 %v1506
  %v1621 = vpop.f32.mrf.mxu0
  %v1622 = vadd.f32 0.0, %v1621
  %v1623 = vpop.f32.mrf.mxu0
  %1624 = vmatprep.mubr.f32.mxu0 0.0
  %1625 = vmatmul.mubr.f32.gmra.mxu0 %v1509
  %v1626 = vpop.f32.mrf.mxu0
  %v1627 = vadd.f32 0.0, %v1626
  %v1628 = vpop.f32.mrf.mxu0
  %1629 = vmatprep.mubr.f32.mxu0 0.0
  %1630 = vmatmul.mubr.f32.gmra.mxu0 %v1512
  %v1631 = vpop.f32.mrf.mxu0
  %v1632 = vadd.f32 0.0, %v1631
  %v1633 = vpop.f32.mrf.mxu0
  %1634 = vmatprep.mubr.f32.mxu0 0.0
  %1635 = vmatmul.mubr.f32.gmra.mxu0 %v1515
  %v1636 = vpop.f32.mrf.mxu0
  %v1637 = vadd.f32 0.0, %v1636
  %v1638 = vpop.f32.mrf.mxu0
  %1639 = vmatprep.mubr.f32.mxu0 0.0
  %1640 = vmatmul.mubr.f32.gmra.mxu0 %v1518
  %v1641 = vpop.f32.mrf.mxu0
  %v1642 = vadd.f32 0.0, %v1641
  %v1643 = vpop.f32.mrf.mxu0
  %1644 = vmatprep.mubr.f32.mxu0 0.0
  %1645 = vmatmul.mubr.f32.gmra.mxu0 %v1521
  %v1646 = vpop.f32.mrf.mxu0
  %v1647 = vadd.f32 0.0, %v1646
  %v1648 = vpop.f32.mrf.mxu0
  %1649 = vmatprep.mubr.f32.mxu0 0.0
  %1650 = vmatmul.mubr.f32.gmra.mxu0 %v1524
  %v1651 = vpop.f32.mrf.mxu0
  %v1652 = vadd.f32 0.0, %v1651
  %v1653 = vpop.f32.mrf.mxu0
  %1654 = vmatprep.mubr.f32.mxu0 0.0
  %1655 = vmatmul.mubr.f32.gmra.mxu0 %v1527
  %v1656 = vpop.f32.mrf.mxu0
  %v1657 = vadd.f32 0.0, %v1656
  %v1658 = vpop.f32.mrf.mxu0
  %1659 = vmatprep.mubr.f32.mxu0 0.0
  %1660 = vmatmul.mubr.f32.gmra.mxu0 %v1530
  %v1661 = vpop.f32.mrf.mxu0
  %v1662 = vadd.f32 0.0, %v1661
  %v1663 = vpop.f32.mrf.mxu0
  %1664 = vmatprep.mubr.f32.mxu0 0.0
  %1665 = vmatmul.mubr.f32.gmra.mxu0 %v1533
  %v1666 = vpop.f32.mrf.mxu0
  %v1667 = vadd.f32 0.0, %v1666
  %v1668 = vpop.f32.mrf.mxu0
  %1669 = vdwg.mxu0
  %v1670 = vadd.f32 %v1462, %v1602
  %v1671 = vadd.f32 %v1463, %v1607
  %v1672 = vadd.f32 %v1464, %v1612
  %v1673 = vadd.f32 %v1465, %v1617
  %v1674 = vadd.f32 %v1466, %v1622
  %v1675 = vadd.f32 %v1467, %v1627
  %v1676 = vadd.f32 %v1468, %v1632
  %v1677 = vadd.f32 %v1469, %v1637
  %v1678 = vadd.f32 %v1470, %v1642
  %v1679 = vadd.f32 %v1471, %v1647
  %v1680 = vadd.f32 %v1472, %v1652
  %v1681 = vadd.f32 %v1473, %v1657
  %v1682 = vadd.f32 %v1474, %v1662
  %v1683 = vadd.f32 %v1475, %v1667
  %v1684 = vld [vmem:[#allocation2 + $0x182] sm:$0xff]
  %v1685 = vld [vmem:[#allocation2 + $0x18a] sm:$0xff]
  %v1686 = vld [vmem:[#allocation2 + $0x192] sm:$0xff]
  %v1687 = vld [vmem:[#allocation2 + $0x19a] sm:$0xff]
  %v1688 = vld [vmem:[#allocation2 + $0x1a2] sm:$0xff]
  %v1689 = vld [vmem:[#allocation2 + $0x1aa] sm:$0xff]
  %v1690 = vld [vmem:[#allocation2 + $0x1b2] sm:$0xff]
  %v1691 = vld [vmem:[#allocation2 + $0x1ba] sm:$0xff]
  %v1692 = vld [vmem:[#allocation2 + $0x1c2] sm:$0xff]
  %v1693 = vld [vmem:[#allocation2 + $0x1ca] sm:$0xff]
  %v1694 = vld [vmem:[#allocation2 + $0x1d2] sm:$0xff]
  %v1695 = vld [vmem:[#allocation2 + $0x1da] sm:$0xff]
  %v1696 = vld [vmem:[#allocation2 + $0x1e2] sm:$0xff]
  %v1697 = vld [vmem:[#allocation2 + $0x1ea] sm:$0xff]
  %s1698 = scalar_lea.vmem %s4, 32
  %v1699 = vld [vmem:[%s1698] sm:$0xff]
  %v1700 = vld [vmem:[%s1698 + $0x8] sm:$0xff]
  %v1702 = vsel %vm1196, %v1684, 0
  %v1705 = vsel %vm1196, %v1685, 0
  %v1708 = vsel %vm1196, %v1686, 0
  %v1711 = vsel %vm1196, %v1687, 0
  %v1714 = vsel %vm1196, %v1688, 0
  %v1717 = vsel %vm1196, %v1689, 0
  %v1720 = vsel %vm1196, %v1690, 0
  %v1723 = vsel %vm1196, %v1691, 0
  %v1726 = vsel %vm1196, %v1692, 0
  %v1729 = vsel %vm1196, %v1693, 0
  %v1732 = vsel %vm1196, %v1694, 0
  %v1735 = vsel %vm1196, %v1695, 0
  %v1738 = vsel %vm1196, %v1696, 0
  %v1741 = vsel %vm1196, %v1697, 0
  %1743 = vmatprep.subr.mxu0 0.0
  %1744 = vmatpush1.msra.mxu0 0.0
  %1745 = vmatprep.subr.mxu0 0.0
  %1746 = vmatpush1.msra.mxu0 0.0
  %1747 = vmatprep.subr.mxu0 0.0
  %1748 = vmatpush1.msra.mxu0 0.0
  %1749 = vmatprep.subr.mxu0 0.0
  %1750 = vmatpush1.msra.mxu0 0.0
  %1751 = vmatprep.subr.mxu0 0.0
  %1752 = vmatpush1.msra.mxu0 0.0
  %1753 = vmatprep.subr.mxu0 0.0
  %1754 = vmatpush1.msra.mxu0 0.0
  %1755 = vmatprep.subr.mxu0 0.0
  %1756 = vmatpush1.msra.mxu0 0.0
  %1757 = vmatprep.subr.mxu0 0.0
  %1758 = vmatpush1.msra.mxu0 0.0
  %1759 = vmatprep.subr.mxu0 0.0
  %1760 = vmatpush1.msra.mxu0 0.0
  %1761 = vmatprep.subr.mxu0 0.0
  %1762 = vmatpush1.msra.mxu0 0.0
  %1763 = vmatprep.subr.mxu0 0.0
  %1764 = vmatpush1.msra.mxu0 0.0
  %1765 = vmatprep.subr.mxu0 0.0
  %1766 = vmatpush1.msra.mxu0 0.0
  %1767 = vmatprep.subr.mxu0 0.0
  %1768 = vmatpush1.msra.mxu0 0.0
  %1769 = vmatprep.subr.mxu0 0.0
  %1770 = vmatpush1.msra.mxu0 0.0
  %1771 = vmatprep.subr.mxu0 0.0
  %1772 = vmatpush1.msra.mxu0 %v1700
  %1773 = vmatprep.subr.mxu0 0.0
  %1774 = vmatpush1.msra.mxu0 %v1699
  %1775 = vmatprep.subr.mxu0 0.0
  %1776 = vmatpush2.msra.mxu0 0.0
  %1777 = vmatprep.subr.mxu0 0.0
  %1778 = vmatpush2.msra.mxu0 0.0
  %1779 = vmatprep.subr.mxu0 0.0
  %1780 = vmatpush2.msra.mxu0 0.0
  %1781 = vmatprep.subr.mxu0 0.0
  %1782 = vmatpush2.msra.mxu0 0.0
  %1783 = vmatprep.subr.mxu0 0.0
  %1784 = vmatpush2.msra.mxu0 0.0
  %1785 = vmatprep.subr.mxu0 0.0
  %1786 = vmatpush2.msra.mxu0 0.0
  %1787 = vmatprep.subr.mxu0 0.0
  %1788 = vmatpush2.msra.mxu0 0.0
  %1789 = vmatprep.subr.mxu0 0.0
  %1790 = vmatpush2.msra.mxu0 0.0
  %1791 = vmatprep.subr.mxu0 0.0
  %1792 = vmatpush2.msra.mxu0 0.0
  %1793 = vmatprep.subr.mxu0 0.0
  %1794 = vmatpush2.msra.mxu0 0.0
  %1795 = vmatprep.subr.mxu0 0.0
  %1796 = vmatpush2.msra.mxu0 0.0
  %1797 = vmatprep.subr.mxu0 0.0
  %1798 = vmatpush2.msra.mxu0 0.0
  %1799 = vmatprep.subr.mxu0 0.0
  %1800 = vmatpush2.msra.mxu0 0.0
  %1801 = vmatprep.subr.mxu0 0.0
  %1802 = vmatpush2.msra.mxu0 0.0
  %1803 = vmatprep.subr.mxu0 0.0
  %1804 = vmatpush2.msra.mxu0 0.0
  %1805 = vmatprep.subr.mxu0 0.0
  %1806 = vmatpush2.msra.mxu0 0.0
  %1807 = vmatprep.mubr.f32.mxu0 0.0
  %1808 = vmatmul.mubr.f32.gmra.mxu0 %v1702
  %v1809 = vpop.f32.mrf.mxu0
  %v1810 = vadd.f32 0.0, %v1809
  %v1811 = vpop.f32.mrf.mxu0
  %1812 = vmatprep.mubr.f32.mxu0 0.0
  %1813 = vmatmul.mubr.f32.gmra.mxu0 %v1705
  %v1814 = vpop.f32.mrf.mxu0
  %v1815 = vadd.f32 0.0, %v1814
  %v1816 = vpop.f32.mrf.mxu0
  %1817 = vmatprep.mubr.f32.mxu0 0.0
  %1818 = vmatmul.mubr.f32.gmra.mxu0 %v1708
  %v1819 = vpop.f32.mrf.mxu0
  %v1820 = vadd.f32 0.0, %v1819
  %v1821 = vpop.f32.mrf.mxu0
  %1822 = vmatprep.mubr.f32.mxu0 0.0
  %1823 = vmatmul.mubr.f32.gmra.mxu0 %v1711
  %v1824 = vpop.f32.mrf.mxu0
  %v1825 = vadd.f32 0.0, %v1824
  %v1826 = vpop.f32.mrf.mxu0
  %1827 = vmatprep.mubr.f32.mxu0 0.0
  %1828 = vmatmul.mubr.f32.gmra.mxu0 %v1714
  %v1829 = vpop.f32.mrf.mxu0
  %v1830 = vadd.f32 0.0, %v1829
  %v1831 = vpop.f32.mrf.mxu0
  %1832 = vmatprep.mubr.f32.mxu0 0.0
  %1833 = vmatmul.mubr.f32.gmra.mxu0 %v1717
  %v1834 = vpop.f32.mrf.mxu0
  %v1835 = vadd.f32 0.0, %v1834
  %v1836 = vpop.f32.mrf.mxu0
  %1837 = vmatprep.mubr.f32.mxu0 0.0
  %1838 = vmatmul.mubr.f32.gmra.mxu0 %v1720
  %v1839 = vpop.f32.mrf.mxu0
  %v1840 = vadd.f32 0.0, %v1839
  %v1841 = vpop.f32.mrf.mxu0
  %1842 = vmatprep.mubr.f32.mxu0 0.0
  %1843 = vmatmul.mubr.f32.gmra.mxu0 %v1723
  %v1844 = vpop.f32.mrf.mxu0
  %v1845 = vadd.f32 0.0, %v1844
  %v1846 = vpop.f32.mrf.mxu0
  %1847 = vmatprep.mubr.f32.mxu0 0.0
  %1848 = vmatmul.mubr.f32.gmra.mxu0 %v1726
  %v1849 = vpop.f32.mrf.mxu0
  %v1850 = vadd.f32 0.0, %v1849
  %v1851 = vpop.f32.mrf.mxu0
  %1852 = vmatprep.mubr.f32.mxu0 0.0
  %1853 = vmatmul.mubr.f32.gmra.mxu0 %v1729
  %v1854 = vpop.f32.mrf.mxu0
  %v1855 = vadd.f32 0.0, %v1854
  %v1856 = vpop.f32.mrf.mxu0
  %1857 = vmatprep.mubr.f32.mxu0 0.0
  %1858 = vmatmul.mubr.f32.gmra.mxu0 %v1732
  %v1859 = vpop.f32.mrf.mxu0
  %v1860 = vadd.f32 0.0, %v1859
  %v1861 = vpop.f32.mrf.mxu0
  %1862 = vmatprep.mubr.f32.mxu0 0.0
  %1863 = vmatmul.mubr.f32.gmra.mxu0 %v1735
  %v1864 = vpop.f32.mrf.mxu0
  %v1865 = vadd.f32 0.0, %v1864
  %v1866 = vpop.f32.mrf.mxu0
  %1867 = vmatprep.mubr.f32.mxu0 0.0
  %1868 = vmatmul.mubr.f32.gmra.mxu0 %v1738
  %v1869 = vpop.f32.mrf.mxu0
  %v1870 = vadd.f32 0.0, %v1869
  %v1871 = vpop.f32.mrf.mxu0
  %1872 = vmatprep.mubr.f32.mxu0 0.0
  %1873 = vmatmul.mubr.f32.gmra.mxu0 %v1741
  %v1874 = vpop.f32.mrf.mxu0
  %v1875 = vadd.f32 0.0, %v1874
  %v1876 = vpop.f32.mrf.mxu0
  %1877 = vdwg.mxu0
  %v1878 = vadd.f32 %v1670, %v1810
  %v1879 = vadd.f32 %v1671, %v1815
  %v1880 = vadd.f32 %v1672, %v1820
  %v1881 = vadd.f32 %v1673, %v1825
  %v1882 = vadd.f32 %v1674, %v1830
  %v1883 = vadd.f32 %v1675, %v1835
  %v1884 = vadd.f32 %v1676, %v1840
  %v1885 = vadd.f32 %v1677, %v1845
  %v1886 = vadd.f32 %v1678, %v1850
  %v1887 = vadd.f32 %v1679, %v1855
  %v1888 = vadd.f32 %v1680, %v1860
  %v1889 = vadd.f32 %v1681, %v1865
  %v1890 = vadd.f32 %v1682, %v1870
  %v1891 = vadd.f32 %v1683, %v1875
  %v1892 = vld [vmem:[#allocation2 + $0x90] sm:$0xff]
  %v1893 = vld [vmem:[#allocation2 + $0x98] sm:$0xff]
  %v1894 = vld [vmem:[#allocation2 + $0xa0] sm:$0xff]
  %v1895 = vld [vmem:[#allocation2 + $0xa8] sm:$0xff]
  %v1896 = vld [vmem:[#allocation2 + $0xb0] sm:$0xff]
  %v1897 = vld [vmem:[#allocation2 + $0xb8] sm:$0xff]
  %v1898 = vld [vmem:[#allocation2 + $0xc0] sm:$0xff]
  %v1899 = vld [vmem:[#allocation2 + $0xc8] sm:$0xff]
  %v1900 = vld [vmem:[#allocation2 + $0xd0] sm:$0xff]
  %v1901 = vld [vmem:[#allocation2 + $0xd8] sm:$0xff]
  %v1902 = vld [vmem:[#allocation2 + $0xe0] sm:$0xff]
  %v1903 = vld [vmem:[#allocation2 + $0xe8] sm:$0xff]
  %v1904 = vld [vmem:[#allocation2 + $0xf0] sm:$0xff]
  %v1905 = vld [vmem:[#allocation2 + $0xf8] sm:$0xff]
  %s1906 = scalar_lea.vmem %s4, 48
  %v1907 = vld [vmem:[%s1906] sm:$0xff]
  %v1908 = vld [vmem:[%s1906 + $0x8] sm:$0xff]
  %v1910 = vsel %vm1196, %v1892, 0
  %v1913 = vsel %vm1196, %v1893, 0
  %v1916 = vsel %vm1196, %v1894, 0
  %v1919 = vsel %vm1196, %v1895, 0
  %v1922 = vsel %vm1196, %v1896, 0
  %v1925 = vsel %vm1196, %v1897, 0
  %v1928 = vsel %vm1196, %v1898, 0
  %v1931 = vsel %vm1196, %v1899, 0
  %v1934 = vsel %vm1196, %v1900, 0
  %v1937 = vsel %vm1196, %v1901, 0
  %v1940 = vsel %vm1196, %v1902, 0
  %v1943 = vsel %vm1196, %v1903, 0
  %v1946 = vsel %vm1196, %v1904, 0
  %v1949 = vsel %vm1196, %v1905, 0
  %1951 = vmatprep.subr.mxu0 0.0
  %1952 = vmatpush1.msra.mxu0 0.0
  %1953 = vmatprep.subr.mxu0 0.0
  %1954 = vmatpush1.msra.mxu0 0.0
  %1955 = vmatprep.subr.mxu0 0.0
  %1956 = vmatpush1.msra.mxu0 0.0
  %1957 = vmatprep.subr.mxu0 0.0
  %1958 = vmatpush1.msra.mxu0 0.0
  %1959 = vmatprep.subr.mxu0 0.0
  %1960 = vmatpush1.msra.mxu0 0.0
  %1961 = vmatprep.subr.mxu0 0.0
  %1962 = vmatpush1.msra.mxu0 0.0
  %1963 = vmatprep.subr.mxu0 0.0
  %1964 = vmatpush1.msra.mxu0 0.0
  %1965 = vmatprep.subr.mxu0 0.0
  %1966 = vmatpush1.msra.mxu0 0.0
  %1967 = vmatprep.subr.mxu0 0.0
  %1968 = vmatpush1.msra.mxu0 0.0
  %1969 = vmatprep.subr.mxu0 0.0
  %1970 = vmatpush1.msra.mxu0 0.0
  %1971 = vmatprep.subr.mxu0 0.0
  %1972 = vmatpush1.msra.mxu0 0.0
  %1973 = vmatprep.subr.mxu0 0.0
  %1974 = vmatpush1.msra.mxu0 0.0
  %1975 = vmatprep.subr.mxu0 0.0
  %1976 = vmatpush1.msra.mxu0 0.0
  %1977 = vmatprep.subr.mxu0 0.0
  %1978 = vmatpush1.msra.mxu0 0.0
  %1979 = vmatprep.subr.mxu0 0.0
  %1980 = vmatpush1.msra.mxu0 %v1908
  %1981 = vmatprep.subr.mxu0 0.0
  %1982 = vmatpush1.msra.mxu0 %v1907
  %1983 = vmatprep.subr.mxu0 0.0
  %1984 = vmatpush2.msra.mxu0 0.0
  %1985 = vmatprep.subr.mxu0 0.0
  %1986 = vmatpush2.msra.mxu0 0.0
  %1987 = vmatprep.subr.mxu0 0.0
  %1988 = vmatpush2.msra.mxu0 0.0
  %1989 = vmatprep.subr.mxu0 0.0
  %1990 = vmatpush2.msra.mxu0 0.0
  %1991 = vmatprep.subr.mxu0 0.0
  %1992 = vmatpush2.msra.mxu0 0.0
  %1993 = vmatprep.subr.mxu0 0.0
  %1994 = vmatpush2.msra.mxu0 0.0
  %1995 = vmatprep.subr.mxu0 0.0
  %1996 = vmatpush2.msra.mxu0 0.0
  %1997 = vmatprep.subr.mxu0 0.0
  %1998 = vmatpush2.msra.mxu0 0.0
  %1999 = vmatprep.subr.mxu0 0.0
  %2000 = vmatpush2.msra.mxu0 0.0
  %2001 = vmatprep.subr.mxu0 0.0
  %2002 = vmatpush2.msra.mxu0 0.0
  %2003 = vmatprep.subr.mxu0 0.0
  %2004 = vmatpush2.msra.mxu0 0.0
  %2005 = vmatprep.subr.mxu0 0.0
  %2006 = vmatpush2.msra.mxu0 0.0
  %2007 = vmatprep.subr.mxu0 0.0
  %2008 = vmatpush2.msra.mxu0 0.0
  %2009 = vmatprep.subr.mxu0 0.0
  %2010 = vmatpush2.msra.mxu0 0.0
  %2011 = vmatprep.subr.mxu0 0.0
  %2012 = vmatpush2.msra.mxu0 0.0
  %2013 = vmatprep.subr.mxu0 0.0
  %2014 = vmatpush2.msra.mxu0 0.0
  %2015 = vmatprep.mubr.f32.mxu0 0.0
  %2016 = vmatmul.mubr.f32.gmra.mxu0 %v1910
  %v2017 = vpop.f32.mrf.mxu0
  %v2018 = vadd.f32 0.0, %v2017
  %v2019 = vpop.f32.mrf.mxu0
  %2020 = vmatprep.mubr.f32.mxu0 0.0
  %2021 = vmatmul.mubr.f32.gmra.mxu0 %v1913
  %v2022 = vpop.f32.mrf.mxu0
  %v2023 = vadd.f32 0.0, %v2022
  %v2024 = vpop.f32.mrf.mxu0
  %2025 = vmatprep.mubr.f32.mxu0 0.0
  %2026 = vmatmul.mubr.f32.gmra.mxu0 %v1916
  %v2027 = vpop.f32.mrf.mxu0
  %v2028 = vadd.f32 0.0, %v2027
  %v2029 = vpop.f32.mrf.mxu0
  %2030 = vmatprep.mubr.f32.mxu0 0.0
  %2031 = vmatmul.mubr.f32.gmra.mxu0 %v1919
  %v2032 = vpop.f32.mrf.mxu0
  %v2033 = vadd.f32 0.0, %v2032
  %v2034 = vpop.f32.mrf.mxu0
  %2035 = vmatprep.mubr.f32.mxu0 0.0
  %2036 = vmatmul.mubr.f32.gmra.mxu0 %v1922
  %v2037 = vpop.f32.mrf.mxu0
  %v2038 = vadd.f32 0.0, %v2037
  %v2039 = vpop.f32.mrf.mxu0
  %2040 = vmatprep.mubr.f32.mxu0 0.0
  %2041 = vmatmul.mubr.f32.gmra.mxu0 %v1925
  %v2042 = vpop.f32.mrf.mxu0
  %v2043 = vadd.f32 0.0, %v2042
  %v2044 = vpop.f32.mrf.mxu0
  %2045 = vmatprep.mubr.f32.mxu0 0.0
  %2046 = vmatmul.mubr.f32.gmra.mxu0 %v1928
  %v2047 = vpop.f32.mrf.mxu0
  %v2048 = vadd.f32 0.0, %v2047
  %v2049 = vpop.f32.mrf.mxu0
  %2050 = vmatprep.mubr.f32.mxu0 0.0
  %2051 = vmatmul.mubr.f32.gmra.mxu0 %v1931
  %v2052 = vpop.f32.mrf.mxu0
  %v2053 = vadd.f32 0.0, %v2052
  %v2054 = vpop.f32.mrf.mxu0
  %2055 = vmatprep.mubr.f32.mxu0 0.0
  %2056 = vmatmul.mubr.f32.gmra.mxu0 %v1934
  %v2057 = vpop.f32.mrf.mxu0
  %v2058 = vadd.f32 0.0, %v2057
  %v2059 = vpop.f32.mrf.mxu0
  %2060 = vmatprep.mubr.f32.mxu0 0.0
  %2061 = vmatmul.mubr.f32.gmra.mxu0 %v1937
  %v2062 = vpop.f32.mrf.mxu0
  %v2063 = vadd.f32 0.0, %v2062
  %v2064 = vpop.f32.mrf.mxu0
  %2065 = vmatprep.mubr.f32.mxu0 0.0
  %2066 = vmatmul.mubr.f32.gmra.mxu0 %v1940
  %v2067 = vpop.f32.mrf.mxu0
  %v2068 = vadd.f32 0.0, %v2067
  %v2069 = vpop.f32.mrf.mxu0
  %2070 = vmatprep.mubr.f32.mxu0 0.0
  %2071 = vmatmul.mubr.f32.gmra.mxu0 %v1943
  %v2072 = vpop.f32.mrf.mxu0
  %v2073 = vadd.f32 0.0, %v2072
  %v2074 = vpop.f32.mrf.mxu0
  %2075 = vmatprep.mubr.f32.mxu0 0.0
  %2076 = vmatmul.mubr.f32.gmra.mxu0 %v1946
  %v2077 = vpop.f32.mrf.mxu0
  %v2078 = vadd.f32 0.0, %v2077
  %v2079 = vpop.f32.mrf.mxu0
  %2080 = vmatprep.mubr.f32.mxu0 0.0
  %2081 = vmatmul.mubr.f32.gmra.mxu0 %v1949
  %v2082 = vpop.f32.mrf.mxu0
  %v2083 = vadd.f32 0.0, %v2082
  %v2084 = vpop.f32.mrf.mxu0
  %2085 = vdwg.mxu0
  %v2086 = vadd.f32 %v1878, %v2018
  %v2087 = vadd.f32 %v1879, %v2023
  %v2088 = vadd.f32 %v1880, %v2028
  %v2089 = vadd.f32 %v1881, %v2033
  %v2090 = vadd.f32 %v1882, %v2038
  %v2091 = vadd.f32 %v1883, %v2043
  %v2092 = vadd.f32 %v1884, %v2048
  %v2093 = vadd.f32 %v1885, %v2053
  %v2094 = vadd.f32 %v1886, %v2058
  %v2095 = vadd.f32 %v1887, %v2063
  %v2096 = vadd.f32 %v1888, %v2068
  %v2097 = vadd.f32 %v1889, %v2073
  %v2098 = vadd.f32 %v1890, %v2078
  %v2099 = vadd.f32 %v1891, %v2083
  %v2100 = vld [vmem:[#allocation2 + $0x12] sm:$0xff]
  %v2101 = vld [vmem:[#allocation2 + $0x1a] sm:$0xff]
  %v2102 = vld [vmem:[#allocation2 + $0x22] sm:$0xff]
  %v2103 = vld [vmem:[#allocation2 + $0x2a] sm:$0xff]
  %v2104 = vld [vmem:[#allocation2 + $0x32] sm:$0xff]
  %v2105 = vld [vmem:[#allocation2 + $0x3a] sm:$0xff]
  %v2106 = vld [vmem:[#allocation2 + $0x42] sm:$0xff]
  %v2107 = vld [vmem:[#allocation2 + $0x4a] sm:$0xff]
  %v2108 = vld [vmem:[#allocation2 + $0x52] sm:$0xff]
  %v2109 = vld [vmem:[#allocation2 + $0x5a] sm:$0xff]
  %v2110 = vld [vmem:[#allocation2 + $0x62] sm:$0xff]
  %v2111 = vld [vmem:[#allocation2 + $0x6a] sm:$0xff]
  %v2112 = vld [vmem:[#allocation2 + $0x72] sm:$0xff]
  %v2113 = vld [vmem:[#allocation2 + $0x7a] sm:$0xff]
  %s2114 = scalar_lea.vmem %s4, 64
  %v2115 = vld [vmem:[%s2114] sm:$0xff]
  %v2116 = vld [vmem:[%s2114 + $0x8] sm:$0xff]
  %v2118 = vsel %vm1196, %v2100, 0
  %v2121 = vsel %vm1196, %v2101, 0
  %v2124 = vsel %vm1196, %v2102, 0
  %v2127 = vsel %vm1196, %v2103, 0
  %v2130 = vsel %vm1196, %v2104, 0
  %v2133 = vsel %vm1196, %v2105, 0
  %v2136 = vsel %vm1196, %v2106, 0
  %v2139 = vsel %vm1196, %v2107, 0
  %v2142 = vsel %vm1196, %v2108, 0
  %v2145 = vsel %vm1196, %v2109, 0
  %v2148 = vsel %vm1196, %v2110, 0
  %v2151 = vsel %vm1196, %v2111, 0
  %v2154 = vsel %vm1196, %v2112, 0
  %v2157 = vsel %vm1196, %v2113, 0
  %2159 = vmatprep.subr.mxu0 0.0
  %2160 = vmatpush1.msra.mxu0 0.0
  %2161 = vmatprep.subr.mxu0 0.0
  %2162 = vmatpush1.msra.mxu0 0.0
  %2163 = vmatprep.subr.mxu0 0.0
  %2164 = vmatpush1.msra.mxu0 0.0
  %2165 = vmatprep.subr.mxu0 0.0
  %2166 = vmatpush1.msra.mxu0 0.0
  %2167 = vmatprep.subr.mxu0 0.0
  %2168 = vmatpush1.msra.mxu0 0.0
  %2169 = vmatprep.subr.mxu0 0.0
  %2170 = vmatpush1.msra.mxu0 0.0
  %2171 = vmatprep.subr.mxu0 0.0
  %2172 = vmatpush1.msra.mxu0 0.0
  %2173 = vmatprep.subr.mxu0 0.0
  %2174 = vmatpush1.msra.mxu0 0.0
  %2175 = vmatprep.subr.mxu0 0.0
  %2176 = vmatpush1.msra.mxu0 0.0
  %2177 = vmatprep.subr.mxu0 0.0
  %2178 = vmatpush1.msra.mxu0 0.0
  %2179 = vmatprep.subr.mxu0 0.0
  %2180 = vmatpush1.msra.mxu0 0.0
  %2181 = vmatprep.subr.mxu0 0.0
  %2182 = vmatpush1.msra.mxu0 0.0
  %2183 = vmatprep.subr.mxu0 0.0
  %2184 = vmatpush1.msra.mxu0 0.0
  %2185 = vmatprep.subr.mxu0 0.0
  %2186 = vmatpush1.msra.mxu0 0.0
  %2187 = vmatprep.subr.mxu0 0.0
  %2188 = vmatpush1.msra.mxu0 %v2116
  %2189 = vmatprep.subr.mxu0 0.0
  %2190 = vmatpush1.msra.mxu0 %v2115
  %2191 = vmatprep.subr.mxu0 0.0
  %2192 = vmatpush2.msra.mxu0 0.0
  %2193 = vmatprep.subr.mxu0 0.0
  %2194 = vmatpush2.msra.mxu0 0.0
  %2195 = vmatprep.subr.mxu0 0.0
  %2196 = vmatpush2.msra.mxu0 0.0
  %2197 = vmatprep.subr.mxu0 0.0
  %2198 = vmatpush2.msra.mxu0 0.0
  %2199 = vmatprep.subr.mxu0 0.0
  %2200 = vmatpush2.msra.mxu0 0.0
  %2201 = vmatprep.subr.mxu0 0.0
  %2202 = vmatpush2.msra.mxu0 0.0
  %2203 = vmatprep.subr.mxu0 0.0
  %2204 = vmatpush2.msra.mxu0 0.0
  %2205 = vmatprep.subr.mxu0 0.0
  %2206 = vmatpush2.msra.mxu0 0.0
  %2207 = vmatprep.subr.mxu0 0.0
  %2208 = vmatpush2.msra.mxu0 0.0
  %2209 = vmatprep.subr.mxu0 0.0
  %2210 = vmatpush2.msra.mxu0 0.0
  %2211 = vmatprep.subr.mxu0 0.0
  %2212 = vmatpush2.msra.mxu0 0.0
  %2213 = vmatprep.subr.mxu0 0.0
  %2214 = vmatpush2.msra.mxu0 0.0
  %2215 = vmatprep.subr.mxu0 0.0
  %2216 = vmatpush2.msra.mxu0 0.0
  %2217 = vmatprep.subr.mxu0 0.0
  %2218 = vmatpush2.msra.mxu0 0.0
  %2219 = vmatprep.subr.mxu0 0.0
  %2220 = vmatpush2.msra.mxu0 0.0
  %2221 = vmatprep.subr.mxu0 0.0
  %2222 = vmatpush2.msra.mxu0 0.0
  %2223 = vmatprep.mubr.f32.mxu0 0.0
  %2224 = vmatmul.mubr.f32.gmra.mxu0 %v2118
  %v2225 = vpop.f32.mrf.mxu0
  %v2226 = vadd.f32 0.0, %v2225
  %v2227 = vpop.f32.mrf.mxu0
  %2228 = vmatprep.mubr.f32.mxu0 0.0
  %2229 = vmatmul.mubr.f32.gmra.mxu0 %v2121
  %v2230 = vpop.f32.mrf.mxu0
  %v2231 = vadd.f32 0.0, %v2230
  %v2232 = vpop.f32.mrf.mxu0
  %2233 = vmatprep.mubr.f32.mxu0 0.0
  %2234 = vmatmul.mubr.f32.gmra.mxu0 %v2124
  %v2235 = vpop.f32.mrf.mxu0
  %v2236 = vadd.f32 0.0, %v2235
  %v2237 = vpop.f32.mrf.mxu0
  %2238 = vmatprep.mubr.f32.mxu0 0.0
  %2239 = vmatmul.mubr.f32.gmra.mxu0 %v2127
  %v2240 = vpop.f32.mrf.mxu0
  %v2241 = vadd.f32 0.0, %v2240
  %v2242 = vpop.f32.mrf.mxu0
  %2243 = vmatprep.mubr.f32.mxu0 0.0
  %2244 = vmatmul.mubr.f32.gmra.mxu0 %v2130
  %v2245 = vpop.f32.mrf.mxu0
  %v2246 = vadd.f32 0.0, %v2245
  %v2247 = vpop.f32.mrf.mxu0
  %2248 = vmatprep.mubr.f32.mxu0 0.0
  %2249 = vmatmul.mubr.f32.gmra.mxu0 %v2133
  %v2250 = vpop.f32.mrf.mxu0
  %v2251 = vadd.f32 0.0, %v2250
  %v2252 = vpop.f32.mrf.mxu0
  %2253 = vmatprep.mubr.f32.mxu0 0.0
  %2254 = vmatmul.mubr.f32.gmra.mxu0 %v2136
  %v2255 = vpop.f32.mrf.mxu0
  %v2256 = vadd.f32 0.0, %v2255
  %v2257 = vpop.f32.mrf.mxu0
  %2258 = vmatprep.mubr.f32.mxu0 0.0
  %2259 = vmatmul.mubr.f32.gmra.mxu0 %v2139
  %v2260 = vpop.f32.mrf.mxu0
  %v2261 = vadd.f32 0.0, %v2260
  %v2262 = vpop.f32.mrf.mxu0
  %2263 = vmatprep.mubr.f32.mxu0 0.0
  %2264 = vmatmul.mubr.f32.gmra.mxu0 %v2142
  %v2265 = vpop.f32.mrf.mxu0
  %v2266 = vadd.f32 0.0, %v2265
  %v2267 = vpop.f32.mrf.mxu0
  %2268 = vmatprep.mubr.f32.mxu0 0.0
  %2269 = vmatmul.mubr.f32.gmra.mxu0 %v2145
  %v2270 = vpop.f32.mrf.mxu0
  %v2271 = vadd.f32 0.0, %v2270
  %v2272 = vpop.f32.mrf.mxu0
  %2273 = vmatprep.mubr.f32.mxu0 0.0
  %2274 = vmatmul.mubr.f32.gmra.mxu0 %v2148
  %v2275 = vpop.f32.mrf.mxu0
  %v2276 = vadd.f32 0.0, %v2275
  %v2277 = vpop.f32.mrf.mxu0
  %2278 = vmatprep.mubr.f32.mxu0 0.0
  %2279 = vmatmul.mubr.f32.gmra.mxu0 %v2151
  %v2280 = vpop.f32.mrf.mxu0
  %v2281 = vadd.f32 0.0, %v2280
  %v2282 = vpop.f32.mrf.mxu0
  %2283 = vmatprep.mubr.f32.mxu0 0.0
  %2284 = vmatmul.mubr.f32.gmra.mxu0 %v2154
  %v2285 = vpop.f32.mrf.mxu0
  %v2286 = vadd.f32 0.0, %v2285
  %v2287 = vpop.f32.mrf.mxu0
  %2288 = vmatprep.mubr.f32.mxu0 0.0
  %2289 = vmatmul.mubr.f32.gmra.mxu0 %v2157
  %v2290 = vpop.f32.mrf.mxu0
  %v2291 = vadd.f32 0.0, %v2290
  %v2292 = vpop.f32.mrf.mxu0
  %2293 = vdwg.mxu0
  %v2294 = vadd.f32 %v2086, %v2226
  %v2295 = vadd.f32 %v2087, %v2231
  %v2296 = vadd.f32 %v2088, %v2236
  %v2297 = vadd.f32 %v2089, %v2241
  %v2298 = vadd.f32 %v2090, %v2246
  %v2299 = vadd.f32 %v2091, %v2251
  %v2300 = vadd.f32 %v2092, %v2256
  %v2301 = vadd.f32 %v2093, %v2261
  %v2302 = vadd.f32 %v2094, %v2266
  %v2303 = vadd.f32 %v2095, %v2271
  %v2304 = vadd.f32 %v2096, %v2276
  %v2305 = vadd.f32 %v2097, %v2281
  %v2306 = vadd.f32 %v2098, %v2286
  %v2307 = vadd.f32 %v2099, %v2291
  %v2308 = vld [vmem:[#allocation2 + $0x92] sm:$0xff]
  %v2309 = vld [vmem:[#allocation2 + $0x9a] sm:$0xff]
  %v2310 = vld [vmem:[#allocation2 + $0xa2] sm:$0xff]
  %v2311 = vld [vmem:[#allocation2 + $0xaa] sm:$0xff]
  %v2312 = vld [vmem:[#allocation2 + $0xb2] sm:$0xff]
  %v2313 = vld [vmem:[#allocation2 + $0xba] sm:$0xff]
  %v2314 = vld [vmem:[#allocation2 + $0xc2] sm:$0xff]
  %v2315 = vld [vmem:[#allocation2 + $0xca] sm:$0xff]
  %v2316 = vld [vmem:[#allocation2 + $0xd2] sm:$0xff]
  %v2317 = vld [vmem:[#allocation2 + $0xda] sm:$0xff]
  %v2318 = vld [vmem:[#allocation2 + $0xe2] sm:$0xff]
  %v2319 = vld [vmem:[#allocation2 + $0xea] sm:$0xff]
  %v2320 = vld [vmem:[#allocation2 + $0xf2] sm:$0xff]
  %v2321 = vld [vmem:[#allocation2 + $0xfa] sm:$0xff]
  %s2322 = scalar_lea.vmem %s4, 80
  %v2323 = vld [vmem:[%s2322] sm:$0xff]
  %v2324 = vld [vmem:[%s2322 + $0x8] sm:$0xff]
  %v2326 = vsel %vm1196, %v2308, 0
  %v2329 = vsel %vm1196, %v2309, 0
  %v2332 = vsel %vm1196, %v2310, 0
  %v2335 = vsel %vm1196, %v2311, 0
  %v2338 = vsel %vm1196, %v2312, 0
  %v2341 = vsel %vm1196, %v2313, 0
  %v2344 = vsel %vm1196, %v2314, 0
  %v2347 = vsel %vm1196, %v2315, 0
  %v2350 = vsel %vm1196, %v2316, 0
  %v2353 = vsel %vm1196, %v2317, 0
  %v2356 = vsel %vm1196, %v2318, 0
  %v2359 = vsel %vm1196, %v2319, 0
  %v2362 = vsel %vm1196, %v2320, 0
  %v2365 = vsel %vm1196, %v2321, 0
  %2367 = vmatprep.subr.mxu0 0.0
  %2368 = vmatpush1.msra.mxu0 0.0
  %2369 = vmatprep.subr.mxu0 0.0
  %2370 = vmatpush1.msra.mxu0 0.0
  %2371 = vmatprep.subr.mxu0 0.0
  %2372 = vmatpush1.msra.mxu0 0.0
  %2373 = vmatprep.subr.mxu0 0.0
  %2374 = vmatpush1.msra.mxu0 0.0
  %2375 = vmatprep.subr.mxu0 0.0
  %2376 = vmatpush1.msra.mxu0 0.0
  %2377 = vmatprep.subr.mxu0 0.0
  %2378 = vmatpush1.msra.mxu0 0.0
  %2379 = vmatprep.subr.mxu0 0.0
  %2380 = vmatpush1.msra.mxu0 0.0
  %2381 = vmatprep.subr.mxu0 0.0
  %2382 = vmatpush1.msra.mxu0 0.0
  %2383 = vmatprep.subr.mxu0 0.0
  %2384 = vmatpush1.msra.mxu0 0.0
  %2385 = vmatprep.subr.mxu0 0.0
  %2386 = vmatpush1.msra.mxu0 0.0
  %2387 = vmatprep.subr.mxu0 0.0
  %2388 = vmatpush1.msra.mxu0 0.0
  %2389 = vmatprep.subr.mxu0 0.0
  %2390 = vmatpush1.msra.mxu0 0.0
  %2391 = vmatprep.subr.mxu0 0.0
  %2392 = vmatpush1.msra.mxu0 0.0
  %2393 = vmatprep.subr.mxu0 0.0
  %2394 = vmatpush1.msra.mxu0 0.0
  %2395 = vmatprep.subr.mxu0 0.0
  %2396 = vmatpush1.msra.mxu0 %v2324
  %2397 = vmatprep.subr.mxu0 0.0
  %2398 = vmatpush1.msra.mxu0 %v2323
  %2399 = vmatprep.subr.mxu0 0.0
  %2400 = vmatpush2.msra.mxu0 0.0
  %2401 = vmatprep.subr.mxu0 0.0
  %2402 = vmatpush2.msra.mxu0 0.0
  %2403 = vmatprep.subr.mxu0 0.0
  %2404 = vmatpush2.msra.mxu0 0.0
  %2405 = vmatprep.subr.mxu0 0.0
  %2406 = vmatpush2.msra.mxu0 0.0
  %2407 = vmatprep.subr.mxu0 0.0
  %2408 = vmatpush2.msra.mxu0 0.0
  %2409 = vmatprep.subr.mxu0 0.0
  %2410 = vmatpush2.msra.mxu0 0.0
  %2411 = vmatprep.subr.mxu0 0.0
  %2412 = vmatpush2.msra.mxu0 0.0
  %2413 = vmatprep.subr.mxu0 0.0
  %2414 = vmatpush2.msra.mxu0 0.0
  %2415 = vmatprep.subr.mxu0 0.0
  %2416 = vmatpush2.msra.mxu0 0.0
  %2417 = vmatprep.subr.mxu0 0.0
  %2418 = vmatpush2.msra.mxu0 0.0
  %2419 = vmatprep.subr.mxu0 0.0
  %2420 = vmatpush2.msra.mxu0 0.0
  %2421 = vmatprep.subr.mxu0 0.0
  %2422 = vmatpush2.msra.mxu0 0.0
  %2423 = vmatprep.subr.mxu0 0.0
  %2424 = vmatpush2.msra.mxu0 0.0
  %2425 = vmatprep.subr.mxu0 0.0
  %2426 = vmatpush2.msra.mxu0 0.0
  %2427 = vmatprep.subr.mxu0 0.0
  %2428 = vmatpush2.msra.mxu0 0.0
  %2429 = vmatprep.subr.mxu0 0.0
  %2430 = vmatpush2.msra.mxu0 0.0
  %2431 = vmatprep.mubr.f32.mxu0 0.0
  %2432 = vmatmul.mubr.f32.gmra.mxu0 %v2326
  %v2433 = vpop.f32.mrf.mxu0
  %v2434 = vadd.f32 0.0, %v2433
  %v2435 = vpop.f32.mrf.mxu0
  %2436 = vmatprep.mubr.f32.mxu0 0.0
  %2437 = vmatmul.mubr.f32.gmra.mxu0 %v2329
  %v2438 = vpop.f32.mrf.mxu0
  %v2439 = vadd.f32 0.0, %v2438
  %v2440 = vpop.f32.mrf.mxu0
  %2441 = vmatprep.mubr.f32.mxu0 0.0
  %2442 = vmatmul.mubr.f32.gmra.mxu0 %v2332
  %v2443 = vpop.f32.mrf.mxu0
  %v2444 = vadd.f32 0.0, %v2443
  %v2445 = vpop.f32.mrf.mxu0
  %2446 = vmatprep.mubr.f32.mxu0 0.0
  %2447 = vmatmul.mubr.f32.gmra.mxu0 %v2335
  %v2448 = vpop.f32.mrf.mxu0
  %v2449 = vadd.f32 0.0, %v2448
  %v2450 = vpop.f32.mrf.mxu0
  %2451 = vmatprep.mubr.f32.mxu0 0.0
  %2452 = vmatmul.mubr.f32.gmra.mxu0 %v2338
  %v2453 = vpop.f32.mrf.mxu0
  %v2454 = vadd.f32 0.0, %v2453
  %v2455 = vpop.f32.mrf.mxu0
  %2456 = vmatprep.mubr.f32.mxu0 0.0
  %2457 = vmatmul.mubr.f32.gmra.mxu0 %v2341
  %v2458 = vpop.f32.mrf.mxu0
  %v2459 = vadd.f32 0.0, %v2458
  %v2460 = vpop.f32.mrf.mxu0
  %2461 = vmatprep.mubr.f32.mxu0 0.0
  %2462 = vmatmul.mubr.f32.gmra.mxu0 %v2344
  %v2463 = vpop.f32.mrf.mxu0
  %v2464 = vadd.f32 0.0, %v2463
  %v2465 = vpop.f32.mrf.mxu0
  %2466 = vmatprep.mubr.f32.mxu0 0.0
  %2467 = vmatmul.mubr.f32.gmra.mxu0 %v2347
  %v2468 = vpop.f32.mrf.mxu0
  %v2469 = vadd.f32 0.0, %v2468
  %v2470 = vpop.f32.mrf.mxu0
  %2471 = vmatprep.mubr.f32.mxu0 0.0
  %2472 = vmatmul.mubr.f32.gmra.mxu0 %v2350
  %v2473 = vpop.f32.mrf.mxu0
  %v2474 = vadd.f32 0.0, %v2473
  %v2475 = vpop.f32.mrf.mxu0
  %2476 = vmatprep.mubr.f32.mxu0 0.0
  %2477 = vmatmul.mubr.f32.gmra.mxu0 %v2353
  %v2478 = vpop.f32.mrf.mxu0
  %v2479 = vadd.f32 0.0, %v2478
  %v2480 = vpop.f32.mrf.mxu0
  %2481 = vmatprep.mubr.f32.mxu0 0.0
  %2482 = vmatmul.mubr.f32.gmra.mxu0 %v2356
  %v2483 = vpop.f32.mrf.mxu0
  %v2484 = vadd.f32 0.0, %v2483
  %v2485 = vpop.f32.mrf.mxu0
  %2486 = vmatprep.mubr.f32.mxu0 0.0
  %2487 = vmatmul.mubr.f32.gmra.mxu0 %v2359
  %v2488 = vpop.f32.mrf.mxu0
  %v2489 = vadd.f32 0.0, %v2488
  %v2490 = vpop.f32.mrf.mxu0
  %2491 = vmatprep.mubr.f32.mxu0 0.0
  %2492 = vmatmul.mubr.f32.gmra.mxu0 %v2362
  %v2493 = vpop.f32.mrf.mxu0
  %v2494 = vadd.f32 0.0, %v2493
  %v2495 = vpop.f32.mrf.mxu0
  %2496 = vmatprep.mubr.f32.mxu0 0.0
  %2497 = vmatmul.mubr.f32.gmra.mxu0 %v2365
  %v2498 = vpop.f32.mrf.mxu0
  %v2499 = vadd.f32 0.0, %v2498
  %v2500 = vpop.f32.mrf.mxu0
  %2501 = vdwg.mxu0
  %v2502 = vadd.f32 %v2294, %v2434
  %v2503 = vadd.f32 %v2295, %v2439
  %v2504 = vadd.f32 %v2296, %v2444
  %v2505 = vadd.f32 %v2297, %v2449
  %v2506 = vadd.f32 %v2298, %v2454
  %v2507 = vadd.f32 %v2299, %v2459
  %v2508 = vadd.f32 %v2300, %v2464
  %v2509 = vadd.f32 %v2301, %v2469
  %v2510 = vadd.f32 %v2302, %v2474
  %v2511 = vadd.f32 %v2303, %v2479
  %v2512 = vadd.f32 %v2304, %v2484
  %v2513 = vadd.f32 %v2305, %v2489
  %v2514 = vadd.f32 %v2306, %v2494
  %v2515 = vadd.f32 %v2307, %v2499
  %v2516 = vld [vmem:[#allocation2 + $0x190] sm:$0xff]
  %v2517 = vld [vmem:[#allocation2 + $0x198] sm:$0xff]
  %v2518 = vld [vmem:[#allocation2 + $0x1a0] sm:$0xff]
  %v2519 = vld [vmem:[#allocation2 + $0x1a8] sm:$0xff]
  %v2520 = vld [vmem:[#allocation2 + $0x1b0] sm:$0xff]
  %v2521 = vld [vmem:[#allocation2 + $0x1b8] sm:$0xff]
  %v2522 = vld [vmem:[#allocation2 + $0x1c0] sm:$0xff]
  %v2523 = vld [vmem:[#allocation2 + $0x1c8] sm:$0xff]
  %v2524 = vld [vmem:[#allocation2 + $0x1d0] sm:$0xff]
  %v2525 = vld [vmem:[#allocation2 + $0x1d8] sm:$0xff]
  %v2526 = vld [vmem:[#allocation2 + $0x1e0] sm:$0xff]
  %v2527 = vld [vmem:[#allocation2 + $0x1e8] sm:$0xff]
  %v2528 = vld [vmem:[#allocation2 + $0x1f0] sm:$0xff]
  %v2529 = vld [vmem:[#allocation2 + $0x1f8] sm:$0xff]
  %s2530 = scalar_lea.vmem %s4, 96
  %v2531 = vld [vmem:[%s2530] sm:$0xff]
  %v2532 = vld [vmem:[%s2530 + $0x8] sm:$0xff]
  %v2534 = vsel %vm1196, %v2516, 0
  %v2537 = vsel %vm1196, %v2517, 0
  %v2540 = vsel %vm1196, %v2518, 0
  %v2543 = vsel %vm1196, %v2519, 0
  %v2546 = vsel %vm1196, %v2520, 0
  %v2549 = vsel %vm1196, %v2521, 0
  %v2552 = vsel %vm1196, %v2522, 0
  %v2555 = vsel %vm1196, %v2523, 0
  %v2558 = vsel %vm1196, %v2524, 0
  %v2561 = vsel %vm1196, %v2525, 0
  %v2564 = vsel %vm1196, %v2526, 0
  %v2567 = vsel %vm1196, %v2527, 0
  %v2570 = vsel %vm1196, %v2528, 0
  %v2573 = vsel %vm1196, %v2529, 0
  %2575 = vmatprep.subr.mxu0 0.0
  %2576 = vmatpush1.msra.mxu0 0.0
  %2577 = vmatprep.subr.mxu0 0.0
  %2578 = vmatpush1.msra.mxu0 0.0
  %2579 = vmatprep.subr.mxu0 0.0
  %2580 = vmatpush1.msra.mxu0 0.0
  %2581 = vmatprep.subr.mxu0 0.0
  %2582 = vmatpush1.msra.mxu0 0.0
  %2583 = vmatprep.subr.mxu0 0.0
  %2584 = vmatpush1.msra.mxu0 0.0
  %2585 = vmatprep.subr.mxu0 0.0
  %2586 = vmatpush1.msra.mxu0 0.0
  %2587 = vmatprep.subr.mxu0 0.0
  %2588 = vmatpush1.msra.mxu0 0.0
  %2589 = vmatprep.subr.mxu0 0.0
  %2590 = vmatpush1.msra.mxu0 0.0
  %2591 = vmatprep.subr.mxu0 0.0
  %2592 = vmatpush1.msra.mxu0 0.0
  %2593 = vmatprep.subr.mxu0 0.0
  %2594 = vmatpush1.msra.mxu0 0.0
  %2595 = vmatprep.subr.mxu0 0.0
  %2596 = vmatpush1.msra.mxu0 0.0
  %2597 = vmatprep.subr.mxu0 0.0
  %2598 = vmatpush1.msra.mxu0 0.0
  %2599 = vmatprep.subr.mxu0 0.0
  %2600 = vmatpush1.msra.mxu0 0.0
  %2601 = vmatprep.subr.mxu0 0.0
  %2602 = vmatpush1.msra.mxu0 0.0
  %2603 = vmatprep.subr.mxu0 0.0
  %2604 = vmatpush1.msra.mxu0 %v2532
  %2605 = vmatprep.subr.mxu0 0.0
  %2606 = vmatpush1.msra.mxu0 %v2531
  %2607 = vmatprep.subr.mxu0 0.0
  %2608 = vmatpush2.msra.mxu0 0.0
  %2609 = vmatprep.subr.mxu0 0.0
  %2610 = vmatpush2.msra.mxu0 0.0
  %2611 = vmatprep.subr.mxu0 0.0
  %2612 = vmatpush2.msra.mxu0 0.0
  %2613 = vmatprep.subr.mxu0 0.0
  %2614 = vmatpush2.msra.mxu0 0.0
  %2615 = vmatprep.subr.mxu0 0.0
  %2616 = vmatpush2.msra.mxu0 0.0
  %2617 = vmatprep.subr.mxu0 0.0
  %2618 = vmatpush2.msra.mxu0 0.0
  %2619 = vmatprep.subr.mxu0 0.0
  %2620 = vmatpush2.msra.mxu0 0.0
  %2621 = vmatprep.subr.mxu0 0.0
  %2622 = vmatpush2.msra.mxu0 0.0
  %2623 = vmatprep.subr.mxu0 0.0
  %2624 = vmatpush2.msra.mxu0 0.0
  %2625 = vmatprep.subr.mxu0 0.0
  %2626 = vmatpush2.msra.mxu0 0.0
  %2627 = vmatprep.subr.mxu0 0.0
  %2628 = vmatpush2.msra.mxu0 0.0
  %2629 = vmatprep.subr.mxu0 0.0
  %2630 = vmatpush2.msra.mxu0 0.0
  %2631 = vmatprep.subr.mxu0 0.0
  %2632 = vmatpush2.msra.mxu0 0.0
  %2633 = vmatprep.subr.mxu0 0.0
  %2634 = vmatpush2.msra.mxu0 0.0
  %2635 = vmatprep.subr.mxu0 0.0
  %2636 = vmatpush2.msra.mxu0 0.0
  %2637 = vmatprep.subr.mxu0 0.0
  %2638 = vmatpush2.msra.mxu0 0.0
  %2639 = vmatprep.mubr.f32.mxu0 0.0
  %2640 = vmatmul.mubr.f32.gmra.mxu0 %v2534
  %v2641 = vpop.f32.mrf.mxu0
  %v2642 = vadd.f32 0.0, %v2641
  %v2643 = vpop.f32.mrf.mxu0
  %2644 = vmatprep.mubr.f32.mxu0 0.0
  %2645 = vmatmul.mubr.f32.gmra.mxu0 %v2537
  %v2646 = vpop.f32.mrf.mxu0
  %v2647 = vadd.f32 0.0, %v2646
  %v2648 = vpop.f32.mrf.mxu0
  %2649 = vmatprep.mubr.f32.mxu0 0.0
  %2650 = vmatmul.mubr.f32.gmra.mxu0 %v2540
  %v2651 = vpop.f32.mrf.mxu0
  %v2652 = vadd.f32 0.0, %v2651
  %v2653 = vpop.f32.mrf.mxu0
  %2654 = vmatprep.mubr.f32.mxu0 0.0
  %2655 = vmatmul.mubr.f32.gmra.mxu0 %v2543
  %v2656 = vpop.f32.mrf.mxu0
  %v2657 = vadd.f32 0.0, %v2656
  %v2658 = vpop.f32.mrf.mxu0
  %2659 = vmatprep.mubr.f32.mxu0 0.0
  %2660 = vmatmul.mubr.f32.gmra.mxu0 %v2546
  %v2661 = vpop.f32.mrf.mxu0
  %v2662 = vadd.f32 0.0, %v2661
  %v2663 = vpop.f32.mrf.mxu0
  %2664 = vmatprep.mubr.f32.mxu0 0.0
  %2665 = vmatmul.mubr.f32.gmra.mxu0 %v2549
  %v2666 = vpop.f32.mrf.mxu0
  %v2667 = vadd.f32 0.0, %v2666
  %v2668 = vpop.f32.mrf.mxu0
  %2669 = vmatprep.mubr.f32.mxu0 0.0
  %2670 = vmatmul.mubr.f32.gmra.mxu0 %v2552
  %v2671 = vpop.f32.mrf.mxu0
  %v2672 = vadd.f32 0.0, %v2671
  %v2673 = vpop.f32.mrf.mxu0
  %2674 = vmatprep.mubr.f32.mxu0 0.0
  %2675 = vmatmul.mubr.f32.gmra.mxu0 %v2555
  %v2676 = vpop.f32.mrf.mxu0
  %v2677 = vadd.f32 0.0, %v2676
  %v2678 = vpop.f32.mrf.mxu0
  %2679 = vmatprep.mubr.f32.mxu0 0.0
  %2680 = vmatmul.mubr.f32.gmra.mxu0 %v2558
  %v2681 = vpop.f32.mrf.mxu0
  %v2682 = vadd.f32 0.0, %v2681
  %v2683 = vpop.f32.mrf.mxu0
  %2684 = vmatprep.mubr.f32.mxu0 0.0
  %2685 = vmatmul.mubr.f32.gmra.mxu0 %v2561
  %v2686 = vpop.f32.mrf.mxu0
  %v2687 = vadd.f32 0.0, %v2686
  %v2688 = vpop.f32.mrf.mxu0
  %2689 = vmatprep.mubr.f32.mxu0 0.0
  %2690 = vmatmul.mubr.f32.gmra.mxu0 %v2564
  %v2691 = vpop.f32.mrf.mxu0
  %v2692 = vadd.f32 0.0, %v2691
  %v2693 = vpop.f32.mrf.mxu0
  %2694 = vmatprep.mubr.f32.mxu0 0.0
  %2695 = vmatmul.mubr.f32.gmra.mxu0 %v2567
  %v2696 = vpop.f32.mrf.mxu0
  %v2697 = vadd.f32 0.0, %v2696
  %v2698 = vpop.f32.mrf.mxu0
  %2699 = vmatprep.mubr.f32.mxu0 0.0
  %2700 = vmatmul.mubr.f32.gmra.mxu0 %v2570
  %v2701 = vpop.f32.mrf.mxu0
  %v2702 = vadd.f32 0.0, %v2701
  %v2703 = vpop.f32.mrf.mxu0
  %2704 = vmatprep.mubr.f32.mxu0 0.0
  %2705 = vmatmul.mubr.f32.gmra.mxu0 %v2573
  %v2706 = vpop.f32.mrf.mxu0
  %v2707 = vadd.f32 0.0, %v2706
  %v2708 = vpop.f32.mrf.mxu0
  %2709 = vdwg.mxu0
  %v2710 = vadd.f32 %v2502, %v2642
  %v2711 = vadd.f32 %v2503, %v2647
  %v2712 = vadd.f32 %v2504, %v2652
  %v2713 = vadd.f32 %v2505, %v2657
  %v2714 = vadd.f32 %v2506, %v2662
  %v2715 = vadd.f32 %v2507, %v2667
  %v2716 = vadd.f32 %v2508, %v2672
  %v2717 = vadd.f32 %v2509, %v2677
  %v2718 = vadd.f32 %v2510, %v2682
  %v2719 = vadd.f32 %v2511, %v2687
  %v2720 = vadd.f32 %v2512, %v2692
  %v2721 = vadd.f32 %v2513, %v2697
  %v2722 = vadd.f32 %v2514, %v2702
  %v2723 = vadd.f32 %v2515, %v2707
  %v2724 = vld [vmem:[#allocation2 + $0x112] sm:$0xff]
  %v2725 = vld [vmem:[#allocation2 + $0x11a] sm:$0xff]
  %v2726 = vld [vmem:[#allocation2 + $0x122] sm:$0xff]
  %v2727 = vld [vmem:[#allocation2 + $0x12a] sm:$0xff]
  %v2728 = vld [vmem:[#allocation2 + $0x132] sm:$0xff]
  %v2729 = vld [vmem:[#allocation2 + $0x13a] sm:$0xff]
  %v2730 = vld [vmem:[#allocation2 + $0x142] sm:$0xff]
  %v2731 = vld [vmem:[#allocation2 + $0x14a] sm:$0xff]
  %v2732 = vld [vmem:[#allocation2 + $0x152] sm:$0xff]
  %v2733 = vld [vmem:[#allocation2 + $0x15a] sm:$0xff]
  %v2734 = vld [vmem:[#allocation2 + $0x162] sm:$0xff]
  %v2735 = vld [vmem:[#allocation2 + $0x16a] sm:$0xff]
  %v2736 = vld [vmem:[#allocation2 + $0x172] sm:$0xff]
  %v2737 = vld [vmem:[#allocation2 + $0x17a] sm:$0xff]
  %s2738 = scalar_lea.vmem %s4, 112
  %v2739 = vld [vmem:[%s2738] sm:$0xff]
  %v2740 = vld [vmem:[%s2738 + $0x8] sm:$0xff]
  %v2742 = vsel %vm1196, %v2724, 0
  %v2745 = vsel %vm1196, %v2725, 0
  %v2748 = vsel %vm1196, %v2726, 0
  %v2751 = vsel %vm1196, %v2727, 0
  %v2754 = vsel %vm1196, %v2728, 0
  %v2757 = vsel %vm1196, %v2729, 0
  %v2760 = vsel %vm1196, %v2730, 0
  %v2763 = vsel %vm1196, %v2731, 0
  %v2766 = vsel %vm1196, %v2732, 0
  %v2769 = vsel %vm1196, %v2733, 0
  %v2772 = vsel %vm1196, %v2734, 0
  %v2775 = vsel %vm1196, %v2735, 0
  %v2778 = vsel %vm1196, %v2736, 0
  %v2781 = vsel %vm1196, %v2737, 0
  %2783 = vmatprep.subr.mxu0 0.0
  %2784 = vmatpush1.msra.mxu0 0.0
  %2785 = vmatprep.subr.mxu0 0.0
  %2786 = vmatpush1.msra.mxu0 0.0
  %2787 = vmatprep.subr.mxu0 0.0
  %2788 = vmatpush1.msra.mxu0 0.0
  %2789 = vmatprep.subr.mxu0 0.0
  %2790 = vmatpush1.msra.mxu0 0.0
  %2791 = vmatprep.subr.mxu0 0.0
  %2792 = vmatpush1.msra.mxu0 0.0
  %2793 = vmatprep.subr.mxu0 0.0
  %2794 = vmatpush1.msra.mxu0 0.0
  %2795 = vmatprep.subr.mxu0 0.0
  %2796 = vmatpush1.msra.mxu0 0.0
  %2797 = vmatprep.subr.mxu0 0.0
  %2798 = vmatpush1.msra.mxu0 0.0
  %2799 = vmatprep.subr.mxu0 0.0
  %2800 = vmatpush1.msra.mxu0 0.0
  %2801 = vmatprep.subr.mxu0 0.0
  %2802 = vmatpush1.msra.mxu0 0.0
  %2803 = vmatprep.subr.mxu0 0.0
  %2804 = vmatpush1.msra.mxu0 0.0
  %2805 = vmatprep.subr.mxu0 0.0
  %2806 = vmatpush1.msra.mxu0 0.0
  %2807 = vmatprep.subr.mxu0 0.0
  %2808 = vmatpush1.msra.mxu0 0.0
  %2809 = vmatprep.subr.mxu0 0.0
  %2810 = vmatpush1.msra.mxu0 0.0
  %2811 = vmatprep.subr.mxu0 0.0
  %2812 = vmatpush1.msra.mxu0 %v2740
  %2813 = vmatprep.subr.mxu0 0.0
  %2814 = vmatpush1.msra.mxu0 %v2739
  %2815 = vmatprep.subr.mxu0 0.0
  %2816 = vmatpush2.msra.mxu0 0.0
  %2817 = vmatprep.subr.mxu0 0.0
  %2818 = vmatpush2.msra.mxu0 0.0
  %2819 = vmatprep.subr.mxu0 0.0
  %2820 = vmatpush2.msra.mxu0 0.0
  %2821 = vmatprep.subr.mxu0 0.0
  %2822 = vmatpush2.msra.mxu0 0.0
  %2823 = vmatprep.subr.mxu0 0.0
  %2824 = vmatpush2.msra.mxu0 0.0
  %2825 = vmatprep.subr.mxu0 0.0
  %2826 = vmatpush2.msra.mxu0 0.0
  %2827 = vmatprep.subr.mxu0 0.0
  %2828 = vmatpush2.msra.mxu0 0.0
  %2829 = vmatprep.subr.mxu0 0.0
  %2830 = vmatpush2.msra.mxu0 0.0
  %2831 = vmatprep.subr.mxu0 0.0
  %2832 = vmatpush2.msra.mxu0 0.0
  %2833 = vmatprep.subr.mxu0 0.0
  %2834 = vmatpush2.msra.mxu0 0.0
  %2835 = vmatprep.subr.mxu0 0.0
  %2836 = vmatpush2.msra.mxu0 0.0
  %2837 = vmatprep.subr.mxu0 0.0
  %2838 = vmatpush2.msra.mxu0 0.0
  %2839 = vmatprep.subr.mxu0 0.0
  %2840 = vmatpush2.msra.mxu0 0.0
  %2841 = vmatprep.subr.mxu0 0.0
  %2842 = vmatpush2.msra.mxu0 0.0
  %2843 = vmatprep.subr.mxu0 0.0
  %2844 = vmatpush2.msra.mxu0 0.0
  %2845 = vmatprep.subr.mxu0 0.0
  %2846 = vmatpush2.msra.mxu0 0.0
  %2847 = vmatprep.mubr.f32.mxu0 0.0
  %2848 = vmatmul.mubr.f32.gmra.mxu0 %v2742
  %v2849 = vpop.f32.mrf.mxu0
  %v2850 = vadd.f32 0.0, %v2849
  %v2851 = vpop.f32.mrf.mxu0
  %2852 = vmatprep.mubr.f32.mxu0 0.0
  %2853 = vmatmul.mubr.f32.gmra.mxu0 %v2745
  %v2854 = vpop.f32.mrf.mxu0
  %v2855 = vadd.f32 0.0, %v2854
  %v2856 = vpop.f32.mrf.mxu0
  %2857 = vmatprep.mubr.f32.mxu0 0.0
  %2858 = vmatmul.mubr.f32.gmra.mxu0 %v2748
  %v2859 = vpop.f32.mrf.mxu0
  %v2860 = vadd.f32 0.0, %v2859
  %v2861 = vpop.f32.mrf.mxu0
  %2862 = vmatprep.mubr.f32.mxu0 0.0
  %2863 = vmatmul.mubr.f32.gmra.mxu0 %v2751
  %v2864 = vpop.f32.mrf.mxu0
  %v2865 = vadd.f32 0.0, %v2864
  %v2866 = vpop.f32.mrf.mxu0
  %2867 = vmatprep.mubr.f32.mxu0 0.0
  %2868 = vmatmul.mubr.f32.gmra.mxu0 %v2754
  %v2869 = vpop.f32.mrf.mxu0
  %v2870 = vadd.f32 0.0, %v2869
  %v2871 = vpop.f32.mrf.mxu0
  %2872 = vmatprep.mubr.f32.mxu0 0.0
  %2873 = vmatmul.mubr.f32.gmra.mxu0 %v2757
  %v2874 = vpop.f32.mrf.mxu0
  %v2875 = vadd.f32 0.0, %v2874
  %v2876 = vpop.f32.mrf.mxu0
  %2877 = vmatprep.mubr.f32.mxu0 0.0
  %2878 = vmatmul.mubr.f32.gmra.mxu0 %v2760
  %v2879 = vpop.f32.mrf.mxu0
  %v2880 = vadd.f32 0.0, %v2879
  %v2881 = vpop.f32.mrf.mxu0
  %2882 = vmatprep.mubr.f32.mxu0 0.0
  %2883 = vmatmul.mubr.f32.gmra.mxu0 %v2763
  %v2884 = vpop.f32.mrf.mxu0
  %v2885 = vadd.f32 0.0, %v2884
  %v2886 = vpop.f32.mrf.mxu0
  %2887 = vmatprep.mubr.f32.mxu0 0.0
  %2888 = vmatmul.mubr.f32.gmra.mxu0 %v2766
  %v2889 = vpop.f32.mrf.mxu0
  %v2890 = vadd.f32 0.0, %v2889
  %v2891 = vpop.f32.mrf.mxu0
  %2892 = vmatprep.mubr.f32.mxu0 0.0
  %2893 = vmatmul.mubr.f32.gmra.mxu0 %v2769
  %v2894 = vpop.f32.mrf.mxu0
  %v2895 = vadd.f32 0.0, %v2894
  %v2896 = vpop.f32.mrf.mxu0
  %2897 = vmatprep.mubr.f32.mxu0 0.0
  %2898 = vmatmul.mubr.f32.gmra.mxu0 %v2772
  %v2899 = vpop.f32.mrf.mxu0
  %v2900 = vadd.f32 0.0, %v2899
  %v2901 = vpop.f32.mrf.mxu0
  %2902 = vmatprep.mubr.f32.mxu0 0.0
  %2903 = vmatmul.mubr.f32.gmra.mxu0 %v2775
  %v2904 = vpop.f32.mrf.mxu0
  %v2905 = vadd.f32 0.0, %v2904
  %v2906 = vpop.f32.mrf.mxu0
  %2907 = vmatprep.mubr.f32.mxu0 0.0
  %2908 = vmatmul.mubr.f32.gmra.mxu0 %v2778
  %v2909 = vpop.f32.mrf.mxu0
  %v2910 = vadd.f32 0.0, %v2909
  %v2911 = vpop.f32.mrf.mxu0
  %2912 = vmatprep.mubr.f32.mxu0 0.0
  %2913 = vmatmul.mubr.f32.gmra.mxu0 %v2781
  %v2914 = vpop.f32.mrf.mxu0
  %v2915 = vadd.f32 0.0, %v2914
  %v2916 = vpop.f32.mrf.mxu0
  %2917 = vdwg.mxu0
  %v2918 = vadd.f32 %v2710, %v2850
  %v2919 = vadd.f32 %v2711, %v2855
  %v2920 = vadd.f32 %v2712, %v2860
  %v2921 = vadd.f32 %v2713, %v2865
  %v2922 = vadd.f32 %v2714, %v2870
  %v2923 = vadd.f32 %v2715, %v2875
  %v2924 = vadd.f32 %v2716, %v2880
  %v2925 = vadd.f32 %v2717, %v2885
  %v2926 = vadd.f32 %v2718, %v2890
  %v2927 = vadd.f32 %v2719, %v2895
  %v2928 = vadd.f32 %v2720, %v2900
  %v2929 = vadd.f32 %v2721, %v2905
  %v2930 = vadd.f32 %v2722, %v2910
  %v2931 = vadd.f32 %v2723, %v2915
  %v2932 = vld [vmem:[#allocation2 + $0x192] sm:$0xff]
  %v2933 = vld [vmem:[#allocation2 + $0x19a] sm:$0xff]
  %v2934 = vld [vmem:[#allocation2 + $0x1a2] sm:$0xff]
  %v2935 = vld [vmem:[#allocation2 + $0x1aa] sm:$0xff]
  %v2936 = vld [vmem:[#allocation2 + $0x1b2] sm:$0xff]
  %v2937 = vld [vmem:[#allocation2 + $0x1ba] sm:$0xff]
  %v2938 = vld [vmem:[#allocation2 + $0x1c2] sm:$0xff]
  %v2939 = vld [vmem:[#allocation2 + $0x1ca] sm:$0xff]
  %v2940 = vld [vmem:[#allocation2 + $0x1d2] sm:$0xff]
  %v2941 = vld [vmem:[#allocation2 + $0x1da] sm:$0xff]
  %v2942 = vld [vmem:[#allocation2 + $0x1e2] sm:$0xff]
  %v2943 = vld [vmem:[#allocation2 + $0x1ea] sm:$0xff]
  %v2944 = vld [vmem:[#allocation2 + $0x1f2] sm:$0xff]
  %v2945 = vld [vmem:[#allocation2 + $0x1fa] sm:$0xff]
  %s2946 = scalar_lea.vmem %s4, 128
  %v2947 = vld [vmem:[%s2946] sm:$0xff]
  %v2948 = vld [vmem:[%s2946 + $0x8] sm:$0xff]
  %v2950 = vsel %vm1196, %v2932, 0
  %v2953 = vsel %vm1196, %v2933, 0
  %v2956 = vsel %vm1196, %v2934, 0
  %v2959 = vsel %vm1196, %v2935, 0
  %v2962 = vsel %vm1196, %v2936, 0
  %v2965 = vsel %vm1196, %v2937, 0
  %v2968 = vsel %vm1196, %v2938, 0
  %v2971 = vsel %vm1196, %v2939, 0
  %v2974 = vsel %vm1196, %v2940, 0
  %v2977 = vsel %vm1196, %v2941, 0
  %v2980 = vsel %vm1196, %v2942, 0
  %v2983 = vsel %vm1196, %v2943, 0
  %v2986 = vsel %vm1196, %v2944, 0
  %v2989 = vsel %vm1196, %v2945, 0
  %2991 = vmatprep.subr.mxu0 0.0
  %2992 = vmatpush1.msra.mxu0 0.0
  %2993 = vmatprep.subr.mxu0 0.0
  %2994 = vmatpush1.msra.mxu0 0.0
  %2995 = vmatprep.subr.mxu0 0.0
  %2996 = vmatpush1.msra.mxu0 0.0
  %2997 = vmatprep.subr.mxu0 0.0
  %2998 = vmatpush1.msra.mxu0 0.0
  %2999 = vmatprep.subr.mxu0 0.0
  %3000 = vmatpush1.msra.mxu0 0.0
  %3001 = vmatprep.subr.mxu0 0.0
  %3002 = vmatpush1.msra.mxu0 0.0
  %3003 = vmatprep.subr.mxu0 0.0
  %3004 = vmatpush1.msra.mxu0 0.0
  %3005 = vmatprep.subr.mxu0 0.0
  %3006 = vmatpush1.msra.mxu0 0.0
  %3007 = vmatprep.subr.mxu0 0.0
  %3008 = vmatpush1.msra.mxu0 0.0
  %3009 = vmatprep.subr.mxu0 0.0
  %3010 = vmatpush1.msra.mxu0 0.0
  %3011 = vmatprep.subr.mxu0 0.0
  %3012 = vmatpush1.msra.mxu0 0.0
  %3013 = vmatprep.subr.mxu0 0.0
  %3014 = vmatpush1.msra.mxu0 0.0
  %3015 = vmatprep.subr.mxu0 0.0
  %3016 = vmatpush1.msra.mxu0 0.0
  %3017 = vmatprep.subr.mxu0 0.0
  %3018 = vmatpush1.msra.mxu0 0.0
  %3019 = vmatprep.subr.mxu0 0.0
  %3020 = vmatpush1.msra.mxu0 %v2948
  %3021 = vmatprep.subr.mxu0 0.0
  %3022 = vmatpush1.msra.mxu0 %v2947
  %3023 = vmatprep.subr.mxu0 0.0
  %3024 = vmatpush2.msra.mxu0 0.0
  %3025 = vmatprep.subr.mxu0 0.0
  %3026 = vmatpush2.msra.mxu0 0.0
  %3027 = vmatprep.subr.mxu0 0.0
  %3028 = vmatpush2.msra.mxu0 0.0
  %3029 = vmatprep.subr.mxu0 0.0
  %3030 = vmatpush2.msra.mxu0 0.0
  %3031 = vmatprep.subr.mxu0 0.0
  %3032 = vmatpush2.msra.mxu0 0.0
  %3033 = vmatprep.subr.mxu0 0.0
  %3034 = vmatpush2.msra.mxu0 0.0
  %3035 = vmatprep.subr.mxu0 0.0
  %3036 = vmatpush2.msra.mxu0 0.0
  %3037 = vmatprep.subr.mxu0 0.0
  %3038 = vmatpush2.msra.mxu0 0.0
  %3039 = vmatprep.subr.mxu0 0.0
  %3040 = vmatpush2.msra.mxu0 0.0
  %3041 = vmatprep.subr.mxu0 0.0
  %3042 = vmatpush2.msra.mxu0 0.0
  %3043 = vmatprep.subr.mxu0 0.0
  %3044 = vmatpush2.msra.mxu0 0.0
  %3045 = vmatprep.subr.mxu0 0.0
  %3046 = vmatpush2.msra.mxu0 0.0
  %3047 = vmatprep.subr.mxu0 0.0
  %3048 = vmatpush2.msra.mxu0 0.0
  %3049 = vmatprep.subr.mxu0 0.0
  %3050 = vmatpush2.msra.mxu0 0.0
  %3051 = vmatprep.subr.mxu0 0.0
  %3052 = vmatpush2.msra.mxu0 0.0
  %3053 = vmatprep.subr.mxu0 0.0
  %3054 = vmatpush2.msra.mxu0 0.0
  %3055 = vmatprep.mubr.f32.mxu0 0.0
  %3056 = vmatmul.mubr.f32.gmra.mxu0 %v2950
  %v3057 = vpop.f32.mrf.mxu0
  %v3058 = vadd.f32 0.0, %v3057
  %v3059 = vpop.f32.mrf.mxu0
  %3060 = vmatprep.mubr.f32.mxu0 0.0
  %3061 = vmatmul.mubr.f32.gmra.mxu0 %v2953
  %v3062 = vpop.f32.mrf.mxu0
  %v3063 = vadd.f32 0.0, %v3062
  %v3064 = vpop.f32.mrf.mxu0
  %3065 = vmatprep.mubr.f32.mxu0 0.0
  %3066 = vmatmul.mubr.f32.gmra.mxu0 %v2956
  %v3067 = vpop.f32.mrf.mxu0
  %v3068 = vadd.f32 0.0, %v3067
  %v3069 = vpop.f32.mrf.mxu0
  %3070 = vmatprep.mubr.f32.mxu0 0.0
  %3071 = vmatmul.mubr.f32.gmra.mxu0 %v2959
  %v3072 = vpop.f32.mrf.mxu0
  %v3073 = vadd.f32 0.0, %v3072
  %v3074 = vpop.f32.mrf.mxu0
  %3075 = vmatprep.mubr.f32.mxu0 0.0
  %3076 = vmatmul.mubr.f32.gmra.mxu0 %v2962
  %v3077 = vpop.f32.mrf.mxu0
  %v3078 = vadd.f32 0.0, %v3077
  %v3079 = vpop.f32.mrf.mxu0
  %3080 = vmatprep.mubr.f32.mxu0 0.0
  %3081 = vmatmul.mubr.f32.gmra.mxu0 %v2965
  %v3082 = vpop.f32.mrf.mxu0
  %v3083 = vadd.f32 0.0, %v3082
  %v3084 = vpop.f32.mrf.mxu0
  %3085 = vmatprep.mubr.f32.mxu0 0.0
  %3086 = vmatmul.mubr.f32.gmra.mxu0 %v2968
  %v3087 = vpop.f32.mrf.mxu0
  %v3088 = vadd.f32 0.0, %v3087
  %v3089 = vpop.f32.mrf.mxu0
  %3090 = vmatprep.mubr.f32.mxu0 0.0
  %3091 = vmatmul.mubr.f32.gmra.mxu0 %v2971
  %v3092 = vpop.f32.mrf.mxu0
  %v3093 = vadd.f32 0.0, %v3092
  %v3094 = vpop.f32.mrf.mxu0
  %3095 = vmatprep.mubr.f32.mxu0 0.0
  %3096 = vmatmul.mubr.f32.gmra.mxu0 %v2974
  %v3097 = vpop.f32.mrf.mxu0
  %v3098 = vadd.f32 0.0, %v3097
  %v3099 = vpop.f32.mrf.mxu0
  %3100 = vmatprep.mubr.f32.mxu0 0.0
  %3101 = vmatmul.mubr.f32.gmra.mxu0 %v2977
  %v3102 = vpop.f32.mrf.mxu0
  %v3103 = vadd.f32 0.0, %v3102
  %v3104 = vpop.f32.mrf.mxu0
  %3105 = vmatprep.mubr.f32.mxu0 0.0
  %3106 = vmatmul.mubr.f32.gmra.mxu0 %v2980
  %v3107 = vpop.f32.mrf.mxu0
  %v3108 = vadd.f32 0.0, %v3107
  %v3109 = vpop.f32.mrf.mxu0
  %3110 = vmatprep.mubr.f32.mxu0 0.0
  %3111 = vmatmul.mubr.f32.gmra.mxu0 %v2983
  %v3112 = vpop.f32.mrf.mxu0
  %v3113 = vadd.f32 0.0, %v3112
  %v3114 = vpop.f32.mrf.mxu0
  %3115 = vmatprep.mubr.f32.mxu0 0.0
  %3116 = vmatmul.mubr.f32.gmra.mxu0 %v2986
  %v3117 = vpop.f32.mrf.mxu0
  %v3118 = vadd.f32 0.0, %v3117
  %v3119 = vpop.f32.mrf.mxu0
  %3120 = vmatprep.mubr.f32.mxu0 0.0
  %3121 = vmatmul.mubr.f32.gmra.mxu0 %v2989
  %v3122 = vpop.f32.mrf.mxu0
  %v3123 = vadd.f32 0.0, %v3122
  %v3124 = vpop.f32.mrf.mxu0
  %3125 = vdwg.mxu0
  %v3126 = vadd.f32 %v2918, %v3058
  %v3127 = vadd.f32 %v2919, %v3063
  %v3128 = vadd.f32 %v2920, %v3068
  %v3129 = vadd.f32 %v2921, %v3073
  %v3130 = vadd.f32 %v2922, %v3078
  %v3131 = vadd.f32 %v2923, %v3083
  %v3132 = vadd.f32 %v2924, %v3088
  %v3133 = vadd.f32 %v2925, %v3093
  %v3134 = vadd.f32 %v2926, %v3098
  %v3135 = vadd.f32 %v2927, %v3103
  %v3136 = vadd.f32 %v2928, %v3108
  %v3137 = vadd.f32 %v2929, %v3113
  %v3138 = vadd.f32 %v2930, %v3118
  %v3139 = vadd.f32 %v2931, %v3123
  %v3140 = vmax.f32 %v3126, 0.0
  %v3141 = vmax.f32 %v3127, 0.0
  %v3142 = vmax.f32 %v3128, 0.0
  %v3143 = vmax.f32 %v3129, 0.0
  %v3144 = vmax.f32 %v3130, 0.0
  %v3145 = vmax.f32 %v3131, 0.0
  %v3146 = vmax.f32 %v3132, 0.0
  %v3147 = vmax.f32 %v3133, 0.0
  %v3148 = vmax.f32 %v3134, 0.0
  %v3149 = vmax.f32 %v3135, 0.0
  %v3150 = vmax.f32 %v3136, 0.0
  %v3151 = vmax.f32 %v3137, 0.0
  %v3152 = vmax.f32 %v3138, 0.0
  %v3153 = vmax.f32 %v3139, 0.0
  %v3154 = vld [vmem:[%s7] sm:$0x1]
  %v3156 = vlaneseq
  %v3157 = vshrl.u32 %v3156, 7
  %v3158 = vsub.s32 0, %v3157
  %v3159 = vrot.slane %v3154, %v3158
  %v3161 = vld [vmem:[%s6] sm:$0xff]
  %v3162 = vld [vmem:[%s6 + $0x8] sm:$0xff]
  %v3163 = vld [vmem:[%s6 + $0x10] sm:$0xff]
  %v3164 = vld [vmem:[%s6 + $0x18] sm:$0xff]
  %vm3165 = vcmask 261120
  %v3167 = vsel %vm3165, %v3140, 0
  %3169 = vmatprep.subr.mxu0 0.0
  %3170 = vmatpush1.msra.mxu0 0.0
  %3171 = vmatprep.subr.mxu0 0.0
  %3172 = vmatpush1.msra.mxu0 0.0
  %3173 = vmatprep.subr.mxu0 0.0
  %3174 = vmatpush1.msra.mxu0 0.0
  %3175 = vmatprep.subr.mxu0 0.0
  %3176 = vmatpush1.msra.mxu0 0.0
  %3177 = vmatprep.subr.mxu0 0.0
  %3178 = vmatpush1.msra.mxu0 0.0
  %3179 = vmatprep.subr.mxu0 0.0
  %3180 = vmatpush1.msra.mxu0 0.0
  %3181 = vmatprep.subr.mxu0 0.0
  %3182 = vmatpush1.msra.mxu0 0.0
  %3183 = vmatprep.subr.mxu0 0.0
  %3184 = vmatpush1.msra.mxu0 0.0
  %3185 = vmatprep.subr.mxu0 0.0
  %3186 = vmatpush1.msra.mxu0 0.0
  %3187 = vmatprep.subr.mxu0 0.0
  %3188 = vmatpush1.msra.mxu0 0.0
  %3189 = vmatprep.subr.mxu0 0.0
  %3190 = vmatpush1.msra.mxu0 0.0
  %3191 = vmatprep.subr.mxu0 0.0
  %3192 = vmatpush1.msra.mxu0 0.0
  %3193 = vmatprep.subr.mxu0 0.0
  %3194 = vmatpush1.msra.mxu0 %v3164
  %3195 = vmatprep.subr.mxu0 0.0
  %3196 = vmatpush1.msra.mxu0 %v3163
  %3197 = vmatprep.subr.mxu0 0.0
  %3198 = vmatpush1.msra.mxu0 %v3162
  %3199 = vmatprep.subr.mxu0 0.0
  %3200 = vmatpush1.msra.mxu0 %v3161
  %3201 = vmatprep.subr.mxu0 0.0
  %3202 = vmatpush2.msra.mxu0 0.0
  %3203 = vmatprep.subr.mxu0 0.0
  %3204 = vmatpush2.msra.mxu0 0.0
  %3205 = vmatprep.subr.mxu0 0.0
  %3206 = vmatpush2.msra.mxu0 0.0
  %3207 = vmatprep.subr.mxu0 0.0
  %3208 = vmatpush2.msra.mxu0 0.0
  %3209 = vmatprep.subr.mxu0 0.0
  %3210 = vmatpush2.msra.mxu0 0.0
  %3211 = vmatprep.subr.mxu0 0.0
  %3212 = vmatpush2.msra.mxu0 0.0
  %3213 = vmatprep.subr.mxu0 0.0
  %3214 = vmatpush2.msra.mxu0 0.0
  %3215 = vmatprep.subr.mxu0 0.0
  %3216 = vmatpush2.msra.mxu0 0.0
  %3217 = vmatprep.subr.mxu0 0.0
  %3218 = vmatpush2.msra.mxu0 0.0
  %3219 = vmatprep.subr.mxu0 0.0
  %3220 = vmatpush2.msra.mxu0 0.0
  %3221 = vmatprep.subr.mxu0 0.0
  %3222 = vmatpush2.msra.mxu0 0.0
  %3223 = vmatprep.subr.mxu0 0.0
  %3224 = vmatpush2.msra.mxu0 0.0
  %3225 = vmatprep.subr.mxu0 0.0
  %3226 = vmatpush2.msra.mxu0 0.0
  %3227 = vmatprep.subr.mxu0 0.0
  %3228 = vmatpush2.msra.mxu0 0.0
  %3229 = vmatprep.subr.mxu0 0.0
  %3230 = vmatpush2.msra.mxu0 0.0
  %3231 = vmatprep.subr.mxu0 0.0
  %3232 = vmatpush2.msra.mxu0 0.0
  %3233 = vmatprep.mubr.f32.mxu0 0.0
  %3234 = vmatmul.mubr.f32.gmra.mxu0 %v3167
  %v3235 = vpop.f32.mrf.mxu0
  %v3236 = vadd.f32 0.0, %v3235
  %v3237 = vpop.f32.mrf.mxu0
  %3238 = vdwg.mxu0
  %v3239 = vadd.f32 %v3159, %v3236
  %s3240 = scalar_lea.vmem %s6, 32
  %v3241 = vld [vmem:[%s3240] sm:$0xff]
  %v3242 = vld [vmem:[%s3240 + $0x8] sm:$0xff]
  %v3243 = vld [vmem:[%s3240 + $0x10] sm:$0xff]
  %v3244 = vld [vmem:[%s3240 + $0x18] sm:$0xff]
  %v3245 = vrot.slane %v3140, 2
  %v3246 = vsel %vm3165, %v3245, 0
  %3248 = vmatprep.subr.mxu0 0.0
  %3249 = vmatpush1.msra.mxu0 0.0
  %3250 = vmatprep.subr.mxu0 0.0
  %3251 = vmatpush1.msra.mxu0 0.0
  %3252 = vmatprep.subr.mxu0 0.0
  %3253 = vmatpush1.msra.mxu0 0.0
  %3254 = vmatprep.subr.mxu0 0.0
  %3255 = vmatpush1.msra.mxu0 0.0
  %3256 = vmatprep.subr.mxu0 0.0
  %3257 = vmatpush1.msra.mxu0 0.0
  %3258 = vmatprep.subr.mxu0 0.0
  %3259 = vmatpush1.msra.mxu0 0.0
  %3260 = vmatprep.subr.mxu0 0.0
  %3261 = vmatpush1.msra.mxu0 0.0
  %3262 = vmatprep.subr.mxu0 0.0
  %3263 = vmatpush1.msra.mxu0 0.0
  %3264 = vmatprep.subr.mxu0 0.0
  %3265 = vmatpush1.msra.mxu0 0.0
  %3266 = vmatprep.subr.mxu0 0.0
  %3267 = vmatpush1.msra.mxu0 0.0
  %3268 = vmatprep.subr.mxu0 0.0
  %3269 = vmatpush1.msra.mxu0 0.0
  %3270 = vmatprep.subr.mxu0 0.0
  %3271 = vmatpush1.msra.mxu0 0.0
  %3272 = vmatprep.subr.mxu0 0.0
  %3273 = vmatpush1.msra.mxu0 %v3244
  %3274 = vmatprep.subr.mxu0 0.0
  %3275 = vmatpush1.msra.mxu0 %v3243
  %3276 = vmatprep.subr.mxu0 0.0
  %3277 = vmatpush1.msra.mxu0 %v3242
  %3278 = vmatprep.subr.mxu0 0.0
  %3279 = vmatpush1.msra.mxu0 %v3241
  %3280 = vmatprep.subr.mxu0 0.0
  %3281 = vmatpush2.msra.mxu0 0.0
  %3282 = vmatprep.subr.mxu0 0.0
  %3283 = vmatpush2.msra.mxu0 0.0
  %3284 = vmatprep.subr.mxu0 0.0
  %3285 = vmatpush2.msra.mxu0 0.0
  %3286 = vmatprep.subr.mxu0 0.0
  %3287 = vmatpush2.msra.mxu0 0.0
  %3288 = vmatprep.subr.mxu0 0.0
  %3289 = vmatpush2.msra.mxu0 0.0
  %3290 = vmatprep.subr.mxu0 0.0
  %3291 = vmatpush2.msra.mxu0 0.0
  %3292 = vmatprep.subr.mxu0 0.0
  %3293 = vmatpush2.msra.mxu0 0.0
  %3294 = vmatprep.subr.mxu0 0.0
  %3295 = vmatpush2.msra.mxu0 0.0
  %3296 = vmatprep.subr.mxu0 0.0
  %3297 = vmatpush2.msra.mxu0 0.0
  %3298 = vmatprep.subr.mxu0 0.0
  %3299 = vmatpush2.msra.mxu0 0.0
  %3300 = vmatprep.subr.mxu0 0.0
  %3301 = vmatpush2.msra.mxu0 0.0
  %3302 = vmatprep.subr.mxu0 0.0
  %3303 = vmatpush2.msra.mxu0 0.0
  %3304 = vmatprep.subr.mxu0 0.0
  %3305 = vmatpush2.msra.mxu0 0.0
  %3306 = vmatprep.subr.mxu0 0.0
  %3307 = vmatpush2.msra.mxu0 0.0
  %3308 = vmatprep.subr.mxu0 0.0
  %3309 = vmatpush2.msra.mxu0 0.0
  %3310 = vmatprep.subr.mxu0 0.0
  %3311 = vmatpush2.msra.mxu0 0.0
  %3312 = vmatprep.mubr.f32.mxu0 0.0
  %3313 = vmatmul.mubr.f32.gmra.mxu0 %v3246
  %v3314 = vpop.f32.mrf.mxu0
  %v3315 = vadd.f32 0.0, %v3314
  %v3316 = vpop.f32.mrf.mxu0
  %3317 = vdwg.mxu0
  %v3318 = vadd.f32 %v3239, %v3315
  %s3319 = scalar_lea.vmem %s6, 64
  %v3320 = vld [vmem:[%s3319] sm:$0xff]
  %v3321 = vld [vmem:[%s3319 + $0x8] sm:$0xff]
  %v3322 = vld [vmem:[%s3319 + $0x10] sm:$0xff]
  %v3323 = vld [vmem:[%s3319 + $0x18] sm:$0xff]
  %v3324 = vrot.slane %v3140, 4
  %v3325 = vsel %vm3165, %v3324, 0
  %3327 = vmatprep.subr.mxu0 0.0
  %3328 = vmatpush1.msra.mxu0 0.0
  %3329 = vmatprep.subr.mxu0 0.0
  %3330 = vmatpush1.msra.mxu0 0.0
  %3331 = vmatprep.subr.mxu0 0.0
  %3332 = vmatpush1.msra.mxu0 0.0
  %3333 = vmatprep.subr.mxu0 0.0
  %3334 = vmatpush1.msra.mxu0 0.0
  %3335 = vmatprep.subr.mxu0 0.0
  %3336 = vmatpush1.msra.mxu0 0.0
  %3337 = vmatprep.subr.mxu0 0.0
  %3338 = vmatpush1.msra.mxu0 0.0
  %3339 = vmatprep.subr.mxu0 0.0
  %3340 = vmatpush1.msra.mxu0 0.0
  %3341 = vmatprep.subr.mxu0 0.0
  %3342 = vmatpush1.msra.mxu0 0.0
  %3343 = vmatprep.subr.mxu0 0.0
  %3344 = vmatpush1.msra.mxu0 0.0
  %3345 = vmatprep.subr.mxu0 0.0
  %3346 = vmatpush1.msra.mxu0 0.0
  %3347 = vmatprep.subr.mxu0 0.0
  %3348 = vmatpush1.msra.mxu0 0.0
  %3349 = vmatprep.subr.mxu0 0.0
  %3350 = vmatpush1.msra.mxu0 0.0
  %3351 = vmatprep.subr.mxu0 0.0
  %3352 = vmatpush1.msra.mxu0 %v3323
  %3353 = vmatprep.subr.mxu0 0.0
  %3354 = vmatpush1.msra.mxu0 %v3322
  %3355 = vmatprep.subr.mxu0 0.0
  %3356 = vmatpush1.msra.mxu0 %v3321
  %3357 = vmatprep.subr.mxu0 0.0
  %3358 = vmatpush1.msra.mxu0 %v3320
  %3359 = vmatprep.subr.mxu0 0.0
  %3360 = vmatpush2.msra.mxu0 0.0
  %3361 = vmatprep.subr.mxu0 0.0
  %3362 = vmatpush2.msra.mxu0 0.0
  %3363 = vmatprep.subr.mxu0 0.0
  %3364 = vmatpush2.msra.mxu0 0.0
  %3365 = vmatprep.subr.mxu0 0.0
  %3366 = vmatpush2.msra.mxu0 0.0
  %3367 = vmatprep.subr.mxu0 0.0
  %3368 = vmatpush2.msra.mxu0 0.0
  %3369 = vmatprep.subr.mxu0 0.0
  %3370 = vmatpush2.msra.mxu0 0.0
  %3371 = vmatprep.subr.mxu0 0.0
  %3372 = vmatpush2.msra.mxu0 0.0
  %3373 = vmatprep.subr.mxu0 0.0
  %3374 = vmatpush2.msra.mxu0 0.0
  %3375 = vmatprep.subr.mxu0 0.0
  %3376 = vmatpush2.msra.mxu0 0.0
  %3377 = vmatprep.subr.mxu0 0.0
  %3378 = vmatpush2.msra.mxu0 0.0
  %3379 = vmatprep.subr.mxu0 0.0
  %3380 = vmatpush2.msra.mxu0 0.0
  %3381 = vmatprep.subr.mxu0 0.0
  %3382 = vmatpush2.msra.mxu0 0.0
  %3383 = vmatprep.subr.mxu0 0.0
  %3384 = vmatpush2.msra.mxu0 0.0
  %3385 = vmatprep.subr.mxu0 0.0
  %3386 = vmatpush2.msra.mxu0 0.0
  %3387 = vmatprep.subr.mxu0 0.0
  %3388 = vmatpush2.msra.mxu0 0.0
  %3389 = vmatprep.subr.mxu0 0.0
  %3390 = vmatpush2.msra.mxu0 0.0
  %3391 = vmatprep.mubr.f32.mxu0 0.0
  %3392 = vmatmul.mubr.f32.gmra.mxu0 %v3325
  %v3393 = vpop.f32.mrf.mxu0
  %v3394 = vadd.f32 0.0, %v3393
  %v3395 = vpop.f32.mrf.mxu0
  %3396 = vdwg.mxu0
  %v3397 = vadd.f32 %v3318, %v3394
  %s3398 = scalar_lea.vmem %s6, 96
  %v3399 = vld [vmem:[%s3398] sm:$0xff]
  %v3400 = vld [vmem:[%s3398 + $0x8] sm:$0xff]
  %v3401 = vld [vmem:[%s3398 + $0x10] sm:$0xff]
  %v3402 = vld [vmem:[%s3398 + $0x18] sm:$0xff]
  %v3403 = vrot.slane %v3140, 6
  %v3404 = vsel %vm3165, %v3403, 0
  %3406 = vmatprep.subr.mxu0 0.0
  %3407 = vmatpush1.msra.mxu0 0.0
  %3408 = vmatprep.subr.mxu0 0.0
  %3409 = vmatpush1.msra.mxu0 0.0
  %3410 = vmatprep.subr.mxu0 0.0
  %3411 = vmatpush1.msra.mxu0 0.0
  %3412 = vmatprep.subr.mxu0 0.0
  %3413 = vmatpush1.msra.mxu0 0.0
  %3414 = vmatprep.subr.mxu0 0.0
  %3415 = vmatpush1.msra.mxu0 0.0
  %3416 = vmatprep.subr.mxu0 0.0
  %3417 = vmatpush1.msra.mxu0 0.0
  %3418 = vmatprep.subr.mxu0 0.0
  %3419 = vmatpush1.msra.mxu0 0.0
  %3420 = vmatprep.subr.mxu0 0.0
  %3421 = vmatpush1.msra.mxu0 0.0
  %3422 = vmatprep.subr.mxu0 0.0
  %3423 = vmatpush1.msra.mxu0 0.0
  %3424 = vmatprep.subr.mxu0 0.0
  %3425 = vmatpush1.msra.mxu0 0.0
  %3426 = vmatprep.subr.mxu0 0.0
  %3427 = vmatpush1.msra.mxu0 0.0
  %3428 = vmatprep.subr.mxu0 0.0
  %3429 = vmatpush1.msra.mxu0 0.0
  %3430 = vmatprep.subr.mxu0 0.0
  %3431 = vmatpush1.msra.mxu0 %v3402
  %3432 = vmatprep.subr.mxu0 0.0
  %3433 = vmatpush1.msra.mxu0 %v3401
  %3434 = vmatprep.subr.mxu0 0.0
  %3435 = vmatpush1.msra.mxu0 %v3400
  %3436 = vmatprep.subr.mxu0 0.0
  %3437 = vmatpush1.msra.mxu0 %v3399
  %3438 = vmatprep.subr.mxu0 0.0
  %3439 = vmatpush2.msra.mxu0 0.0
  %3440 = vmatprep.subr.mxu0 0.0
  %3441 = vmatpush2.msra.mxu0 0.0
  %3442 = vmatprep.subr.mxu0 0.0
  %3443 = vmatpush2.msra.mxu0 0.0
  %3444 = vmatprep.subr.mxu0 0.0
  %3445 = vmatpush2.msra.mxu0 0.0
  %3446 = vmatprep.subr.mxu0 0.0
  %3447 = vmatpush2.msra.mxu0 0.0
  %3448 = vmatprep.subr.mxu0 0.0
  %3449 = vmatpush2.msra.mxu0 0.0
  %3450 = vmatprep.subr.mxu0 0.0
  %3451 = vmatpush2.msra.mxu0 0.0
  %3452 = vmatprep.subr.mxu0 0.0
  %3453 = vmatpush2.msra.mxu0 0.0
  %3454 = vmatprep.subr.mxu0 0.0
  %3455 = vmatpush2.msra.mxu0 0.0
  %3456 = vmatprep.subr.mxu0 0.0
  %3457 = vmatpush2.msra.mxu0 0.0
  %3458 = vmatprep.subr.mxu0 0.0
  %3459 = vmatpush2.msra.mxu0 0.0
  %3460 = vmatprep.subr.mxu0 0.0
  %3461 = vmatpush2.msra.mxu0 0.0
  %3462 = vmatprep.subr.mxu0 0.0
  %3463 = vmatpush2.msra.mxu0 0.0
  %3464 = vmatprep.subr.mxu0 0.0
  %3465 = vmatpush2.msra.mxu0 0.0
  %3466 = vmatprep.subr.mxu0 0.0
  %3467 = vmatpush2.msra.mxu0 0.0
  %3468 = vmatprep.subr.mxu0 0.0
  %3469 = vmatpush2.msra.mxu0 0.0
  %3470 = vmatprep.mubr.f32.mxu0 0.0
  %3471 = vmatmul.mubr.f32.gmra.mxu0 %v3404
  %v3472 = vpop.f32.mrf.mxu0
  %v3473 = vadd.f32 0.0, %v3472
  %v3474 = vpop.f32.mrf.mxu0
  %3475 = vdwg.mxu0
  %v3476 = vadd.f32 %v3397, %v3473
  %s3477 = scalar_lea.vmem %s6, 128
  %v3478 = vld [vmem:[%s3477] sm:$0xff]
  %v3479 = vld [vmem:[%s3477 + $0x8] sm:$0xff]
  %v3480 = vld [vmem:[%s3477 + $0x10] sm:$0xff]
  %v3481 = vld [vmem:[%s3477 + $0x18] sm:$0xff]
  %v3483 = vsel %vm3165, %v3141, 0
  %3485 = vmatprep.subr.mxu0 0.0
  %3486 = vmatpush1.msra.mxu0 0.0
  %3487 = vmatprep.subr.mxu0 0.0
  %3488 = vmatpush1.msra.mxu0 0.0
  %3489 = vmatprep.subr.mxu0 0.0
  %3490 = vmatpush1.msra.mxu0 0.0
  %3491 = vmatprep.subr.mxu0 0.0
  %3492 = vmatpush1.msra.mxu0 0.0
  %3493 = vmatprep.subr.mxu0 0.0
  %3494 = vmatpush1.msra.mxu0 0.0
  %3495 = vmatprep.subr.mxu0 0.0
  %3496 = vmatpush1.msra.mxu0 0.0
  %3497 = vmatprep.subr.mxu0 0.0
  %3498 = vmatpush1.msra.mxu0 0.0
  %3499 = vmatprep.subr.mxu0 0.0
  %3500 = vmatpush1.msra.mxu0 0.0
  %3501 = vmatprep.subr.mxu0 0.0
  %3502 = vmatpush1.msra.mxu0 0.0
  %3503 = vmatprep.subr.mxu0 0.0
  %3504 = vmatpush1.msra.mxu0 0.0
  %3505 = vmatprep.subr.mxu0 0.0
  %3506 = vmatpush1.msra.mxu0 0.0
  %3507 = vmatprep.subr.mxu0 0.0
  %3508 = vmatpush1.msra.mxu0 0.0
  %3509 = vmatprep.subr.mxu0 0.0
  %3510 = vmatpush1.msra.mxu0 %v3481
  %3511 = vmatprep.subr.mxu0 0.0
  %3512 = vmatpush1.msra.mxu0 %v3480
  %3513 = vmatprep.subr.mxu0 0.0
  %3514 = vmatpush1.msra.mxu0 %v3479
  %3515 = vmatprep.subr.mxu0 0.0
  %3516 = vmatpush1.msra.mxu0 %v3478
  %3517 = vmatprep.subr.mxu0 0.0
  %3518 = vmatpush2.msra.mxu0 0.0
  %3519 = vmatprep.subr.mxu0 0.0
  %3520 = vmatpush2.msra.mxu0 0.0
  %3521 = vmatprep.subr.mxu0 0.0
  %3522 = vmatpush2.msra.mxu0 0.0
  %3523 = vmatprep.subr.mxu0 0.0
  %3524 = vmatpush2.msra.mxu0 0.0
  %3525 = vmatprep.subr.mxu0 0.0
  %3526 = vmatpush2.msra.mxu0 0.0
  %3527 = vmatprep.subr.mxu0 0.0
  %3528 = vmatpush2.msra.mxu0 0.0
  %3529 = vmatprep.subr.mxu0 0.0
  %3530 = vmatpush2.msra.mxu0 0.0
  %3531 = vmatprep.subr.mxu0 0.0
  %3532 = vmatpush2.msra.mxu0 0.0
  %3533 = vmatprep.subr.mxu0 0.0
  %3534 = vmatpush2.msra.mxu0 0.0
  %3535 = vmatprep.subr.mxu0 0.0
  %3536 = vmatpush2.msra.mxu0 0.0
  %3537 = vmatprep.subr.mxu0 0.0
  %3538 = vmatpush2.msra.mxu0 0.0
  %3539 = vmatprep.subr.mxu0 0.0
  %3540 = vmatpush2.msra.mxu0 0.0
  %3541 = vmatprep.subr.mxu0 0.0
  %3542 = vmatpush2.msra.mxu0 0.0
  %3543 = vmatprep.subr.mxu0 0.0
  %3544 = vmatpush2.msra.mxu0 0.0
  %3545 = vmatprep.subr.mxu0 0.0
  %3546 = vmatpush2.msra.mxu0 0.0
  %3547 = vmatprep.subr.mxu0 0.0
  %3548 = vmatpush2.msra.mxu0 0.0
  %3549 = vmatprep.mubr.f32.mxu0 0.0
  %3550 = vmatmul.mubr.f32.gmra.mxu0 %v3483
  %v3551 = vpop.f32.mrf.mxu0
  %v3552 = vadd.f32 0.0, %v3551
  %v3553 = vpop.f32.mrf.mxu0
  %3554 = vdwg.mxu0
  %v3555 = vadd.f32 %v3476, %v3552
  %s3556 = scalar_lea.vmem %s6, 160
  %v3557 = vld [vmem:[%s3556] sm:$0xff]
  %v3558 = vld [vmem:[%s3556 + $0x8] sm:$0xff]
  %v3559 = vld [vmem:[%s3556 + $0x10] sm:$0xff]
  %v3560 = vld [vmem:[%s3556 + $0x18] sm:$0xff]
  %v3561 = vrot.slane %v3141, 2
  %v3562 = vsel %vm3165, %v3561, 0
  %3564 = vmatprep.subr.mxu0 0.0
  %3565 = vmatpush1.msra.mxu0 0.0
  %3566 = vmatprep.subr.mxu0 0.0
  %3567 = vmatpush1.msra.mxu0 0.0
  %3568 = vmatprep.subr.mxu0 0.0
  %3569 = vmatpush1.msra.mxu0 0.0
  %3570 = vmatprep.subr.mxu0 0.0
  %3571 = vmatpush1.msra.mxu0 0.0
  %3572 = vmatprep.subr.mxu0 0.0
  %3573 = vmatpush1.msra.mxu0 0.0
  %3574 = vmatprep.subr.mxu0 0.0
  %3575 = vmatpush1.msra.mxu0 0.0
  %3576 = vmatprep.subr.mxu0 0.0
  %3577 = vmatpush1.msra.mxu0 0.0
  %3578 = vmatprep.subr.mxu0 0.0
  %3579 = vmatpush1.msra.mxu0 0.0
  %3580 = vmatprep.subr.mxu0 0.0
  %3581 = vmatpush1.msra.mxu0 0.0
  %3582 = vmatprep.subr.mxu0 0.0
  %3583 = vmatpush1.msra.mxu0 0.0
  %3584 = vmatprep.subr.mxu0 0.0
  %3585 = vmatpush1.msra.mxu0 0.0
  %3586 = vmatprep.subr.mxu0 0.0
  %3587 = vmatpush1.msra.mxu0 0.0
  %3588 = vmatprep.subr.mxu0 0.0
  %3589 = vmatpush1.msra.mxu0 %v3560
  %3590 = vmatprep.subr.mxu0 0.0
  %3591 = vmatpush1.msra.mxu0 %v3559
  %3592 = vmatprep.subr.mxu0 0.0
  %3593 = vmatpush1.msra.mxu0 %v3558
  %3594 = vmatprep.subr.mxu0 0.0
  %3595 = vmatpush1.msra.mxu0 %v3557
  %3596 = vmatprep.subr.mxu0 0.0
  %3597 = vmatpush2.msra.mxu0 0.0
  %3598 = vmatprep.subr.mxu0 0.0
  %3599 = vmatpush2.msra.mxu0 0.0
  %3600 = vmatprep.subr.mxu0 0.0
  %3601 = vmatpush2.msra.mxu0 0.0
  %3602 = vmatprep.subr.mxu0 0.0
  %3603 = vmatpush2.msra.mxu0 0.0
  %3604 = vmatprep.subr.mxu0 0.0
  %3605 = vmatpush2.msra.mxu0 0.0
  %3606 = vmatprep.subr.mxu0 0.0
  %3607 = vmatpush2.msra.mxu0 0.0
  %3608 = vmatprep.subr.mxu0 0.0
  %3609 = vmatpush2.msra.mxu0 0.0
  %3610 = vmatprep.subr.mxu0 0.0
  %3611 = vmatpush2.msra.mxu0 0.0
  %3612 = vmatprep.subr.mxu0 0.0
  %3613 = vmatpush2.msra.mxu0 0.0
  %3614 = vmatprep.subr.mxu0 0.0
  %3615 = vmatpush2.msra.mxu0 0.0
  %3616 = vmatprep.subr.mxu0 0.0
  %3617 = vmatpush2.msra.mxu0 0.0
  %3618 = vmatprep.subr.mxu0 0.0
  %3619 = vmatpush2.msra.mxu0 0.0
  %3620 = vmatprep.subr.mxu0 0.0
  %3621 = vmatpush2.msra.mxu0 0.0
  %3622 = vmatprep.subr.mxu0 0.0
  %3623 = vmatpush2.msra.mxu0 0.0
  %3624 = vmatprep.subr.mxu0 0.0
  %3625 = vmatpush2.msra.mxu0 0.0
  %3626 = vmatprep.subr.mxu0 0.0
  %3627 = vmatpush2.msra.mxu0 0.0
  %3628 = vmatprep.mubr.f32.mxu0 0.0
  %3629 = vmatmul.mubr.f32.gmra.mxu0 %v3562
  %v3630 = vpop.f32.mrf.mxu0
  %v3631 = vadd.f32 0.0, %v3630
  %v3632 = vpop.f32.mrf.mxu0
  %3633 = vdwg.mxu0
  %v3634 = vadd.f32 %v3555, %v3631
  %s3635 = scalar_lea.vmem %s6, 192
  %v3636 = vld [vmem:[%s3635] sm:$0xff]
  %v3637 = vld [vmem:[%s3635 + $0x8] sm:$0xff]
  %v3638 = vld [vmem:[%s3635 + $0x10] sm:$0xff]
  %v3639 = vld [vmem:[%s3635 + $0x18] sm:$0xff]
  %v3640 = vrot.slane %v3141, 4
  %v3641 = vsel %vm3165, %v3640, 0
  %3643 = vmatprep.subr.mxu0 0.0
  %3644 = vmatpush1.msra.mxu0 0.0
  %3645 = vmatprep.subr.mxu0 0.0
  %3646 = vmatpush1.msra.mxu0 0.0
  %3647 = vmatprep.subr.mxu0 0.0
  %3648 = vmatpush1.msra.mxu0 0.0
  %3649 = vmatprep.subr.mxu0 0.0
  %3650 = vmatpush1.msra.mxu0 0.0
  %3651 = vmatprep.subr.mxu0 0.0
  %3652 = vmatpush1.msra.mxu0 0.0
  %3653 = vmatprep.subr.mxu0 0.0
  %3654 = vmatpush1.msra.mxu0 0.0
  %3655 = vmatprep.subr.mxu0 0.0
  %3656 = vmatpush1.msra.mxu0 0.0
  %3657 = vmatprep.subr.mxu0 0.0
  %3658 = vmatpush1.msra.mxu0 0.0
  %3659 = vmatprep.subr.mxu0 0.0
  %3660 = vmatpush1.msra.mxu0 0.0
  %3661 = vmatprep.subr.mxu0 0.0
  %3662 = vmatpush1.msra.mxu0 0.0
  %3663 = vmatprep.subr.mxu0 0.0
  %3664 = vmatpush1.msra.mxu0 0.0
  %3665 = vmatprep.subr.mxu0 0.0
  %3666 = vmatpush1.msra.mxu0 0.0
  %3667 = vmatprep.subr.mxu0 0.0
  %3668 = vmatpush1.msra.mxu0 %v3639
  %3669 = vmatprep.subr.mxu0 0.0
  %3670 = vmatpush1.msra.mxu0 %v3638
  %3671 = vmatprep.subr.mxu0 0.0
  %3672 = vmatpush1.msra.mxu0 %v3637
  %3673 = vmatprep.subr.mxu0 0.0
  %3674 = vmatpush1.msra.mxu0 %v3636
  %3675 = vmatprep.subr.mxu0 0.0
  %3676 = vmatpush2.msra.mxu0 0.0
  %3677 = vmatprep.subr.mxu0 0.0
  %3678 = vmatpush2.msra.mxu0 0.0
  %3679 = vmatprep.subr.mxu0 0.0
  %3680 = vmatpush2.msra.mxu0 0.0
  %3681 = vmatprep.subr.mxu0 0.0
  %3682 = vmatpush2.msra.mxu0 0.0
  %3683 = vmatprep.subr.mxu0 0.0
  %3684 = vmatpush2.msra.mxu0 0.0
  %3685 = vmatprep.subr.mxu0 0.0
  %3686 = vmatpush2.msra.mxu0 0.0
  %3687 = vmatprep.subr.mxu0 0.0
  %3688 = vmatpush2.msra.mxu0 0.0
  %3689 = vmatprep.subr.mxu0 0.0
  %3690 = vmatpush2.msra.mxu0 0.0
  %3691 = vmatprep.subr.mxu0 0.0
  %3692 = vmatpush2.msra.mxu0 0.0
  %3693 = vmatprep.subr.mxu0 0.0
  %3694 = vmatpush2.msra.mxu0 0.0
  %3695 = vmatprep.subr.mxu0 0.0
  %3696 = vmatpush2.msra.mxu0 0.0
  %3697 = vmatprep.subr.mxu0 0.0
  %3698 = vmatpush2.msra.mxu0 0.0
  %3699 = vmatprep.subr.mxu0 0.0
  %3700 = vmatpush2.msra.mxu0 0.0
  %3701 = vmatprep.subr.mxu0 0.0
  %3702 = vmatpush2.msra.mxu0 0.0
  %3703 = vmatprep.subr.mxu0 0.0
  %3704 = vmatpush2.msra.mxu0 0.0
  %3705 = vmatprep.subr.mxu0 0.0
  %3706 = vmatpush2.msra.mxu0 0.0
  %3707 = vmatprep.mubr.f32.mxu0 0.0
  %3708 = vmatmul.mubr.f32.gmra.mxu0 %v3641
  %v3709 = vpop.f32.mrf.mxu0
  %v3710 = vadd.f32 0.0, %v3709
  %v3711 = vpop.f32.mrf.mxu0
  %3712 = vdwg.mxu0
  %v3713 = vadd.f32 %v3634, %v3710
  %s3714 = scalar_lea.vmem %s6, 224
  %v3715 = vld [vmem:[%s3714] sm:$0xff]
  %v3716 = vld [vmem:[%s3714 + $0x8] sm:$0xff]
  %v3717 = vld [vmem:[%s3714 + $0x10] sm:$0xff]
  %v3718 = vld [vmem:[%s3714 + $0x18] sm:$0xff]
  %v3720 = vsel %vm3165, %v3142, 0
  %3722 = vmatprep.subr.mxu0 0.0
  %3723 = vmatpush1.msra.mxu0 0.0
  %3724 = vmatprep.subr.mxu0 0.0
  %3725 = vmatpush1.msra.mxu0 0.0
  %3726 = vmatprep.subr.mxu0 0.0
  %3727 = vmatpush1.msra.mxu0 0.0
  %3728 = vmatprep.subr.mxu0 0.0
  %3729 = vmatpush1.msra.mxu0 0.0
  %3730 = vmatprep.subr.mxu0 0.0
  %3731 = vmatpush1.msra.mxu0 0.0
  %3732 = vmatprep.subr.mxu0 0.0
  %3733 = vmatpush1.msra.mxu0 0.0
  %3734 = vmatprep.subr.mxu0 0.0
  %3735 = vmatpush1.msra.mxu0 0.0
  %3736 = vmatprep.subr.mxu0 0.0
  %3737 = vmatpush1.msra.mxu0 0.0
  %3738 = vmatprep.subr.mxu0 0.0
  %3739 = vmatpush1.msra.mxu0 0.0
  %3740 = vmatprep.subr.mxu0 0.0
  %3741 = vmatpush1.msra.mxu0 0.0
  %3742 = vmatprep.subr.mxu0 0.0
  %3743 = vmatpush1.msra.mxu0 0.0
  %3744 = vmatprep.subr.mxu0 0.0
  %3745 = vmatpush1.msra.mxu0 0.0
  %3746 = vmatprep.subr.mxu0 0.0
  %3747 = vmatpush1.msra.mxu0 %v3718
  %3748 = vmatprep.subr.mxu0 0.0
  %3749 = vmatpush1.msra.mxu0 %v3717
  %3750 = vmatprep.subr.mxu0 0.0
  %3751 = vmatpush1.msra.mxu0 %v3716
  %3752 = vmatprep.subr.mxu0 0.0
  %3753 = vmatpush1.msra.mxu0 %v3715
  %3754 = vmatprep.subr.mxu0 0.0
  %3755 = vmatpush2.msra.mxu0 0.0
  %3756 = vmatprep.subr.mxu0 0.0
  %3757 = vmatpush2.msra.mxu0 0.0
  %3758 = vmatprep.subr.mxu0 0.0
  %3759 = vmatpush2.msra.mxu0 0.0
  %3760 = vmatprep.subr.mxu0 0.0
  %3761 = vmatpush2.msra.mxu0 0.0
  %3762 = vmatprep.subr.mxu0 0.0
  %3763 = vmatpush2.msra.mxu0 0.0
  %3764 = vmatprep.subr.mxu0 0.0
  %3765 = vmatpush2.msra.mxu0 0.0
  %3766 = vmatprep.subr.mxu0 0.0
  %3767 = vmatpush2.msra.mxu0 0.0
  %3768 = vmatprep.subr.mxu0 0.0
  %3769 = vmatpush2.msra.mxu0 0.0
  %3770 = vmatprep.subr.mxu0 0.0
  %3771 = vmatpush2.msra.mxu0 0.0
  %3772 = vmatprep.subr.mxu0 0.0
  %3773 = vmatpush2.msra.mxu0 0.0
  %3774 = vmatprep.subr.mxu0 0.0
  %3775 = vmatpush2.msra.mxu0 0.0
  %3776 = vmatprep.subr.mxu0 0.0
  %3777 = vmatpush2.msra.mxu0 0.0
  %3778 = vmatprep.subr.mxu0 0.0
  %3779 = vmatpush2.msra.mxu0 0.0
  %3780 = vmatprep.subr.mxu0 0.0
  %3781 = vmatpush2.msra.mxu0 0.0
  %3782 = vmatprep.subr.mxu0 0.0
  %3783 = vmatpush2.msra.mxu0 0.0
  %3784 = vmatprep.subr.mxu0 0.0
  %3785 = vmatpush2.msra.mxu0 0.0
  %3786 = vmatprep.mubr.f32.mxu0 0.0
  %3787 = vmatmul.mubr.f32.gmra.mxu0 %v3720
  %v3788 = vpop.f32.mrf.mxu0
  %v3789 = vadd.f32 0.0, %v3788
  %v3790 = vpop.f32.mrf.mxu0
  %3791 = vdwg.mxu0
  %v3792 = vadd.f32 %v3713, %v3789
  %s3793 = scalar_lea.vmem %s6, 256
  %v3794 = vld [vmem:[%s3793] sm:$0xff]
  %v3795 = vld [vmem:[%s3793 + $0x8] sm:$0xff]
  %v3796 = vld [vmem:[%s3793 + $0x10] sm:$0xff]
  %v3797 = vld [vmem:[%s3793 + $0x18] sm:$0xff]
  %v3798 = vrot.slane %v3142, 2
  %v3799 = vsel %vm3165, %v3798, 0
  %3801 = vmatprep.subr.mxu0 0.0
  %3802 = vmatpush1.msra.mxu0 0.0
  %3803 = vmatprep.subr.mxu0 0.0
  %3804 = vmatpush1.msra.mxu0 0.0
  %3805 = vmatprep.subr.mxu0 0.0
  %3806 = vmatpush1.msra.mxu0 0.0
  %3807 = vmatprep.subr.mxu0 0.0
  %3808 = vmatpush1.msra.mxu0 0.0
  %3809 = vmatprep.subr.mxu0 0.0
  %3810 = vmatpush1.msra.mxu0 0.0
  %3811 = vmatprep.subr.mxu0 0.0
  %3812 = vmatpush1.msra.mxu0 0.0
  %3813 = vmatprep.subr.mxu0 0.0
  %3814 = vmatpush1.msra.mxu0 0.0
  %3815 = vmatprep.subr.mxu0 0.0
  %3816 = vmatpush1.msra.mxu0 0.0
  %3817 = vmatprep.subr.mxu0 0.0
  %3818 = vmatpush1.msra.mxu0 0.0
  %3819 = vmatprep.subr.mxu0 0.0
  %3820 = vmatpush1.msra.mxu0 0.0
  %3821 = vmatprep.subr.mxu0 0.0
  %3822 = vmatpush1.msra.mxu0 0.0
  %3823 = vmatprep.subr.mxu0 0.0
  %3824 = vmatpush1.msra.mxu0 0.0
  %3825 = vmatprep.subr.mxu0 0.0
  %3826 = vmatpush1.msra.mxu0 %v3797
  %3827 = vmatprep.subr.mxu0 0.0
  %3828 = vmatpush1.msra.mxu0 %v3796
  %3829 = vmatprep.subr.mxu0 0.0
  %3830 = vmatpush1.msra.mxu0 %v3795
  %3831 = vmatprep.subr.mxu0 0.0
  %3832 = vmatpush1.msra.mxu0 %v3794
  %3833 = vmatprep.subr.mxu0 0.0
  %3834 = vmatpush2.msra.mxu0 0.0
  %3835 = vmatprep.subr.mxu0 0.0
  %3836 = vmatpush2.msra.mxu0 0.0
  %3837 = vmatprep.subr.mxu0 0.0
  %3838 = vmatpush2.msra.mxu0 0.0
  %3839 = vmatprep.subr.mxu0 0.0
  %3840 = vmatpush2.msra.mxu0 0.0
  %3841 = vmatprep.subr.mxu0 0.0
  %3842 = vmatpush2.msra.mxu0 0.0
  %3843 = vmatprep.subr.mxu0 0.0
  %3844 = vmatpush2.msra.mxu0 0.0
  %3845 = vmatprep.subr.mxu0 0.0
  %3846 = vmatpush2.msra.mxu0 0.0
  %3847 = vmatprep.subr.mxu0 0.0
  %3848 = vmatpush2.msra.mxu0 0.0
  %3849 = vmatprep.subr.mxu0 0.0
  %3850 = vmatpush2.msra.mxu0 0.0
  %3851 = vmatprep.subr.mxu0 0.0
  %3852 = vmatpush2.msra.mxu0 0.0
  %3853 = vmatprep.subr.mxu0 0.0
  %3854 = vmatpush2.msra.mxu0 0.0
  %3855 = vmatprep.subr.mxu0 0.0
  %3856 = vmatpush2.msra.mxu0 0.0
  %3857 = vmatprep.subr.mxu0 0.0
  %3858 = vmatpush2.msra.mxu0 0.0
  %3859 = vmatprep.subr.mxu0 0.0
  %3860 = vmatpush2.msra.mxu0 0.0
  %3861 = vmatprep.subr.mxu0 0.0
  %3862 = vmatpush2.msra.mxu0 0.0
  %3863 = vmatprep.subr.mxu0 0.0
  %3864 = vmatpush2.msra.mxu0 0.0
  %3865 = vmatprep.mubr.f32.mxu0 0.0
  %3866 = vmatmul.mubr.f32.gmra.mxu0 %v3799
  %v3867 = vpop.f32.mrf.mxu0
  %v3868 = vadd.f32 0.0, %v3867
  %v3869 = vpop.f32.mrf.mxu0
  %3870 = vdwg.mxu0
  %v3871 = vadd.f32 %v3792, %v3868
  %s3872 = scalar_lea.vmem %s6, 288
  %v3873 = vld [vmem:[%s3872] sm:$0xff]
  %v3874 = vld [vmem:[%s3872 + $0x8] sm:$0xff]
  %v3875 = vld [vmem:[%s3872 + $0x10] sm:$0xff]
  %v3876 = vld [vmem:[%s3872 + $0x18] sm:$0xff]
  %v3877 = vrot.slane %v3142, 4
  %v3878 = vsel %vm3165, %v3877, 0
  %3880 = vmatprep.subr.mxu0 0.0
  %3881 = vmatpush1.msra.mxu0 0.0
  %3882 = vmatprep.subr.mxu0 0.0
  %3883 = vmatpush1.msra.mxu0 0.0
  %3884 = vmatprep.subr.mxu0 0.0
  %3885 = vmatpush1.msra.mxu0 0.0
  %3886 = vmatprep.subr.mxu0 0.0
  %3887 = vmatpush1.msra.mxu0 0.0
  %3888 = vmatprep.subr.mxu0 0.0
  %3889 = vmatpush1.msra.mxu0 0.0
  %3890 = vmatprep.subr.mxu0 0.0
  %3891 = vmatpush1.msra.mxu0 0.0
  %3892 = vmatprep.subr.mxu0 0.0
  %3893 = vmatpush1.msra.mxu0 0.0
  %3894 = vmatprep.subr.mxu0 0.0
  %3895 = vmatpush1.msra.mxu0 0.0
  %3896 = vmatprep.subr.mxu0 0.0
  %3897 = vmatpush1.msra.mxu0 0.0
  %3898 = vmatprep.subr.mxu0 0.0
  %3899 = vmatpush1.msra.mxu0 0.0
  %3900 = vmatprep.subr.mxu0 0.0
  %3901 = vmatpush1.msra.mxu0 0.0
  %3902 = vmatprep.subr.mxu0 0.0
  %3903 = vmatpush1.msra.mxu0 0.0
  %3904 = vmatprep.subr.mxu0 0.0
  %3905 = vmatpush1.msra.mxu0 %v3876
  %3906 = vmatprep.subr.mxu0 0.0
  %3907 = vmatpush1.msra.mxu0 %v3875
  %3908 = vmatprep.subr.mxu0 0.0
  %3909 = vmatpush1.msra.mxu0 %v3874
  %3910 = vmatprep.subr.mxu0 0.0
  %3911 = vmatpush1.msra.mxu0 %v3873
  %3912 = vmatprep.subr.mxu0 0.0
  %3913 = vmatpush2.msra.mxu0 0.0
  %3914 = vmatprep.subr.mxu0 0.0
  %3915 = vmatpush2.msra.mxu0 0.0
  %3916 = vmatprep.subr.mxu0 0.0
  %3917 = vmatpush2.msra.mxu0 0.0
  %3918 = vmatprep.subr.mxu0 0.0
  %3919 = vmatpush2.msra.mxu0 0.0
  %3920 = vmatprep.subr.mxu0 0.0
  %3921 = vmatpush2.msra.mxu0 0.0
  %3922 = vmatprep.subr.mxu0 0.0
  %3923 = vmatpush2.msra.mxu0 0.0
  %3924 = vmatprep.subr.mxu0 0.0
  %3925 = vmatpush2.msra.mxu0 0.0
  %3926 = vmatprep.subr.mxu0 0.0
  %3927 = vmatpush2.msra.mxu0 0.0
  %3928 = vmatprep.subr.mxu0 0.0
  %3929 = vmatpush2.msra.mxu0 0.0
  %3930 = vmatprep.subr.mxu0 0.0
  %3931 = vmatpush2.msra.mxu0 0.0
  %3932 = vmatprep.subr.mxu0 0.0
  %3933 = vmatpush2.msra.mxu0 0.0
  %3934 = vmatprep.subr.mxu0 0.0
  %3935 = vmatpush2.msra.mxu0 0.0
  %3936 = vmatprep.subr.mxu0 0.0
  %3937 = vmatpush2.msra.mxu0 0.0
  %3938 = vmatprep.subr.mxu0 0.0
  %3939 = vmatpush2.msra.mxu0 0.0
  %3940 = vmatprep.subr.mxu0 0.0
  %3941 = vmatpush2.msra.mxu0 0.0
  %3942 = vmatprep.subr.mxu0 0.0
  %3943 = vmatpush2.msra.mxu0 0.0
  %3944 = vmatprep.mubr.f32.mxu0 0.0
  %3945 = vmatmul.mubr.f32.gmra.mxu0 %v3878
  %v3946 = vpop.f32.mrf.mxu0
  %v3947 = vadd.f32 0.0, %v3946
  %v3948 = vpop.f32.mrf.mxu0
  %3949 = vdwg.mxu0
  %v3950 = vadd.f32 %v3871, %v3947
  %s3951 = scalar_lea.vmem %s6, 320
  %v3952 = vld [vmem:[%s3951] sm:$0xff]
  %v3953 = vld [vmem:[%s3951 + $0x8] sm:$0xff]
  %v3954 = vld [vmem:[%s3951 + $0x10] sm:$0xff]
  %v3955 = vld [vmem:[%s3951 + $0x18] sm:$0xff]
  %v3956 = vrot.slane %v3142, 6
  %v3957 = vsel %vm3165, %v3956, 0
  %3959 = vmatprep.subr.mxu0 0.0
  %3960 = vmatpush1.msra.mxu0 0.0
  %3961 = vmatprep.subr.mxu0 0.0
  %3962 = vmatpush1.msra.mxu0 0.0
  %3963 = vmatprep.subr.mxu0 0.0
  %3964 = vmatpush1.msra.mxu0 0.0
  %3965 = vmatprep.subr.mxu0 0.0
  %3966 = vmatpush1.msra.mxu0 0.0
  %3967 = vmatprep.subr.mxu0 0.0
  %3968 = vmatpush1.msra.mxu0 0.0
  %3969 = vmatprep.subr.mxu0 0.0
  %3970 = vmatpush1.msra.mxu0 0.0
  %3971 = vmatprep.subr.mxu0 0.0
  %3972 = vmatpush1.msra.mxu0 0.0
  %3973 = vmatprep.subr.mxu0 0.0
  %3974 = vmatpush1.msra.mxu0 0.0
  %3975 = vmatprep.subr.mxu0 0.0
  %3976 = vmatpush1.msra.mxu0 0.0
  %3977 = vmatprep.subr.mxu0 0.0
  %3978 = vmatpush1.msra.mxu0 0.0
  %3979 = vmatprep.subr.mxu0 0.0
  %3980 = vmatpush1.msra.mxu0 0.0
  %3981 = vmatprep.subr.mxu0 0.0
  %3982 = vmatpush1.msra.mxu0 0.0
  %3983 = vmatprep.subr.mxu0 0.0
  %3984 = vmatpush1.msra.mxu0 %v3955
  %3985 = vmatprep.subr.mxu0 0.0
  %3986 = vmatpush1.msra.mxu0 %v3954
  %3987 = vmatprep.subr.mxu0 0.0
  %3988 = vmatpush1.msra.mxu0 %v3953
  %3989 = vmatprep.subr.mxu0 0.0
  %3990 = vmatpush1.msra.mxu0 %v3952
  %3991 = vmatprep.subr.mxu0 0.0
  %3992 = vmatpush2.msra.mxu0 0.0
  %3993 = vmatprep.subr.mxu0 0.0
  %3994 = vmatpush2.msra.mxu0 0.0
  %3995 = vmatprep.subr.mxu0 0.0
  %3996 = vmatpush2.msra.mxu0 0.0
  %3997 = vmatprep.subr.mxu0 0.0
  %3998 = vmatpush2.msra.mxu0 0.0
  %3999 = vmatprep.subr.mxu0 0.0
  %4000 = vmatpush2.msra.mxu0 0.0
  %4001 = vmatprep.subr.mxu0 0.0
  %4002 = vmatpush2.msra.mxu0 0.0
  %4003 = vmatprep.subr.mxu0 0.0
  %4004 = vmatpush2.msra.mxu0 0.0
  %4005 = vmatprep.subr.mxu0 0.0
  %4006 = vmatpush2.msra.mxu0 0.0
  %4007 = vmatprep.subr.mxu0 0.0
  %4008 = vmatpush2.msra.mxu0 0.0
  %4009 = vmatprep.subr.mxu0 0.0
  %4010 = vmatpush2.msra.mxu0 0.0
  %4011 = vmatprep.subr.mxu0 0.0
  %4012 = vmatpush2.msra.mxu0 0.0
  %4013 = vmatprep.subr.mxu0 0.0
  %4014 = vmatpush2.msra.mxu0 0.0
  %4015 = vmatprep.subr.mxu0 0.0
  %4016 = vmatpush2.msra.mxu0 0.0
  %4017 = vmatprep.subr.mxu0 0.0
  %4018 = vmatpush2.msra.mxu0 0.0
  %4019 = vmatprep.subr.mxu0 0.0
  %4020 = vmatpush2.msra.mxu0 0.0
  %4021 = vmatprep.subr.mxu0 0.0
  %4022 = vmatpush2.msra.mxu0 0.0
  %4023 = vmatprep.mubr.f32.mxu0 0.0
  %4024 = vmatmul.mubr.f32.gmra.mxu0 %v3957
  %v4025 = vpop.f32.mrf.mxu0
  %v4026 = vadd.f32 0.0, %v4025
  %v4027 = vpop.f32.mrf.mxu0
  %4028 = vdwg.mxu0
  %v4029 = vadd.f32 %v3950, %v4026
  %s4030 = scalar_lea.vmem %s6, 352
  %v4031 = vld [vmem:[%s4030] sm:$0xff]
  %v4032 = vld [vmem:[%s4030 + $0x8] sm:$0xff]
  %v4033 = vld [vmem:[%s4030 + $0x10] sm:$0xff]
  %v4034 = vld [vmem:[%s4030 + $0x18] sm:$0xff]
  %v4036 = vsel %vm3165, %v3143, 0
  %4038 = vmatprep.subr.mxu0 0.0
  %4039 = vmatpush1.msra.mxu0 0.0
  %4040 = vmatprep.subr.mxu0 0.0
  %4041 = vmatpush1.msra.mxu0 0.0
  %4042 = vmatprep.subr.mxu0 0.0
  %4043 = vmatpush1.msra.mxu0 0.0
  %4044 = vmatprep.subr.mxu0 0.0
  %4045 = vmatpush1.msra.mxu0 0.0
  %4046 = vmatprep.subr.mxu0 0.0
  %4047 = vmatpush1.msra.mxu0 0.0
  %4048 = vmatprep.subr.mxu0 0.0
  %4049 = vmatpush1.msra.mxu0 0.0
  %4050 = vmatprep.subr.mxu0 0.0
  %4051 = vmatpush1.msra.mxu0 0.0
  %4052 = vmatprep.subr.mxu0 0.0
  %4053 = vmatpush1.msra.mxu0 0.0
  %4054 = vmatprep.subr.mxu0 0.0
  %4055 = vmatpush1.msra.mxu0 0.0
  %4056 = vmatprep.subr.mxu0 0.0
  %4057 = vmatpush1.msra.mxu0 0.0
  %4058 = vmatprep.subr.mxu0 0.0
  %4059 = vmatpush1.msra.mxu0 0.0
  %4060 = vmatprep.subr.mxu0 0.0
  %4061 = vmatpush1.msra.mxu0 0.0
  %4062 = vmatprep.subr.mxu0 0.0
  %4063 = vmatpush1.msra.mxu0 %v4034
  %4064 = vmatprep.subr.mxu0 0.0
  %4065 = vmatpush1.msra.mxu0 %v4033
  %4066 = vmatprep.subr.mxu0 0.0
  %4067 = vmatpush1.msra.mxu0 %v4032
  %4068 = vmatprep.subr.mxu0 0.0
  %4069 = vmatpush1.msra.mxu0 %v4031
  %4070 = vmatprep.subr.mxu0 0.0
  %4071 = vmatpush2.msra.mxu0 0.0
  %4072 = vmatprep.subr.mxu0 0.0
  %4073 = vmatpush2.msra.mxu0 0.0
  %4074 = vmatprep.subr.mxu0 0.0
  %4075 = vmatpush2.msra.mxu0 0.0
  %4076 = vmatprep.subr.mxu0 0.0
  %4077 = vmatpush2.msra.mxu0 0.0
  %4078 = vmatprep.subr.mxu0 0.0
  %4079 = vmatpush2.msra.mxu0 0.0
  %4080 = vmatprep.subr.mxu0 0.0
  %4081 = vmatpush2.msra.mxu0 0.0
  %4082 = vmatprep.subr.mxu0 0.0
  %4083 = vmatpush2.msra.mxu0 0.0
  %4084 = vmatprep.subr.mxu0 0.0
  %4085 = vmatpush2.msra.mxu0 0.0
  %4086 = vmatprep.subr.mxu0 0.0
  %4087 = vmatpush2.msra.mxu0 0.0
  %4088 = vmatprep.subr.mxu0 0.0
  %4089 = vmatpush2.msra.mxu0 0.0
  %4090 = vmatprep.subr.mxu0 0.0
  %4091 = vmatpush2.msra.mxu0 0.0
  %4092 = vmatprep.subr.mxu0 0.0
  %4093 = vmatpush2.msra.mxu0 0.0
  %4094 = vmatprep.subr.mxu0 0.0
  %4095 = vmatpush2.msra.mxu0 0.0
  %4096 = vmatprep.subr.mxu0 0.0
  %4097 = vmatpush2.msra.mxu0 0.0
  %4098 = vmatprep.subr.mxu0 0.0
  %4099 = vmatpush2.msra.mxu0 0.0
  %4100 = vmatprep.subr.mxu0 0.0
  %4101 = vmatpush2.msra.mxu0 0.0
  %4102 = vmatprep.mubr.f32.mxu0 0.0
  %4103 = vmatmul.mubr.f32.gmra.mxu0 %v4036
  %v4104 = vpop.f32.mrf.mxu0
  %v4105 = vadd.f32 0.0, %v4104
  %v4106 = vpop.f32.mrf.mxu0
  %4107 = vdwg.mxu0
  %v4108 = vadd.f32 %v4029, %v4105
  %s4109 = scalar_lea.vmem %s6, 384
  %v4110 = vld [vmem:[%s4109] sm:$0xff]
  %v4111 = vld [vmem:[%s4109 + $0x8] sm:$0xff]
  %v4112 = vld [vmem:[%s4109 + $0x10] sm:$0xff]
  %v4113 = vld [vmem:[%s4109 + $0x18] sm:$0xff]
  %v4114 = vrot.slane %v3143, 2
  %v4115 = vsel %vm3165, %v4114, 0
  %4117 = vmatprep.subr.mxu0 0.0
  %4118 = vmatpush1.msra.mxu0 0.0
  %4119 = vmatprep.subr.mxu0 0.0
  %4120 = vmatpush1.msra.mxu0 0.0
  %4121 = vmatprep.subr.mxu0 0.0
  %4122 = vmatpush1.msra.mxu0 0.0
  %4123 = vmatprep.subr.mxu0 0.0
  %4124 = vmatpush1.msra.mxu0 0.0
  %4125 = vmatprep.subr.mxu0 0.0
  %4126 = vmatpush1.msra.mxu0 0.0
  %4127 = vmatprep.subr.mxu0 0.0
  %4128 = vmatpush1.msra.mxu0 0.0
  %4129 = vmatprep.subr.mxu0 0.0
  %4130 = vmatpush1.msra.mxu0 0.0
  %4131 = vmatprep.subr.mxu0 0.0
  %4132 = vmatpush1.msra.mxu0 0.0
  %4133 = vmatprep.subr.mxu0 0.0
  %4134 = vmatpush1.msra.mxu0 0.0
  %4135 = vmatprep.subr.mxu0 0.0
  %4136 = vmatpush1.msra.mxu0 0.0
  %4137 = vmatprep.subr.mxu0 0.0
  %4138 = vmatpush1.msra.mxu0 0.0
  %4139 = vmatprep.subr.mxu0 0.0
  %4140 = vmatpush1.msra.mxu0 0.0
  %4141 = vmatprep.subr.mxu0 0.0
  %4142 = vmatpush1.msra.mxu0 %v4113
  %4143 = vmatprep.subr.mxu0 0.0
  %4144 = vmatpush1.msra.mxu0 %v4112
  %4145 = vmatprep.subr.mxu0 0.0
  %4146 = vmatpush1.msra.mxu0 %v4111
  %4147 = vmatprep.subr.mxu0 0.0
  %4148 = vmatpush1.msra.mxu0 %v4110
  %4149 = vmatprep.subr.mxu0 0.0
  %4150 = vmatpush2.msra.mxu0 0.0
  %4151 = vmatprep.subr.mxu0 0.0
  %4152 = vmatpush2.msra.mxu0 0.0
  %4153 = vmatprep.subr.mxu0 0.0
  %4154 = vmatpush2.msra.mxu0 0.0
  %4155 = vmatprep.subr.mxu0 0.0
  %4156 = vmatpush2.msra.mxu0 0.0
  %4157 = vmatprep.subr.mxu0 0.0
  %4158 = vmatpush2.msra.mxu0 0.0
  %4159 = vmatprep.subr.mxu0 0.0
  %4160 = vmatpush2.msra.mxu0 0.0
  %4161 = vmatprep.subr.mxu0 0.0
  %4162 = vmatpush2.msra.mxu0 0.0
  %4163 = vmatprep.subr.mxu0 0.0
  %4164 = vmatpush2.msra.mxu0 0.0
  %4165 = vmatprep.subr.mxu0 0.0
  %4166 = vmatpush2.msra.mxu0 0.0
  %4167 = vmatprep.subr.mxu0 0.0
  %4168 = vmatpush2.msra.mxu0 0.0
  %4169 = vmatprep.subr.mxu0 0.0
  %4170 = vmatpush2.msra.mxu0 0.0
  %4171 = vmatprep.subr.mxu0 0.0
  %4172 = vmatpush2.msra.mxu0 0.0
  %4173 = vmatprep.subr.mxu0 0.0
  %4174 = vmatpush2.msra.mxu0 0.0
  %4175 = vmatprep.subr.mxu0 0.0
  %4176 = vmatpush2.msra.mxu0 0.0
  %4177 = vmatprep.subr.mxu0 0.0
  %4178 = vmatpush2.msra.mxu0 0.0
  %4179 = vmatprep.subr.mxu0 0.0
  %4180 = vmatpush2.msra.mxu0 0.0
  %4181 = vmatprep.mubr.f32.mxu0 0.0
  %4182 = vmatmul.mubr.f32.gmra.mxu0 %v4115
  %v4183 = vpop.f32.mrf.mxu0
  %v4184 = vadd.f32 0.0, %v4183
  %v4185 = vpop.f32.mrf.mxu0
  %4186 = vdwg.mxu0
  %v4187 = vadd.f32 %v4108, %v4184
  %s4188 = scalar_lea.vmem %s6, 416
  %v4189 = vld [vmem:[%s4188] sm:$0xff]
  %v4190 = vld [vmem:[%s4188 + $0x8] sm:$0xff]
  %v4191 = vld [vmem:[%s4188 + $0x10] sm:$0xff]
  %v4192 = vld [vmem:[%s4188 + $0x18] sm:$0xff]
  %v4193 = vrot.slane %v3143, 4
  %v4194 = vsel %vm3165, %v4193, 0
  %4196 = vmatprep.subr.mxu0 0.0
  %4197 = vmatpush1.msra.mxu0 0.0
  %4198 = vmatprep.subr.mxu0 0.0
  %4199 = vmatpush1.msra.mxu0 0.0
  %4200 = vmatprep.subr.mxu0 0.0
  %4201 = vmatpush1.msra.mxu0 0.0
  %4202 = vmatprep.subr.mxu0 0.0
  %4203 = vmatpush1.msra.mxu0 0.0
  %4204 = vmatprep.subr.mxu0 0.0
  %4205 = vmatpush1.msra.mxu0 0.0
  %4206 = vmatprep.subr.mxu0 0.0
  %4207 = vmatpush1.msra.mxu0 0.0
  %4208 = vmatprep.subr.mxu0 0.0
  %4209 = vmatpush1.msra.mxu0 0.0
  %4210 = vmatprep.subr.mxu0 0.0
  %4211 = vmatpush1.msra.mxu0 0.0
  %4212 = vmatprep.subr.mxu0 0.0
  %4213 = vmatpush1.msra.mxu0 0.0
  %4214 = vmatprep.subr.mxu0 0.0
  %4215 = vmatpush1.msra.mxu0 0.0
  %4216 = vmatprep.subr.mxu0 0.0
  %4217 = vmatpush1.msra.mxu0 0.0
  %4218 = vmatprep.subr.mxu0 0.0
  %4219 = vmatpush1.msra.mxu0 0.0
  %4220 = vmatprep.subr.mxu0 0.0
  %4221 = vmatpush1.msra.mxu0 %v4192
  %4222 = vmatprep.subr.mxu0 0.0
  %4223 = vmatpush1.msra.mxu0 %v4191
  %4224 = vmatprep.subr.mxu0 0.0
  %4225 = vmatpush1.msra.mxu0 %v4190
  %4226 = vmatprep.subr.mxu0 0.0
  %4227 = vmatpush1.msra.mxu0 %v4189
  %4228 = vmatprep.subr.mxu0 0.0
  %4229 = vmatpush2.msra.mxu0 0.0
  %4230 = vmatprep.subr.mxu0 0.0
  %4231 = vmatpush2.msra.mxu0 0.0
  %4232 = vmatprep.subr.mxu0 0.0
  %4233 = vmatpush2.msra.mxu0 0.0
  %4234 = vmatprep.subr.mxu0 0.0
  %4235 = vmatpush2.msra.mxu0 0.0
  %4236 = vmatprep.subr.mxu0 0.0
  %4237 = vmatpush2.msra.mxu0 0.0
  %4238 = vmatprep.subr.mxu0 0.0
  %4239 = vmatpush2.msra.mxu0 0.0
  %4240 = vmatprep.subr.mxu0 0.0
  %4241 = vmatpush2.msra.mxu0 0.0
  %4242 = vmatprep.subr.mxu0 0.0
  %4243 = vmatpush2.msra.mxu0 0.0
  %4244 = vmatprep.subr.mxu0 0.0
  %4245 = vmatpush2.msra.mxu0 0.0
  %4246 = vmatprep.subr.mxu0 0.0
  %4247 = vmatpush2.msra.mxu0 0.0
  %4248 = vmatprep.subr.mxu0 0.0
  %4249 = vmatpush2.msra.mxu0 0.0
  %4250 = vmatprep.subr.mxu0 0.0
  %4251 = vmatpush2.msra.mxu0 0.0
  %4252 = vmatprep.subr.mxu0 0.0
  %4253 = vmatpush2.msra.mxu0 0.0
  %4254 = vmatprep.subr.mxu0 0.0
  %4255 = vmatpush2.msra.mxu0 0.0
  %4256 = vmatprep.subr.mxu0 0.0
  %4257 = vmatpush2.msra.mxu0 0.0
  %4258 = vmatprep.subr.mxu0 0.0
  %4259 = vmatpush2.msra.mxu0 0.0
  %4260 = vmatprep.mubr.f32.mxu0 0.0
  %4261 = vmatmul.mubr.f32.gmra.mxu0 %v4194
  %v4262 = vpop.f32.mrf.mxu0
  %v4263 = vadd.f32 0.0, %v4262
  %v4264 = vpop.f32.mrf.mxu0
  %4265 = vdwg.mxu0
  %v4266 = vadd.f32 %v4187, %v4263
  %s4267 = scalar_lea.vmem %s6, 448
  %v4268 = vld [vmem:[%s4267] sm:$0xff]
  %v4269 = vld [vmem:[%s4267 + $0x8] sm:$0xff]
  %v4270 = vld [vmem:[%s4267 + $0x10] sm:$0xff]
  %v4271 = vld [vmem:[%s4267 + $0x18] sm:$0xff]
  %v4273 = vsel %vm3165, %v3144, 0
  %4275 = vmatprep.subr.mxu0 0.0
  %4276 = vmatpush1.msra.mxu0 0.0
  %4277 = vmatprep.subr.mxu0 0.0
  %4278 = vmatpush1.msra.mxu0 0.0
  %4279 = vmatprep.subr.mxu0 0.0
  %4280 = vmatpush1.msra.mxu0 0.0
  %4281 = vmatprep.subr.mxu0 0.0
  %4282 = vmatpush1.msra.mxu0 0.0
  %4283 = vmatprep.subr.mxu0 0.0
  %4284 = vmatpush1.msra.mxu0 0.0
  %4285 = vmatprep.subr.mxu0 0.0
  %4286 = vmatpush1.msra.mxu0 0.0
  %4287 = vmatprep.subr.mxu0 0.0
  %4288 = vmatpush1.msra.mxu0 0.0
  %4289 = vmatprep.subr.mxu0 0.0
  %4290 = vmatpush1.msra.mxu0 0.0
  %4291 = vmatprep.subr.mxu0 0.0
  %4292 = vmatpush1.msra.mxu0 0.0
  %4293 = vmatprep.subr.mxu0 0.0
  %4294 = vmatpush1.msra.mxu0 0.0
  %4295 = vmatprep.subr.mxu0 0.0
  %4296 = vmatpush1.msra.mxu0 0.0
  %4297 = vmatprep.subr.mxu0 0.0
  %4298 = vmatpush1.msra.mxu0 0.0
  %4299 = vmatprep.subr.mxu0 0.0
  %4300 = vmatpush1.msra.mxu0 %v4271
  %4301 = vmatprep.subr.mxu0 0.0
  %4302 = vmatpush1.msra.mxu0 %v4270
  %4303 = vmatprep.subr.mxu0 0.0
  %4304 = vmatpush1.msra.mxu0 %v4269
  %4305 = vmatprep.subr.mxu0 0.0
  %4306 = vmatpush1.msra.mxu0 %v4268
  %4307 = vmatprep.subr.mxu0 0.0
  %4308 = vmatpush2.msra.mxu0 0.0
  %4309 = vmatprep.subr.mxu0 0.0
  %4310 = vmatpush2.msra.mxu0 0.0
  %4311 = vmatprep.subr.mxu0 0.0
  %4312 = vmatpush2.msra.mxu0 0.0
  %4313 = vmatprep.subr.mxu0 0.0
  %4314 = vmatpush2.msra.mxu0 0.0
  %4315 = vmatprep.subr.mxu0 0.0
  %4316 = vmatpush2.msra.mxu0 0.0
  %4317 = vmatprep.subr.mxu0 0.0
  %4318 = vmatpush2.msra.mxu0 0.0
  %4319 = vmatprep.subr.mxu0 0.0
  %4320 = vmatpush2.msra.mxu0 0.0
  %4321 = vmatprep.subr.mxu0 0.0
  %4322 = vmatpush2.msra.mxu0 0.0
  %4323 = vmatprep.subr.mxu0 0.0
  %4324 = vmatpush2.msra.mxu0 0.0
  %4325 = vmatprep.subr.mxu0 0.0
  %4326 = vmatpush2.msra.mxu0 0.0
  %4327 = vmatprep.subr.mxu0 0.0
  %4328 = vmatpush2.msra.mxu0 0.0
  %4329 = vmatprep.subr.mxu0 0.0
  %4330 = vmatpush2.msra.mxu0 0.0
  %4331 = vmatprep.subr.mxu0 0.0
  %4332 = vmatpush2.msra.mxu0 0.0
  %4333 = vmatprep.subr.mxu0 0.0
  %4334 = vmatpush2.msra.mxu0 0.0
  %4335 = vmatprep.subr.mxu0 0.0
  %4336 = vmatpush2.msra.mxu0 0.0
  %4337 = vmatprep.subr.mxu0 0.0
  %4338 = vmatpush2.msra.mxu0 0.0
  %4339 = vmatprep.mubr.f32.mxu0 0.0
  %4340 = vmatmul.mubr.f32.gmra.mxu0 %v4273
  %v4341 = vpop.f32.mrf.mxu0
  %v4342 = vadd.f32 0.0, %v4341
  %v4343 = vpop.f32.mrf.mxu0
  %4344 = vdwg.mxu0
  %v4345 = vadd.f32 %v4266, %v4342
  %s4346 = scalar_lea.vmem %s6, 480
  %v4347 = vld [vmem:[%s4346] sm:$0xff]
  %v4348 = vld [vmem:[%s4346 + $0x8] sm:$0xff]
  %v4349 = vld [vmem:[%s4346 + $0x10] sm:$0xff]
  %v4350 = vld [vmem:[%s4346 + $0x18] sm:$0xff]
  %v4351 = vrot.slane %v3144, 2
  %v4352 = vsel %vm3165, %v4351, 0
  %4354 = vmatprep.subr.mxu0 0.0
  %4355 = vmatpush1.msra.mxu0 0.0
  %4356 = vmatprep.subr.mxu0 0.0
  %4357 = vmatpush1.msra.mxu0 0.0
  %4358 = vmatprep.subr.mxu0 0.0
  %4359 = vmatpush1.msra.mxu0 0.0
  %4360 = vmatprep.subr.mxu0 0.0
  %4361 = vmatpush1.msra.mxu0 0.0
  %4362 = vmatprep.subr.mxu0 0.0
  %4363 = vmatpush1.msra.mxu0 0.0
  %4364 = vmatprep.subr.mxu0 0.0
  %4365 = vmatpush1.msra.mxu0 0.0
  %4366 = vmatprep.subr.mxu0 0.0
  %4367 = vmatpush1.msra.mxu0 0.0
  %4368 = vmatprep.subr.mxu0 0.0
  %4369 = vmatpush1.msra.mxu0 0.0
  %4370 = vmatprep.subr.mxu0 0.0
  %4371 = vmatpush1.msra.mxu0 0.0
  %4372 = vmatprep.subr.mxu0 0.0
  %4373 = vmatpush1.msra.mxu0 0.0
  %4374 = vmatprep.subr.mxu0 0.0
  %4375 = vmatpush1.msra.mxu0 0.0
  %4376 = vmatprep.subr.mxu0 0.0
  %4377 = vmatpush1.msra.mxu0 0.0
  %4378 = vmatprep.subr.mxu0 0.0
  %4379 = vmatpush1.msra.mxu0 %v4350
  %4380 = vmatprep.subr.mxu0 0.0
  %4381 = vmatpush1.msra.mxu0 %v4349
  %4382 = vmatprep.subr.mxu0 0.0
  %4383 = vmatpush1.msra.mxu0 %v4348
  %4384 = vmatprep.subr.mxu0 0.0
  %4385 = vmatpush1.msra.mxu0 %v4347
  %4386 = vmatprep.subr.mxu0 0.0
  %4387 = vmatpush2.msra.mxu0 0.0
  %4388 = vmatprep.subr.mxu0 0.0
  %4389 = vmatpush2.msra.mxu0 0.0
  %4390 = vmatprep.subr.mxu0 0.0
  %4391 = vmatpush2.msra.mxu0 0.0
  %4392 = vmatprep.subr.mxu0 0.0
  %4393 = vmatpush2.msra.mxu0 0.0
  %4394 = vmatprep.subr.mxu0 0.0
  %4395 = vmatpush2.msra.mxu0 0.0
  %4396 = vmatprep.subr.mxu0 0.0
  %4397 = vmatpush2.msra.mxu0 0.0
  %4398 = vmatprep.subr.mxu0 0.0
  %4399 = vmatpush2.msra.mxu0 0.0
  %4400 = vmatprep.subr.mxu0 0.0
  %4401 = vmatpush2.msra.mxu0 0.0
  %4402 = vmatprep.subr.mxu0 0.0
  %4403 = vmatpush2.msra.mxu0 0.0
  %4404 = vmatprep.subr.mxu0 0.0
  %4405 = vmatpush2.msra.mxu0 0.0
  %4406 = vmatprep.subr.mxu0 0.0
  %4407 = vmatpush2.msra.mxu0 0.0
  %4408 = vmatprep.subr.mxu0 0.0
  %4409 = vmatpush2.msra.mxu0 0.0
  %4410 = vmatprep.subr.mxu0 0.0
  %4411 = vmatpush2.msra.mxu0 0.0
  %4412 = vmatprep.subr.mxu0 0.0
  %4413 = vmatpush2.msra.mxu0 0.0
  %4414 = vmatprep.subr.mxu0 0.0
  %4415 = vmatpush2.msra.mxu0 0.0
  %4416 = vmatprep.subr.mxu0 0.0
  %4417 = vmatpush2.msra.mxu0 0.0
  %4418 = vmatprep.mubr.f32.mxu0 0.0
  %4419 = vmatmul.mubr.f32.gmra.mxu0 %v4352
  %v4420 = vpop.f32.mrf.mxu0
  %v4421 = vadd.f32 0.0, %v4420
  %v4422 = vpop.f32.mrf.mxu0
  %4423 = vdwg.mxu0
  %v4424 = vadd.f32 %v4345, %v4421
  %s4425 = scalar_lea.vmem %s6, 512
  %v4426 = vld [vmem:[%s4425] sm:$0xff]
  %v4427 = vld [vmem:[%s4425 + $0x8] sm:$0xff]
  %v4428 = vld [vmem:[%s4425 + $0x10] sm:$0xff]
  %v4429 = vld [vmem:[%s4425 + $0x18] sm:$0xff]
  %v4430 = vrot.slane %v3144, 4
  %v4431 = vsel %vm3165, %v4430, 0
  %4433 = vmatprep.subr.mxu0 0.0
  %4434 = vmatpush1.msra.mxu0 0.0
  %4435 = vmatprep.subr.mxu0 0.0
  %4436 = vmatpush1.msra.mxu0 0.0
  %4437 = vmatprep.subr.mxu0 0.0
  %4438 = vmatpush1.msra.mxu0 0.0
  %4439 = vmatprep.subr.mxu0 0.0
  %4440 = vmatpush1.msra.mxu0 0.0
  %4441 = vmatprep.subr.mxu0 0.0
  %4442 = vmatpush1.msra.mxu0 0.0
  %4443 = vmatprep.subr.mxu0 0.0
  %4444 = vmatpush1.msra.mxu0 0.0
  %4445 = vmatprep.subr.mxu0 0.0
  %4446 = vmatpush1.msra.mxu0 0.0
  %4447 = vmatprep.subr.mxu0 0.0
  %4448 = vmatpush1.msra.mxu0 0.0
  %4449 = vmatprep.subr.mxu0 0.0
  %4450 = vmatpush1.msra.mxu0 0.0
  %4451 = vmatprep.subr.mxu0 0.0
  %4452 = vmatpush1.msra.mxu0 0.0
  %4453 = vmatprep.subr.mxu0 0.0
  %4454 = vmatpush1.msra.mxu0 0.0
  %4455 = vmatprep.subr.mxu0 0.0
  %4456 = vmatpush1.msra.mxu0 0.0
  %4457 = vmatprep.subr.mxu0 0.0
  %4458 = vmatpush1.msra.mxu0 %v4429
  %4459 = vmatprep.subr.mxu0 0.0
  %4460 = vmatpush1.msra.mxu0 %v4428
  %4461 = vmatprep.subr.mxu0 0.0
  %4462 = vmatpush1.msra.mxu0 %v4427
  %4463 = vmatprep.subr.mxu0 0.0
  %4464 = vmatpush1.msra.mxu0 %v4426
  %4465 = vmatprep.subr.mxu0 0.0
  %4466 = vmatpush2.msra.mxu0 0.0
  %4467 = vmatprep.subr.mxu0 0.0
  %4468 = vmatpush2.msra.mxu0 0.0
  %4469 = vmatprep.subr.mxu0 0.0
  %4470 = vmatpush2.msra.mxu0 0.0
  %4471 = vmatprep.subr.mxu0 0.0
  %4472 = vmatpush2.msra.mxu0 0.0
  %4473 = vmatprep.subr.mxu0 0.0
  %4474 = vmatpush2.msra.mxu0 0.0
  %4475 = vmatprep.subr.mxu0 0.0
  %4476 = vmatpush2.msra.mxu0 0.0
  %4477 = vmatprep.subr.mxu0 0.0
  %4478 = vmatpush2.msra.mxu0 0.0
  %4479 = vmatprep.subr.mxu0 0.0
  %4480 = vmatpush2.msra.mxu0 0.0
  %4481 = vmatprep.subr.mxu0 0.0
  %4482 = vmatpush2.msra.mxu0 0.0
  %4483 = vmatprep.subr.mxu0 0.0
  %4484 = vmatpush2.msra.mxu0 0.0
  %4485 = vmatprep.subr.mxu0 0.0
  %4486 = vmatpush2.msra.mxu0 0.0
  %4487 = vmatprep.subr.mxu0 0.0
  %4488 = vmatpush2.msra.mxu0 0.0
  %4489 = vmatprep.subr.mxu0 0.0
  %4490 = vmatpush2.msra.mxu0 0.0
  %4491 = vmatprep.subr.mxu0 0.0
  %4492 = vmatpush2.msra.mxu0 0.0
  %4493 = vmatprep.subr.mxu0 0.0
  %4494 = vmatpush2.msra.mxu0 0.0
  %4495 = vmatprep.subr.mxu0 0.0
  %4496 = vmatpush2.msra.mxu0 0.0
  %4497 = vmatprep.mubr.f32.mxu0 0.0
  %4498 = vmatmul.mubr.f32.gmra.mxu0 %v4431
  %v4499 = vpop.f32.mrf.mxu0
  %v4500 = vadd.f32 0.0, %v4499
  %v4501 = vpop.f32.mrf.mxu0
  %4502 = vdwg.mxu0
  %v4503 = vadd.f32 %v4424, %v4500
  %s4504 = scalar_lea.vmem %s6, 544
  %v4505 = vld [vmem:[%s4504] sm:$0xff]
  %v4506 = vld [vmem:[%s4504 + $0x8] sm:$0xff]
  %v4507 = vld [vmem:[%s4504 + $0x10] sm:$0xff]
  %v4508 = vld [vmem:[%s4504 + $0x18] sm:$0xff]
  %v4509 = vrot.slane %v3144, 6
  %v4510 = vsel %vm3165, %v4509, 0
  %4512 = vmatprep.subr.mxu0 0.0
  %4513 = vmatpush1.msra.mxu0 0.0
  %4514 = vmatprep.subr.mxu0 0.0
  %4515 = vmatpush1.msra.mxu0 0.0
  %4516 = vmatprep.subr.mxu0 0.0
  %4517 = vmatpush1.msra.mxu0 0.0
  %4518 = vmatprep.subr.mxu0 0.0
  %4519 = vmatpush1.msra.mxu0 0.0
  %4520 = vmatprep.subr.mxu0 0.0
  %4521 = vmatpush1.msra.mxu0 0.0
  %4522 = vmatprep.subr.mxu0 0.0
  %4523 = vmatpush1.msra.mxu0 0.0
  %4524 = vmatprep.subr.mxu0 0.0
  %4525 = vmatpush1.msra.mxu0 0.0
  %4526 = vmatprep.subr.mxu0 0.0
  %4527 = vmatpush1.msra.mxu0 0.0
  %4528 = vmatprep.subr.mxu0 0.0
  %4529 = vmatpush1.msra.mxu0 0.0
  %4530 = vmatprep.subr.mxu0 0.0
  %4531 = vmatpush1.msra.mxu0 0.0
  %4532 = vmatprep.subr.mxu0 0.0
  %4533 = vmatpush1.msra.mxu0 0.0
  %4534 = vmatprep.subr.mxu0 0.0
  %4535 = vmatpush1.msra.mxu0 0.0
  %4536 = vmatprep.subr.mxu0 0.0
  %4537 = vmatpush1.msra.mxu0 %v4508
  %4538 = vmatprep.subr.mxu0 0.0
  %4539 = vmatpush1.msra.mxu0 %v4507
  %4540 = vmatprep.subr.mxu0 0.0
  %4541 = vmatpush1.msra.mxu0 %v4506
  %4542 = vmatprep.subr.mxu0 0.0
  %4543 = vmatpush1.msra.mxu0 %v4505
  %4544 = vmatprep.subr.mxu0 0.0
  %4545 = vmatpush2.msra.mxu0 0.0
  %4546 = vmatprep.subr.mxu0 0.0
  %4547 = vmatpush2.msra.mxu0 0.0
  %4548 = vmatprep.subr.mxu0 0.0
  %4549 = vmatpush2.msra.mxu0 0.0
  %4550 = vmatprep.subr.mxu0 0.0
  %4551 = vmatpush2.msra.mxu0 0.0
  %4552 = vmatprep.subr.mxu0 0.0
  %4553 = vmatpush2.msra.mxu0 0.0
  %4554 = vmatprep.subr.mxu0 0.0
  %4555 = vmatpush2.msra.mxu0 0.0
  %4556 = vmatprep.subr.mxu0 0.0
  %4557 = vmatpush2.msra.mxu0 0.0
  %4558 = vmatprep.subr.mxu0 0.0
  %4559 = vmatpush2.msra.mxu0 0.0
  %4560 = vmatprep.subr.mxu0 0.0
  %4561 = vmatpush2.msra.mxu0 0.0
  %4562 = vmatprep.subr.mxu0 0.0
  %4563 = vmatpush2.msra.mxu0 0.0
  %4564 = vmatprep.subr.mxu0 0.0
  %4565 = vmatpush2.msra.mxu0 0.0
  %4566 = vmatprep.subr.mxu0 0.0
  %4567 = vmatpush2.msra.mxu0 0.0
  %4568 = vmatprep.subr.mxu0 0.0
  %4569 = vmatpush2.msra.mxu0 0.0
  %4570 = vmatprep.subr.mxu0 0.0
  %4571 = vmatpush2.msra.mxu0 0.0
  %4572 = vmatprep.subr.mxu0 0.0
  %4573 = vmatpush2.msra.mxu0 0.0
  %4574 = vmatprep.subr.mxu0 0.0
  %4575 = vmatpush2.msra.mxu0 0.0
  %4576 = vmatprep.mubr.f32.mxu0 0.0
  %4577 = vmatmul.mubr.f32.gmra.mxu0 %v4510
  %v4578 = vpop.f32.mrf.mxu0
  %v4579 = vadd.f32 0.0, %v4578
  %v4580 = vpop.f32.mrf.mxu0
  %4581 = vdwg.mxu0
  %v4582 = vadd.f32 %v4503, %v4579
  %s4583 = scalar_lea.vmem %s6, 576
  %v4584 = vld [vmem:[%s4583] sm:$0xff]
  %v4585 = vld [vmem:[%s4583 + $0x8] sm:$0xff]
  %v4586 = vld [vmem:[%s4583 + $0x10] sm:$0xff]
  %v4587 = vld [vmem:[%s4583 + $0x18] sm:$0xff]
  %v4589 = vsel %vm3165, %v3145, 0
  %4591 = vmatprep.subr.mxu0 0.0
  %4592 = vmatpush1.msra.mxu0 0.0
  %4593 = vmatprep.subr.mxu0 0.0
  %4594 = vmatpush1.msra.mxu0 0.0
  %4595 = vmatprep.subr.mxu0 0.0
  %4596 = vmatpush1.msra.mxu0 0.0
  %4597 = vmatprep.subr.mxu0 0.0
  %4598 = vmatpush1.msra.mxu0 0.0
  %4599 = vmatprep.subr.mxu0 0.0
  %4600 = vmatpush1.msra.mxu0 0.0
  %4601 = vmatprep.subr.mxu0 0.0
  %4602 = vmatpush1.msra.mxu0 0.0
  %4603 = vmatprep.subr.mxu0 0.0
  %4604 = vmatpush1.msra.mxu0 0.0
  %4605 = vmatprep.subr.mxu0 0.0
  %4606 = vmatpush1.msra.mxu0 0.0
  %4607 = vmatprep.subr.mxu0 0.0
  %4608 = vmatpush1.msra.mxu0 0.0
  %4609 = vmatprep.subr.mxu0 0.0
  %4610 = vmatpush1.msra.mxu0 0.0
  %4611 = vmatprep.subr.mxu0 0.0
  %4612 = vmatpush1.msra.mxu0 0.0
  %4613 = vmatprep.subr.mxu0 0.0
  %4614 = vmatpush1.msra.mxu0 0.0
  %4615 = vmatprep.subr.mxu0 0.0
  %4616 = vmatpush1.msra.mxu0 %v4587
  %4617 = vmatprep.subr.mxu0 0.0
  %4618 = vmatpush1.msra.mxu0 %v4586
  %4619 = vmatprep.subr.mxu0 0.0
  %4620 = vmatpush1.msra.mxu0 %v4585
  %4621 = vmatprep.subr.mxu0 0.0
  %4622 = vmatpush1.msra.mxu0 %v4584
  %4623 = vmatprep.subr.mxu0 0.0
  %4624 = vmatpush2.msra.mxu0 0.0
  %4625 = vmatprep.subr.mxu0 0.0
  %4626 = vmatpush2.msra.mxu0 0.0
  %4627 = vmatprep.subr.mxu0 0.0
  %4628 = vmatpush2.msra.mxu0 0.0
  %4629 = vmatprep.subr.mxu0 0.0
  %4630 = vmatpush2.msra.mxu0 0.0
  %4631 = vmatprep.subr.mxu0 0.0
  %4632 = vmatpush2.msra.mxu0 0.0
  %4633 = vmatprep.subr.mxu0 0.0
  %4634 = vmatpush2.msra.mxu0 0.0
  %4635 = vmatprep.subr.mxu0 0.0
  %4636 = vmatpush2.msra.mxu0 0.0
  %4637 = vmatprep.subr.mxu0 0.0
  %4638 = vmatpush2.msra.mxu0 0.0
  %4639 = vmatprep.subr.mxu0 0.0
  %4640 = vmatpush2.msra.mxu0 0.0
  %4641 = vmatprep.subr.mxu0 0.0
  %4642 = vmatpush2.msra.mxu0 0.0
  %4643 = vmatprep.subr.mxu0 0.0
  %4644 = vmatpush2.msra.mxu0 0.0
  %4645 = vmatprep.subr.mxu0 0.0
  %4646 = vmatpush2.msra.mxu0 0.0
  %4647 = vmatprep.subr.mxu0 0.0
  %4648 = vmatpush2.msra.mxu0 0.0
  %4649 = vmatprep.subr.mxu0 0.0
  %4650 = vmatpush2.msra.mxu0 0.0
  %4651 = vmatprep.subr.mxu0 0.0
  %4652 = vmatpush2.msra.mxu0 0.0
  %4653 = vmatprep.subr.mxu0 0.0
  %4654 = vmatpush2.msra.mxu0 0.0
  %4655 = vmatprep.mubr.f32.mxu0 0.0
  %4656 = vmatmul.mubr.f32.gmra.mxu0 %v4589
  %v4657 = vpop.f32.mrf.mxu0
  %v4658 = vadd.f32 0.0, %v4657
  %v4659 = vpop.f32.mrf.mxu0
  %4660 = vdwg.mxu0
  %v4661 = vadd.f32 %v4582, %v4658
  %s4662 = scalar_lea.vmem %s6, 608
  %v4663 = vld [vmem:[%s4662] sm:$0xff]
  %v4664 = vld [vmem:[%s4662 + $0x8] sm:$0xff]
  %v4665 = vld [vmem:[%s4662 + $0x10] sm:$0xff]
  %v4666 = vld [vmem:[%s4662 + $0x18] sm:$0xff]
  %v4667 = vrot.slane %v3145, 2
  %v4668 = vsel %vm3165, %v4667, 0
  %4670 = vmatprep.subr.mxu0 0.0
  %4671 = vmatpush1.msra.mxu0 0.0
  %4672 = vmatprep.subr.mxu0 0.0
  %4673 = vmatpush1.msra.mxu0 0.0
  %4674 = vmatprep.subr.mxu0 0.0
  %4675 = vmatpush1.msra.mxu0 0.0
  %4676 = vmatprep.subr.mxu0 0.0
  %4677 = vmatpush1.msra.mxu0 0.0
  %4678 = vmatprep.subr.mxu0 0.0
  %4679 = vmatpush1.msra.mxu0 0.0
  %4680 = vmatprep.subr.mxu0 0.0
  %4681 = vmatpush1.msra.mxu0 0.0
  %4682 = vmatprep.subr.mxu0 0.0
  %4683 = vmatpush1.msra.mxu0 0.0
  %4684 = vmatprep.subr.mxu0 0.0
  %4685 = vmatpush1.msra.mxu0 0.0
  %4686 = vmatprep.subr.mxu0 0.0
  %4687 = vmatpush1.msra.mxu0 0.0
  %4688 = vmatprep.subr.mxu0 0.0
  %4689 = vmatpush1.msra.mxu0 0.0
  %4690 = vmatprep.subr.mxu0 0.0
  %4691 = vmatpush1.msra.mxu0 0.0
  %4692 = vmatprep.subr.mxu0 0.0
  %4693 = vmatpush1.msra.mxu0 0.0
  %4694 = vmatprep.subr.mxu0 0.0
  %4695 = vmatpush1.msra.mxu0 %v4666
  %4696 = vmatprep.subr.mxu0 0.0
  %4697 = vmatpush1.msra.mxu0 %v4665
  %4698 = vmatprep.subr.mxu0 0.0
  %4699 = vmatpush1.msra.mxu0 %v4664
  %4700 = vmatprep.subr.mxu0 0.0
  %4701 = vmatpush1.msra.mxu0 %v4663
  %4702 = vmatprep.subr.mxu0 0.0
  %4703 = vmatpush2.msra.mxu0 0.0
  %4704 = vmatprep.subr.mxu0 0.0
  %4705 = vmatpush2.msra.mxu0 0.0
  %4706 = vmatprep.subr.mxu0 0.0
  %4707 = vmatpush2.msra.mxu0 0.0
  %4708 = vmatprep.subr.mxu0 0.0
  %4709 = vmatpush2.msra.mxu0 0.0
  %4710 = vmatprep.subr.mxu0 0.0
  %4711 = vmatpush2.msra.mxu0 0.0
  %4712 = vmatprep.subr.mxu0 0.0
  %4713 = vmatpush2.msra.mxu0 0.0
  %4714 = vmatprep.subr.mxu0 0.0
  %4715 = vmatpush2.msra.mxu0 0.0
  %4716 = vmatprep.subr.mxu0 0.0
  %4717 = vmatpush2.msra.mxu0 0.0
  %4718 = vmatprep.subr.mxu0 0.0
  %4719 = vmatpush2.msra.mxu0 0.0
  %4720 = vmatprep.subr.mxu0 0.0
  %4721 = vmatpush2.msra.mxu0 0.0
  %4722 = vmatprep.subr.mxu0 0.0
  %4723 = vmatpush2.msra.mxu0 0.0
  %4724 = vmatprep.subr.mxu0 0.0
  %4725 = vmatpush2.msra.mxu0 0.0
  %4726 = vmatprep.subr.mxu0 0.0
  %4727 = vmatpush2.msra.mxu0 0.0
  %4728 = vmatprep.subr.mxu0 0.0
  %4729 = vmatpush2.msra.mxu0 0.0
  %4730 = vmatprep.subr.mxu0 0.0
  %4731 = vmatpush2.msra.mxu0 0.0
  %4732 = vmatprep.subr.mxu0 0.0
  %4733 = vmatpush2.msra.mxu0 0.0
  %4734 = vmatprep.mubr.f32.mxu0 0.0
  %4735 = vmatmul.mubr.f32.gmra.mxu0 %v4668
  %v4736 = vpop.f32.mrf.mxu0
  %v4737 = vadd.f32 0.0, %v4736
  %v4738 = vpop.f32.mrf.mxu0
  %4739 = vdwg.mxu0
  %v4740 = vadd.f32 %v4661, %v4737
  %s4741 = scalar_lea.vmem %s6, 640
  %v4742 = vld [vmem:[%s4741] sm:$0xff]
  %v4743 = vld [vmem:[%s4741 + $0x8] sm:$0xff]
  %v4744 = vld [vmem:[%s4741 + $0x10] sm:$0xff]
  %v4745 = vld [vmem:[%s4741 + $0x18] sm:$0xff]
  %v4746 = vrot.slane %v3145, 4
  %v4747 = vsel %vm3165, %v4746, 0
  %4749 = vmatprep.subr.mxu0 0.0
  %4750 = vmatpush1.msra.mxu0 0.0
  %4751 = vmatprep.subr.mxu0 0.0
  %4752 = vmatpush1.msra.mxu0 0.0
  %4753 = vmatprep.subr.mxu0 0.0
  %4754 = vmatpush1.msra.mxu0 0.0
  %4755 = vmatprep.subr.mxu0 0.0
  %4756 = vmatpush1.msra.mxu0 0.0
  %4757 = vmatprep.subr.mxu0 0.0
  %4758 = vmatpush1.msra.mxu0 0.0
  %4759 = vmatprep.subr.mxu0 0.0
  %4760 = vmatpush1.msra.mxu0 0.0
  %4761 = vmatprep.subr.mxu0 0.0
  %4762 = vmatpush1.msra.mxu0 0.0
  %4763 = vmatprep.subr.mxu0 0.0
  %4764 = vmatpush1.msra.mxu0 0.0
  %4765 = vmatprep.subr.mxu0 0.0
  %4766 = vmatpush1.msra.mxu0 0.0
  %4767 = vmatprep.subr.mxu0 0.0
  %4768 = vmatpush1.msra.mxu0 0.0
  %4769 = vmatprep.subr.mxu0 0.0
  %4770 = vmatpush1.msra.mxu0 0.0
  %4771 = vmatprep.subr.mxu0 0.0
  %4772 = vmatpush1.msra.mxu0 0.0
  %4773 = vmatprep.subr.mxu0 0.0
  %4774 = vmatpush1.msra.mxu0 %v4745
  %4775 = vmatprep.subr.mxu0 0.0
  %4776 = vmatpush1.msra.mxu0 %v4744
  %4777 = vmatprep.subr.mxu0 0.0
  %4778 = vmatpush1.msra.mxu0 %v4743
  %4779 = vmatprep.subr.mxu0 0.0
  %4780 = vmatpush1.msra.mxu0 %v4742
  %4781 = vmatprep.subr.mxu0 0.0
  %4782 = vmatpush2.msra.mxu0 0.0
  %4783 = vmatprep.subr.mxu0 0.0
  %4784 = vmatpush2.msra.mxu0 0.0
  %4785 = vmatprep.subr.mxu0 0.0
  %4786 = vmatpush2.msra.mxu0 0.0
  %4787 = vmatprep.subr.mxu0 0.0
  %4788 = vmatpush2.msra.mxu0 0.0
  %4789 = vmatprep.subr.mxu0 0.0
  %4790 = vmatpush2.msra.mxu0 0.0
  %4791 = vmatprep.subr.mxu0 0.0
  %4792 = vmatpush2.msra.mxu0 0.0
  %4793 = vmatprep.subr.mxu0 0.0
  %4794 = vmatpush2.msra.mxu0 0.0
  %4795 = vmatprep.subr.mxu0 0.0
  %4796 = vmatpush2.msra.mxu0 0.0
  %4797 = vmatprep.subr.mxu0 0.0
  %4798 = vmatpush2.msra.mxu0 0.0
  %4799 = vmatprep.subr.mxu0 0.0
  %4800 = vmatpush2.msra.mxu0 0.0
  %4801 = vmatprep.subr.mxu0 0.0
  %4802 = vmatpush2.msra.mxu0 0.0
  %4803 = vmatprep.subr.mxu0 0.0
  %4804 = vmatpush2.msra.mxu0 0.0
  %4805 = vmatprep.subr.mxu0 0.0
  %4806 = vmatpush2.msra.mxu0 0.0
  %4807 = vmatprep.subr.mxu0 0.0
  %4808 = vmatpush2.msra.mxu0 0.0
  %4809 = vmatprep.subr.mxu0 0.0
  %4810 = vmatpush2.msra.mxu0 0.0
  %4811 = vmatprep.subr.mxu0 0.0
  %4812 = vmatpush2.msra.mxu0 0.0
  %4813 = vmatprep.mubr.f32.mxu0 0.0
  %4814 = vmatmul.mubr.f32.gmra.mxu0 %v4747
  %v4815 = vpop.f32.mrf.mxu0
  %v4816 = vadd.f32 0.0, %v4815
  %v4817 = vpop.f32.mrf.mxu0
  %4818 = vdwg.mxu0
  %v4819 = vadd.f32 %v4740, %v4816
  %s4820 = scalar_lea.vmem %s6, 672
  %v4821 = vld [vmem:[%s4820] sm:$0xff]
  %v4822 = vld [vmem:[%s4820 + $0x8] sm:$0xff]
  %v4823 = vld [vmem:[%s4820 + $0x10] sm:$0xff]
  %v4824 = vld [vmem:[%s4820 + $0x18] sm:$0xff]
  %v4826 = vsel %vm3165, %v3146, 0
  %4828 = vmatprep.subr.mxu0 0.0
  %4829 = vmatpush1.msra.mxu0 0.0
  %4830 = vmatprep.subr.mxu0 0.0
  %4831 = vmatpush1.msra.mxu0 0.0
  %4832 = vmatprep.subr.mxu0 0.0
  %4833 = vmatpush1.msra.mxu0 0.0
  %4834 = vmatprep.subr.mxu0 0.0
  %4835 = vmatpush1.msra.mxu0 0.0
  %4836 = vmatprep.subr.mxu0 0.0
  %4837 = vmatpush1.msra.mxu0 0.0
  %4838 = vmatprep.subr.mxu0 0.0
  %4839 = vmatpush1.msra.mxu0 0.0
  %4840 = vmatprep.subr.mxu0 0.0
  %4841 = vmatpush1.msra.mxu0 0.0
  %4842 = vmatprep.subr.mxu0 0.0
  %4843 = vmatpush1.msra.mxu0 0.0
  %4844 = vmatprep.subr.mxu0 0.0
  %4845 = vmatpush1.msra.mxu0 0.0
  %4846 = vmatprep.subr.mxu0 0.0
  %4847 = vmatpush1.msra.mxu0 0.0
  %4848 = vmatprep.subr.mxu0 0.0
  %4849 = vmatpush1.msra.mxu0 0.0
  %4850 = vmatprep.subr.mxu0 0.0
  %4851 = vmatpush1.msra.mxu0 0.0
  %4852 = vmatprep.subr.mxu0 0.0
  %4853 = vmatpush1.msra.mxu0 %v4824
  %4854 = vmatprep.subr.mxu0 0.0
  %4855 = vmatpush1.msra.mxu0 %v4823
  %4856 = vmatprep.subr.mxu0 0.0
  %4857 = vmatpush1.msra.mxu0 %v4822
  %4858 = vmatprep.subr.mxu0 0.0
  %4859 = vmatpush1.msra.mxu0 %v4821
  %4860 = vmatprep.subr.mxu0 0.0
  %4861 = vmatpush2.msra.mxu0 0.0
  %4862 = vmatprep.subr.mxu0 0.0
  %4863 = vmatpush2.msra.mxu0 0.0
  %4864 = vmatprep.subr.mxu0 0.0
  %4865 = vmatpush2.msra.mxu0 0.0
  %4866 = vmatprep.subr.mxu0 0.0
  %4867 = vmatpush2.msra.mxu0 0.0
  %4868 = vmatprep.subr.mxu0 0.0
  %4869 = vmatpush2.msra.mxu0 0.0
  %4870 = vmatprep.subr.mxu0 0.0
  %4871 = vmatpush2.msra.mxu0 0.0
  %4872 = vmatprep.subr.mxu0 0.0
  %4873 = vmatpush2.msra.mxu0 0.0
  %4874 = vmatprep.subr.mxu0 0.0
  %4875 = vmatpush2.msra.mxu0 0.0
  %4876 = vmatprep.subr.mxu0 0.0
  %4877 = vmatpush2.msra.mxu0 0.0
  %4878 = vmatprep.subr.mxu0 0.0
  %4879 = vmatpush2.msra.mxu0 0.0
  %4880 = vmatprep.subr.mxu0 0.0
  %4881 = vmatpush2.msra.mxu0 0.0
  %4882 = vmatprep.subr.mxu0 0.0
  %4883 = vmatpush2.msra.mxu0 0.0
  %4884 = vmatprep.subr.mxu0 0.0
  %4885 = vmatpush2.msra.mxu0 0.0
  %4886 = vmatprep.subr.mxu0 0.0
  %4887 = vmatpush2.msra.mxu0 0.0
  %4888 = vmatprep.subr.mxu0 0.0
  %4889 = vmatpush2.msra.mxu0 0.0
  %4890 = vmatprep.subr.mxu0 0.0
  %4891 = vmatpush2.msra.mxu0 0.0
  %4892 = vmatprep.mubr.f32.mxu0 0.0
  %4893 = vmatmul.mubr.f32.gmra.mxu0 %v4826
  %v4894 = vpop.f32.mrf.mxu0
  %v4895 = vadd.f32 0.0, %v4894
  %v4896 = vpop.f32.mrf.mxu0
  %4897 = vdwg.mxu0
  %v4898 = vadd.f32 %v4819, %v4895
  %s4899 = scalar_lea.vmem %s6, 704
  %v4900 = vld [vmem:[%s4899] sm:$0xff]
  %v4901 = vld [vmem:[%s4899 + $0x8] sm:$0xff]
  %v4902 = vld [vmem:[%s4899 + $0x10] sm:$0xff]
  %v4903 = vld [vmem:[%s4899 + $0x18] sm:$0xff]
  %v4904 = vrot.slane %v3146, 2
  %v4905 = vsel %vm3165, %v4904, 0
  %4907 = vmatprep.subr.mxu0 0.0
  %4908 = vmatpush1.msra.mxu0 0.0
  %4909 = vmatprep.subr.mxu0 0.0
  %4910 = vmatpush1.msra.mxu0 0.0
  %4911 = vmatprep.subr.mxu0 0.0
  %4912 = vmatpush1.msra.mxu0 0.0
  %4913 = vmatprep.subr.mxu0 0.0
  %4914 = vmatpush1.msra.mxu0 0.0
  %4915 = vmatprep.subr.mxu0 0.0
  %4916 = vmatpush1.msra.mxu0 0.0
  %4917 = vmatprep.subr.mxu0 0.0
  %4918 = vmatpush1.msra.mxu0 0.0
  %4919 = vmatprep.subr.mxu0 0.0
  %4920 = vmatpush1.msra.mxu0 0.0
  %4921 = vmatprep.subr.mxu0 0.0
  %4922 = vmatpush1.msra.mxu0 0.0
  %4923 = vmatprep.subr.mxu0 0.0
  %4924 = vmatpush1.msra.mxu0 0.0
  %4925 = vmatprep.subr.mxu0 0.0
  %4926 = vmatpush1.msra.mxu0 0.0
  %4927 = vmatprep.subr.mxu0 0.0
  %4928 = vmatpush1.msra.mxu0 0.0
  %4929 = vmatprep.subr.mxu0 0.0
  %4930 = vmatpush1.msra.mxu0 0.0
  %4931 = vmatprep.subr.mxu0 0.0
  %4932 = vmatpush1.msra.mxu0 %v4903
  %4933 = vmatprep.subr.mxu0 0.0
  %4934 = vmatpush1.msra.mxu0 %v4902
  %4935 = vmatprep.subr.mxu0 0.0
  %4936 = vmatpush1.msra.mxu0 %v4901
  %4937 = vmatprep.subr.mxu0 0.0
  %4938 = vmatpush1.msra.mxu0 %v4900
  %4939 = vmatprep.subr.mxu0 0.0
  %4940 = vmatpush2.msra.mxu0 0.0
  %4941 = vmatprep.subr.mxu0 0.0
  %4942 = vmatpush2.msra.mxu0 0.0
  %4943 = vmatprep.subr.mxu0 0.0
  %4944 = vmatpush2.msra.mxu0 0.0
  %4945 = vmatprep.subr.mxu0 0.0
  %4946 = vmatpush2.msra.mxu0 0.0
  %4947 = vmatprep.subr.mxu0 0.0
  %4948 = vmatpush2.msra.mxu0 0.0
  %4949 = vmatprep.subr.mxu0 0.0
  %4950 = vmatpush2.msra.mxu0 0.0
  %4951 = vmatprep.subr.mxu0 0.0
  %4952 = vmatpush2.msra.mxu0 0.0
  %4953 = vmatprep.subr.mxu0 0.0
  %4954 = vmatpush2.msra.mxu0 0.0
  %4955 = vmatprep.subr.mxu0 0.0
  %4956 = vmatpush2.msra.mxu0 0.0
  %4957 = vmatprep.subr.mxu0 0.0
  %4958 = vmatpush2.msra.mxu0 0.0
  %4959 = vmatprep.subr.mxu0 0.0
  %4960 = vmatpush2.msra.mxu0 0.0
  %4961 = vmatprep.subr.mxu0 0.0
  %4962 = vmatpush2.msra.mxu0 0.0
  %4963 = vmatprep.subr.mxu0 0.0
  %4964 = vmatpush2.msra.mxu0 0.0
  %4965 = vmatprep.subr.mxu0 0.0
  %4966 = vmatpush2.msra.mxu0 0.0
  %4967 = vmatprep.subr.mxu0 0.0
  %4968 = vmatpush2.msra.mxu0 0.0
  %4969 = vmatprep.subr.mxu0 0.0
  %4970 = vmatpush2.msra.mxu0 0.0
  %4971 = vmatprep.mubr.f32.mxu0 0.0
  %4972 = vmatmul.mubr.f32.gmra.mxu0 %v4905
  %v4973 = vpop.f32.mrf.mxu0
  %v4974 = vadd.f32 0.0, %v4973
  %v4975 = vpop.f32.mrf.mxu0
  %4976 = vdwg.mxu0
  %v4977 = vadd.f32 %v4898, %v4974
  %s4978 = scalar_lea.vmem %s6, 736
  %v4979 = vld [vmem:[%s4978] sm:$0xff]
  %v4980 = vld [vmem:[%s4978 + $0x8] sm:$0xff]
  %v4981 = vld [vmem:[%s4978 + $0x10] sm:$0xff]
  %v4982 = vld [vmem:[%s4978 + $0x18] sm:$0xff]
  %v4983 = vrot.slane %v3146, 4
  %v4984 = vsel %vm3165, %v4983, 0
  %4986 = vmatprep.subr.mxu0 0.0
  %4987 = vmatpush1.msra.mxu0 0.0
  %4988 = vmatprep.subr.mxu0 0.0
  %4989 = vmatpush1.msra.mxu0 0.0
  %4990 = vmatprep.subr.mxu0 0.0
  %4991 = vmatpush1.msra.mxu0 0.0
  %4992 = vmatprep.subr.mxu0 0.0
  %4993 = vmatpush1.msra.mxu0 0.0
  %4994 = vmatprep.subr.mxu0 0.0
  %4995 = vmatpush1.msra.mxu0 0.0
  %4996 = vmatprep.subr.mxu0 0.0
  %4997 = vmatpush1.msra.mxu0 0.0
  %4998 = vmatprep.subr.mxu0 0.0
  %4999 = vmatpush1.msra.mxu0 0.0
  %5000 = vmatprep.subr.mxu0 0.0
  %5001 = vmatpush1.msra.mxu0 0.0
  %5002 = vmatprep.subr.mxu0 0.0
  %5003 = vmatpush1.msra.mxu0 0.0
  %5004 = vmatprep.subr.mxu0 0.0
  %5005 = vmatpush1.msra.mxu0 0.0
  %5006 = vmatprep.subr.mxu0 0.0
  %5007 = vmatpush1.msra.mxu0 0.0
  %5008 = vmatprep.subr.mxu0 0.0
  %5009 = vmatpush1.msra.mxu0 0.0
  %5010 = vmatprep.subr.mxu0 0.0
  %5011 = vmatpush1.msra.mxu0 %v4982
  %5012 = vmatprep.subr.mxu0 0.0
  %5013 = vmatpush1.msra.mxu0 %v4981
  %5014 = vmatprep.subr.mxu0 0.0
  %5015 = vmatpush1.msra.mxu0 %v4980
  %5016 = vmatprep.subr.mxu0 0.0
  %5017 = vmatpush1.msra.mxu0 %v4979
  %5018 = vmatprep.subr.mxu0 0.0
  %5019 = vmatpush2.msra.mxu0 0.0
  %5020 = vmatprep.subr.mxu0 0.0
  %5021 = vmatpush2.msra.mxu0 0.0
  %5022 = vmatprep.subr.mxu0 0.0
  %5023 = vmatpush2.msra.mxu0 0.0
  %5024 = vmatprep.subr.mxu0 0.0
  %5025 = vmatpush2.msra.mxu0 0.0
  %5026 = vmatprep.subr.mxu0 0.0
  %5027 = vmatpush2.msra.mxu0 0.0
  %5028 = vmatprep.subr.mxu0 0.0
  %5029 = vmatpush2.msra.mxu0 0.0
  %5030 = vmatprep.subr.mxu0 0.0
  %5031 = vmatpush2.msra.mxu0 0.0
  %5032 = vmatprep.subr.mxu0 0.0
  %5033 = vmatpush2.msra.mxu0 0.0
  %5034 = vmatprep.subr.mxu0 0.0
  %5035 = vmatpush2.msra.mxu0 0.0
  %5036 = vmatprep.subr.mxu0 0.0
  %5037 = vmatpush2.msra.mxu0 0.0
  %5038 = vmatprep.subr.mxu0 0.0
  %5039 = vmatpush2.msra.mxu0 0.0
  %5040 = vmatprep.subr.mxu0 0.0
  %5041 = vmatpush2.msra.mxu0 0.0
  %5042 = vmatprep.subr.mxu0 0.0
  %5043 = vmatpush2.msra.mxu0 0.0
  %5044 = vmatprep.subr.mxu0 0.0
  %5045 = vmatpush2.msra.mxu0 0.0
  %5046 = vmatprep.subr.mxu0 0.0
  %5047 = vmatpush2.msra.mxu0 0.0
  %5048 = vmatprep.subr.mxu0 0.0
  %5049 = vmatpush2.msra.mxu0 0.0
  %5050 = vmatprep.mubr.f32.mxu0 0.0
  %5051 = vmatmul.mubr.f32.gmra.mxu0 %v4984
  %v5052 = vpop.f32.mrf.mxu0
  %v5053 = vadd.f32 0.0, %v5052
  %v5054 = vpop.f32.mrf.mxu0
  %5055 = vdwg.mxu0
  %v5056 = vadd.f32 %v4977, %v5053
  %s5057 = scalar_lea.vmem %s6, 768
  %v5058 = vld [vmem:[%s5057] sm:$0xff]
  %v5059 = vld [vmem:[%s5057 + $0x8] sm:$0xff]
  %v5060 = vld [vmem:[%s5057 + $0x10] sm:$0xff]
  %v5061 = vld [vmem:[%s5057 + $0x18] sm:$0xff]
  %v5062 = vrot.slane %v3146, 6
  %v5063 = vsel %vm3165, %v5062, 0
  %5065 = vmatprep.subr.mxu0 0.0
  %5066 = vmatpush1.msra.mxu0 0.0
  %5067 = vmatprep.subr.mxu0 0.0
  %5068 = vmatpush1.msra.mxu0 0.0
  %5069 = vmatprep.subr.mxu0 0.0
  %5070 = vmatpush1.msra.mxu0 0.0
  %5071 = vmatprep.subr.mxu0 0.0
  %5072 = vmatpush1.msra.mxu0 0.0
  %5073 = vmatprep.subr.mxu0 0.0
  %5074 = vmatpush1.msra.mxu0 0.0
  %5075 = vmatprep.subr.mxu0 0.0
  %5076 = vmatpush1.msra.mxu0 0.0
  %5077 = vmatprep.subr.mxu0 0.0
  %5078 = vmatpush1.msra.mxu0 0.0
  %5079 = vmatprep.subr.mxu0 0.0
  %5080 = vmatpush1.msra.mxu0 0.0
  %5081 = vmatprep.subr.mxu0 0.0
  %5082 = vmatpush1.msra.mxu0 0.0
  %5083 = vmatprep.subr.mxu0 0.0
  %5084 = vmatpush1.msra.mxu0 0.0
  %5085 = vmatprep.subr.mxu0 0.0
  %5086 = vmatpush1.msra.mxu0 0.0
  %5087 = vmatprep.subr.mxu0 0.0
  %5088 = vmatpush1.msra.mxu0 0.0
  %5089 = vmatprep.subr.mxu0 0.0
  %5090 = vmatpush1.msra.mxu0 %v5061
  %5091 = vmatprep.subr.mxu0 0.0
  %5092 = vmatpush1.msra.mxu0 %v5060
  %5093 = vmatprep.subr.mxu0 0.0
  %5094 = vmatpush1.msra.mxu0 %v5059
  %5095 = vmatprep.subr.mxu0 0.0
  %5096 = vmatpush1.msra.mxu0 %v5058
  %5097 = vmatprep.subr.mxu0 0.0
  %5098 = vmatpush2.msra.mxu0 0.0
  %5099 = vmatprep.subr.mxu0 0.0
  %5100 = vmatpush2.msra.mxu0 0.0
  %5101 = vmatprep.subr.mxu0 0.0
  %5102 = vmatpush2.msra.mxu0 0.0
  %5103 = vmatprep.subr.mxu0 0.0
  %5104 = vmatpush2.msra.mxu0 0.0
  %5105 = vmatprep.subr.mxu0 0.0
  %5106 = vmatpush2.msra.mxu0 0.0
  %5107 = vmatprep.subr.mxu0 0.0
  %5108 = vmatpush2.msra.mxu0 0.0
  %5109 = vmatprep.subr.mxu0 0.0
  %5110 = vmatpush2.msra.mxu0 0.0
  %5111 = vmatprep.subr.mxu0 0.0
  %5112 = vmatpush2.msra.mxu0 0.0
  %5113 = vmatprep.subr.mxu0 0.0
  %5114 = vmatpush2.msra.mxu0 0.0
  %5115 = vmatprep.subr.mxu0 0.0
  %5116 = vmatpush2.msra.mxu0 0.0
  %5117 = vmatprep.subr.mxu0 0.0
  %5118 = vmatpush2.msra.mxu0 0.0
  %5119 = vmatprep.subr.mxu0 0.0
  %5120 = vmatpush2.msra.mxu0 0.0
  %5121 = vmatprep.subr.mxu0 0.0
  %5122 = vmatpush2.msra.mxu0 0.0
  %5123 = vmatprep.subr.mxu0 0.0
  %5124 = vmatpush2.msra.mxu0 0.0
  %5125 = vmatprep.subr.mxu0 0.0
  %5126 = vmatpush2.msra.mxu0 0.0
  %5127 = vmatprep.subr.mxu0 0.0
  %5128 = vmatpush2.msra.mxu0 0.0
  %5129 = vmatprep.mubr.f32.mxu0 0.0
  %5130 = vmatmul.mubr.f32.gmra.mxu0 %v5063
  %v5131 = vpop.f32.mrf.mxu0
  %v5132 = vadd.f32 0.0, %v5131
  %v5133 = vpop.f32.mrf.mxu0
  %5134 = vdwg.mxu0
  %v5135 = vadd.f32 %v5056, %v5132
  %s5136 = scalar_lea.vmem %s6, 800
  %v5137 = vld [vmem:[%s5136] sm:$0xff]
  %v5138 = vld [vmem:[%s5136 + $0x8] sm:$0xff]
  %v5139 = vld [vmem:[%s5136 + $0x10] sm:$0xff]
  %v5140 = vld [vmem:[%s5136 + $0x18] sm:$0xff]
  %v5142 = vsel %vm3165, %v3147, 0
  %5144 = vmatprep.subr.mxu0 0.0
  %5145 = vmatpush1.msra.mxu0 0.0
  %5146 = vmatprep.subr.mxu0 0.0
  %5147 = vmatpush1.msra.mxu0 0.0
  %5148 = vmatprep.subr.mxu0 0.0
  %5149 = vmatpush1.msra.mxu0 0.0
  %5150 = vmatprep.subr.mxu0 0.0
  %5151 = vmatpush1.msra.mxu0 0.0
  %5152 = vmatprep.subr.mxu0 0.0
  %5153 = vmatpush1.msra.mxu0 0.0
  %5154 = vmatprep.subr.mxu0 0.0
  %5155 = vmatpush1.msra.mxu0 0.0
  %5156 = vmatprep.subr.mxu0 0.0
  %5157 = vmatpush1.msra.mxu0 0.0
  %5158 = vmatprep.subr.mxu0 0.0
  %5159 = vmatpush1.msra.mxu0 0.0
  %5160 = vmatprep.subr.mxu0 0.0
  %5161 = vmatpush1.msra.mxu0 0.0
  %5162 = vmatprep.subr.mxu0 0.0
  %5163 = vmatpush1.msra.mxu0 0.0
  %5164 = vmatprep.subr.mxu0 0.0
  %5165 = vmatpush1.msra.mxu0 0.0
  %5166 = vmatprep.subr.mxu0 0.0
  %5167 = vmatpush1.msra.mxu0 0.0
  %5168 = vmatprep.subr.mxu0 0.0
  %5169 = vmatpush1.msra.mxu0 %v5140
  %5170 = vmatprep.subr.mxu0 0.0
  %5171 = vmatpush1.msra.mxu0 %v5139
  %5172 = vmatprep.subr.mxu0 0.0
  %5173 = vmatpush1.msra.mxu0 %v5138
  %5174 = vmatprep.subr.mxu0 0.0
  %5175 = vmatpush1.msra.mxu0 %v5137
  %5176 = vmatprep.subr.mxu0 0.0
  %5177 = vmatpush2.msra.mxu0 0.0
  %5178 = vmatprep.subr.mxu0 0.0
  %5179 = vmatpush2.msra.mxu0 0.0
  %5180 = vmatprep.subr.mxu0 0.0
  %5181 = vmatpush2.msra.mxu0 0.0
  %5182 = vmatprep.subr.mxu0 0.0
  %5183 = vmatpush2.msra.mxu0 0.0
  %5184 = vmatprep.subr.mxu0 0.0
  %5185 = vmatpush2.msra.mxu0 0.0
  %5186 = vmatprep.subr.mxu0 0.0
  %5187 = vmatpush2.msra.mxu0 0.0
  %5188 = vmatprep.subr.mxu0 0.0
  %5189 = vmatpush2.msra.mxu0 0.0
  %5190 = vmatprep.subr.mxu0 0.0
  %5191 = vmatpush2.msra.mxu0 0.0
  %5192 = vmatprep.subr.mxu0 0.0
  %5193 = vmatpush2.msra.mxu0 0.0
  %5194 = vmatprep.subr.mxu0 0.0
  %5195 = vmatpush2.msra.mxu0 0.0
  %5196 = vmatprep.subr.mxu0 0.0
  %5197 = vmatpush2.msra.mxu0 0.0
  %5198 = vmatprep.subr.mxu0 0.0
  %5199 = vmatpush2.msra.mxu0 0.0
  %5200 = vmatprep.subr.mxu0 0.0
  %5201 = vmatpush2.msra.mxu0 0.0
  %5202 = vmatprep.subr.mxu0 0.0
  %5203 = vmatpush2.msra.mxu0 0.0
  %5204 = vmatprep.subr.mxu0 0.0
  %5205 = vmatpush2.msra.mxu0 0.0
  %5206 = vmatprep.subr.mxu0 0.0
  %5207 = vmatpush2.msra.mxu0 0.0
  %5208 = vmatprep.mubr.f32.mxu0 0.0
  %5209 = vmatmul.mubr.f32.gmra.mxu0 %v5142
  %v5210 = vpop.f32.mrf.mxu0
  %v5211 = vadd.f32 0.0, %v5210
  %v5212 = vpop.f32.mrf.mxu0
  %5213 = vdwg.mxu0
  %v5214 = vadd.f32 %v5135, %v5211
  %s5215 = scalar_lea.vmem %s6, 832
  %v5216 = vld [vmem:[%s5215] sm:$0xff]
  %v5217 = vld [vmem:[%s5215 + $0x8] sm:$0xff]
  %v5218 = vld [vmem:[%s5215 + $0x10] sm:$0xff]
  %v5219 = vld [vmem:[%s5215 + $0x18] sm:$0xff]
  %v5220 = vrot.slane %v3147, 2
  %v5221 = vsel %vm3165, %v5220, 0
  %5223 = vmatprep.subr.mxu0 0.0
  %5224 = vmatpush1.msra.mxu0 0.0
  %5225 = vmatprep.subr.mxu0 0.0
  %5226 = vmatpush1.msra.mxu0 0.0
  %5227 = vmatprep.subr.mxu0 0.0
  %5228 = vmatpush1.msra.mxu0 0.0
  %5229 = vmatprep.subr.mxu0 0.0
  %5230 = vmatpush1.msra.mxu0 0.0
  %5231 = vmatprep.subr.mxu0 0.0
  %5232 = vmatpush1.msra.mxu0 0.0
  %5233 = vmatprep.subr.mxu0 0.0
  %5234 = vmatpush1.msra.mxu0 0.0
  %5235 = vmatprep.subr.mxu0 0.0
  %5236 = vmatpush1.msra.mxu0 0.0
  %5237 = vmatprep.subr.mxu0 0.0
  %5238 = vmatpush1.msra.mxu0 0.0
  %5239 = vmatprep.subr.mxu0 0.0
  %5240 = vmatpush1.msra.mxu0 0.0
  %5241 = vmatprep.subr.mxu0 0.0
  %5242 = vmatpush1.msra.mxu0 0.0
  %5243 = vmatprep.subr.mxu0 0.0
  %5244 = vmatpush1.msra.mxu0 0.0
  %5245 = vmatprep.subr.mxu0 0.0
  %5246 = vmatpush1.msra.mxu0 0.0
  %5247 = vmatprep.subr.mxu0 0.0
  %5248 = vmatpush1.msra.mxu0 %v5219
  %5249 = vmatprep.subr.mxu0 0.0
  %5250 = vmatpush1.msra.mxu0 %v5218
  %5251 = vmatprep.subr.mxu0 0.0
  %5252 = vmatpush1.msra.mxu0 %v5217
  %5253 = vmatprep.subr.mxu0 0.0
  %5254 = vmatpush1.msra.mxu0 %v5216
  %5255 = vmatprep.subr.mxu0 0.0
  %5256 = vmatpush2.msra.mxu0 0.0
  %5257 = vmatprep.subr.mxu0 0.0
  %5258 = vmatpush2.msra.mxu0 0.0
  %5259 = vmatprep.subr.mxu0 0.0
  %5260 = vmatpush2.msra.mxu0 0.0
  %5261 = vmatprep.subr.mxu0 0.0
  %5262 = vmatpush2.msra.mxu0 0.0
  %5263 = vmatprep.subr.mxu0 0.0
  %5264 = vmatpush2.msra.mxu0 0.0
  %5265 = vmatprep.subr.mxu0 0.0
  %5266 = vmatpush2.msra.mxu0 0.0
  %5267 = vmatprep.subr.mxu0 0.0
  %5268 = vmatpush2.msra.mxu0 0.0
  %5269 = vmatprep.subr.mxu0 0.0
  %5270 = vmatpush2.msra.mxu0 0.0
  %5271 = vmatprep.subr.mxu0 0.0
  %5272 = vmatpush2.msra.mxu0 0.0
  %5273 = vmatprep.subr.mxu0 0.0
  %5274 = vmatpush2.msra.mxu0 0.0
  %5275 = vmatprep.subr.mxu0 0.0
  %5276 = vmatpush2.msra.mxu0 0.0
  %5277 = vmatprep.subr.mxu0 0.0
  %5278 = vmatpush2.msra.mxu0 0.0
  %5279 = vmatprep.subr.mxu0 0.0
  %5280 = vmatpush2.msra.mxu0 0.0
  %5281 = vmatprep.subr.mxu0 0.0
  %5282 = vmatpush2.msra.mxu0 0.0
  %5283 = vmatprep.subr.mxu0 0.0
  %5284 = vmatpush2.msra.mxu0 0.0
  %5285 = vmatprep.subr.mxu0 0.0
  %5286 = vmatpush2.msra.mxu0 0.0
  %5287 = vmatprep.mubr.f32.mxu0 0.0
  %5288 = vmatmul.mubr.f32.gmra.mxu0 %v5221
  %v5289 = vpop.f32.mrf.mxu0
  %v5290 = vadd.f32 0.0, %v5289
  %v5291 = vpop.f32.mrf.mxu0
  %5292 = vdwg.mxu0
  %v5293 = vadd.f32 %v5214, %v5290
  %s5294 = scalar_lea.vmem %s6, 864
  %v5295 = vld [vmem:[%s5294] sm:$0xff]
  %v5296 = vld [vmem:[%s5294 + $0x8] sm:$0xff]
  %v5297 = vld [vmem:[%s5294 + $0x10] sm:$0xff]
  %v5298 = vld [vmem:[%s5294 + $0x18] sm:$0xff]
  %v5299 = vrot.slane %v3147, 4
  %v5300 = vsel %vm3165, %v5299, 0
  %5302 = vmatprep.subr.mxu0 0.0
  %5303 = vmatpush1.msra.mxu0 0.0
  %5304 = vmatprep.subr.mxu0 0.0
  %5305 = vmatpush1.msra.mxu0 0.0
  %5306 = vmatprep.subr.mxu0 0.0
  %5307 = vmatpush1.msra.mxu0 0.0
  %5308 = vmatprep.subr.mxu0 0.0
  %5309 = vmatpush1.msra.mxu0 0.0
  %5310 = vmatprep.subr.mxu0 0.0
  %5311 = vmatpush1.msra.mxu0 0.0
  %5312 = vmatprep.subr.mxu0 0.0
  %5313 = vmatpush1.msra.mxu0 0.0
  %5314 = vmatprep.subr.mxu0 0.0
  %5315 = vmatpush1.msra.mxu0 0.0
  %5316 = vmatprep.subr.mxu0 0.0
  %5317 = vmatpush1.msra.mxu0 0.0
  %5318 = vmatprep.subr.mxu0 0.0
  %5319 = vmatpush1.msra.mxu0 0.0
  %5320 = vmatprep.subr.mxu0 0.0
  %5321 = vmatpush1.msra.mxu0 0.0
  %5322 = vmatprep.subr.mxu0 0.0
  %5323 = vmatpush1.msra.mxu0 0.0
  %5324 = vmatprep.subr.mxu0 0.0
  %5325 = vmatpush1.msra.mxu0 0.0
  %5326 = vmatprep.subr.mxu0 0.0
  %5327 = vmatpush1.msra.mxu0 %v5298
  %5328 = vmatprep.subr.mxu0 0.0
  %5329 = vmatpush1.msra.mxu0 %v5297
  %5330 = vmatprep.subr.mxu0 0.0
  %5331 = vmatpush1.msra.mxu0 %v5296
  %5332 = vmatprep.subr.mxu0 0.0
  %5333 = vmatpush1.msra.mxu0 %v5295
  %5334 = vmatprep.subr.mxu0 0.0
  %5335 = vmatpush2.msra.mxu0 0.0
  %5336 = vmatprep.subr.mxu0 0.0
  %5337 = vmatpush2.msra.mxu0 0.0
  %5338 = vmatprep.subr.mxu0 0.0
  %5339 = vmatpush2.msra.mxu0 0.0
  %5340 = vmatprep.subr.mxu0 0.0
  %5341 = vmatpush2.msra.mxu0 0.0
  %5342 = vmatprep.subr.mxu0 0.0
  %5343 = vmatpush2.msra.mxu0 0.0
  %5344 = vmatprep.subr.mxu0 0.0
  %5345 = vmatpush2.msra.mxu0 0.0
  %5346 = vmatprep.subr.mxu0 0.0
  %5347 = vmatpush2.msra.mxu0 0.0
  %5348 = vmatprep.subr.mxu0 0.0
  %5349 = vmatpush2.msra.mxu0 0.0
  %5350 = vmatprep.subr.mxu0 0.0
  %5351 = vmatpush2.msra.mxu0 0.0
  %5352 = vmatprep.subr.mxu0 0.0
  %5353 = vmatpush2.msra.mxu0 0.0
  %5354 = vmatprep.subr.mxu0 0.0
  %5355 = vmatpush2.msra.mxu0 0.0
  %5356 = vmatprep.subr.mxu0 0.0
  %5357 = vmatpush2.msra.mxu0 0.0
  %5358 = vmatprep.subr.mxu0 0.0
  %5359 = vmatpush2.msra.mxu0 0.0
  %5360 = vmatprep.subr.mxu0 0.0
  %5361 = vmatpush2.msra.mxu0 0.0
  %5362 = vmatprep.subr.mxu0 0.0
  %5363 = vmatpush2.msra.mxu0 0.0
  %5364 = vmatprep.subr.mxu0 0.0
  %5365 = vmatpush2.msra.mxu0 0.0
  %5366 = vmatprep.mubr.f32.mxu0 0.0
  %5367 = vmatmul.mubr.f32.gmra.mxu0 %v5300
  %v5368 = vpop.f32.mrf.mxu0
  %v5369 = vadd.f32 0.0, %v5368
  %v5370 = vpop.f32.mrf.mxu0
  %5371 = vdwg.mxu0
  %v5372 = vadd.f32 %v5293, %v5369
  %s5373 = scalar_lea.vmem %s6, 896
  %v5374 = vld [vmem:[%s5373] sm:$0xff]
  %v5375 = vld [vmem:[%s5373 + $0x8] sm:$0xff]
  %v5376 = vld [vmem:[%s5373 + $0x10] sm:$0xff]
  %v5377 = vld [vmem:[%s5373 + $0x18] sm:$0xff]
  %v5379 = vsel %vm3165, %v3148, 0
  %5381 = vmatprep.subr.mxu0 0.0
  %5382 = vmatpush1.msra.mxu0 0.0
  %5383 = vmatprep.subr.mxu0 0.0
  %5384 = vmatpush1.msra.mxu0 0.0
  %5385 = vmatprep.subr.mxu0 0.0
  %5386 = vmatpush1.msra.mxu0 0.0
  %5387 = vmatprep.subr.mxu0 0.0
  %5388 = vmatpush1.msra.mxu0 0.0
  %5389 = vmatprep.subr.mxu0 0.0
  %5390 = vmatpush1.msra.mxu0 0.0
  %5391 = vmatprep.subr.mxu0 0.0
  %5392 = vmatpush1.msra.mxu0 0.0
  %5393 = vmatprep.subr.mxu0 0.0
  %5394 = vmatpush1.msra.mxu0 0.0
  %5395 = vmatprep.subr.mxu0 0.0
  %5396 = vmatpush1.msra.mxu0 0.0
  %5397 = vmatprep.subr.mxu0 0.0
  %5398 = vmatpush1.msra.mxu0 0.0
  %5399 = vmatprep.subr.mxu0 0.0
  %5400 = vmatpush1.msra.mxu0 0.0
  %5401 = vmatprep.subr.mxu0 0.0
  %5402 = vmatpush1.msra.mxu0 0.0
  %5403 = vmatprep.subr.mxu0 0.0
  %5404 = vmatpush1.msra.mxu0 0.0
  %5405 = vmatprep.subr.mxu0 0.0
  %5406 = vmatpush1.msra.mxu0 %v5377
  %5407 = vmatprep.subr.mxu0 0.0
  %5408 = vmatpush1.msra.mxu0 %v5376
  %5409 = vmatprep.subr.mxu0 0.0
  %5410 = vmatpush1.msra.mxu0 %v5375
  %5411 = vmatprep.subr.mxu0 0.0
  %5412 = vmatpush1.msra.mxu0 %v5374
  %5413 = vmatprep.subr.mxu0 0.0
  %5414 = vmatpush2.msra.mxu0 0.0
  %5415 = vmatprep.subr.mxu0 0.0
  %5416 = vmatpush2.msra.mxu0 0.0
  %5417 = vmatprep.subr.mxu0 0.0
  %5418 = vmatpush2.msra.mxu0 0.0
  %5419 = vmatprep.subr.mxu0 0.0
  %5420 = vmatpush2.msra.mxu0 0.0
  %5421 = vmatprep.subr.mxu0 0.0
  %5422 = vmatpush2.msra.mxu0 0.0
  %5423 = vmatprep.subr.mxu0 0.0
  %5424 = vmatpush2.msra.mxu0 0.0
  %5425 = vmatprep.subr.mxu0 0.0
  %5426 = vmatpush2.msra.mxu0 0.0
  %5427 = vmatprep.subr.mxu0 0.0
  %5428 = vmatpush2.msra.mxu0 0.0
  %5429 = vmatprep.subr.mxu0 0.0
  %5430 = vmatpush2.msra.mxu0 0.0
  %5431 = vmatprep.subr.mxu0 0.0
  %5432 = vmatpush2.msra.mxu0 0.0
  %5433 = vmatprep.subr.mxu0 0.0
  %5434 = vmatpush2.msra.mxu0 0.0
  %5435 = vmatprep.subr.mxu0 0.0
  %5436 = vmatpush2.msra.mxu0 0.0
  %5437 = vmatprep.subr.mxu0 0.0
  %5438 = vmatpush2.msra.mxu0 0.0
  %5439 = vmatprep.subr.mxu0 0.0
  %5440 = vmatpush2.msra.mxu0 0.0
  %5441 = vmatprep.subr.mxu0 0.0
  %5442 = vmatpush2.msra.mxu0 0.0
  %5443 = vmatprep.subr.mxu0 0.0
  %5444 = vmatpush2.msra.mxu0 0.0
  %5445 = vmatprep.mubr.f32.mxu0 0.0
  %5446 = vmatmul.mubr.f32.gmra.mxu0 %v5379
  %v5447 = vpop.f32.mrf.mxu0
  %v5448 = vadd.f32 0.0, %v5447
  %v5449 = vpop.f32.mrf.mxu0
  %5450 = vdwg.mxu0
  %v5451 = vadd.f32 %v5372, %v5448
  %s5452 = scalar_lea.vmem %s6, 928
  %v5453 = vld [vmem:[%s5452] sm:$0xff]
  %v5454 = vld [vmem:[%s5452 + $0x8] sm:$0xff]
  %v5455 = vld [vmem:[%s5452 + $0x10] sm:$0xff]
  %v5456 = vld [vmem:[%s5452 + $0x18] sm:$0xff]
  %v5457 = vrot.slane %v3148, 2
  %v5458 = vsel %vm3165, %v5457, 0
  %5460 = vmatprep.subr.mxu0 0.0
  %5461 = vmatpush1.msra.mxu0 0.0
  %5462 = vmatprep.subr.mxu0 0.0
  %5463 = vmatpush1.msra.mxu0 0.0
  %5464 = vmatprep.subr.mxu0 0.0
  %5465 = vmatpush1.msra.mxu0 0.0
  %5466 = vmatprep.subr.mxu0 0.0
  %5467 = vmatpush1.msra.mxu0 0.0
  %5468 = vmatprep.subr.mxu0 0.0
  %5469 = vmatpush1.msra.mxu0 0.0
  %5470 = vmatprep.subr.mxu0 0.0
  %5471 = vmatpush1.msra.mxu0 0.0
  %5472 = vmatprep.subr.mxu0 0.0
  %5473 = vmatpush1.msra.mxu0 0.0
  %5474 = vmatprep.subr.mxu0 0.0
  %5475 = vmatpush1.msra.mxu0 0.0
  %5476 = vmatprep.subr.mxu0 0.0
  %5477 = vmatpush1.msra.mxu0 0.0
  %5478 = vmatprep.subr.mxu0 0.0
  %5479 = vmatpush1.msra.mxu0 0.0
  %5480 = vmatprep.subr.mxu0 0.0
  %5481 = vmatpush1.msra.mxu0 0.0
  %5482 = vmatprep.subr.mxu0 0.0
  %5483 = vmatpush1.msra.mxu0 0.0
  %5484 = vmatprep.subr.mxu0 0.0
  %5485 = vmatpush1.msra.mxu0 %v5456
  %5486 = vmatprep.subr.mxu0 0.0
  %5487 = vmatpush1.msra.mxu0 %v5455
  %5488 = vmatprep.subr.mxu0 0.0
  %5489 = vmatpush1.msra.mxu0 %v5454
  %5490 = vmatprep.subr.mxu0 0.0
  %5491 = vmatpush1.msra.mxu0 %v5453
  %5492 = vmatprep.subr.mxu0 0.0
  %5493 = vmatpush2.msra.mxu0 0.0
  %5494 = vmatprep.subr.mxu0 0.0
  %5495 = vmatpush2.msra.mxu0 0.0
  %5496 = vmatprep.subr.mxu0 0.0
  %5497 = vmatpush2.msra.mxu0 0.0
  %5498 = vmatprep.subr.mxu0 0.0
  %5499 = vmatpush2.msra.mxu0 0.0
  %5500 = vmatprep.subr.mxu0 0.0
  %5501 = vmatpush2.msra.mxu0 0.0
  %5502 = vmatprep.subr.mxu0 0.0
  %5503 = vmatpush2.msra.mxu0 0.0
  %5504 = vmatprep.subr.mxu0 0.0
  %5505 = vmatpush2.msra.mxu0 0.0
  %5506 = vmatprep.subr.mxu0 0.0
  %5507 = vmatpush2.msra.mxu0 0.0
  %5508 = vmatprep.subr.mxu0 0.0
  %5509 = vmatpush2.msra.mxu0 0.0
  %5510 = vmatprep.subr.mxu0 0.0
  %5511 = vmatpush2.msra.mxu0 0.0
  %5512 = vmatprep.subr.mxu0 0.0
  %5513 = vmatpush2.msra.mxu0 0.0
  %5514 = vmatprep.subr.mxu0 0.0
  %5515 = vmatpush2.msra.mxu0 0.0
  %5516 = vmatprep.subr.mxu0 0.0
  %5517 = vmatpush2.msra.mxu0 0.0
  %5518 = vmatprep.subr.mxu0 0.0
  %5519 = vmatpush2.msra.mxu0 0.0
  %5520 = vmatprep.subr.mxu0 0.0
  %5521 = vmatpush2.msra.mxu0 0.0
  %5522 = vmatprep.subr.mxu0 0.0
  %5523 = vmatpush2.msra.mxu0 0.0
  %5524 = vmatprep.mubr.f32.mxu0 0.0
  %5525 = vmatmul.mubr.f32.gmra.mxu0 %v5458
  %v5526 = vpop.f32.mrf.mxu0
  %v5527 = vadd.f32 0.0, %v5526
  %v5528 = vpop.f32.mrf.mxu0
  %5529 = vdwg.mxu0
  %v5530 = vadd.f32 %v5451, %v5527
  %s5531 = scalar_lea.vmem %s6, 960
  %v5532 = vld [vmem:[%s5531] sm:$0xff]
  %v5533 = vld [vmem:[%s5531 + $0x8] sm:$0xff]
  %v5534 = vld [vmem:[%s5531 + $0x10] sm:$0xff]
  %v5535 = vld [vmem:[%s5531 + $0x18] sm:$0xff]
  %v5536 = vrot.slane %v3148, 4
  %v5537 = vsel %vm3165, %v5536, 0
  %5539 = vmatprep.subr.mxu0 0.0
  %5540 = vmatpush1.msra.mxu0 0.0
  %5541 = vmatprep.subr.mxu0 0.0
  %5542 = vmatpush1.msra.mxu0 0.0
  %5543 = vmatprep.subr.mxu0 0.0
  %5544 = vmatpush1.msra.mxu0 0.0
  %5545 = vmatprep.subr.mxu0 0.0
  %5546 = vmatpush1.msra.mxu0 0.0
  %5547 = vmatprep.subr.mxu0 0.0
  %5548 = vmatpush1.msra.mxu0 0.0
  %5549 = vmatprep.subr.mxu0 0.0
  %5550 = vmatpush1.msra.mxu0 0.0
  %5551 = vmatprep.subr.mxu0 0.0
  %5552 = vmatpush1.msra.mxu0 0.0
  %5553 = vmatprep.subr.mxu0 0.0
  %5554 = vmatpush1.msra.mxu0 0.0
  %5555 = vmatprep.subr.mxu0 0.0
  %5556 = vmatpush1.msra.mxu0 0.0
  %5557 = vmatprep.subr.mxu0 0.0
  %5558 = vmatpush1.msra.mxu0 0.0
  %5559 = vmatprep.subr.mxu0 0.0
  %5560 = vmatpush1.msra.mxu0 0.0
  %5561 = vmatprep.subr.mxu0 0.0
  %5562 = vmatpush1.msra.mxu0 0.0
  %5563 = vmatprep.subr.mxu0 0.0
  %5564 = vmatpush1.msra.mxu0 %v5535
  %5565 = vmatprep.subr.mxu0 0.0
  %5566 = vmatpush1.msra.mxu0 %v5534
  %5567 = vmatprep.subr.mxu0 0.0
  %5568 = vmatpush1.msra.mxu0 %v5533
  %5569 = vmatprep.subr.mxu0 0.0
  %5570 = vmatpush1.msra.mxu0 %v5532
  %5571 = vmatprep.subr.mxu0 0.0
  %5572 = vmatpush2.msra.mxu0 0.0
  %5573 = vmatprep.subr.mxu0 0.0
  %5574 = vmatpush2.msra.mxu0 0.0
  %5575 = vmatprep.subr.mxu0 0.0
  %5576 = vmatpush2.msra.mxu0 0.0
  %5577 = vmatprep.subr.mxu0 0.0
  %5578 = vmatpush2.msra.mxu0 0.0
  %5579 = vmatprep.subr.mxu0 0.0
  %5580 = vmatpush2.msra.mxu0 0.0
  %5581 = vmatprep.subr.mxu0 0.0
  %5582 = vmatpush2.msra.mxu0 0.0
  %5583 = vmatprep.subr.mxu0 0.0
  %5584 = vmatpush2.msra.mxu0 0.0
  %5585 = vmatprep.subr.mxu0 0.0
  %5586 = vmatpush2.msra.mxu0 0.0
  %5587 = vmatprep.subr.mxu0 0.0
  %5588 = vmatpush2.msra.mxu0 0.0
  %5589 = vmatprep.subr.mxu0 0.0
  %5590 = vmatpush2.msra.mxu0 0.0
  %5591 = vmatprep.subr.mxu0 0.0
  %5592 = vmatpush2.msra.mxu0 0.0
  %5593 = vmatprep.subr.mxu0 0.0
  %5594 = vmatpush2.msra.mxu0 0.0
  %5595 = vmatprep.subr.mxu0 0.0
  %5596 = vmatpush2.msra.mxu0 0.0
  %5597 = vmatprep.subr.mxu0 0.0
  %5598 = vmatpush2.msra.mxu0 0.0
  %5599 = vmatprep.subr.mxu0 0.0
  %5600 = vmatpush2.msra.mxu0 0.0
  %5601 = vmatprep.subr.mxu0 0.0
  %5602 = vmatpush2.msra.mxu0 0.0
  %5603 = vmatprep.mubr.f32.mxu0 0.0
  %5604 = vmatmul.mubr.f32.gmra.mxu0 %v5537
  %v5605 = vpop.f32.mrf.mxu0
  %v5606 = vadd.f32 0.0, %v5605
  %v5607 = vpop.f32.mrf.mxu0
  %5608 = vdwg.mxu0
  %v5609 = vadd.f32 %v5530, %v5606
  %s5610 = scalar_lea.vmem %s6, 992
  %v5611 = vld [vmem:[%s5610] sm:$0xff]
  %v5612 = vld [vmem:[%s5610 + $0x8] sm:$0xff]
  %v5613 = vld [vmem:[%s5610 + $0x10] sm:$0xff]
  %v5614 = vld [vmem:[%s5610 + $0x18] sm:$0xff]
  %v5615 = vrot.slane %v3148, 6
  %v5616 = vsel %vm3165, %v5615, 0
  %5618 = vmatprep.subr.mxu0 0.0
  %5619 = vmatpush1.msra.mxu0 0.0
  %5620 = vmatprep.subr.mxu0 0.0
  %5621 = vmatpush1.msra.mxu0 0.0
  %5622 = vmatprep.subr.mxu0 0.0
  %5623 = vmatpush1.msra.mxu0 0.0
  %5624 = vmatprep.subr.mxu0 0.0
  %5625 = vmatpush1.msra.mxu0 0.0
  %5626 = vmatprep.subr.mxu0 0.0
  %5627 = vmatpush1.msra.mxu0 0.0
  %5628 = vmatprep.subr.mxu0 0.0
  %5629 = vmatpush1.msra.mxu0 0.0
  %5630 = vmatprep.subr.mxu0 0.0
  %5631 = vmatpush1.msra.mxu0 0.0
  %5632 = vmatprep.subr.mxu0 0.0
  %5633 = vmatpush1.msra.mxu0 0.0
  %5634 = vmatprep.subr.mxu0 0.0
  %5635 = vmatpush1.msra.mxu0 0.0
  %5636 = vmatprep.subr.mxu0 0.0
  %5637 = vmatpush1.msra.mxu0 0.0
  %5638 = vmatprep.subr.mxu0 0.0
  %5639 = vmatpush1.msra.mxu0 0.0
  %5640 = vmatprep.subr.mxu0 0.0
  %5641 = vmatpush1.msra.mxu0 0.0
  %5642 = vmatprep.subr.mxu0 0.0
  %5643 = vmatpush1.msra.mxu0 %v5614
  %5644 = vmatprep.subr.mxu0 0.0
  %5645 = vmatpush1.msra.mxu0 %v5613
  %5646 = vmatprep.subr.mxu0 0.0
  %5647 = vmatpush1.msra.mxu0 %v5612
  %5648 = vmatprep.subr.mxu0 0.0
  %5649 = vmatpush1.msra.mxu0 %v5611
  %5650 = vmatprep.subr.mxu0 0.0
  %5651 = vmatpush2.msra.mxu0 0.0
  %5652 = vmatprep.subr.mxu0 0.0
  %5653 = vmatpush2.msra.mxu0 0.0
  %5654 = vmatprep.subr.mxu0 0.0
  %5655 = vmatpush2.msra.mxu0 0.0
  %5656 = vmatprep.subr.mxu0 0.0
  %5657 = vmatpush2.msra.mxu0 0.0
  %5658 = vmatprep.subr.mxu0 0.0
  %5659 = vmatpush2.msra.mxu0 0.0
  %5660 = vmatprep.subr.mxu0 0.0
  %5661 = vmatpush2.msra.mxu0 0.0
  %5662 = vmatprep.subr.mxu0 0.0
  %5663 = vmatpush2.msra.mxu0 0.0
  %5664 = vmatprep.subr.mxu0 0.0
  %5665 = vmatpush2.msra.mxu0 0.0
  %5666 = vmatprep.subr.mxu0 0.0
  %5667 = vmatpush2.msra.mxu0 0.0
  %5668 = vmatprep.subr.mxu0 0.0
  %5669 = vmatpush2.msra.mxu0 0.0
  %5670 = vmatprep.subr.mxu0 0.0
  %5671 = vmatpush2.msra.mxu0 0.0
  %5672 = vmatprep.subr.mxu0 0.0
  %5673 = vmatpush2.msra.mxu0 0.0
  %5674 = vmatprep.subr.mxu0 0.0
  %5675 = vmatpush2.msra.mxu0 0.0
  %5676 = vmatprep.subr.mxu0 0.0
  %5677 = vmatpush2.msra.mxu0 0.0
  %5678 = vmatprep.subr.mxu0 0.0
  %5679 = vmatpush2.msra.mxu0 0.0
  %5680 = vmatprep.subr.mxu0 0.0
  %5681 = vmatpush2.msra.mxu0 0.0
  %5682 = vmatprep.mubr.f32.mxu0 0.0
  %5683 = vmatmul.mubr.f32.gmra.mxu0 %v5616
  %v5684 = vpop.f32.mrf.mxu0
  %v5685 = vadd.f32 0.0, %v5684
  %v5686 = vpop.f32.mrf.mxu0
  %5687 = vdwg.mxu0
  %v5688 = vadd.f32 %v5609, %v5685
  %s5689 = scalar_lea.vmem %s6, 1024
  %v5690 = vld [vmem:[%s5689] sm:$0xff]
  %v5691 = vld [vmem:[%s5689 + $0x8] sm:$0xff]
  %v5692 = vld [vmem:[%s5689 + $0x10] sm:$0xff]
  %v5693 = vld [vmem:[%s5689 + $0x18] sm:$0xff]
  %v5695 = vsel %vm3165, %v3149, 0
  %5697 = vmatprep.subr.mxu0 0.0
  %5698 = vmatpush1.msra.mxu0 0.0
  %5699 = vmatprep.subr.mxu0 0.0
  %5700 = vmatpush1.msra.mxu0 0.0
  %5701 = vmatprep.subr.mxu0 0.0
  %5702 = vmatpush1.msra.mxu0 0.0
  %5703 = vmatprep.subr.mxu0 0.0
  %5704 = vmatpush1.msra.mxu0 0.0
  %5705 = vmatprep.subr.mxu0 0.0
  %5706 = vmatpush1.msra.mxu0 0.0
  %5707 = vmatprep.subr.mxu0 0.0
  %5708 = vmatpush1.msra.mxu0 0.0
  %5709 = vmatprep.subr.mxu0 0.0
  %5710 = vmatpush1.msra.mxu0 0.0
  %5711 = vmatprep.subr.mxu0 0.0
  %5712 = vmatpush1.msra.mxu0 0.0
  %5713 = vmatprep.subr.mxu0 0.0
  %5714 = vmatpush1.msra.mxu0 0.0
  %5715 = vmatprep.subr.mxu0 0.0
  %5716 = vmatpush1.msra.mxu0 0.0
  %5717 = vmatprep.subr.mxu0 0.0
  %5718 = vmatpush1.msra.mxu0 0.0
  %5719 = vmatprep.subr.mxu0 0.0
  %5720 = vmatpush1.msra.mxu0 0.0
  %5721 = vmatprep.subr.mxu0 0.0
  %5722 = vmatpush1.msra.mxu0 %v5693
  %5723 = vmatprep.subr.mxu0 0.0
  %5724 = vmatpush1.msra.mxu0 %v5692
  %5725 = vmatprep.subr.mxu0 0.0
  %5726 = vmatpush1.msra.mxu0 %v5691
  %5727 = vmatprep.subr.mxu0 0.0
  %5728 = vmatpush1.msra.mxu0 %v5690
  %5729 = vmatprep.subr.mxu0 0.0
  %5730 = vmatpush2.msra.mxu0 0.0
  %5731 = vmatprep.subr.mxu0 0.0
  %5732 = vmatpush2.msra.mxu0 0.0
  %5733 = vmatprep.subr.mxu0 0.0
  %5734 = vmatpush2.msra.mxu0 0.0
  %5735 = vmatprep.subr.mxu0 0.0
  %5736 = vmatpush2.msra.mxu0 0.0
  %5737 = vmatprep.subr.mxu0 0.0
  %5738 = vmatpush2.msra.mxu0 0.0
  %5739 = vmatprep.subr.mxu0 0.0
  %5740 = vmatpush2.msra.mxu0 0.0
  %5741 = vmatprep.subr.mxu0 0.0
  %5742 = vmatpush2.msra.mxu0 0.0
  %5743 = vmatprep.subr.mxu0 0.0
  %5744 = vmatpush2.msra.mxu0 0.0
  %5745 = vmatprep.subr.mxu0 0.0
  %5746 = vmatpush2.msra.mxu0 0.0
  %5747 = vmatprep.subr.mxu0 0.0
  %5748 = vmatpush2.msra.mxu0 0.0
  %5749 = vmatprep.subr.mxu0 0.0
  %5750 = vmatpush2.msra.mxu0 0.0
  %5751 = vmatprep.subr.mxu0 0.0
  %5752 = vmatpush2.msra.mxu0 0.0
  %5753 = vmatprep.subr.mxu0 0.0
  %5754 = vmatpush2.msra.mxu0 0.0
  %5755 = vmatprep.subr.mxu0 0.0
  %5756 = vmatpush2.msra.mxu0 0.0
  %5757 = vmatprep.subr.mxu0 0.0
  %5758 = vmatpush2.msra.mxu0 0.0
  %5759 = vmatprep.subr.mxu0 0.0
  %5760 = vmatpush2.msra.mxu0 0.0
  %5761 = vmatprep.mubr.f32.mxu0 0.0
  %5762 = vmatmul.mubr.f32.gmra.mxu0 %v5695
  %v5763 = vpop.f32.mrf.mxu0
  %v5764 = vadd.f32 0.0, %v5763
  %v5765 = vpop.f32.mrf.mxu0
  %5766 = vdwg.mxu0
  %v5767 = vadd.f32 %v5688, %v5764
  %s5768 = scalar_lea.vmem %s6, 1056
  %v5769 = vld [vmem:[%s5768] sm:$0xff]
  %v5770 = vld [vmem:[%s5768 + $0x8] sm:$0xff]
  %v5771 = vld [vmem:[%s5768 + $0x10] sm:$0xff]
  %v5772 = vld [vmem:[%s5768 + $0x18] sm:$0xff]
  %v5773 = vrot.slane %v3149, 2
  %v5774 = vsel %vm3165, %v5773, 0
  %5776 = vmatprep.subr.mxu0 0.0
  %5777 = vmatpush1.msra.mxu0 0.0
  %5778 = vmatprep.subr.mxu0 0.0
  %5779 = vmatpush1.msra.mxu0 0.0
  %5780 = vmatprep.subr.mxu0 0.0
  %5781 = vmatpush1.msra.mxu0 0.0
  %5782 = vmatprep.subr.mxu0 0.0
  %5783 = vmatpush1.msra.mxu0 0.0
  %5784 = vmatprep.subr.mxu0 0.0
  %5785 = vmatpush1.msra.mxu0 0.0
  %5786 = vmatprep.subr.mxu0 0.0
  %5787 = vmatpush1.msra.mxu0 0.0
  %5788 = vmatprep.subr.mxu0 0.0
  %5789 = vmatpush1.msra.mxu0 0.0
  %5790 = vmatprep.subr.mxu0 0.0
  %5791 = vmatpush1.msra.mxu0 0.0
  %5792 = vmatprep.subr.mxu0 0.0
  %5793 = vmatpush1.msra.mxu0 0.0
  %5794 = vmatprep.subr.mxu0 0.0
  %5795 = vmatpush1.msra.mxu0 0.0
  %5796 = vmatprep.subr.mxu0 0.0
  %5797 = vmatpush1.msra.mxu0 0.0
  %5798 = vmatprep.subr.mxu0 0.0
  %5799 = vmatpush1.msra.mxu0 0.0
  %5800 = vmatprep.subr.mxu0 0.0
  %5801 = vmatpush1.msra.mxu0 %v5772
  %5802 = vmatprep.subr.mxu0 0.0
  %5803 = vmatpush1.msra.mxu0 %v5771
  %5804 = vmatprep.subr.mxu0 0.0
  %5805 = vmatpush1.msra.mxu0 %v5770
  %5806 = vmatprep.subr.mxu0 0.0
  %5807 = vmatpush1.msra.mxu0 %v5769
  %5808 = vmatprep.subr.mxu0 0.0
  %5809 = vmatpush2.msra.mxu0 0.0
  %5810 = vmatprep.subr.mxu0 0.0
  %5811 = vmatpush2.msra.mxu0 0.0
  %5812 = vmatprep.subr.mxu0 0.0
  %5813 = vmatpush2.msra.mxu0 0.0
  %5814 = vmatprep.subr.mxu0 0.0
  %5815 = vmatpush2.msra.mxu0 0.0
  %5816 = vmatprep.subr.mxu0 0.0
  %5817 = vmatpush2.msra.mxu0 0.0
  %5818 = vmatprep.subr.mxu0 0.0
  %5819 = vmatpush2.msra.mxu0 0.0
  %5820 = vmatprep.subr.mxu0 0.0
  %5821 = vmatpush2.msra.mxu0 0.0
  %5822 = vmatprep.subr.mxu0 0.0
  %5823 = vmatpush2.msra.mxu0 0.0
  %5824 = vmatprep.subr.mxu0 0.0
  %5825 = vmatpush2.msra.mxu0 0.0
  %5826 = vmatprep.subr.mxu0 0.0
  %5827 = vmatpush2.msra.mxu0 0.0
  %5828 = vmatprep.subr.mxu0 0.0
  %5829 = vmatpush2.msra.mxu0 0.0
  %5830 = vmatprep.subr.mxu0 0.0
  %5831 = vmatpush2.msra.mxu0 0.0
  %5832 = vmatprep.subr.mxu0 0.0
  %5833 = vmatpush2.msra.mxu0 0.0
  %5834 = vmatprep.subr.mxu0 0.0
  %5835 = vmatpush2.msra.mxu0 0.0
  %5836 = vmatprep.subr.mxu0 0.0
  %5837 = vmatpush2.msra.mxu0 0.0
  %5838 = vmatprep.subr.mxu0 0.0
  %5839 = vmatpush2.msra.mxu0 0.0
  %5840 = vmatprep.mubr.f32.mxu0 0.0
  %5841 = vmatmul.mubr.f32.gmra.mxu0 %v5774
  %v5842 = vpop.f32.mrf.mxu0
  %v5843 = vadd.f32 0.0, %v5842
  %v5844 = vpop.f32.mrf.mxu0
  %5845 = vdwg.mxu0
  %v5846 = vadd.f32 %v5767, %v5843
  %s5847 = scalar_lea.vmem %s6, 1088
  %v5848 = vld [vmem:[%s5847] sm:$0xff]
  %v5849 = vld [vmem:[%s5847 + $0x8] sm:$0xff]
  %v5850 = vld [vmem:[%s5847 + $0x10] sm:$0xff]
  %v5851 = vld [vmem:[%s5847 + $0x18] sm:$0xff]
  %v5852 = vrot.slane %v3149, 4
  %v5853 = vsel %vm3165, %v5852, 0
  %5855 = vmatprep.subr.mxu0 0.0
  %5856 = vmatpush1.msra.mxu0 0.0
  %5857 = vmatprep.subr.mxu0 0.0
  %5858 = vmatpush1.msra.mxu0 0.0
  %5859 = vmatprep.subr.mxu0 0.0
  %5860 = vmatpush1.msra.mxu0 0.0
  %5861 = vmatprep.subr.mxu0 0.0
  %5862 = vmatpush1.msra.mxu0 0.0
  %5863 = vmatprep.subr.mxu0 0.0
  %5864 = vmatpush1.msra.mxu0 0.0
  %5865 = vmatprep.subr.mxu0 0.0
  %5866 = vmatpush1.msra.mxu0 0.0
  %5867 = vmatprep.subr.mxu0 0.0
  %5868 = vmatpush1.msra.mxu0 0.0
  %5869 = vmatprep.subr.mxu0 0.0
  %5870 = vmatpush1.msra.mxu0 0.0
  %5871 = vmatprep.subr.mxu0 0.0
  %5872 = vmatpush1.msra.mxu0 0.0
  %5873 = vmatprep.subr.mxu0 0.0
  %5874 = vmatpush1.msra.mxu0 0.0
  %5875 = vmatprep.subr.mxu0 0.0
  %5876 = vmatpush1.msra.mxu0 0.0
  %5877 = vmatprep.subr.mxu0 0.0
  %5878 = vmatpush1.msra.mxu0 0.0
  %5879 = vmatprep.subr.mxu0 0.0
  %5880 = vmatpush1.msra.mxu0 %v5851
  %5881 = vmatprep.subr.mxu0 0.0
  %5882 = vmatpush1.msra.mxu0 %v5850
  %5883 = vmatprep.subr.mxu0 0.0
  %5884 = vmatpush1.msra.mxu0 %v5849
  %5885 = vmatprep.subr.mxu0 0.0
  %5886 = vmatpush1.msra.mxu0 %v5848
  %5887 = vmatprep.subr.mxu0 0.0
  %5888 = vmatpush2.msra.mxu0 0.0
  %5889 = vmatprep.subr.mxu0 0.0
  %5890 = vmatpush2.msra.mxu0 0.0
  %5891 = vmatprep.subr.mxu0 0.0
  %5892 = vmatpush2.msra.mxu0 0.0
  %5893 = vmatprep.subr.mxu0 0.0
  %5894 = vmatpush2.msra.mxu0 0.0
  %5895 = vmatprep.subr.mxu0 0.0
  %5896 = vmatpush2.msra.mxu0 0.0
  %5897 = vmatprep.subr.mxu0 0.0
  %5898 = vmatpush2.msra.mxu0 0.0
  %5899 = vmatprep.subr.mxu0 0.0
  %5900 = vmatpush2.msra.mxu0 0.0
  %5901 = vmatprep.subr.mxu0 0.0
  %5902 = vmatpush2.msra.mxu0 0.0
  %5903 = vmatprep.subr.mxu0 0.0
  %5904 = vmatpush2.msra.mxu0 0.0
  %5905 = vmatprep.subr.mxu0 0.0
  %5906 = vmatpush2.msra.mxu0 0.0
  %5907 = vmatprep.subr.mxu0 0.0
  %5908 = vmatpush2.msra.mxu0 0.0
  %5909 = vmatprep.subr.mxu0 0.0
  %5910 = vmatpush2.msra.mxu0 0.0
  %5911 = vmatprep.subr.mxu0 0.0
  %5912 = vmatpush2.msra.mxu0 0.0
  %5913 = vmatprep.subr.mxu0 0.0
  %5914 = vmatpush2.msra.mxu0 0.0
  %5915 = vmatprep.subr.mxu0 0.0
  %5916 = vmatpush2.msra.mxu0 0.0
  %5917 = vmatprep.subr.mxu0 0.0
  %5918 = vmatpush2.msra.mxu0 0.0
  %5919 = vmatprep.mubr.f32.mxu0 0.0
  %5920 = vmatmul.mubr.f32.gmra.mxu0 %v5853
  %v5921 = vpop.f32.mrf.mxu0
  %v5922 = vadd.f32 0.0, %v5921
  %v5923 = vpop.f32.mrf.mxu0
  %5924 = vdwg.mxu0
  %v5925 = vadd.f32 %v5846, %v5922
  %s5926 = scalar_lea.vmem %s6, 1120
  %v5927 = vld [vmem:[%s5926] sm:$0xff]
  %v5928 = vld [vmem:[%s5926 + $0x8] sm:$0xff]
  %v5929 = vld [vmem:[%s5926 + $0x10] sm:$0xff]
  %v5930 = vld [vmem:[%s5926 + $0x18] sm:$0xff]
  %v5932 = vsel %vm3165, %v3150, 0
  %5934 = vmatprep.subr.mxu0 0.0
  %5935 = vmatpush1.msra.mxu0 0.0
  %5936 = vmatprep.subr.mxu0 0.0
  %5937 = vmatpush1.msra.mxu0 0.0
  %5938 = vmatprep.subr.mxu0 0.0
  %5939 = vmatpush1.msra.mxu0 0.0
  %5940 = vmatprep.subr.mxu0 0.0
  %5941 = vmatpush1.msra.mxu0 0.0
  %5942 = vmatprep.subr.mxu0 0.0
  %5943 = vmatpush1.msra.mxu0 0.0
  %5944 = vmatprep.subr.mxu0 0.0
  %5945 = vmatpush1.msra.mxu0 0.0
  %5946 = vmatprep.subr.mxu0 0.0
  %5947 = vmatpush1.msra.mxu0 0.0
  %5948 = vmatprep.subr.mxu0 0.0
  %5949 = vmatpush1.msra.mxu0 0.0
  %5950 = vmatprep.subr.mxu0 0.0
  %5951 = vmatpush1.msra.mxu0 0.0
  %5952 = vmatprep.subr.mxu0 0.0
  %5953 = vmatpush1.msra.mxu0 0.0
  %5954 = vmatprep.subr.mxu0 0.0
  %5955 = vmatpush1.msra.mxu0 0.0
  %5956 = vmatprep.subr.mxu0 0.0
  %5957 = vmatpush1.msra.mxu0 0.0
  %5958 = vmatprep.subr.mxu0 0.0
  %5959 = vmatpush1.msra.mxu0 %v5930
  %5960 = vmatprep.subr.mxu0 0.0
  %5961 = vmatpush1.msra.mxu0 %v5929
  %5962 = vmatprep.subr.mxu0 0.0
  %5963 = vmatpush1.msra.mxu0 %v5928
  %5964 = vmatprep.subr.mxu0 0.0
  %5965 = vmatpush1.msra.mxu0 %v5927
  %5966 = vmatprep.subr.mxu0 0.0
  %5967 = vmatpush2.msra.mxu0 0.0
  %5968 = vmatprep.subr.mxu0 0.0
  %5969 = vmatpush2.msra.mxu0 0.0
  %5970 = vmatprep.subr.mxu0 0.0
  %5971 = vmatpush2.msra.mxu0 0.0
  %5972 = vmatprep.subr.mxu0 0.0
  %5973 = vmatpush2.msra.mxu0 0.0
  %5974 = vmatprep.subr.mxu0 0.0
  %5975 = vmatpush2.msra.mxu0 0.0
  %5976 = vmatprep.subr.mxu0 0.0
  %5977 = vmatpush2.msra.mxu0 0.0
  %5978 = vmatprep.subr.mxu0 0.0
  %5979 = vmatpush2.msra.mxu0 0.0
  %5980 = vmatprep.subr.mxu0 0.0
  %5981 = vmatpush2.msra.mxu0 0.0
  %5982 = vmatprep.subr.mxu0 0.0
  %5983 = vmatpush2.msra.mxu0 0.0
  %5984 = vmatprep.subr.mxu0 0.0
  %5985 = vmatpush2.msra.mxu0 0.0
  %5986 = vmatprep.subr.mxu0 0.0
  %5987 = vmatpush2.msra.mxu0 0.0
  %5988 = vmatprep.subr.mxu0 0.0
  %5989 = vmatpush2.msra.mxu0 0.0
  %5990 = vmatprep.subr.mxu0 0.0
  %5991 = vmatpush2.msra.mxu0 0.0
  %5992 = vmatprep.subr.mxu0 0.0
  %5993 = vmatpush2.msra.mxu0 0.0
  %5994 = vmatprep.subr.mxu0 0.0
  %5995 = vmatpush2.msra.mxu0 0.0
  %5996 = vmatprep.subr.mxu0 0.0
  %5997 = vmatpush2.msra.mxu0 0.0
  %5998 = vmatprep.mubr.f32.mxu0 0.0
  %5999 = vmatmul.mubr.f32.gmra.mxu0 %v5932
  %v6000 = vpop.f32.mrf.mxu0
  %v6001 = vadd.f32 0.0, %v6000
  %v6002 = vpop.f32.mrf.mxu0
  %6003 = vdwg.mxu0
  %v6004 = vadd.f32 %v5925, %v6001
  %s6005 = scalar_lea.vmem %s6, 1152
  %v6006 = vld [vmem:[%s6005] sm:$0xff]
  %v6007 = vld [vmem:[%s6005 + $0x8] sm:$0xff]
  %v6008 = vld [vmem:[%s6005 + $0x10] sm:$0xff]
  %v6009 = vld [vmem:[%s6005 + $0x18] sm:$0xff]
  %v6010 = vrot.slane %v3150, 2
  %v6011 = vsel %vm3165, %v6010, 0
  %6013 = vmatprep.subr.mxu0 0.0
  %6014 = vmatpush1.msra.mxu0 0.0
  %6015 = vmatprep.subr.mxu0 0.0
  %6016 = vmatpush1.msra.mxu0 0.0
  %6017 = vmatprep.subr.mxu0 0.0
  %6018 = vmatpush1.msra.mxu0 0.0
  %6019 = vmatprep.subr.mxu0 0.0
  %6020 = vmatpush1.msra.mxu0 0.0
  %6021 = vmatprep.subr.mxu0 0.0
  %6022 = vmatpush1.msra.mxu0 0.0
  %6023 = vmatprep.subr.mxu0 0.0
  %6024 = vmatpush1.msra.mxu0 0.0
  %6025 = vmatprep.subr.mxu0 0.0
  %6026 = vmatpush1.msra.mxu0 0.0
  %6027 = vmatprep.subr.mxu0 0.0
  %6028 = vmatpush1.msra.mxu0 0.0
  %6029 = vmatprep.subr.mxu0 0.0
  %6030 = vmatpush1.msra.mxu0 0.0
  %6031 = vmatprep.subr.mxu0 0.0
  %6032 = vmatpush1.msra.mxu0 0.0
  %6033 = vmatprep.subr.mxu0 0.0
  %6034 = vmatpush1.msra.mxu0 0.0
  %6035 = vmatprep.subr.mxu0 0.0
  %6036 = vmatpush1.msra.mxu0 0.0
  %6037 = vmatprep.subr.mxu0 0.0
  %6038 = vmatpush1.msra.mxu0 %v6009
  %6039 = vmatprep.subr.mxu0 0.0
  %6040 = vmatpush1.msra.mxu0 %v6008
  %6041 = vmatprep.subr.mxu0 0.0
  %6042 = vmatpush1.msra.mxu0 %v6007
  %6043 = vmatprep.subr.mxu0 0.0
  %6044 = vmatpush1.msra.mxu0 %v6006
  %6045 = vmatprep.subr.mxu0 0.0
  %6046 = vmatpush2.msra.mxu0 0.0
  %6047 = vmatprep.subr.mxu0 0.0
  %6048 = vmatpush2.msra.mxu0 0.0
  %6049 = vmatprep.subr.mxu0 0.0
  %6050 = vmatpush2.msra.mxu0 0.0
  %6051 = vmatprep.subr.mxu0 0.0
  %6052 = vmatpush2.msra.mxu0 0.0
  %6053 = vmatprep.subr.mxu0 0.0
  %6054 = vmatpush2.msra.mxu0 0.0
  %6055 = vmatprep.subr.mxu0 0.0
  %6056 = vmatpush2.msra.mxu0 0.0
  %6057 = vmatprep.subr.mxu0 0.0
  %6058 = vmatpush2.msra.mxu0 0.0
  %6059 = vmatprep.subr.mxu0 0.0
  %6060 = vmatpush2.msra.mxu0 0.0
  %6061 = vmatprep.subr.mxu0 0.0
  %6062 = vmatpush2.msra.mxu0 0.0
  %6063 = vmatprep.subr.mxu0 0.0
  %6064 = vmatpush2.msra.mxu0 0.0
  %6065 = vmatprep.subr.mxu0 0.0
  %6066 = vmatpush2.msra.mxu0 0.0
  %6067 = vmatprep.subr.mxu0 0.0
  %6068 = vmatpush2.msra.mxu0 0.0
  %6069 = vmatprep.subr.mxu0 0.0
  %6070 = vmatpush2.msra.mxu0 0.0
  %6071 = vmatprep.subr.mxu0 0.0
  %6072 = vmatpush2.msra.mxu0 0.0
  %6073 = vmatprep.subr.mxu0 0.0
  %6074 = vmatpush2.msra.mxu0 0.0
  %6075 = vmatprep.subr.mxu0 0.0
  %6076 = vmatpush2.msra.mxu0 0.0
  %6077 = vmatprep.mubr.f32.mxu0 0.0
  %6078 = vmatmul.mubr.f32.gmra.mxu0 %v6011
  %v6079 = vpop.f32.mrf.mxu0
  %v6080 = vadd.f32 0.0, %v6079
  %v6081 = vpop.f32.mrf.mxu0
  %6082 = vdwg.mxu0
  %v6083 = vadd.f32 %v6004, %v6080
  %s6084 = scalar_lea.vmem %s6, 1184
  %v6085 = vld [vmem:[%s6084] sm:$0xff]
  %v6086 = vld [vmem:[%s6084 + $0x8] sm:$0xff]
  %v6087 = vld [vmem:[%s6084 + $0x10] sm:$0xff]
  %v6088 = vld [vmem:[%s6084 + $0x18] sm:$0xff]
  %v6089 = vrot.slane %v3150, 4
  %v6090 = vsel %vm3165, %v6089, 0
  %6092 = vmatprep.subr.mxu0 0.0
  %6093 = vmatpush1.msra.mxu0 0.0
  %6094 = vmatprep.subr.mxu0 0.0
  %6095 = vmatpush1.msra.mxu0 0.0
  %6096 = vmatprep.subr.mxu0 0.0
  %6097 = vmatpush1.msra.mxu0 0.0
  %6098 = vmatprep.subr.mxu0 0.0
  %6099 = vmatpush1.msra.mxu0 0.0
  %6100 = vmatprep.subr.mxu0 0.0
  %6101 = vmatpush1.msra.mxu0 0.0
  %6102 = vmatprep.subr.mxu0 0.0
  %6103 = vmatpush1.msra.mxu0 0.0
  %6104 = vmatprep.subr.mxu0 0.0
  %6105 = vmatpush1.msra.mxu0 0.0
  %6106 = vmatprep.subr.mxu0 0.0
  %6107 = vmatpush1.msra.mxu0 0.0
  %6108 = vmatprep.subr.mxu0 0.0
  %6109 = vmatpush1.msra.mxu0 0.0
  %6110 = vmatprep.subr.mxu0 0.0
  %6111 = vmatpush1.msra.mxu0 0.0
  %6112 = vmatprep.subr.mxu0 0.0
  %6113 = vmatpush1.msra.mxu0 0.0
  %6114 = vmatprep.subr.mxu0 0.0
  %6115 = vmatpush1.msra.mxu0 0.0
  %6116 = vmatprep.subr.mxu0 0.0
  %6117 = vmatpush1.msra.mxu0 %v6088
  %6118 = vmatprep.subr.mxu0 0.0
  %6119 = vmatpush1.msra.mxu0 %v6087
  %6120 = vmatprep.subr.mxu0 0.0
  %6121 = vmatpush1.msra.mxu0 %v6086
  %6122 = vmatprep.subr.mxu0 0.0
  %6123 = vmatpush1.msra.mxu0 %v6085
  %6124 = vmatprep.subr.mxu0 0.0
  %6125 = vmatpush2.msra.mxu0 0.0
  %6126 = vmatprep.subr.mxu0 0.0
  %6127 = vmatpush2.msra.mxu0 0.0
  %6128 = vmatprep.subr.mxu0 0.0
  %6129 = vmatpush2.msra.mxu0 0.0
  %6130 = vmatprep.subr.mxu0 0.0
  %6131 = vmatpush2.msra.mxu0 0.0
  %6132 = vmatprep.subr.mxu0 0.0
  %6133 = vmatpush2.msra.mxu0 0.0
  %6134 = vmatprep.subr.mxu0 0.0
  %6135 = vmatpush2.msra.mxu0 0.0
  %6136 = vmatprep.subr.mxu0 0.0
  %6137 = vmatpush2.msra.mxu0 0.0
  %6138 = vmatprep.subr.mxu0 0.0
  %6139 = vmatpush2.msra.mxu0 0.0
  %6140 = vmatprep.subr.mxu0 0.0
  %6141 = vmatpush2.msra.mxu0 0.0
  %6142 = vmatprep.subr.mxu0 0.0
  %6143 = vmatpush2.msra.mxu0 0.0
  %6144 = vmatprep.subr.mxu0 0.0
  %6145 = vmatpush2.msra.mxu0 0.0
  %6146 = vmatprep.subr.mxu0 0.0
  %6147 = vmatpush2.msra.mxu0 0.0
  %6148 = vmatprep.subr.mxu0 0.0
  %6149 = vmatpush2.msra.mxu0 0.0
  %6150 = vmatprep.subr.mxu0 0.0
  %6151 = vmatpush2.msra.mxu0 0.0
  %6152 = vmatprep.subr.mxu0 0.0
  %6153 = vmatpush2.msra.mxu0 0.0
  %6154 = vmatprep.subr.mxu0 0.0
  %6155 = vmatpush2.msra.mxu0 0.0
  %6156 = vmatprep.mubr.f32.mxu0 0.0
  %6157 = vmatmul.mubr.f32.gmra.mxu0 %v6090
  %v6158 = vpop.f32.mrf.mxu0
  %v6159 = vadd.f32 0.0, %v6158
  %v6160 = vpop.f32.mrf.mxu0
  %6161 = vdwg.mxu0
  %v6162 = vadd.f32 %v6083, %v6159
  %s6163 = scalar_lea.vmem %s6, 1216
  %v6164 = vld [vmem:[%s6163] sm:$0xff]
  %v6165 = vld [vmem:[%s6163 + $0x8] sm:$0xff]
  %v6166 = vld [vmem:[%s6163 + $0x10] sm:$0xff]
  %v6167 = vld [vmem:[%s6163 + $0x18] sm:$0xff]
  %v6168 = vrot.slane %v3150, 6
  %v6169 = vsel %vm3165, %v6168, 0
  %6171 = vmatprep.subr.mxu0 0.0
  %6172 = vmatpush1.msra.mxu0 0.0
  %6173 = vmatprep.subr.mxu0 0.0
  %6174 = vmatpush1.msra.mxu0 0.0
  %6175 = vmatprep.subr.mxu0 0.0
  %6176 = vmatpush1.msra.mxu0 0.0
  %6177 = vmatprep.subr.mxu0 0.0
  %6178 = vmatpush1.msra.mxu0 0.0
  %6179 = vmatprep.subr.mxu0 0.0
  %6180 = vmatpush1.msra.mxu0 0.0
  %6181 = vmatprep.subr.mxu0 0.0
  %6182 = vmatpush1.msra.mxu0 0.0
  %6183 = vmatprep.subr.mxu0 0.0
  %6184 = vmatpush1.msra.mxu0 0.0
  %6185 = vmatprep.subr.mxu0 0.0
  %6186 = vmatpush1.msra.mxu0 0.0
  %6187 = vmatprep.subr.mxu0 0.0
  %6188 = vmatpush1.msra.mxu0 0.0
  %6189 = vmatprep.subr.mxu0 0.0
  %6190 = vmatpush1.msra.mxu0 0.0
  %6191 = vmatprep.subr.mxu0 0.0
  %6192 = vmatpush1.msra.mxu0 0.0
  %6193 = vmatprep.subr.mxu0 0.0
  %6194 = vmatpush1.msra.mxu0 0.0
  %6195 = vmatprep.subr.mxu0 0.0
  %6196 = vmatpush1.msra.mxu0 %v6167
  %6197 = vmatprep.subr.mxu0 0.0
  %6198 = vmatpush1.msra.mxu0 %v6166
  %6199 = vmatprep.subr.mxu0 0.0
  %6200 = vmatpush1.msra.mxu0 %v6165
  %6201 = vmatprep.subr.mxu0 0.0
  %6202 = vmatpush1.msra.mxu0 %v6164
  %6203 = vmatprep.subr.mxu0 0.0
  %6204 = vmatpush2.msra.mxu0 0.0
  %6205 = vmatprep.subr.mxu0 0.0
  %6206 = vmatpush2.msra.mxu0 0.0
  %6207 = vmatprep.subr.mxu0 0.0
  %6208 = vmatpush2.msra.mxu0 0.0
  %6209 = vmatprep.subr.mxu0 0.0
  %6210 = vmatpush2.msra.mxu0 0.0
  %6211 = vmatprep.subr.mxu0 0.0
  %6212 = vmatpush2.msra.mxu0 0.0
  %6213 = vmatprep.subr.mxu0 0.0
  %6214 = vmatpush2.msra.mxu0 0.0
  %6215 = vmatprep.subr.mxu0 0.0
  %6216 = vmatpush2.msra.mxu0 0.0
  %6217 = vmatprep.subr.mxu0 0.0
  %6218 = vmatpush2.msra.mxu0 0.0
  %6219 = vmatprep.subr.mxu0 0.0
  %6220 = vmatpush2.msra.mxu0 0.0
  %6221 = vmatprep.subr.mxu0 0.0
  %6222 = vmatpush2.msra.mxu0 0.0
  %6223 = vmatprep.subr.mxu0 0.0
  %6224 = vmatpush2.msra.mxu0 0.0
  %6225 = vmatprep.subr.mxu0 0.0
  %6226 = vmatpush2.msra.mxu0 0.0
  %6227 = vmatprep.subr.mxu0 0.0
  %6228 = vmatpush2.msra.mxu0 0.0
  %6229 = vmatprep.subr.mxu0 0.0
  %6230 = vmatpush2.msra.mxu0 0.0
  %6231 = vmatprep.subr.mxu0 0.0
  %6232 = vmatpush2.msra.mxu0 0.0
  %6233 = vmatprep.subr.mxu0 0.0
  %6234 = vmatpush2.msra.mxu0 0.0
  %6235 = vmatprep.mubr.f32.mxu0 0.0
  %6236 = vmatmul.mubr.f32.gmra.mxu0 %v6169
  %v6237 = vpop.f32.mrf.mxu0
  %v6238 = vadd.f32 0.0, %v6237
  %v6239 = vpop.f32.mrf.mxu0
  %6240 = vdwg.mxu0
  %v6241 = vadd.f32 %v6162, %v6238
  %s6242 = scalar_lea.vmem %s6, 1248
  %v6243 = vld [vmem:[%s6242] sm:$0xff]
  %v6244 = vld [vmem:[%s6242 + $0x8] sm:$0xff]
  %v6245 = vld [vmem:[%s6242 + $0x10] sm:$0xff]
  %v6246 = vld [vmem:[%s6242 + $0x18] sm:$0xff]
  %v6248 = vsel %vm3165, %v3151, 0
  %6250 = vmatprep.subr.mxu0 0.0
  %6251 = vmatpush1.msra.mxu0 0.0
  %6252 = vmatprep.subr.mxu0 0.0
  %6253 = vmatpush1.msra.mxu0 0.0
  %6254 = vmatprep.subr.mxu0 0.0
  %6255 = vmatpush1.msra.mxu0 0.0
  %6256 = vmatprep.subr.mxu0 0.0
  %6257 = vmatpush1.msra.mxu0 0.0
  %6258 = vmatprep.subr.mxu0 0.0
  %6259 = vmatpush1.msra.mxu0 0.0
  %6260 = vmatprep.subr.mxu0 0.0
  %6261 = vmatpush1.msra.mxu0 0.0
  %6262 = vmatprep.subr.mxu0 0.0
  %6263 = vmatpush1.msra.mxu0 0.0
  %6264 = vmatprep.subr.mxu0 0.0
  %6265 = vmatpush1.msra.mxu0 0.0
  %6266 = vmatprep.subr.mxu0 0.0
  %6267 = vmatpush1.msra.mxu0 0.0
  %6268 = vmatprep.subr.mxu0 0.0
  %6269 = vmatpush1.msra.mxu0 0.0
  %6270 = vmatprep.subr.mxu0 0.0
  %6271 = vmatpush1.msra.mxu0 0.0
  %6272 = vmatprep.subr.mxu0 0.0
  %6273 = vmatpush1.msra.mxu0 0.0
  %6274 = vmatprep.subr.mxu0 0.0
  %6275 = vmatpush1.msra.mxu0 %v6246
  %6276 = vmatprep.subr.mxu0 0.0
  %6277 = vmatpush1.msra.mxu0 %v6245
  %6278 = vmatprep.subr.mxu0 0.0
  %6279 = vmatpush1.msra.mxu0 %v6244
  %6280 = vmatprep.subr.mxu0 0.0
  %6281 = vmatpush1.msra.mxu0 %v6243
  %6282 = vmatprep.subr.mxu0 0.0
  %6283 = vmatpush2.msra.mxu0 0.0
  %6284 = vmatprep.subr.mxu0 0.0
  %6285 = vmatpush2.msra.mxu0 0.0
  %6286 = vmatprep.subr.mxu0 0.0
  %6287 = vmatpush2.msra.mxu0 0.0
  %6288 = vmatprep.subr.mxu0 0.0
  %6289 = vmatpush2.msra.mxu0 0.0
  %6290 = vmatprep.subr.mxu0 0.0
  %6291 = vmatpush2.msra.mxu0 0.0
  %6292 = vmatprep.subr.mxu0 0.0
  %6293 = vmatpush2.msra.mxu0 0.0
  %6294 = vmatprep.subr.mxu0 0.0
  %6295 = vmatpush2.msra.mxu0 0.0
  %6296 = vmatprep.subr.mxu0 0.0
  %6297 = vmatpush2.msra.mxu0 0.0
  %6298 = vmatprep.subr.mxu0 0.0
  %6299 = vmatpush2.msra.mxu0 0.0
  %6300 = vmatprep.subr.mxu0 0.0
  %6301 = vmatpush2.msra.mxu0 0.0
  %6302 = vmatprep.subr.mxu0 0.0
  %6303 = vmatpush2.msra.mxu0 0.0
  %6304 = vmatprep.subr.mxu0 0.0
  %6305 = vmatpush2.msra.mxu0 0.0
  %6306 = vmatprep.subr.mxu0 0.0
  %6307 = vmatpush2.msra.mxu0 0.0
  %6308 = vmatprep.subr.mxu0 0.0
  %6309 = vmatpush2.msra.mxu0 0.0
  %6310 = vmatprep.subr.mxu0 0.0
  %6311 = vmatpush2.msra.mxu0 0.0
  %6312 = vmatprep.subr.mxu0 0.0
  %6313 = vmatpush2.msra.mxu0 0.0
  %6314 = vmatprep.mubr.f32.mxu0 0.0
  %6315 = vmatmul.mubr.f32.gmra.mxu0 %v6248
  %v6316 = vpop.f32.mrf.mxu0
  %v6317 = vadd.f32 0.0, %v6316
  %v6318 = vpop.f32.mrf.mxu0
  %6319 = vdwg.mxu0
  %v6320 = vadd.f32 %v6241, %v6317
  %s6321 = scalar_lea.vmem %s6, 1280
  %v6322 = vld [vmem:[%s6321] sm:$0xff]
  %v6323 = vld [vmem:[%s6321 + $0x8] sm:$0xff]
  %v6324 = vld [vmem:[%s6321 + $0x10] sm:$0xff]
  %v6325 = vld [vmem:[%s6321 + $0x18] sm:$0xff]
  %v6326 = vrot.slane %v3151, 2
  %v6327 = vsel %vm3165, %v6326, 0
  %6329 = vmatprep.subr.mxu0 0.0
  %6330 = vmatpush1.msra.mxu0 0.0
  %6331 = vmatprep.subr.mxu0 0.0
  %6332 = vmatpush1.msra.mxu0 0.0
  %6333 = vmatprep.subr.mxu0 0.0
  %6334 = vmatpush1.msra.mxu0 0.0
  %6335 = vmatprep.subr.mxu0 0.0
  %6336 = vmatpush1.msra.mxu0 0.0
  %6337 = vmatprep.subr.mxu0 0.0
  %6338 = vmatpush1.msra.mxu0 0.0
  %6339 = vmatprep.subr.mxu0 0.0
  %6340 = vmatpush1.msra.mxu0 0.0
  %6341 = vmatprep.subr.mxu0 0.0
  %6342 = vmatpush1.msra.mxu0 0.0
  %6343 = vmatprep.subr.mxu0 0.0
  %6344 = vmatpush1.msra.mxu0 0.0
  %6345 = vmatprep.subr.mxu0 0.0
  %6346 = vmatpush1.msra.mxu0 0.0
  %6347 = vmatprep.subr.mxu0 0.0
  %6348 = vmatpush1.msra.mxu0 0.0
  %6349 = vmatprep.subr.mxu0 0.0
  %6350 = vmatpush1.msra.mxu0 0.0
  %6351 = vmatprep.subr.mxu0 0.0
  %6352 = vmatpush1.msra.mxu0 0.0
  %6353 = vmatprep.subr.mxu0 0.0
  %6354 = vmatpush1.msra.mxu0 %v6325
  %6355 = vmatprep.subr.mxu0 0.0
  %6356 = vmatpush1.msra.mxu0 %v6324
  %6357 = vmatprep.subr.mxu0 0.0
  %6358 = vmatpush1.msra.mxu0 %v6323
  %6359 = vmatprep.subr.mxu0 0.0
  %6360 = vmatpush1.msra.mxu0 %v6322
  %6361 = vmatprep.subr.mxu0 0.0
  %6362 = vmatpush2.msra.mxu0 0.0
  %6363 = vmatprep.subr.mxu0 0.0
  %6364 = vmatpush2.msra.mxu0 0.0
  %6365 = vmatprep.subr.mxu0 0.0
  %6366 = vmatpush2.msra.mxu0 0.0
  %6367 = vmatprep.subr.mxu0 0.0
  %6368 = vmatpush2.msra.mxu0 0.0
  %6369 = vmatprep.subr.mxu0 0.0
  %6370 = vmatpush2.msra.mxu0 0.0
  %6371 = vmatprep.subr.mxu0 0.0
  %6372 = vmatpush2.msra.mxu0 0.0
  %6373 = vmatprep.subr.mxu0 0.0
  %6374 = vmatpush2.msra.mxu0 0.0
  %6375 = vmatprep.subr.mxu0 0.0
  %6376 = vmatpush2.msra.mxu0 0.0
  %6377 = vmatprep.subr.mxu0 0.0
  %6378 = vmatpush2.msra.mxu0 0.0
  %6379 = vmatprep.subr.mxu0 0.0
  %6380 = vmatpush2.msra.mxu0 0.0
  %6381 = vmatprep.subr.mxu0 0.0
  %6382 = vmatpush2.msra.mxu0 0.0
  %6383 = vmatprep.subr.mxu0 0.0
  %6384 = vmatpush2.msra.mxu0 0.0
  %6385 = vmatprep.subr.mxu0 0.0
  %6386 = vmatpush2.msra.mxu0 0.0
  %6387 = vmatprep.subr.mxu0 0.0
  %6388 = vmatpush2.msra.mxu0 0.0
  %6389 = vmatprep.subr.mxu0 0.0
  %6390 = vmatpush2.msra.mxu0 0.0
  %6391 = vmatprep.subr.mxu0 0.0
  %6392 = vmatpush2.msra.mxu0 0.0
  %6393 = vmatprep.mubr.f32.mxu0 0.0
  %6394 = vmatmul.mubr.f32.gmra.mxu0 %v6327
  %v6395 = vpop.f32.mrf.mxu0
  %v6396 = vadd.f32 0.0, %v6395
  %v6397 = vpop.f32.mrf.mxu0
  %6398 = vdwg.mxu0
  %v6399 = vadd.f32 %v6320, %v6396
  %s6400 = scalar_lea.vmem %s6, 1312
  %v6401 = vld [vmem:[%s6400] sm:$0xff]
  %v6402 = vld [vmem:[%s6400 + $0x8] sm:$0xff]
  %v6403 = vld [vmem:[%s6400 + $0x10] sm:$0xff]
  %v6404 = vld [vmem:[%s6400 + $0x18] sm:$0xff]
  %v6405 = vrot.slane %v3151, 4
  %v6406 = vsel %vm3165, %v6405, 0
  %6408 = vmatprep.subr.mxu0 0.0
  %6409 = vmatpush1.msra.mxu0 0.0
  %6410 = vmatprep.subr.mxu0 0.0
  %6411 = vmatpush1.msra.mxu0 0.0
  %6412 = vmatprep.subr.mxu0 0.0
  %6413 = vmatpush1.msra.mxu0 0.0
  %6414 = vmatprep.subr.mxu0 0.0
  %6415 = vmatpush1.msra.mxu0 0.0
  %6416 = vmatprep.subr.mxu0 0.0
  %6417 = vmatpush1.msra.mxu0 0.0
  %6418 = vmatprep.subr.mxu0 0.0
  %6419 = vmatpush1.msra.mxu0 0.0
  %6420 = vmatprep.subr.mxu0 0.0
  %6421 = vmatpush1.msra.mxu0 0.0
  %6422 = vmatprep.subr.mxu0 0.0
  %6423 = vmatpush1.msra.mxu0 0.0
  %6424 = vmatprep.subr.mxu0 0.0
  %6425 = vmatpush1.msra.mxu0 0.0
  %6426 = vmatprep.subr.mxu0 0.0
  %6427 = vmatpush1.msra.mxu0 0.0
  %6428 = vmatprep.subr.mxu0 0.0
  %6429 = vmatpush1.msra.mxu0 0.0
  %6430 = vmatprep.subr.mxu0 0.0
  %6431 = vmatpush1.msra.mxu0 0.0
  %6432 = vmatprep.subr.mxu0 0.0
  %6433 = vmatpush1.msra.mxu0 %v6404
  %6434 = vmatprep.subr.mxu0 0.0
  %6435 = vmatpush1.msra.mxu0 %v6403
  %6436 = vmatprep.subr.mxu0 0.0
  %6437 = vmatpush1.msra.mxu0 %v6402
  %6438 = vmatprep.subr.mxu0 0.0
  %6439 = vmatpush1.msra.mxu0 %v6401
  %6440 = vmatprep.subr.mxu0 0.0
  %6441 = vmatpush2.msra.mxu0 0.0
  %6442 = vmatprep.subr.mxu0 0.0
  %6443 = vmatpush2.msra.mxu0 0.0
  %6444 = vmatprep.subr.mxu0 0.0
  %6445 = vmatpush2.msra.mxu0 0.0
  %6446 = vmatprep.subr.mxu0 0.0
  %6447 = vmatpush2.msra.mxu0 0.0
  %6448 = vmatprep.subr.mxu0 0.0
  %6449 = vmatpush2.msra.mxu0 0.0
  %6450 = vmatprep.subr.mxu0 0.0
  %6451 = vmatpush2.msra.mxu0 0.0
  %6452 = vmatprep.subr.mxu0 0.0
  %6453 = vmatpush2.msra.mxu0 0.0
  %6454 = vmatprep.subr.mxu0 0.0
  %6455 = vmatpush2.msra.mxu0 0.0
  %6456 = vmatprep.subr.mxu0 0.0
  %6457 = vmatpush2.msra.mxu0 0.0
  %6458 = vmatprep.subr.mxu0 0.0
  %6459 = vmatpush2.msra.mxu0 0.0
  %6460 = vmatprep.subr.mxu0 0.0
  %6461 = vmatpush2.msra.mxu0 0.0
  %6462 = vmatprep.subr.mxu0 0.0
  %6463 = vmatpush2.msra.mxu0 0.0
  %6464 = vmatprep.subr.mxu0 0.0
  %6465 = vmatpush2.msra.mxu0 0.0
  %6466 = vmatprep.subr.mxu0 0.0
  %6467 = vmatpush2.msra.mxu0 0.0
  %6468 = vmatprep.subr.mxu0 0.0
  %6469 = vmatpush2.msra.mxu0 0.0
  %6470 = vmatprep.subr.mxu0 0.0
  %6471 = vmatpush2.msra.mxu0 0.0
  %6472 = vmatprep.mubr.f32.mxu0 0.0
  %6473 = vmatmul.mubr.f32.gmra.mxu0 %v6406
  %v6474 = vpop.f32.mrf.mxu0
  %v6475 = vadd.f32 0.0, %v6474
  %v6476 = vpop.f32.mrf.mxu0
  %6477 = vdwg.mxu0
  %v6478 = vadd.f32 %v6399, %v6475
  %s6479 = scalar_lea.vmem %s6, 1344
  %v6480 = vld [vmem:[%s6479] sm:$0xff]
  %v6481 = vld [vmem:[%s6479 + $0x8] sm:$0xff]
  %v6482 = vld [vmem:[%s6479 + $0x10] sm:$0xff]
  %v6483 = vld [vmem:[%s6479 + $0x18] sm:$0xff]
  %v6485 = vsel %vm3165, %v3152, 0
  %6487 = vmatprep.subr.mxu0 0.0
  %6488 = vmatpush1.msra.mxu0 0.0
  %6489 = vmatprep.subr.mxu0 0.0
  %6490 = vmatpush1.msra.mxu0 0.0
  %6491 = vmatprep.subr.mxu0 0.0
  %6492 = vmatpush1.msra.mxu0 0.0
  %6493 = vmatprep.subr.mxu0 0.0
  %6494 = vmatpush1.msra.mxu0 0.0
  %6495 = vmatprep.subr.mxu0 0.0
  %6496 = vmatpush1.msra.mxu0 0.0
  %6497 = vmatprep.subr.mxu0 0.0
  %6498 = vmatpush1.msra.mxu0 0.0
  %6499 = vmatprep.subr.mxu0 0.0
  %6500 = vmatpush1.msra.mxu0 0.0
  %6501 = vmatprep.subr.mxu0 0.0
  %6502 = vmatpush1.msra.mxu0 0.0
  %6503 = vmatprep.subr.mxu0 0.0
  %6504 = vmatpush1.msra.mxu0 0.0
  %6505 = vmatprep.subr.mxu0 0.0
  %6506 = vmatpush1.msra.mxu0 0.0
  %6507 = vmatprep.subr.mxu0 0.0
  %6508 = vmatpush1.msra.mxu0 0.0
  %6509 = vmatprep.subr.mxu0 0.0
  %6510 = vmatpush1.msra.mxu0 0.0
  %6511 = vmatprep.subr.mxu0 0.0
  %6512 = vmatpush1.msra.mxu0 %v6483
  %6513 = vmatprep.subr.mxu0 0.0
  %6514 = vmatpush1.msra.mxu0 %v6482
  %6515 = vmatprep.subr.mxu0 0.0
  %6516 = vmatpush1.msra.mxu0 %v6481
  %6517 = vmatprep.subr.mxu0 0.0
  %6518 = vmatpush1.msra.mxu0 %v6480
  %6519 = vmatprep.subr.mxu0 0.0
  %6520 = vmatpush2.msra.mxu0 0.0
  %6521 = vmatprep.subr.mxu0 0.0
  %6522 = vmatpush2.msra.mxu0 0.0
  %6523 = vmatprep.subr.mxu0 0.0
  %6524 = vmatpush2.msra.mxu0 0.0
  %6525 = vmatprep.subr.mxu0 0.0
  %6526 = vmatpush2.msra.mxu0 0.0
  %6527 = vmatprep.subr.mxu0 0.0
  %6528 = vmatpush2.msra.mxu0 0.0
  %6529 = vmatprep.subr.mxu0 0.0
  %6530 = vmatpush2.msra.mxu0 0.0
  %6531 = vmatprep.subr.mxu0 0.0
  %6532 = vmatpush2.msra.mxu0 0.0
  %6533 = vmatprep.subr.mxu0 0.0
  %6534 = vmatpush2.msra.mxu0 0.0
  %6535 = vmatprep.subr.mxu0 0.0
  %6536 = vmatpush2.msra.mxu0 0.0
  %6537 = vmatprep.subr.mxu0 0.0
  %6538 = vmatpush2.msra.mxu0 0.0
  %6539 = vmatprep.subr.mxu0 0.0
  %6540 = vmatpush2.msra.mxu0 0.0
  %6541 = vmatprep.subr.mxu0 0.0
  %6542 = vmatpush2.msra.mxu0 0.0
  %6543 = vmatprep.subr.mxu0 0.0
  %6544 = vmatpush2.msra.mxu0 0.0
  %6545 = vmatprep.subr.mxu0 0.0
  %6546 = vmatpush2.msra.mxu0 0.0
  %6547 = vmatprep.subr.mxu0 0.0
  %6548 = vmatpush2.msra.mxu0 0.0
  %6549 = vmatprep.subr.mxu0 0.0
  %6550 = vmatpush2.msra.mxu0 0.0
  %6551 = vmatprep.mubr.f32.mxu0 0.0
  %6552 = vmatmul.mubr.f32.gmra.mxu0 %v6485
  %v6553 = vpop.f32.mrf.mxu0
  %v6554 = vadd.f32 0.0, %v6553
  %v6555 = vpop.f32.mrf.mxu0
  %6556 = vdwg.mxu0
  %v6557 = vadd.f32 %v6478, %v6554
  %s6558 = scalar_lea.vmem %s6, 1376
  %v6559 = vld [vmem:[%s6558] sm:$0xff]
  %v6560 = vld [vmem:[%s6558 + $0x8] sm:$0xff]
  %v6561 = vld [vmem:[%s6558 + $0x10] sm:$0xff]
  %v6562 = vld [vmem:[%s6558 + $0x18] sm:$0xff]
  %v6563 = vrot.slane %v3152, 2
  %v6564 = vsel %vm3165, %v6563, 0
  %6566 = vmatprep.subr.mxu0 0.0
  %6567 = vmatpush1.msra.mxu0 0.0
  %6568 = vmatprep.subr.mxu0 0.0
  %6569 = vmatpush1.msra.mxu0 0.0
  %6570 = vmatprep.subr.mxu0 0.0
  %6571 = vmatpush1.msra.mxu0 0.0
  %6572 = vmatprep.subr.mxu0 0.0
  %6573 = vmatpush1.msra.mxu0 0.0
  %6574 = vmatprep.subr.mxu0 0.0
  %6575 = vmatpush1.msra.mxu0 0.0
  %6576 = vmatprep.subr.mxu0 0.0
  %6577 = vmatpush1.msra.mxu0 0.0
  %6578 = vmatprep.subr.mxu0 0.0
  %6579 = vmatpush1.msra.mxu0 0.0
  %6580 = vmatprep.subr.mxu0 0.0
  %6581 = vmatpush1.msra.mxu0 0.0
  %6582 = vmatprep.subr.mxu0 0.0
  %6583 = vmatpush1.msra.mxu0 0.0
  %6584 = vmatprep.subr.mxu0 0.0
  %6585 = vmatpush1.msra.mxu0 0.0
  %6586 = vmatprep.subr.mxu0 0.0
  %6587 = vmatpush1.msra.mxu0 0.0
  %6588 = vmatprep.subr.mxu0 0.0
  %6589 = vmatpush1.msra.mxu0 0.0
  %6590 = vmatprep.subr.mxu0 0.0
  %6591 = vmatpush1.msra.mxu0 %v6562
  %6592 = vmatprep.subr.mxu0 0.0
  %6593 = vmatpush1.msra.mxu0 %v6561
  %6594 = vmatprep.subr.mxu0 0.0
  %6595 = vmatpush1.msra.mxu0 %v6560
  %6596 = vmatprep.subr.mxu0 0.0
  %6597 = vmatpush1.msra.mxu0 %v6559
  %6598 = vmatprep.subr.mxu0 0.0
  %6599 = vmatpush2.msra.mxu0 0.0
  %6600 = vmatprep.subr.mxu0 0.0
  %6601 = vmatpush2.msra.mxu0 0.0
  %6602 = vmatprep.subr.mxu0 0.0
  %6603 = vmatpush2.msra.mxu0 0.0
  %6604 = vmatprep.subr.mxu0 0.0
  %6605 = vmatpush2.msra.mxu0 0.0
  %6606 = vmatprep.subr.mxu0 0.0
  %6607 = vmatpush2.msra.mxu0 0.0
  %6608 = vmatprep.subr.mxu0 0.0
  %6609 = vmatpush2.msra.mxu0 0.0
  %6610 = vmatprep.subr.mxu0 0.0
  %6611 = vmatpush2.msra.mxu0 0.0
  %6612 = vmatprep.subr.mxu0 0.0
  %6613 = vmatpush2.msra.mxu0 0.0
  %6614 = vmatprep.subr.mxu0 0.0
  %6615 = vmatpush2.msra.mxu0 0.0
  %6616 = vmatprep.subr.mxu0 0.0
  %6617 = vmatpush2.msra.mxu0 0.0
  %6618 = vmatprep.subr.mxu0 0.0
  %6619 = vmatpush2.msra.mxu0 0.0
  %6620 = vmatprep.subr.mxu0 0.0
  %6621 = vmatpush2.msra.mxu0 0.0
  %6622 = vmatprep.subr.mxu0 0.0
  %6623 = vmatpush2.msra.mxu0 0.0
  %6624 = vmatprep.subr.mxu0 0.0
  %6625 = vmatpush2.msra.mxu0 0.0
  %6626 = vmatprep.subr.mxu0 0.0
  %6627 = vmatpush2.msra.mxu0 0.0
  %6628 = vmatprep.subr.mxu0 0.0
  %6629 = vmatpush2.msra.mxu0 0.0
  %6630 = vmatprep.mubr.f32.mxu0 0.0
  %6631 = vmatmul.mubr.f32.gmra.mxu0 %v6564
  %v6632 = vpop.f32.mrf.mxu0
  %v6633 = vadd.f32 0.0, %v6632
  %v6634 = vpop.f32.mrf.mxu0
  %6635 = vdwg.mxu0
  %v6636 = vadd.f32 %v6557, %v6633
  %s6637 = scalar_lea.vmem %s6, 1408
  %v6638 = vld [vmem:[%s6637] sm:$0xff]
  %v6639 = vld [vmem:[%s6637 + $0x8] sm:$0xff]
  %v6640 = vld [vmem:[%s6637 + $0x10] sm:$0xff]
  %v6641 = vld [vmem:[%s6637 + $0x18] sm:$0xff]
  %v6642 = vrot.slane %v3152, 4
  %v6643 = vsel %vm3165, %v6642, 0
  %6645 = vmatprep.subr.mxu0 0.0
  %6646 = vmatpush1.msra.mxu0 0.0
  %6647 = vmatprep.subr.mxu0 0.0
  %6648 = vmatpush1.msra.mxu0 0.0
  %6649 = vmatprep.subr.mxu0 0.0
  %6650 = vmatpush1.msra.mxu0 0.0
  %6651 = vmatprep.subr.mxu0 0.0
  %6652 = vmatpush1.msra.mxu0 0.0
  %6653 = vmatprep.subr.mxu0 0.0
  %6654 = vmatpush1.msra.mxu0 0.0
  %6655 = vmatprep.subr.mxu0 0.0
  %6656 = vmatpush1.msra.mxu0 0.0
  %6657 = vmatprep.subr.mxu0 0.0
  %6658 = vmatpush1.msra.mxu0 0.0
  %6659 = vmatprep.subr.mxu0 0.0
  %6660 = vmatpush1.msra.mxu0 0.0
  %6661 = vmatprep.subr.mxu0 0.0
  %6662 = vmatpush1.msra.mxu0 0.0
  %6663 = vmatprep.subr.mxu0 0.0
  %6664 = vmatpush1.msra.mxu0 0.0
  %6665 = vmatprep.subr.mxu0 0.0
  %6666 = vmatpush1.msra.mxu0 0.0
  %6667 = vmatprep.subr.mxu0 0.0
  %6668 = vmatpush1.msra.mxu0 0.0
  %6669 = vmatprep.subr.mxu0 0.0
  %6670 = vmatpush1.msra.mxu0 %v6641
  %6671 = vmatprep.subr.mxu0 0.0
  %6672 = vmatpush1.msra.mxu0 %v6640
  %6673 = vmatprep.subr.mxu0 0.0
  %6674 = vmatpush1.msra.mxu0 %v6639
  %6675 = vmatprep.subr.mxu0 0.0
  %6676 = vmatpush1.msra.mxu0 %v6638
  %6677 = vmatprep.subr.mxu0 0.0
  %6678 = vmatpush2.msra.mxu0 0.0
  %6679 = vmatprep.subr.mxu0 0.0
  %6680 = vmatpush2.msra.mxu0 0.0
  %6681 = vmatprep.subr.mxu0 0.0
  %6682 = vmatpush2.msra.mxu0 0.0
  %6683 = vmatprep.subr.mxu0 0.0
  %6684 = vmatpush2.msra.mxu0 0.0
  %6685 = vmatprep.subr.mxu0 0.0
  %6686 = vmatpush2.msra.mxu0 0.0
  %6687 = vmatprep.subr.mxu0 0.0
  %6688 = vmatpush2.msra.mxu0 0.0
  %6689 = vmatprep.subr.mxu0 0.0
  %6690 = vmatpush2.msra.mxu0 0.0
  %6691 = vmatprep.subr.mxu0 0.0
  %6692 = vmatpush2.msra.mxu0 0.0
  %6693 = vmatprep.subr.mxu0 0.0
  %6694 = vmatpush2.msra.mxu0 0.0
  %6695 = vmatprep.subr.mxu0 0.0
  %6696 = vmatpush2.msra.mxu0 0.0
  %6697 = vmatprep.subr.mxu0 0.0
  %6698 = vmatpush2.msra.mxu0 0.0
  %6699 = vmatprep.subr.mxu0 0.0
  %6700 = vmatpush2.msra.mxu0 0.0
  %6701 = vmatprep.subr.mxu0 0.0
  %6702 = vmatpush2.msra.mxu0 0.0
  %6703 = vmatprep.subr.mxu0 0.0
  %6704 = vmatpush2.msra.mxu0 0.0
  %6705 = vmatprep.subr.mxu0 0.0
  %6706 = vmatpush2.msra.mxu0 0.0
  %6707 = vmatprep.subr.mxu0 0.0
  %6708 = vmatpush2.msra.mxu0 0.0
  %6709 = vmatprep.mubr.f32.mxu0 0.0
  %6710 = vmatmul.mubr.f32.gmra.mxu0 %v6643
  %v6711 = vpop.f32.mrf.mxu0
  %v6712 = vadd.f32 0.0, %v6711
  %v6713 = vpop.f32.mrf.mxu0
  %6714 = vdwg.mxu0
  %v6715 = vadd.f32 %v6636, %v6712
  %s6716 = scalar_lea.vmem %s6, 1440
  %v6717 = vld [vmem:[%s6716] sm:$0xff]
  %v6718 = vld [vmem:[%s6716 + $0x8] sm:$0xff]
  %v6719 = vld [vmem:[%s6716 + $0x10] sm:$0xff]
  %v6720 = vld [vmem:[%s6716 + $0x18] sm:$0xff]
  %v6721 = vrot.slane %v3152, 6
  %v6722 = vsel %vm3165, %v6721, 0
  %6724 = vmatprep.subr.mxu0 0.0
  %6725 = vmatpush1.msra.mxu0 0.0
  %6726 = vmatprep.subr.mxu0 0.0
  %6727 = vmatpush1.msra.mxu0 0.0
  %6728 = vmatprep.subr.mxu0 0.0
  %6729 = vmatpush1.msra.mxu0 0.0
  %6730 = vmatprep.subr.mxu0 0.0
  %6731 = vmatpush1.msra.mxu0 0.0
  %6732 = vmatprep.subr.mxu0 0.0
  %6733 = vmatpush1.msra.mxu0 0.0
  %6734 = vmatprep.subr.mxu0 0.0
  %6735 = vmatpush1.msra.mxu0 0.0
  %6736 = vmatprep.subr.mxu0 0.0
  %6737 = vmatpush1.msra.mxu0 0.0
  %6738 = vmatprep.subr.mxu0 0.0
  %6739 = vmatpush1.msra.mxu0 0.0
  %6740 = vmatprep.subr.mxu0 0.0
  %6741 = vmatpush1.msra.mxu0 0.0
  %6742 = vmatprep.subr.mxu0 0.0
  %6743 = vmatpush1.msra.mxu0 0.0
  %6744 = vmatprep.subr.mxu0 0.0
  %6745 = vmatpush1.msra.mxu0 0.0
  %6746 = vmatprep.subr.mxu0 0.0
  %6747 = vmatpush1.msra.mxu0 0.0
  %6748 = vmatprep.subr.mxu0 0.0
  %6749 = vmatpush1.msra.mxu0 %v6720
  %6750 = vmatprep.subr.mxu0 0.0
  %6751 = vmatpush1.msra.mxu0 %v6719
  %6752 = vmatprep.subr.mxu0 0.0
  %6753 = vmatpush1.msra.mxu0 %v6718
  %6754 = vmatprep.subr.mxu0 0.0
  %6755 = vmatpush1.msra.mxu0 %v6717
  %6756 = vmatprep.subr.mxu0 0.0
  %6757 = vmatpush2.msra.mxu0 0.0
  %6758 = vmatprep.subr.mxu0 0.0
  %6759 = vmatpush2.msra.mxu0 0.0
  %6760 = vmatprep.subr.mxu0 0.0
  %6761 = vmatpush2.msra.mxu0 0.0
  %6762 = vmatprep.subr.mxu0 0.0
  %6763 = vmatpush2.msra.mxu0 0.0
  %6764 = vmatprep.subr.mxu0 0.0
  %6765 = vmatpush2.msra.mxu0 0.0
  %6766 = vmatprep.subr.mxu0 0.0
  %6767 = vmatpush2.msra.mxu0 0.0
  %6768 = vmatprep.subr.mxu0 0.0
  %6769 = vmatpush2.msra.mxu0 0.0
  %6770 = vmatprep.subr.mxu0 0.0
  %6771 = vmatpush2.msra.mxu0 0.0
  %6772 = vmatprep.subr.mxu0 0.0
  %6773 = vmatpush2.msra.mxu0 0.0
  %6774 = vmatprep.subr.mxu0 0.0
  %6775 = vmatpush2.msra.mxu0 0.0
  %6776 = vmatprep.subr.mxu0 0.0
  %6777 = vmatpush2.msra.mxu0 0.0
  %6778 = vmatprep.subr.mxu0 0.0
  %6779 = vmatpush2.msra.mxu0 0.0
  %6780 = vmatprep.subr.mxu0 0.0
  %6781 = vmatpush2.msra.mxu0 0.0
  %6782 = vmatprep.subr.mxu0 0.0
  %6783 = vmatpush2.msra.mxu0 0.0
  %6784 = vmatprep.subr.mxu0 0.0
  %6785 = vmatpush2.msra.mxu0 0.0
  %6786 = vmatprep.subr.mxu0 0.0
  %6787 = vmatpush2.msra.mxu0 0.0
  %6788 = vmatprep.mubr.f32.mxu0 0.0
  %6789 = vmatmul.mubr.f32.gmra.mxu0 %v6722
  %v6790 = vpop.f32.mrf.mxu0
  %v6791 = vadd.f32 0.0, %v6790
  %v6792 = vpop.f32.mrf.mxu0
  %6793 = vdwg.mxu0
  %v6794 = vadd.f32 %v6715, %v6791
  %s6795 = scalar_lea.vmem %s6, 1472
  %v6796 = vld [vmem:[%s6795] sm:$0xff]
  %v6797 = vld [vmem:[%s6795 + $0x8] sm:$0xff]
  %v6798 = vld [vmem:[%s6795 + $0x10] sm:$0xff]
  %v6799 = vld [vmem:[%s6795 + $0x18] sm:$0xff]
  %v6801 = vsel %vm3165, %v3153, 0
  %6803 = vmatprep.subr.mxu0 0.0
  %6804 = vmatpush1.msra.mxu0 0.0
  %6805 = vmatprep.subr.mxu0 0.0
  %6806 = vmatpush1.msra.mxu0 0.0
  %6807 = vmatprep.subr.mxu0 0.0
  %6808 = vmatpush1.msra.mxu0 0.0
  %6809 = vmatprep.subr.mxu0 0.0
  %6810 = vmatpush1.msra.mxu0 0.0
  %6811 = vmatprep.subr.mxu0 0.0
  %6812 = vmatpush1.msra.mxu0 0.0
  %6813 = vmatprep.subr.mxu0 0.0
  %6814 = vmatpush1.msra.mxu0 0.0
  %6815 = vmatprep.subr.mxu0 0.0
  %6816 = vmatpush1.msra.mxu0 0.0
  %6817 = vmatprep.subr.mxu0 0.0
  %6818 = vmatpush1.msra.mxu0 0.0
  %6819 = vmatprep.subr.mxu0 0.0
  %6820 = vmatpush1.msra.mxu0 0.0
  %6821 = vmatprep.subr.mxu0 0.0
  %6822 = vmatpush1.msra.mxu0 0.0
  %6823 = vmatprep.subr.mxu0 0.0
  %6824 = vmatpush1.msra.mxu0 0.0
  %6825 = vmatprep.subr.mxu0 0.0
  %6826 = vmatpush1.msra.mxu0 0.0
  %6827 = vmatprep.subr.mxu0 0.0
  %6828 = vmatpush1.msra.mxu0 %v6799
  %6829 = vmatprep.subr.mxu0 0.0
  %6830 = vmatpush1.msra.mxu0 %v6798
  %6831 = vmatprep.subr.mxu0 0.0
  %6832 = vmatpush1.msra.mxu0 %v6797
  %6833 = vmatprep.subr.mxu0 0.0
  %6834 = vmatpush1.msra.mxu0 %v6796
  %6835 = vmatprep.subr.mxu0 0.0
  %6836 = vmatpush2.msra.mxu0 0.0
  %6837 = vmatprep.subr.mxu0 0.0
  %6838 = vmatpush2.msra.mxu0 0.0
  %6839 = vmatprep.subr.mxu0 0.0
  %6840 = vmatpush2.msra.mxu0 0.0
  %6841 = vmatprep.subr.mxu0 0.0
  %6842 = vmatpush2.msra.mxu0 0.0
  %6843 = vmatprep.subr.mxu0 0.0
  %6844 = vmatpush2.msra.mxu0 0.0
  %6845 = vmatprep.subr.mxu0 0.0
  %6846 = vmatpush2.msra.mxu0 0.0
  %6847 = vmatprep.subr.mxu0 0.0
  %6848 = vmatpush2.msra.mxu0 0.0
  %6849 = vmatprep.subr.mxu0 0.0
  %6850 = vmatpush2.msra.mxu0 0.0
  %6851 = vmatprep.subr.mxu0 0.0
  %6852 = vmatpush2.msra.mxu0 0.0
  %6853 = vmatprep.subr.mxu0 0.0
  %6854 = vmatpush2.msra.mxu0 0.0
  %6855 = vmatprep.subr.mxu0 0.0
  %6856 = vmatpush2.msra.mxu0 0.0
  %6857 = vmatprep.subr.mxu0 0.0
  %6858 = vmatpush2.msra.mxu0 0.0
  %6859 = vmatprep.subr.mxu0 0.0
  %6860 = vmatpush2.msra.mxu0 0.0
  %6861 = vmatprep.subr.mxu0 0.0
  %6862 = vmatpush2.msra.mxu0 0.0
  %6863 = vmatprep.subr.mxu0 0.0
  %6864 = vmatpush2.msra.mxu0 0.0
  %6865 = vmatprep.subr.mxu0 0.0
  %6866 = vmatpush2.msra.mxu0 0.0
  %6867 = vmatprep.mubr.f32.mxu0 0.0
  %6868 = vmatmul.mubr.f32.gmra.mxu0 %v6801
  %v6869 = vpop.f32.mrf.mxu0
  %v6870 = vadd.f32 0.0, %v6869
  %v6871 = vpop.f32.mrf.mxu0
  %6872 = vdwg.mxu0
  %v6873 = vadd.f32 %v6794, %v6870
  %s6874 = scalar_lea.vmem %s6, 1504
  %v6875 = vld [vmem:[%s6874] sm:$0xff]
  %v6876 = vld [vmem:[%s6874 + $0x8] sm:$0xff]
  %v6877 = vld [vmem:[%s6874 + $0x10] sm:$0xff]
  %v6878 = vld [vmem:[%s6874 + $0x18] sm:$0xff]
  %v6879 = vrot.slane %v3153, 2
  %v6880 = vsel %vm3165, %v6879, 0
  %6882 = vmatprep.subr.mxu0 0.0
  %6883 = vmatpush1.msra.mxu0 0.0
  %6884 = vmatprep.subr.mxu0 0.0
  %6885 = vmatpush1.msra.mxu0 0.0
  %6886 = vmatprep.subr.mxu0 0.0
  %6887 = vmatpush1.msra.mxu0 0.0
  %6888 = vmatprep.subr.mxu0 0.0
  %6889 = vmatpush1.msra.mxu0 0.0
  %6890 = vmatprep.subr.mxu0 0.0
  %6891 = vmatpush1.msra.mxu0 0.0
  %6892 = vmatprep.subr.mxu0 0.0
  %6893 = vmatpush1.msra.mxu0 0.0
  %6894 = vmatprep.subr.mxu0 0.0
  %6895 = vmatpush1.msra.mxu0 0.0
  %6896 = vmatprep.subr.mxu0 0.0
  %6897 = vmatpush1.msra.mxu0 0.0
  %6898 = vmatprep.subr.mxu0 0.0
  %6899 = vmatpush1.msra.mxu0 0.0
  %6900 = vmatprep.subr.mxu0 0.0
  %6901 = vmatpush1.msra.mxu0 0.0
  %6902 = vmatprep.subr.mxu0 0.0
  %6903 = vmatpush1.msra.mxu0 0.0
  %6904 = vmatprep.subr.mxu0 0.0
  %6905 = vmatpush1.msra.mxu0 0.0
  %6906 = vmatprep.subr.mxu0 0.0
  %6907 = vmatpush1.msra.mxu0 %v6878
  %6908 = vmatprep.subr.mxu0 0.0
  %6909 = vmatpush1.msra.mxu0 %v6877
  %6910 = vmatprep.subr.mxu0 0.0
  %6911 = vmatpush1.msra.mxu0 %v6876
  %6912 = vmatprep.subr.mxu0 0.0
  %6913 = vmatpush1.msra.mxu0 %v6875
  %6914 = vmatprep.subr.mxu0 0.0
  %6915 = vmatpush2.msra.mxu0 0.0
  %6916 = vmatprep.subr.mxu0 0.0
  %6917 = vmatpush2.msra.mxu0 0.0
  %6918 = vmatprep.subr.mxu0 0.0
  %6919 = vmatpush2.msra.mxu0 0.0
  %6920 = vmatprep.subr.mxu0 0.0
  %6921 = vmatpush2.msra.mxu0 0.0
  %6922 = vmatprep.subr.mxu0 0.0
  %6923 = vmatpush2.msra.mxu0 0.0
  %6924 = vmatprep.subr.mxu0 0.0
  %6925 = vmatpush2.msra.mxu0 0.0
  %6926 = vmatprep.subr.mxu0 0.0
  %6927 = vmatpush2.msra.mxu0 0.0
  %6928 = vmatprep.subr.mxu0 0.0
  %6929 = vmatpush2.msra.mxu0 0.0
  %6930 = vmatprep.subr.mxu0 0.0
  %6931 = vmatpush2.msra.mxu0 0.0
  %6932 = vmatprep.subr.mxu0 0.0
  %6933 = vmatpush2.msra.mxu0 0.0
  %6934 = vmatprep.subr.mxu0 0.0
  %6935 = vmatpush2.msra.mxu0 0.0
  %6936 = vmatprep.subr.mxu0 0.0
  %6937 = vmatpush2.msra.mxu0 0.0
  %6938 = vmatprep.subr.mxu0 0.0
  %6939 = vmatpush2.msra.mxu0 0.0
  %6940 = vmatprep.subr.mxu0 0.0
  %6941 = vmatpush2.msra.mxu0 0.0
  %6942 = vmatprep.subr.mxu0 0.0
  %6943 = vmatpush2.msra.mxu0 0.0
  %6944 = vmatprep.subr.mxu0 0.0
  %6945 = vmatpush2.msra.mxu0 0.0
  %6946 = vmatprep.mubr.f32.mxu0 0.0
  %6947 = vmatmul.mubr.f32.gmra.mxu0 %v6880
  %v6948 = vpop.f32.mrf.mxu0
  %v6949 = vadd.f32 0.0, %v6948
  %v6950 = vpop.f32.mrf.mxu0
  %6951 = vdwg.mxu0
  %v6952 = vadd.f32 %v6873, %v6949
  %s6953 = scalar_lea.vmem %s6, 1536
  %v6954 = vld [vmem:[%s6953] sm:$0xff]
  %v6955 = vld [vmem:[%s6953 + $0x8] sm:$0xff]
  %v6956 = vld [vmem:[%s6953 + $0x10] sm:$0xff]
  %v6957 = vld [vmem:[%s6953 + $0x18] sm:$0xff]
  %v6958 = vrot.slane %v3153, 4
  %v6959 = vsel %vm3165, %v6958, 0
  %6961 = vmatprep.subr.mxu0 0.0
  %6962 = vmatpush1.msra.mxu0 0.0
  %6963 = vmatprep.subr.mxu0 0.0
  %6964 = vmatpush1.msra.mxu0 0.0
  %6965 = vmatprep.subr.mxu0 0.0
  %6966 = vmatpush1.msra.mxu0 0.0
  %6967 = vmatprep.subr.mxu0 0.0
  %6968 = vmatpush1.msra.mxu0 0.0
  %6969 = vmatprep.subr.mxu0 0.0
  %6970 = vmatpush1.msra.mxu0 0.0
  %6971 = vmatprep.subr.mxu0 0.0
  %6972 = vmatpush1.msra.mxu0 0.0
  %6973 = vmatprep.subr.mxu0 0.0
  %6974 = vmatpush1.msra.mxu0 0.0
  %6975 = vmatprep.subr.mxu0 0.0
  %6976 = vmatpush1.msra.mxu0 0.0
  %6977 = vmatprep.subr.mxu0 0.0
  %6978 = vmatpush1.msra.mxu0 0.0
  %6979 = vmatprep.subr.mxu0 0.0
  %6980 = vmatpush1.msra.mxu0 0.0
  %6981 = vmatprep.subr.mxu0 0.0
  %6982 = vmatpush1.msra.mxu0 0.0
  %6983 = vmatprep.subr.mxu0 0.0
  %6984 = vmatpush1.msra.mxu0 0.0
  %6985 = vmatprep.subr.mxu0 0.0
  %6986 = vmatpush1.msra.mxu0 %v6957
  %6987 = vmatprep.subr.mxu0 0.0
  %6988 = vmatpush1.msra.mxu0 %v6956
  %6989 = vmatprep.subr.mxu0 0.0
  %6990 = vmatpush1.msra.mxu0 %v6955
  %6991 = vmatprep.subr.mxu0 0.0
  %6992 = vmatpush1.msra.mxu0 %v6954
  %6993 = vmatprep.subr.mxu0 0.0
  %6994 = vmatpush2.msra.mxu0 0.0
  %6995 = vmatprep.subr.mxu0 0.0
  %6996 = vmatpush2.msra.mxu0 0.0
  %6997 = vmatprep.subr.mxu0 0.0
  %6998 = vmatpush2.msra.mxu0 0.0
  %6999 = vmatprep.subr.mxu0 0.0
  %7000 = vmatpush2.msra.mxu0 0.0
  %7001 = vmatprep.subr.mxu0 0.0
  %7002 = vmatpush2.msra.mxu0 0.0
  %7003 = vmatprep.subr.mxu0 0.0
  %7004 = vmatpush2.msra.mxu0 0.0
  %7005 = vmatprep.subr.mxu0 0.0
  %7006 = vmatpush2.msra.mxu0 0.0
  %7007 = vmatprep.subr.mxu0 0.0
  %7008 = vmatpush2.msra.mxu0 0.0
  %7009 = vmatprep.subr.mxu0 0.0
  %7010 = vmatpush2.msra.mxu0 0.0
  %7011 = vmatprep.subr.mxu0 0.0
  %7012 = vmatpush2.msra.mxu0 0.0
  %7013 = vmatprep.subr.mxu0 0.0
  %7014 = vmatpush2.msra.mxu0 0.0
  %7015 = vmatprep.subr.mxu0 0.0
  %7016 = vmatpush2.msra.mxu0 0.0
  %7017 = vmatprep.subr.mxu0 0.0
  %7018 = vmatpush2.msra.mxu0 0.0
  %7019 = vmatprep.subr.mxu0 0.0
  %7020 = vmatpush2.msra.mxu0 0.0
  %7021 = vmatprep.subr.mxu0 0.0
  %7022 = vmatpush2.msra.mxu0 0.0
  %7023 = vmatprep.subr.mxu0 0.0
  %7024 = vmatpush2.msra.mxu0 0.0
  %7025 = vmatprep.mubr.f32.mxu0 0.0
  %7026 = vmatmul.mubr.f32.gmra.mxu0 %v6959
  %v7027 = vpop.f32.mrf.mxu0
  %v7028 = vadd.f32 0.0, %v7027
  %v7029 = vpop.f32.mrf.mxu0
  %7030 = vdwg.mxu0
  %v7031 = vadd.f32 %v6952, %v7028
  %vm7032 = vcmask 1041408
  %v7033 = vsel %vm7032, %v7031, 0.0
  %vm7034 = vcmask 523264
  %7035 = vst.msk [vmem:[%s8] sm:$0xff] %vm7034, %v7033
  // Predicated region
  $region34: #{encoder_forward.1} parent=0 // pred_check
    _
  $region35: #{encoder_forward.1} parent=0 // pred_check_branch
    %7037 = sbr.rel (0) target = $region37
  $region36: #{encoder_forward.1} parent=0 // pred_region
    _
  $region37: #{encoder_forward.1} parent=0 // pred_fallthru
    _
  // Predicated region
  $region38: #{encoder_forward.1} parent=0 // pred_check
    _
  $region39: #{encoder_forward.1} parent=0 // pred_check_branch
    %7039 = sbr.rel (0) target = $region41
  $region40: #{encoder_forward.1} parent=0 // pred_region
    _
  $region41: #{encoder_forward.1} parent=0 // pred_fallthru
    _

</llo_original>
